<compile_context>
chip_gen: v7x
topology: tpu7x:2x2x1
jax: 0.10.0
libtpu: 0.0.40
codegen_flags: <defaults>
</compile_context>

<pallas_src>
import jax
import jax.numpy as jnp
import numpy as np
from jax.experimental import pallas as pl
from jax.experimental.pallas import tpu as pltpu

EPS = 1e-5

# ---------------------------------------------------------------------------
# Parity bookkeeping (per spatial axis)
# ---------------------------------------------------------------------------
# A full-res output index o = 2*i + p reading source o + k, k in {-1,0,+1},
# lands on source (parity p', low-res shift delta):
#   p=0: k=-1 -> (1,-1)   k=0 -> (0,0)   k=+1 -> (1,0)
#   p=1: k=-1 -> (0, 0)   k=0 -> (1,0)   k=+1 -> (0,+1)
_PAIRS = ((0, 0), (1, 0), (0, 1), (1, -1))          # the 4 distinct (p', delta) slots
_PAIR_OF = {
    (0, -1): (1, -1), (0, 0): (0, 0), (0, 1): (1, 0),
    (1, -1): (0, 0), (1, 0): (1, 0), (1, 1): (0, 1),
}
# ConvTranspose3d(k=3,s=2,p=1,op=1): output o = 2*i + p uses kernel tap k with
# low-res source i + a:   p=0: (a=0, k=1)      p=1: (a=0, k=2), (a=1, k=0)
_DECONV_K = {(0, 0): 1, (1, 0): 2, (1, 1): 0}


def _lowres_tap_masks(D, H, W):
    """(27, D*H*W) 0/1 masks: low-res shift (dd,dh,dw) in {-1,0,1}^3 is in-bounds."""
    d = np.arange(D)[:, None, None]
    h = np.arange(H)[None, :, None]
    w = np.arange(W)[None, None, :]
    rows = []
    for dd in (-1, 0, 1):
        for dh in (-1, 0, 1):
            for dw in (-1, 0, 1):
                m = ((d + dd >= 0) & (d + dd < D) & (h + dh >= 0) & (h + dh < H)
                     & (w + dw >= 0) & (w + dw < W))
                rows.append(m.reshape(-1))
    return jnp.asarray(np.stack(rows).astype(np.float32))


# ---------------------------------------------------------------------------
# Host-side parameter preparation (PyTorch layouts -> folded, parity-blocked GEMMs)
# ---------------------------------------------------------------------------
def _fold_bn(gamma, beta, mean, var, conv_bias):
    scale = np.asarray(gamma) / np.sqrt(np.asarray(var) + EPS)
    bias = np.asarray(beta) + scale * (np.asarray(conv_bias) - np.asarray(mean))
    return scale, bias


def _deconv_parity_weight(wt, scale):
    """ConvTranspose3d weight (Cin, Cmid, 3,3,3) -> (8*Cmid, 8*Cin) GEMM weight.

    Rows = (output parity, out channel); cols = (low-res tap a in {0,1}^3, in ch).
    Folded BN scale is baked into the rows.
    """
    wt = np.asarray(wt)
    Cin, Cmid = wt.shape[0], wt.shape[1]
    wt = wt * np.asarray(scale)[None, :, None, None, None]
    W = np.zeros((8 * Cmid, 8 * Cin), np.float32)
    for pd in range(2):
        for ph in range(2):
            for pw in range(2):
                p = (pd * 2 + ph) * 2 + pw
                for ad in range(2):
                    for ah in range(2):
                        for aw in range(2):
                            if ((pd, ad) not in _DECONV_K or (ph, ah) not in _DECONV_K
                                    or (pw, aw) not in _DECONV_K):
                                continue
                            kd = _DECONV_K[(pd, ad)]
                            kh = _DECONV_K[(ph, ah)]
                            kw = _DECONV_K[(pw, aw)]
                            a = (ad * 2 + ah) * 2 + aw
                            W[p * Cmid:(p + 1) * Cmid,
                              a * Cin:(a + 1) * Cin] = wt[:, :, kd, kh, kw].T
    return jnp.asarray(W, jnp.bfloat16)


def _conv_parity_weight(w, scale):
    """Conv3d weight (Cout, Cin_tot, 3,3,3) -> (8*Cout, 64*Cin_tot) GEMM weight.

    Rows = (output parity, out channel); cols = (64-slot tap-bank index, in ch).
    27/64 of the column blocks are used per output-parity row block; rest are 0.
    """
    w = np.asarray(w)
    Cout, Cin_tot = w.shape[0], w.shape[1]
    w = w * np.asarray(scale)[:, None, None, None, None]
    W = np.zeros((8 * Cout, 64 * Cin_tot), np.float32)
    for pd in range(2):
        for ph in range(2):
            for pw in range(2):
                p = (pd * 2 + ph) * 2 + pw
                for kd in range(3):
                    for kh in range(3):
                        for kw in range(3):
                            td = _PAIRS.index(_PAIR_OF[(pd, kd - 1)])
                            th = _PAIRS.index(_PAIR_OF[(ph, kh - 1)])
                            tw = _PAIRS.index(_PAIR_OF[(pw, kw - 1)])
                            t = (td * 4 + th) * 4 + tw
                            W[p * Cout:(p + 1) * Cout,
                              t * Cin_tot:(t + 1) * Cin_tot] = w[:, :, kd, kh, kw]
    return jnp.asarray(W, jnp.bfloat16)


def prepare_params(raw):
    Cmid = raw["wt"].shape[1]
    st, bt = _fold_bn(raw["gt"], raw["bnt"], raw["mt"], raw["vt"], raw["bt"])
    s1, b1 = _fold_bn(raw["g1"], raw["bn1"], raw["m1"], raw["v1"], raw["b1"])
    s2, b2 = _fold_bn(raw["g2"], raw["bn2"], raw["m2"], raw["v2"], raw["b2"])
    vec = lambda b: jnp.asarray(np.tile(b, 8).reshape(8 * Cmid, 1).astype(np.float32))
    return {
        "wt_pg": _deconv_parity_weight(raw["wt"], st),
        "w1_pg": _conv_parity_weight(raw["w1"], s1),
        "w2_pg": _conv_parity_weight(raw["w2"], s2),
        "bt_vec": vec(bt), "b1_vec": vec(b1), "b2_vec": vec(b2),
    }


# ---------------------------------------------------------------------------
# Fused UpBlock kernel
# ---------------------------------------------------------------------------
def _make_upblock_kernel(Cin, Cmid, D, H, W):
    S1 = D * H * W
    HW = H * W
    Cg = 2 * Cmid                     # stage-2 concat channel count (up ++ skip)

    # 8 low-res taps of the sub-pixel transposed conv (offsets a in {0,1}^3).
    taps8 = [(ad, ah, aw) for ad in (0, 1) for ah in (0, 1) for aw in (0, 1)]
    # 64 tap-bank slots for the parity-blocked 3x3x3 convs.
    taps64 = [(_PAIRS[td], _PAIRS[th], _PAIRS[tw])
              for td in range(4) for th in range(4) for tw in range(4)]

    def mrow(dd, dh, dw):
        return (dd + 1) * 9 + (dh + 1) * 3 + (dw + 1)

    def kernel(x_ref, skip_ref, wt_ref, w1_ref, w2_ref,
               bt_ref, b1_ref, b2_ref, mask_ref, o_ref, bank_ref):

        def shifted(src, dd, dh, dw):
            """out[:, s] = src[:, s + delta], zeroed where the tap is out of bounds."""
            if (dd, dh, dw) == (0, 0, 0):
                return src
            delta = dd * HW + dh * W + dw
            # Static-shift jnp.roll == two static lane slices + concat under Mosaic;
            # pltpu.roll(src, -delta, 1) is the native XLU rotate equivalent.
            return jnp.roll(src, -delta, axis=1) * mask_ref[mrow(dd, dh, dw), :]

        def gemm_bias_relu(w_ref, k_rows, bias_ref):
            acc = jnp.dot(w_ref[...], bank_ref[0:k_rows, :],
                          preferred_element_type=jnp.float32)
            return jnp.maximum(acc + bias_ref[...], 0.0)

        # ---- Stage 1: ConvTranspose3d via sub-pixel decomposition (no zero-insert).
        x = x_ref[0]                                               # (Cin, S1) f32
        for a, (ad, ah, aw) in enumerate(taps8):
            bank_ref[a * Cin:(a + 1) * Cin, :] = (
                shifted(x, ad, ah, aw).astype(jnp.bfloat16))
        up = gemm_bias_relu(wt_ref, 8 * Cin, bt_ref)               # (8*Cmid, S1), rows (p, co)

        # ---- Stage 2: concat([up, skip], channel) -> 3x3x3 conv, parity-blocked.
        skip = skip_ref[0]                                         # (8*Cmid, S1) f32
        for t, ((pd, dd), (ph, dh), (pw, dw)) in enumerate(taps64):
            p_src = (pd * 2 + ph) * 2 + pw
            r = p_src * Cmid
            bank_ref[t * Cg:t * Cg + Cmid, :] = (
                shifted(up[r:r + Cmid, :], dd, dh, dw).astype(jnp.bfloat16))
            bank_ref[t * Cg + Cmid:(t + 1) * Cg, :] = (
                shifted(skip[r:r + Cmid, :], dd, dh, dw).astype(jnp.bfloat16))
        h1 = gemm_bias_relu(w1_ref, 64 * Cg, b1_ref)               # (8*Cmid, S1)

        # ---- Stage 3: 3x3x3 conv, parity-blocked.
        for t, ((pd, dd), (ph, dh), (pw, dw)) in enumerate(taps64):
            p_src = (pd * 2 + ph) * 2 + pw
            r = p_src * Cmid
            bank_ref[t * Cmid:(t + 1) * Cmid, :] = (
                shifted(h1[r:r + Cmid, :], dd, dh, dw).astype(jnp.bfloat16))
        h2 = gemm_bias_relu(w2_ref, 64 * Cmid, b2_ref)             # (8*Cmid, S1)

        o_ref[0] = h2.astype(o_ref.dtype)

    return kernel


def upblock_forward(x, down, kp):
    """x: (N, Cin, D, H, W); down: (N, Cmid, 2D, 2H, 2W).  NCDHW in / NCDHW out."""
    N, Cin, D, H, W = x.shape
    Cmid = down.shape[1]
    S1 = D * H * W

    x_flat = x.reshape(N, Cin, S1)                         # free contiguous reshape
    # Parity-blocked skip: rows (pd, ph, pw, c), lanes = low-res flat (d, h, w).
    skip_pb = down.reshape(N, Cmid, D, 2, H, 2, W, 2)
    skip_pb = skip_pb.transpose(0, 3, 5, 7, 1, 2, 4, 6).reshape(N, 8 * Cmid, S1)

    masks = _lowres_tap_masks(D, H, W)                     # (27, S1) boundary masks
    kernel = _make_upblock_kernel(Cin, Cmid, D, H, W)
    bank_rows = max(8 * Cin, 128 * Cmid)                   # stage-2 K = 64 * 2*Cmid

    flops = 2 * N * S1 * (8 * Cmid * 8 * Cin + 8 * Cmid * 64 * 2 * Cmid
                          + 8 * Cmid * 64 * Cmid)
    bytes_accessed = 4 * (x_flat.size + skip_pb.size + N * 8 * Cmid * S1) + 2 * (
        kp["wt_pg"].size + kp["w1_pg"].size + kp["w2_pg"].size)

    def const_spec(a):
        return pl.BlockSpec(a.shape, lambda n: (0,) * a.ndim)

    out_pb = pl.pallas_call(
        kernel,
        out_shape=jax.ShapeDtypeStruct((N, 8 * Cmid, S1), jnp.float32),
        grid=(N,),
        in_specs=[
            pl.BlockSpec((1, Cin, S1), lambda n: (n, 0, 0)),
            pl.BlockSpec((1, 8 * Cmid, S1), lambda n: (n, 0, 0)),
            const_spec(kp["wt_pg"]),
            const_spec(kp["w1_pg"]),
            const_spec(kp["w2_pg"]),
            const_spec(kp["bt_vec"]),
            const_spec(kp["b1_vec"]),
            const_spec(kp["b2_vec"]),
            const_spec(masks),
        ],
        out_specs=pl.BlockSpec((1, 8 * Cmid, S1), lambda n: (n, 0, 0)),
        scratch_shapes=[pltpu.VMEM((bank_rows, S1), jnp.bfloat16)],
        compiler_params=pltpu.CompilerParams(
            dimension_semantics=("parallel",),
            vmem_limit_bytes=32 * 1024 * 1024),
        cost_estimate=pl.CostEstimate(flops=flops, transcendentals=0,
                                      bytes_accessed=bytes_accessed),
    )(x_flat, skip_pb, kp["wt_pg"], kp["w1_pg"], kp["w2_pg"],
      kp["bt_vec"], kp["b1_vec"], kp["b2_vec"], masks)

    # Un-permute parity blocks: rows (pd, ph, pw, c) + low-res lanes -> NCDHW @ 2x.
    out = out_pb.reshape(N, 2, 2, 2, Cmid, D, H, W)
    out = out.transpose(0, 4, 5, 1, 6, 2, 7, 3).reshape(N, Cmid, 2 * D, 2 * H, 2 * W)
    return out


# ---------------------------------------------------------------------------
# Deterministic test parameters + pure-JAX reference (eval-mode BN), NCDHW
# ---------------------------------------------------------------------------
def _init_raw_params(key, Cin, Cmid):
    ks = jax.random.split(key, 18)
    nrm = lambda k, s: 0.1 * jax.random.normal(k, s, jnp.float32)
    uni = lambda k, s: jax.random.uniform(k, s, jnp.float32, 0.5, 1.5)
    return {
        "wt": nrm(ks[0], (Cin, Cmid, 3, 3, 3)), "bt": nrm(ks[1], (Cmid,)),
        "gt": 1.0 + nrm(ks[2], (Cmid,)), "bnt": nrm(ks[3], (Cmid,)),
        "mt": nrm(ks[4], (Cmid,)), "vt": uni(ks[5], (Cmid,)),
        "w1": nrm(ks[6], (Cmid, 2 * Cmid, 3, 3, 3)), "b1": nrm(ks[7], (Cmid,)),
        "g1": 1.0 + nrm(ks[8], (Cmid,)), "bn1": nrm(ks[9], (Cmid,)),
        "m1": nrm(ks[10], (Cmid,)), "v1": uni(ks[11], (Cmid,)),
        "w2": nrm(ks[12], (Cmid, Cmid, 3, 3, 3)), "b2": nrm(ks[13], (Cmid,)),
        "g2": 1.0 + nrm(ks[14], (Cmid,)), "bn2": nrm(ks[15], (Cmid,)),
        "m2": nrm(ks[16], (Cmid,)), "v2": uni(ks[17], (Cmid,)),
    }


def _ref_upblock(x, down, raw):
    hi = jax.lax.Precision.HIGHEST
    dn = ("NCDHW", "OIDHW", "NCDHW")

    def bn_relu(y, g, b, m, v):
        s = g / jnp.sqrt(v + EPS)
        y = y * s.reshape(1, -1, 1, 1, 1) + (b - m * s).reshape(1, -1, 1, 1, 1)
        return jnp.maximum(y, 0.0)

    # ConvTranspose3d(k=3, s=2, p=1, output_padding=1) as fractionally-strided conv.
    wc = jnp.swapaxes(jnp.flip(raw["wt"], axis=(2, 3, 4)), 0, 1)
    y = jax.lax.conv_general_dilated(
        x, wc, window_strides=(1, 1, 1), padding=[(1, 2)] * 3,
        lhs_dilation=(2, 2, 2), dimension_numbers=dn, precision=hi)
    y = bn_relu(y + raw["bt"].reshape(1, -1, 1, 1, 1),
                raw["gt"], raw["bnt"], raw["mt"], raw["vt"])

    c = jnp.concatenate([y, down], axis=1)
    h = jax.lax.conv_general_dilated(c, raw["w1"], (1, 1, 1), [(1, 1)] * 3,
                                     dimension_numbers=dn, precision=hi)
    h = bn_relu(h + raw["b1"].reshape(1, -1, 1, 1, 1),
                raw["g1"], raw["bn1"], raw["m1"], raw["v1"])

    h2 = jax.lax.conv_general_dilated(h, raw["w2"], (1, 1, 1), [(1, 1)] * 3,
                                      dimension_numbers=dn, precision=hi)
    h2 = bn_relu(h2 + raw["b2"].reshape(1, -1, 1, 1, 1),
                 raw["g2"], raw["bn2"], raw["m2"], raw["v2"])
    return h2


if __name__ == "__main__":
    key = jax.random.PRNGKey(0)
    kx, kd, kp_key = jax.random.split(key, 3)

    # UpBlock(input_data=8, output_data=8): x is the low-res feature map; the skip
    # (down_features) is at 2x spatial resolution with output_data channels.
    N, Cin, Cmid = 2, 8, 8
    D = H = W = 4
    x = jax.random.normal(kx, (N, Cin, D, H, W), jnp.float32)
    down = jax.random.normal(kd, (N, Cmid, 2 * D, 2 * H, 2 * W), jnp.float32)

    raw = _init_raw_params(kp_key, Cin, Cmid)
    kparams = prepare_params(raw)

    out = jax.block_until_ready(jax.jit(upblock_forward)(x, down, kparams))
    ref = jax.block_until_ready(_ref_upblock(x, down, raw))

    assert out.shape == (N, Cmid, 2 * D, 2 * H, 2 * W), out.shape
    # bf16 tap bank / weights (f32 accumulation) vs. an f32 HIGHEST-precision XLA
    # reference: expect ~1% relative (Frobenius) error at these magnitudes; any
    # structural/tap-mapping bug would be O(100%) and far above these thresholds.
    out_np, ref_np = np.asarray(out), np.asarray(ref)
    rel = np.linalg.norm(out_np - ref_np) / np.linalg.norm(ref_np)
    max_abs = np.max(np.abs(out_np - ref_np))
    assert rel < 2.5e-2, f"relative error too large: {rel}"
    assert max_abs < 2.5e-1, f"max abs error too large: {max_abs}"
    print("KERNEL_OK")
</pallas_src>

<mosaic_0001>
module attributes {stable_mosaic.version = 11 : i64} {
  func.func @kernel(%arg0: i32, %arg1: memref<1x8x64xf32, #tpu.memory_space<vmem>>, %arg2: memref<1x64x64xf32, #tpu.memory_space<vmem>>, %arg3: memref<64x64xbf16, #tpu.memory_space<vmem>>, %arg4: memref<64x1024xbf16, #tpu.memory_space<vmem>>, %arg5: memref<64x512xbf16, #tpu.memory_space<vmem>>, %arg6: memref<64x1xf32, #tpu.memory_space<vmem>>, %arg7: memref<64x1xf32, #tpu.memory_space<vmem>>, %arg8: memref<64x1xf32, #tpu.memory_space<vmem>>, %arg9: memref<27x64xf32, #tpu.memory_space<vmem>>, %arg10: memref<1x64x64xf32, #tpu.memory_space<vmem>>, %arg11: memref<1024x64xbf16, #tpu.memory_space<vmem>>) attributes {dimension_semantics = [#tpu.dimension_semantics<parallel>], iteration_bounds = array<i64: 2>, scalar_prefetch = 0 : i64, scratch_operands = 1 : i64, tpu.core_type = #tpu.core_type<tc>, window_params = [{transform_indices = @transform_0, window_bounds = array<i64: 1, 8, 64>}, {transform_indices = @transform_1, window_bounds = array<i64: 1, 64, 64>}, {pipeline_mode = #tpu.pipeline_mode<synchronous>, transform_indices = @transform_2, window_bounds = array<i64: 64, 64>}, {pipeline_mode = #tpu.pipeline_mode<synchronous>, transform_indices = @transform_3, window_bounds = array<i64: 64, 1024>}, {pipeline_mode = #tpu.pipeline_mode<synchronous>, transform_indices = @transform_4, window_bounds = array<i64: 64, 512>}, {pipeline_mode = #tpu.pipeline_mode<synchronous>, transform_indices = @transform_5, window_bounds = array<i64: 64, 1>}, {pipeline_mode = #tpu.pipeline_mode<synchronous>, transform_indices = @transform_6, window_bounds = array<i64: 64, 1>}, {pipeline_mode = #tpu.pipeline_mode<synchronous>, transform_indices = @transform_7, window_bounds = array<i64: 64, 1>}, {pipeline_mode = #tpu.pipeline_mode<synchronous>, transform_indices = @transform_8, window_bounds = array<i64: 27, 64>}, {transform_indices = @transform_9, window_bounds = array<i64: 1, 64, 64>}]} {
    %c0 = arith.constant 0 : index
    %c0_0 = arith.constant 0 : index
    %c0_1 = arith.constant 0 : index
    %0 = vector.load %arg1[%c0, %c0_0, %c0_1] : memref<1x8x64xf32, #tpu.memory_space<vmem>>, vector<1x8x64xf32>
    %1 = vector.shape_cast %0 : vector<1x8x64xf32> to vector<8x64xf32>
    %2 = arith.truncf %1 : vector<8x64xf32> to vector<8x64xbf16>
    %c0_2 = arith.constant 0 : index
    %c0_3 = arith.constant 0 : index
    %3 = vector.load %arg11[%c0_2, %c0_3] : memref<1024x64xbf16, #tpu.memory_space<vmem>>, vector<8x64xbf16>
    tpu.vector_store %arg11[%c0_2, %c0_3], %2 {strides = array<i32>} : memref<1024x64xbf16, #tpu.memory_space<vmem>>, vector<8x64xbf16>,
    %4 = vector.extract_strided_slice %1 {offsets = [0, 1], sizes = [8, 63], strides = [1, 1]} : vector<8x64xf32> to vector<8x63xf32>
    %5 = vector.extract_strided_slice %1 {offsets = [0, 0], sizes = [8, 1], strides = [1, 1]} : vector<8x64xf32> to vector<8x1xf32>
    %6 = tpu.concatenate %4, %5 in 1 : vector<8x63xf32>, vector<8x1xf32> -> vector<8x64xf32>
    %c14 = arith.constant 14 : index
    %c0_4 = arith.constant 0 : index
    %7 = vector.load %arg9[%c14, %c0_4] : memref<27x64xf32, #tpu.memory_space<vmem>>, vector<1x64xf32>
    %8 = vector.shape_cast %7 : vector<1x64xf32> to vector<64xf32>
    %9 = vector.shape_cast %8 : vector<64xf32> to vector<1x64xf32>
    %10 = vector.broadcast %9 : vector<1x64xf32> to vector<8x64xf32>
    %11 = arith.mulf %6, %10 : vector<8x64xf32>
    %12 = arith.truncf %11 : vector<8x64xf32> to vector<8x64xbf16>
    %c8 = arith.constant 8 : index
    %c0_5 = arith.constant 0 : index
    %13 = vector.load %arg11[%c8, %c0_5] : memref<1024x64xbf16, #tpu.memory_space<vmem>>, vector<8x64xbf16>
    tpu.vector_store %arg11[%c8, %c0_5], %12 {strides = array<i32>} : memref<1024x64xbf16, #tpu.memory_space<vmem>>, vector<8x64xbf16>,
    %14 = vector.extract_strided_slice %1 {offsets = [0, 4], sizes = [8, 60], strides = [1, 1]} : vector<8x64xf32> to vector<8x60xf32>
    %15 = vector.extract_strided_slice %1 {offsets = [0, 0], sizes = [8, 4], strides = [1, 1]} : vector<8x64xf32> to vector<8x4xf32>
    %16 = tpu.concatenate %14, %15 in 1 : vector<8x60xf32>, vector<8x4xf32> -> vector<8x64xf32>
    %c16 = arith.constant 16 : index
    %c0_6 = arith.constant 0 : index
    %17 = vector.load %arg9[%c16, %c0_6] : memref<27x64xf32, #tpu.memory_space<vmem>>, vector<1x64xf32>
    %18 = vector.shape_cast %17 : vector<1x64xf32> to vector<64xf32>
    %19 = vector.shape_cast %18 : vector<64xf32> to vector<1x64xf32>
    %20 = vector.broadcast %19 : vector<1x64xf32> to vector<8x64xf32>
    %21 = arith.mulf %16, %20 : vector<8x64xf32>
    %22 = arith.truncf %21 : vector<8x64xf32> to vector<8x64xbf16>
    %c16_7 = arith.constant 16 : index
    %c0_8 = arith.constant 0 : index
    %23 = vector.load %arg11[%c16_7, %c0_8] : memref<1024x64xbf16, #tpu.memory_space<vmem>>, vector<8x64xbf16>
    tpu.vector_store %arg11[%c16_7, %c0_8], %22 {strides = array<i32>} : memref<1024x64xbf16, #tpu.memory_space<vmem>>, vector<8x64xbf16>,
    %24 = vector.extract_strided_slice %1 {offsets = [0, 5], sizes = [8, 59], strides = [1, 1]} : vector<8x64xf32> to vector<8x59xf32>
    %25 = vector.extract_strided_slice %1 {offsets = [0, 0], sizes = [8, 5], strides = [1, 1]} : vector<8x64xf32> to vector<8x5xf32>
    %26 = tpu.concatenate %24, %25 in 1 : vector<8x59xf32>, vector<8x5xf32> -> vector<8x64xf32>
    %c17 = arith.constant 17 : index
    %c0_9 = arith.constant 0 : index
    %27 = vector.load %arg9[%c17, %c0_9] : memref<27x64xf32, #tpu.memory_space<vmem>>, vector<1x64xf32>
    %28 = vector.shape_cast %27 : vector<1x64xf32> to vector<64xf32>
    %29 = vector.shape_cast %28 : vector<64xf32> to vector<1x64xf32>
    %30 = vector.broadcast %29 : vector<1x64xf32> to vector<8x64xf32>
    %31 = arith.mulf %26, %30 : vector<8x64xf32>
    %32 = arith.truncf %31 : vector<8x64xf32> to vector<8x64xbf16>
    %c24 = arith.constant 24 : index
    %c0_10 = arith.constant 0 : index
    %33 = vector.load %arg11[%c24, %c0_10] : memref<1024x64xbf16, #tpu.memory_space<vmem>>, vector<8x64xbf16>
    tpu.vector_store %arg11[%c24, %c0_10], %32 {strides = array<i32>} : memref<1024x64xbf16, #tpu.memory_space<vmem>>, vector<8x64xbf16>,
    %34 = vector.extract_strided_slice %1 {offsets = [0, 16], sizes = [8, 48], strides = [1, 1]} : vector<8x64xf32> to vector<8x48xf32>
    %35 = vector.extract_strided_slice %1 {offsets = [0, 0], sizes = [8, 16], strides = [1, 1]} : vector<8x64xf32> to vector<8x16xf32>
    %36 = tpu.concatenate %34, %35 in 1 : vector<8x48xf32>, vector<8x16xf32> -> vector<8x64xf32>
    %c22 = arith.constant 22 : index
    %c0_11 = arith.constant 0 : index
    %37 = vector.load %arg9[%c22, %c0_11] : memref<27x64xf32, #tpu.memory_space<vmem>>, vector<1x64xf32>
    %38 = vector.shape_cast %37 : vector<1x64xf32> to vector<64xf32>
    %39 = vector.shape_cast %38 : vector<64xf32> to vector<1x64xf32>
    %40 = vector.broadcast %39 : vector<1x64xf32> to vector<8x64xf32>
    %41 = arith.mulf %36, %40 : vector<8x64xf32>
    %42 = arith.truncf %41 : vector<8x64xf32> to vector<8x64xbf16>
    %c32 = arith.constant 32 : index
    %c0_12 = arith.constant 0 : index
    %43 = vector.load %arg11[%c32, %c0_12] : memref<1024x64xbf16, #tpu.memory_space<vmem>>, vector<8x64xbf16>
    tpu.vector_store %arg11[%c32, %c0_12], %42 {strides = array<i32>} : memref<1024x64xbf16, #tpu.memory_space<vmem>>, vector<8x64xbf16>,
    %44 = vector.extract_strided_slice %1 {offsets = [0, 17], sizes = [8, 47], strides = [1, 1]} : vector<8x64xf32> to vector<8x47xf32>
    %45 = vector.extract_strided_slice %1 {offsets = [0, 0], sizes = [8, 17], strides = [1, 1]} : vector<8x64xf32> to vector<8x17xf32>
    %46 = tpu.concatenate %44, %45 in 1 : vector<8x47xf32>, vector<8x17xf32> -> vector<8x64xf32>
    %c23 = arith.constant 23 : index
    %c0_13 = arith.constant 0 : index
    %47 = vector.load %arg9[%c23, %c0_13] : memref<27x64xf32, #tpu.memory_space<vmem>>, vector<1x64xf32>
    %48 = vector.shape_cast %47 : vector<1x64xf32> to vector<64xf32>
    %49 = vector.shape_cast %48 : vector<64xf32> to vector<1x64xf32>
    %50 = vector.broadcast %49 : vector<1x64xf32> to vector<8x64xf32>
    %51 = arith.mulf %46, %50 : vector<8x64xf32>
    %52 = arith.truncf %51 : vector<8x64xf32> to vector<8x64xbf16>
    %c40 = arith.constant 40 : index
    %c0_14 = arith.constant 0 : index
    %53 = vector.load %arg11[%c40, %c0_14] : memref<1024x64xbf16, #tpu.memory_space<vmem>>, vector<8x64xbf16>
    tpu.vector_store %arg11[%c40, %c0_14], %52 {strides = array<i32>} : memref<1024x64xbf16, #tpu.memory_space<vmem>>, vector<8x64xbf16>,
    %54 = vector.extract_strided_slice %1 {offsets = [0, 20], sizes = [8, 44], strides = [1, 1]} : vector<8x64xf32> to vector<8x44xf32>
    %55 = vector.extract_strided_slice %1 {offsets = [0, 0], sizes = [8, 20], strides = [1, 1]} : vector<8x64xf32> to vector<8x20xf32>
    %56 = tpu.concatenate %54, %55 in 1 : vector<8x44xf32>, vector<8x20xf32> -> vector<8x64xf32>
    %c25 = arith.constant 25 : index
    %c0_15 = arith.constant 0 : index
    %57 = vector.load %arg9[%c25, %c0_15] : memref<27x64xf32, #tpu.memory_space<vmem>>, vector<1x64xf32>
    %58 = vector.shape_cast %57 : vector<1x64xf32> to vector<64xf32>
    %59 = vector.shape_cast %58 : vector<64xf32> to vector<1x64xf32>
    %60 = vector.broadcast %59 : vector<1x64xf32> to vector<8x64xf32>
    %61 = arith.mulf %56, %60 : vector<8x64xf32>
    %62 = arith.truncf %61 : vector<8x64xf32> to vector<8x64xbf16>
    %c48 = arith.constant 48 : index
    %c0_16 = arith.constant 0 : index
    %63 = vector.load %arg11[%c48, %c0_16] : memref<1024x64xbf16, #tpu.memory_space<vmem>>, vector<8x64xbf16>
    tpu.vector_store %arg11[%c48, %c0_16], %62 {strides = array<i32>} : memref<1024x64xbf16, #tpu.memory_space<vmem>>, vector<8x64xbf16>,
    %64 = vector.extract_strided_slice %1 {offsets = [0, 21], sizes = [8, 43], strides = [1, 1]} : vector<8x64xf32> to vector<8x43xf32>
    %65 = vector.extract_strided_slice %1 {offsets = [0, 0], sizes = [8, 21], strides = [1, 1]} : vector<8x64xf32> to vector<8x21xf32>
    %66 = tpu.concatenate %64, %65 in 1 : vector<8x43xf32>, vector<8x21xf32> -> vector<8x64xf32>
    %c26 = arith.constant 26 : index
    %c0_17 = arith.constant 0 : index
    %67 = vector.load %arg9[%c26, %c0_17] : memref<27x64xf32, #tpu.memory_space<vmem>>, vector<1x64xf32>
    %68 = vector.shape_cast %67 : vector<1x64xf32> to vector<64xf32>
    %69 = vector.shape_cast %68 : vector<64xf32> to vector<1x64xf32>
    %70 = vector.broadcast %69 : vector<1x64xf32> to vector<8x64xf32>
    %71 = arith.mulf %66, %70 : vector<8x64xf32>
    %72 = arith.truncf %71 : vector<8x64xf32> to vector<8x64xbf16>
    %c56 = arith.constant 56 : index
    %c0_18 = arith.constant 0 : index
    %73 = vector.load %arg11[%c56, %c0_18] : memref<1024x64xbf16, #tpu.memory_space<vmem>>, vector<8x64xbf16>
    tpu.vector_store %arg11[%c56, %c0_18], %72 {strides = array<i32>} : memref<1024x64xbf16, #tpu.memory_space<vmem>>, vector<8x64xbf16>,
    %c0_19 = arith.constant 0 : index
    %c0_20 = arith.constant 0 : index
    %74 = vector.load %arg3[%c0_19, %c0_20] : memref<64x64xbf16, #tpu.memory_space<vmem>>, vector<64x64xbf16>
    %c0_21 = arith.constant 0 : index
    %c0_22 = arith.constant 0 : index
    %75 = vector.load %arg11[%c0_21, %c0_22] : memref<1024x64xbf16, #tpu.memory_space<vmem>>, vector<64x64xbf16>
    %cst = arith.constant dense<0.000000e+00> : vector<64x64xf32>
    %76 = tpu.matmul %74, %75, %cst {dimension_numbers = #tpu.dot_dimension_numbers<[1], [0], [0], [1], [0, 0, 1, 1], [], []>} : vector<64x64xbf16>, vector<64x64xbf16>, vector<64x64xf32> -> vector<64x64xf32>
    %c0_23 = arith.constant 0 : index
    %c0_24 = arith.constant 0 : index
    %77 = vector.load %arg6[%c0_23, %c0_24] : memref<64x1xf32, #tpu.memory_space<vmem>>, vector<64x1xf32>
    %78 = vector.broadcast %77 : vector<64x1xf32> to vector<64x64xf32>
    %79 = arith.addf %76, %78 : vector<64x64xf32>
    %cst_25 = arith.constant 0.000000e+00 : f32
    %80 = vector.broadcast %cst_25 : f32 to vector<64x64xf32>
    %81 = arith.maximumf %79, %80 : vector<64x64xf32>
    %c0_26 = arith.constant 0 : index
    %c0_27 = arith.constant 0 : index
    %c0_28 = arith.constant 0 : index
    %82 = vector.load %arg2[%c0_26, %c0_27, %c0_28] : memref<1x64x64xf32, #tpu.memory_space<vmem>>, vector<1x64x64xf32>
    %83 = vector.shape_cast %82 : vector<1x64x64xf32> to vector<64x64xf32>
    %84 = vector.extract_strided_slice %81 {offsets = [0, 0], sizes = [8, 64], strides = [1, 1]} : vector<64x64xf32> to vector<8x64xf32>
    %85 = arith.truncf %84 : vector<8x64xf32> to vector<8x64xbf16>
    %c0_29 = arith.constant 0 : index
    %c0_30 = arith.constant 0 : index
    %86 = vector.load %arg11[%c0_29, %c0_30] : memref<1024x64xbf16, #tpu.memory_space<vmem>>, vector<8x64xbf16>
    tpu.vector_store %arg11[%c0_29, %c0_30], %85 {strides = array<i32>} : memref<1024x64xbf16, #tpu.memory_space<vmem>>, vector<8x64xbf16>,
    %87 = vector.extract_strided_slice %83 {offsets = [0, 0], sizes = [8, 64], strides = [1, 1]} : vector<64x64xf32> to vector<8x64xf32>
    %88 = arith.truncf %87 : vector<8x64xf32> to vector<8x64xbf16>
    %c8_31 = arith.constant 8 : index
    %c0_32 = arith.constant 0 : index
    %89 = vector.load %arg11[%c8_31, %c0_32] : memref<1024x64xbf16, #tpu.memory_space<vmem>>, vector<8x64xbf16>
    tpu.vector_store %arg11[%c8_31, %c0_32], %88 {strides = array<i32>} : memref<1024x64xbf16, #tpu.memory_space<vmem>>, vector<8x64xbf16>,
    %90 = vector.extract_strided_slice %81 {offsets = [8, 0], sizes = [8, 64], strides = [1, 1]} : vector<64x64xf32> to vector<8x64xf32>
    %91 = arith.truncf %90 : vector<8x64xf32> to vector<8x64xbf16>
    %c16_33 = arith.constant 16 : index
    %c0_34 = arith.constant 0 : index
    %92 = vector.load %arg11[%c16_33, %c0_34] : memref<1024x64xbf16, #tpu.memory_space<vmem>>, vector<8x64xbf16>
    tpu.vector_store %arg11[%c16_33, %c0_34], %91 {strides = array<i32>} : memref<1024x64xbf16, #tpu.memory_space<vmem>>, vector<8x64xbf16>,
    %93 = vector.extract_strided_slice %83 {offsets = [8, 0], sizes = [8, 64], strides = [1, 1]} : vector<64x64xf32> to vector<8x64xf32>
    %94 = arith.truncf %93 : vector<8x64xf32> to vector<8x64xbf16>
    %c24_35 = arith.constant 24 : index
    %c0_36 = arith.constant 0 : index
    %95 = vector.load %arg11[%c24_35, %c0_36] : memref<1024x64xbf16, #tpu.memory_space<vmem>>, vector<8x64xbf16>
    tpu.vector_store %arg11[%c24_35, %c0_36], %94 {strides = array<i32>} : memref<1024x64xbf16, #tpu.memory_space<vmem>>, vector<8x64xbf16>,
    %96 = vector.extract_strided_slice %81 {offsets = [0, 0], sizes = [8, 64], strides = [1, 1]} : vector<64x64xf32> to vector<8x64xf32>
    %97 = vector.extract_strided_slice %96 {offsets = [0, 1], sizes = [8, 63], strides = [1, 1]} : vector<8x64xf32> to vector<8x63xf32>
    %98 = vector.extract_strided_slice %96 {offsets = [0, 0], sizes = [8, 1], strides = [1, 1]} : vector<8x64xf32> to vector<8x1xf32>
    %99 = tpu.concatenate %97, %98 in 1 : vector<8x63xf32>, vector<8x1xf32> -> vector<8x64xf32>
    %c14_37 = arith.constant 14 : index
    %c0_38 = arith.constant 0 : index
    %100 = vector.load %arg9[%c14_37, %c0_38] : memref<27x64xf32, #tpu.memory_space<vmem>>, vector<1x64xf32>
    %101 = vector.shape_cast %100 : vector<1x64xf32> to vector<64xf32>
    %102 = vector.shape_cast %101 : vector<64xf32> to vector<1x64xf32>
    %103 = vector.broadcast %102 : vector<1x64xf32> to vector<8x64xf32>
    %104 = arith.mulf %99, %103 : vector<8x64xf32>
    %105 = arith.truncf %104 : vector<8x64xf32> to vector<8x64xbf16>
    %c32_39 = arith.constant 32 : index
    %c0_40 = arith.constant 0 : index
    %106 = vector.load %arg11[%c32_39, %c0_40] : memref<1024x64xbf16, #tpu.memory_space<vmem>>, vector<8x64xbf16>
    tpu.vector_store %arg11[%c32_39, %c0_40], %105 {strides = array<i32>} : memref<1024x64xbf16, #tpu.memory_space<vmem>>, vector<8x64xbf16>,
    %107 = vector.extract_strided_slice %83 {offsets = [0, 0], sizes = [8, 64], strides = [1, 1]} : vector<64x64xf32> to vector<8x64xf32>
    %108 = vector.extract_strided_slice %107 {offsets = [0, 1], sizes = [8, 63], strides = [1, 1]} : vector<8x64xf32> to vector<8x63xf32>
    %109 = vector.extract_strided_slice %107 {offsets = [0, 0], sizes = [8, 1], strides = [1, 1]} : vector<8x64xf32> to vector<8x1xf32>
    %110 = tpu.concatenate %108, %109 in 1 : vector<8x63xf32>, vector<8x1xf32> -> vector<8x64xf32>
    %c14_41 = arith.constant 14 : index
    %c0_42 = arith.constant 0 : index
    %111 = vector.load %arg9[%c14_41, %c0_42] : memref<27x64xf32, #tpu.memory_space<vmem>>, vector<1x64xf32>
    %112 = vector.shape_cast %111 : vector<1x64xf32> to vector<64xf32>
    %113 = vector.shape_cast %112 : vector<64xf32> to vector<1x64xf32>
    %114 = vector.broadcast %113 : vector<1x64xf32> to vector<8x64xf32>
    %115 = arith.mulf %110, %114 : vector<8x64xf32>
    %116 = arith.truncf %115 : vector<8x64xf32> to vector<8x64xbf16>
    %c40_43 = arith.constant 40 : index
    %c0_44 = arith.constant 0 : index
    %117 = vector.load %arg11[%c40_43, %c0_44] : memref<1024x64xbf16, #tpu.memory_space<vmem>>, vector<8x64xbf16>
    tpu.vector_store %arg11[%c40_43, %c0_44], %116 {strides = array<i32>} : memref<1024x64xbf16, #tpu.memory_space<vmem>>, vector<8x64xbf16>,
    %118 = vector.extract_strided_slice %81 {offsets = [8, 0], sizes = [8, 64], strides = [1, 1]} : vector<64x64xf32> to vector<8x64xf32>
    %119 = vector.extract_strided_slice %118 {offsets = [0, 63], sizes = [8, 1], strides = [1, 1]} : vector<8x64xf32> to vector<8x1xf32>
    %120 = vector.extract_strided_slice %118 {offsets = [0, 0], sizes = [8, 63], strides = [1, 1]} : vector<8x64xf32> to vector<8x63xf32>
    %121 = tpu.concatenate %119, %120 in 1 : vector<8x1xf32>, vector<8x63xf32> -> vector<8x64xf32>
    %c12 = arith.constant 12 : index
    %c0_45 = arith.constant 0 : index
    %122 = vector.load %arg9[%c12, %c0_45] : memref<27x64xf32, #tpu.memory_space<vmem>>, vector<1x64xf32>
    %123 = vector.shape_cast %122 : vector<1x64xf32> to vector<64xf32>
    %124 = vector.shape_cast %123 : vector<64xf32> to vector<1x64xf32>
    %125 = vector.broadcast %124 : vector<1x64xf32> to vector<8x64xf32>
    %126 = arith.mulf %121, %125 : vector<8x64xf32>
    %127 = arith.truncf %126 : vector<8x64xf32> to vector<8x64xbf16>
    %c48_46 = arith.constant 48 : index
    %c0_47 = arith.constant 0 : index
    %128 = vector.load %arg11[%c48_46, %c0_47] : memref<1024x64xbf16, #tpu.memory_space<vmem>>, vector<8x64xbf16>
    tpu.vector_store %arg11[%c48_46, %c0_47], %127 {strides = array<i32>} : memref<1024x64xbf16, #tpu.memory_space<vmem>>, vector<8x64xbf16>,
    %129 = vector.extract_strided_slice %83 {offsets = [8, 0], sizes = [8, 64], strides = [1, 1]} : vector<64x64xf32> to vector<8x64xf32>
    %130 = vector.extract_strided_slice %129 {offsets = [0, 63], sizes = [8, 1], strides = [1, 1]} : vector<8x64xf32> to vector<8x1xf32>
    %131 = vector.extract_strided_slice %129 {offsets = [0, 0], sizes = [8, 63], strides = [1, 1]} : vector<8x64xf32> to vector<8x63xf32>
    %132 = tpu.concatenate %130, %131 in 1 : vector<8x1xf32>, vector<8x63xf32> -> vector<8x64xf32>
    %c12_48 = arith.constant 12 : index
    %c0_49 = arith.constant 0 : index
    %133 = vector.load %arg9[%c12_48, %c0_49] : memref<27x64xf32, #tpu.memory_space<vmem>>, vector<1x64xf32>
    %134 = vector.shape_cast %133 : vector<1x64xf32> to vector<64xf32>
    %135 = vector.shape_cast %134 : vector<64xf32> to vector<1x64xf32>
    %136 = vector.broadcast %135 : vector<1x64xf32> to vector<8x64xf32>
    %137 = arith.mulf %132, %136 : vector<8x64xf32>
    %138 = arith.truncf %137 : vector<8x64xf32> to vector<8x64xbf16>
    %c56_50 = arith.constant 56 : index
    %c0_51 = arith.constant 0 : index
    %139 = vector.load %arg11[%c56_50, %c0_51] : memref<1024x64xbf16, #tpu.memory_space<vmem>>, vector<8x64xbf16>
    tpu.vector_store %arg11[%c56_50, %c0_51], %138 {strides = array<i32>} : memref<1024x64xbf16, #tpu.memory_space<vmem>>, vector<8x64xbf16>,
    %140 = vector.extract_strided_slice %81 {offsets = [16, 0], sizes = [8, 64], strides = [1, 1]} : vector<64x64xf32> to vector<8x64xf32>
    %141 = arith.truncf %140 : vector<8x64xf32> to vector<8x64xbf16>
    %c64 = arith.constant 64 : index
    %c0_52 = arith.constant 0 : index
    %142 = vector.load %arg11[%c64, %c0_52] : memref<1024x64xbf16, #tpu.memory_space<vmem>>, vector<8x64xbf16>
    tpu.vector_store %arg11[%c64, %c0_52], %141 {strides = array<i32>} : memref<1024x64xbf16, #tpu.memory_space<vmem>>, vector<8x64xbf16>,
    %143 = vector.extract_strided_slice %83 {offsets = [16, 0], sizes = [8, 64], strides = [1, 1]} : vector<64x64xf32> to vector<8x64xf32>
    %144 = arith.truncf %143 : vector<8x64xf32> to vector<8x64xbf16>
    %c72 = arith.constant 72 : index
    %c0_53 = arith.constant 0 : index
    %145 = vector.load %arg11[%c72, %c0_53] : memref<1024x64xbf16, #tpu.memory_space<vmem>>, vector<8x64xbf16>
    tpu.vector_store %arg11[%c72, %c0_53], %144 {strides = array<i32>} : memref<1024x64xbf16, #tpu.memory_space<vmem>>, vector<8x64xbf16>,
    %146 = vector.extract_strided_slice %81 {offsets = [24, 0], sizes = [8, 64], strides = [1, 1]} : vector<64x64xf32> to vector<8x64xf32>
    %147 = arith.truncf %146 : vector<8x64xf32> to vector<8x64xbf16>
    %c80 = arith.constant 80 : index
    %c0_54 = arith.constant 0 : index
    %148 = vector.load %arg11[%c80, %c0_54] : memref<1024x64xbf16, #tpu.memory_space<vmem>>, vector<8x64xbf16>
    tpu.vector_store %arg11[%c80, %c0_54], %147 {strides = array<i32>} : memref<1024x64xbf16, #tpu.memory_space<vmem>>, vector<8x64xbf16>,
    %149 = vector.extract_strided_slice %83 {offsets = [24, 0], sizes = [8, 64], strides = [1, 1]} : vector<64x64xf32> to vector<8x64xf32>
    %150 = arith.truncf %149 : vector<8x64xf32> to vector<8x64xbf16>
    %c88 = arith.constant 88 : index
    %c0_55 = arith.constant 0 : index
    %151 = vector.load %arg11[%c88, %c0_55] : memref<1024x64xbf16, #tpu.memory_space<vmem>>, vector<8x64xbf16>
    tpu.vector_store %arg11[%c88, %c0_55], %150 {strides = array<i32>} : memref<1024x64xbf16, #tpu.memory_space<vmem>>, vector<8x64xbf16>,
    %152 = vector.extract_strided_slice %81 {offsets = [16, 0], sizes = [8, 64], strides = [1, 1]} : vector<64x64xf32> to vector<8x64xf32>
    %153 = vector.extract_strided_slice %152 {offsets = [0, 1], sizes = [8, 63], strides = [1, 1]} : vector<8x64xf32> to vector<8x63xf32>
    %154 = vector.extract_strided_slice %152 {offsets = [0, 0], sizes = [8, 1], strides = [1, 1]} : vector<8x64xf32> to vector<8x1xf32>
    %155 = tpu.concatenate %153, %154 in 1 : vector<8x63xf32>, vector<8x1xf32> -> vector<8x64xf32>
    %c14_56 = arith.constant 14 : index
    %c0_57 = arith.constant 0 : index
    %156 = vector.load %arg9[%c14_56, %c0_57] : memref<27x64xf32, #tpu.memory_space<vmem>>, vector<1x64xf32>
    %157 = vector.shape_cast %156 : vector<1x64xf32> to vector<64xf32>
    %158 = vector.shape_cast %157 : vector<64xf32> to vector<1x64xf32>
    %159 = vector.broadcast %158 : vector<1x64xf32> to vector<8x64xf32>
    %160 = arith.mulf %155, %159 : vector<8x64xf32>
    %161 = arith.truncf %160 : vector<8x64xf32> to vector<8x64xbf16>
    %c96 = arith.constant 96 : index
    %c0_58 = arith.constant 0 : index
    %162 = vector.load %arg11[%c96, %c0_58] : memref<1024x64xbf16, #tpu.memory_space<vmem>>, vector<8x64xbf16>
    tpu.vector_store %arg11[%c96, %c0_58], %161 {strides = array<i32>} : memref<1024x64xbf16, #tpu.memory_space<vmem>>, vector<8x64xbf16>,
    %163 = vector.extract_strided_slice %83 {offsets = [16, 0], sizes = [8, 64], strides = [1, 1]} : vector<64x64xf32> to vector<8x64xf32>
    %164 = vector.extract_strided_slice %163 {offsets = [0, 1], sizes = [8, 63], strides = [1, 1]} : vector<8x64xf32> to vector<8x63xf32>
    %165 = vector.extract_strided_slice %163 {offsets = [0, 0], sizes = [8, 1], strides = [1, 1]} : vector<8x64xf32> to vector<8x1xf32>
    %166 = tpu.concatenate %164, %165 in 1 : vector<8x63xf32>, vector<8x1xf32> -> vector<8x64xf32>
    %c14_59 = arith.constant 14 : index
    %c0_60 = arith.constant 0 : index
    %167 = vector.load %arg9[%c14_59, %c0_60] : memref<27x64xf32, #tpu.memory_space<vmem>>, vector<1x64xf32>
    %168 = vector.shape_cast %167 : vector<1x64xf32> to vector<64xf32>
    %169 = vector.shape_cast %168 : vector<64xf32> to vector<1x64xf32>
    %170 = vector.broadcast %169 : vector<1x64xf32> to vector<8x64xf32>
    %171 = arith.mulf %166, %170 : vector<8x64xf32>
    %172 = arith.truncf %171 : vector<8x64xf32> to vector<8x64xbf16>
    %c104 = arith.constant 104 : index
    %c0_61 = arith.constant 0 : index
    %173 = vector.load %arg11[%c104, %c0_61] : memref<1024x64xbf16, #tpu.memory_space<vmem>>, vector<8x64xbf16>
    tpu.vector_store %arg11[%c104, %c0_61], %172 {strides = array<i32>} : memref<1024x64xbf16, #tpu.memory_space<vmem>>, vector<8x64xbf16>,
    %174 = vector.extract_strided_slice %81 {offsets = [24, 0], sizes = [8, 64], strides = [1, 1]} : vector<64x64xf32> to vector<8x64xf32>
    %175 = vector.extract_strided_slice %174 {offsets = [0, 63], sizes = [8, 1], strides = [1, 1]} : vector<8x64xf32> to vector<8x1xf32>
    %176 = vector.extract_strided_slice %174 {offsets = [0, 0], sizes = [8, 63], strides = [1, 1]} : vector<8x64xf32> to vector<8x63xf32>
    %177 = tpu.concatenate %175, %176 in 1 : vector<8x1xf32>, vector<8x63xf32> -> vector<8x64xf32>
    %c12_62 = arith.constant 12 : index
    %c0_63 = arith.constant 0 : index
    %178 = vector.load %arg9[%c12_62, %c0_63] : memref<27x64xf32, #tpu.memory_space<vmem>>, vector<1x64xf32>
    %179 = vector.shape_cast %178 : vector<1x64xf32> to vector<64xf32>
    %180 = vector.shape_cast %179 : vector<64xf32> to vector<1x64xf32>
    %181 = vector.broadcast %180 : vector<1x64xf32> to vector<8x64xf32>
    %182 = arith.mulf %177, %181 : vector<8x64xf32>
    %183 = arith.truncf %182 : vector<8x64xf32> to vector<8x64xbf16>
    %c112 = arith.constant 112 : index
    %c0_64 = arith.constant 0 : index
    %184 = vector.load %arg11[%c112, %c0_64] : memref<1024x64xbf16, #tpu.memory_space<vmem>>, vector<8x64xbf16>
    tpu.vector_store %arg11[%c112, %c0_64], %183 {strides = array<i32>} : memref<1024x64xbf16, #tpu.memory_space<vmem>>, vector<8x64xbf16>,
    %185 = vector.extract_strided_slice %83 {offsets = [24, 0], sizes = [8, 64], strides = [1, 1]} : vector<64x64xf32> to vector<8x64xf32>
    %186 = vector.extract_strided_slice %185 {offsets = [0, 63], sizes = [8, 1], strides = [1, 1]} : vector<8x64xf32> to vector<8x1xf32>
    %187 = vector.extract_strided_slice %185 {offsets = [0, 0], sizes = [8, 63], strides = [1, 1]} : vector<8x64xf32> to vector<8x63xf32>
    %188 = tpu.concatenate %186, %187 in 1 : vector<8x1xf32>, vector<8x63xf32> -> vector<8x64xf32>
    %c12_65 = arith.constant 12 : index
    %c0_66 = arith.constant 0 : index
    %189 = vector.load %arg9[%c12_65, %c0_66] : memref<27x64xf32, #tpu.memory_space<vmem>>, vector<1x64xf32>
    %190 = vector.shape_cast %189 : vector<1x64xf32> to vector<64xf32>
    %191 = vector.shape_cast %190 : vector<64xf32> to vector<1x64xf32>
    %192 = vector.broadcast %191 : vector<1x64xf32> to vector<8x64xf32>
    %193 = arith.mulf %188, %192 : vector<8x64xf32>
    %194 = arith.truncf %193 : vector<8x64xf32> to vector<8x64xbf16>
    %c120 = arith.constant 120 : index
    %c0_67 = arith.constant 0 : index
    %195 = vector.load %arg11[%c120, %c0_67] : memref<1024x64xbf16, #tpu.memory_space<vmem>>, vector<8x64xbf16>
    tpu.vector_store %arg11[%c120, %c0_67], %194 {strides = array<i32>} : memref<1024x64xbf16, #tpu.memory_space<vmem>>, vector<8x64xbf16>,
    %196 = vector.extract_strided_slice %81 {offsets = [0, 0], sizes = [8, 64], strides = [1, 1]} : vector<64x64xf32> to vector<8x64xf32>
    %197 = vector.extract_strided_slice %196 {offsets = [0, 4], sizes = [8, 60], strides = [1, 1]} : vector<8x64xf32> to vector<8x60xf32>
    %198 = vector.extract_strided_slice %196 {offsets = [0, 0], sizes = [8, 4], strides = [1, 1]} : vector<8x64xf32> to vector<8x4xf32>
    %199 = tpu.concatenate %197, %198 in 1 : vector<8x60xf32>, vector<8x4xf32> -> vector<8x64xf32>
    %c16_68 = arith.constant 16 : index
    %c0_69 = arith.constant 0 : index
    %200 = vector.load %arg9[%c16_68, %c0_69] : memref<27x64xf32, #tpu.memory_space<vmem>>, vector<1x64xf32>
    %201 = vector.shape_cast %200 : vector<1x64xf32> to vector<64xf32>
    %202 = vector.shape_cast %201 : vector<64xf32> to vector<1x64xf32>
    %203 = vector.broadcast %202 : vector<1x64xf32> to vector<8x64xf32>
    %204 = arith.mulf %199, %203 : vector<8x64xf32>
    %205 = arith.truncf %204 : vector<8x64xf32> to vector<8x64xbf16>
    %c128 = arith.constant 128 : index
    %c0_70 = arith.constant 0 : index
    %206 = vector.load %arg11[%c128, %c0_70] : memref<1024x64xbf16, #tpu.memory_space<vmem>>, vector<8x64xbf16>
    tpu.vector_store %arg11[%c128, %c0_70], %205 {strides = array<i32>} : memref<1024x64xbf16, #tpu.memory_space<vmem>>, vector<8x64xbf16>,
    %207 = vector.extract_strided_slice %83 {offsets = [0, 0], sizes = [8, 64], strides = [1, 1]} : vector<64x64xf32> to vector<8x64xf32>
    %208 = vector.extract_strided_slice %207 {offsets = [0, 4], sizes = [8, 60], strides = [1, 1]} : vector<8x64xf32> to vector<8x60xf32>
    %209 = vector.extract_strided_slice %207 {offsets = [0, 0], sizes = [8, 4], strides = [1, 1]} : vector<8x64xf32> to vector<8x4xf32>
    %210 = tpu.concatenate %208, %209 in 1 : vector<8x60xf32>, vector<8x4xf32> -> vector<8x64xf32>
    %c16_71 = arith.constant 16 : index
    %c0_72 = arith.constant 0 : index
    %211 = vector.load %arg9[%c16_71, %c0_72] : memref<27x64xf32, #tpu.memory_space<vmem>>, vector<1x64xf32>
    %212 = vector.shape_cast %211 : vector<1x64xf32> to vector<64xf32>
    %213 = vector.shape_cast %212 : vector<64xf32> to vector<1x64xf32>
    %214 = vector.broadcast %213 : vector<1x64xf32> to vector<8x64xf32>
    %215 = arith.mulf %210, %214 : vector<8x64xf32>
    %216 = arith.truncf %215 : vector<8x64xf32> to vector<8x64xbf16>
    %c136 = arith.constant 136 : index
    %c0_73 = arith.constant 0 : index
    %217 = vector.load %arg11[%c136, %c0_73] : memref<1024x64xbf16, #tpu.memory_space<vmem>>, vector<8x64xbf16>
    tpu.vector_store %arg11[%c136, %c0_73], %216 {strides = array<i32>} : memref<1024x64xbf16, #tpu.memory_space<vmem>>, vector<8x64xbf16>,
    %218 = vector.extract_strided_slice %81 {offsets = [8, 0], sizes = [8, 64], strides = [1, 1]} : vector<64x64xf32> to vector<8x64xf32>
    %219 = vector.extract_strided_slice %218 {offsets = [0, 4], sizes = [8, 60], strides = [1, 1]} : vector<8x64xf32> to vector<8x60xf32>
    %220 = vector.extract_strided_slice %218 {offsets = [0, 0], sizes = [8, 4], strides = [1, 1]} : vector<8x64xf32> to vector<8x4xf32>
    %221 = tpu.concatenate %219, %220 in 1 : vector<8x60xf32>, vector<8x4xf32> -> vector<8x64xf32>
    %c16_74 = arith.constant 16 : index
    %c0_75 = arith.constant 0 : index
    %222 = vector.load %arg9[%c16_74, %c0_75] : memref<27x64xf32, #tpu.memory_space<vmem>>, vector<1x64xf32>
    %223 = vector.shape_cast %222 : vector<1x64xf32> to vector<64xf32>
    %224 = vector.shape_cast %223 : vector<64xf32> to vector<1x64xf32>
    %225 = vector.broadcast %224 : vector<1x64xf32> to vector<8x64xf32>
    %226 = arith.mulf %221, %225 : vector<8x64xf32>
    %227 = arith.truncf %226 : vector<8x64xf32> to vector<8x64xbf16>
    %c144 = arith.constant 144 : index
    %c0_76 = arith.constant 0 : index
    %228 = vector.load %arg11[%c144, %c0_76] : memref<1024x64xbf16, #tpu.memory_space<vmem>>, vector<8x64xbf16>
    tpu.vector_store %arg11[%c144, %c0_76], %227 {strides = array<i32>} : memref<1024x64xbf16, #tpu.memory_space<vmem>>, vector<8x64xbf16>,
    %229 = vector.extract_strided_slice %83 {offsets = [8, 0], sizes = [8, 64], strides = [1, 1]} : vector<64x64xf32> to vector<8x64xf32>
    %230 = vector.extract_strided_slice %229 {offsets = [0, 4], sizes = [8, 60], strides = [1, 1]} : vector<8x64xf32> to vector<8x60xf32>
    %231 = vector.extract_strided_slice %229 {offsets = [0, 0], sizes = [8, 4], strides = [1, 1]} : vector<8x64xf32> to vector<8x4xf32>
    %232 = tpu.concatenate %230, %231 in 1 : vector<8x60xf32>, vector<8x4xf32> -> vector<8x64xf32>
    %c16_77 = arith.constant 16 : index
    %c0_78 = arith.constant 0 : index
    %233 = vector.load %arg9[%c16_77, %c0_78] : memref<27x64xf32, #tpu.memory_space<vmem>>, vector<1x64xf32>
    %234 = vector.shape_cast %233 : vector<1x64xf32> to vector<64xf32>
    %235 = vector.shape_cast %234 : vector<64xf32> to vector<1x64xf32>
    %236 = vector.broadcast %235 : vector<1x64xf32> to vector<8x64xf32>
    %237 = arith.mulf %232, %236 : vector<8x64xf32>
    %238 = arith.truncf %237 : vector<8x64xf32> to vector<8x64xbf16>
    %c152 = arith.constant 152 : index
    %c0_79 = arith.constant 0 : index
    %239 = vector.load %arg11[%c152, %c0_79] : memref<1024x64xbf16, #tpu.memory_space<vmem>>, vector<8x64xbf16>
    tpu.vector_store %arg11[%c152, %c0_79], %238 {strides = array<i32>} : memref<1024x64xbf16, #tpu.memory_space<vmem>>, vector<8x64xbf16>,
    %240 = vector.extract_strided_slice %81 {offsets = [0, 0], sizes = [8, 64], strides = [1, 1]} : vector<64x64xf32> to vector<8x64xf32>
    %241 = vector.extract_strided_slice %240 {offsets = [0, 5], sizes = [8, 59], strides = [1, 1]} : vector<8x64xf32> to vector<8x59xf32>
    %242 = vector.extract_strided_slice %240 {offsets = [0, 0], sizes = [8, 5], strides = [1, 1]} : vector<8x64xf32> to vector<8x5xf32>
    %243 = tpu.concatenate %241, %242 in 1 : vector<8x59xf32>, vector<8x5xf32> -> vector<8x64xf32>
    %c17_80 = arith.constant 17 : index
    %c0_81 = arith.constant 0 : index
    %244 = vector.load %arg9[%c17_80, %c0_81] : memref<27x64xf32, #tpu.memory_space<vmem>>, vector<1x64xf32>
    %245 = vector.shape_cast %244 : vector<1x64xf32> to vector<64xf32>
    %246 = vector.shape_cast %245 : vector<64xf32> to vector<1x64xf32>
    %247 = vector.broadcast %246 : vector<1x64xf32> to vector<8x64xf32>
    %248 = arith.mulf %243, %247 : vector<8x64xf32>
    %249 = arith.truncf %248 : vector<8x64xf32> to vector<8x64xbf16>
    %c160 = arith.constant 160 : index
    %c0_82 = arith.constant 0 : index
    %250 = vector.load %arg11[%c160, %c0_82] : memref<1024x64xbf16, #tpu.memory_space<vmem>>, vector<8x64xbf16>
    tpu.vector_store %arg11[%c160, %c0_82], %249 {strides = array<i32>} : memref<1024x64xbf16, #tpu.memory_space<vmem>>, vector<8x64xbf16>,
    %251 = vector.extract_strided_slice %83 {offsets = [0, 0], sizes = [8, 64], strides = [1, 1]} : vector<64x64xf32> to vector<8x64xf32>
    %252 = vector.extract_strided_slice %251 {offsets = [0, 5], sizes = [8, 59], strides = [1, 1]} : vector<8x64xf32> to vector<8x59xf32>
    %253 = vector.extract_strided_slice %251 {offsets = [0, 0], sizes = [8, 5], strides = [1, 1]} : vector<8x64xf32> to vector<8x5xf32>
    %254 = tpu.concatenate %252, %253 in 1 : vector<8x59xf32>, vector<8x5xf32> -> vector<8x64xf32>
    %c17_83 = arith.constant 17 : index
    %c0_84 = arith.constant 0 : index
    %255 = vector.load %arg9[%c17_83, %c0_84] : memref<27x64xf32, #tpu.memory_space<vmem>>, vector<1x64xf32>
    %256 = vector.shape_cast %255 : vector<1x64xf32> to vector<64xf32>
    %257 = vector.shape_cast %256 : vector<64xf32> to vector<1x64xf32>
    %258 = vector.broadcast %257 : vector<1x64xf32> to vector<8x64xf32>
    %259 = arith.mulf %254, %258 : vector<8x64xf32>
    %260 = arith.truncf %259 : vector<8x64xf32> to vector<8x64xbf16>
    %c168 = arith.constant 168 : index
    %c0_85 = arith.constant 0 : index
    %261 = vector.load %arg11[%c168, %c0_85] : memref<1024x64xbf16, #tpu.memory_space<vmem>>, vector<8x64xbf16>
    tpu.vector_store %arg11[%c168, %c0_85], %260 {strides = array<i32>} : memref<1024x64xbf16, #tpu.memory_space<vmem>>, vector<8x64xbf16>,
    %262 = vector.extract_strided_slice %81 {offsets = [8, 0], sizes = [8, 64], strides = [1, 1]} : vector<64x64xf32> to vector<8x64xf32>
    %263 = vector.extract_strided_slice %262 {offsets = [0, 3], sizes = [8, 61], strides = [1, 1]} : vector<8x64xf32> to vector<8x61xf32>
    %264 = vector.extract_strided_slice %262 {offsets = [0, 0], sizes = [8, 3], strides = [1, 1]} : vector<8x64xf32> to vector<8x3xf32>
    %265 = tpu.concatenate %263, %264 in 1 : vector<8x61xf32>, vector<8x3xf32> -> vector<8x64xf32>
    %c15 = arith.constant 15 : index
    %c0_86 = arith.constant 0 : index
    %266 = vector.load %arg9[%c15, %c0_86] : memref<27x64xf32, #tpu.memory_space<vmem>>, vector<1x64xf32>
    %267 = vector.shape_cast %266 : vector<1x64xf32> to vector<64xf32>
    %268 = vector.shape_cast %267 : vector<64xf32> to vector<1x64xf32>
    %269 = vector.broadcast %268 : vector<1x64xf32> to vector<8x64xf32>
    %270 = arith.mulf %265, %269 : vector<8x64xf32>
    %271 = arith.truncf %270 : vector<8x64xf32> to vector<8x64xbf16>
    %c176 = arith.constant 176 : index
    %c0_87 = arith.constant 0 : index
    %272 = vector.load %arg11[%c176, %c0_87] : memref<1024x64xbf16, #tpu.memory_space<vmem>>, vector<8x64xbf16>
    tpu.vector_store %arg11[%c176, %c0_87], %271 {strides = array<i32>} : memref<1024x64xbf16, #tpu.memory_space<vmem>>, vector<8x64xbf16>,
    %273 = vector.extract_strided_slice %83 {offsets = [8, 0], sizes = [8, 64], strides = [1, 1]} : vector<64x64xf32> to vector<8x64xf32>
    %274 = vector.extract_strided_slice %273 {offsets = [0, 3], sizes = [8, 61], strides = [1, 1]} : vector<8x64xf32> to vector<8x61xf32>
    %275 = vector.extract_strided_slice %273 {offsets = [0, 0], sizes = [8, 3], strides = [1, 1]} : vector<8x64xf32> to vector<8x3xf32>
    %276 = tpu.concatenate %274, %275 in 1 : vector<8x61xf32>, vector<8x3xf32> -> vector<8x64xf32>
    %c15_88 = arith.constant 15 : index
    %c0_89 = arith.constant 0 : index
    %277 = vector.load %arg9[%c15_88, %c0_89] : memref<27x64xf32, #tpu.memory_space<vmem>>, vector<1x64xf32>
    %278 = vector.shape_cast %277 : vector<1x64xf32> to vector<64xf32>
    %279 = vector.shape_cast %278 : vector<64xf32> to vector<1x64xf32>
    %280 = vector.broadcast %279 : vector<1x64xf32> to vector<8x64xf32>
    %281 = arith.mulf %276, %280 : vector<8x64xf32>
    %282 = arith.truncf %281 : vector<8x64xf32> to vector<8x64xbf16>
    %c184 = arith.constant 184 : index
    %c0_90 = arith.constant 0 : index
    %283 = vector.load %arg11[%c184, %c0_90] : memref<1024x64xbf16, #tpu.memory_space<vmem>>, vector<8x64xbf16>
    tpu.vector_store %arg11[%c184, %c0_90], %282 {strides = array<i32>} : memref<1024x64xbf16, #tpu.memory_space<vmem>>, vector<8x64xbf16>,
    %284 = vector.extract_strided_slice %81 {offsets = [16, 0], sizes = [8, 64], strides = [1, 1]} : vector<64x64xf32> to vector<8x64xf32>
    %285 = vector.extract_strided_slice %284 {offsets = [0, 60], sizes = [8, 4], strides = [1, 1]} : vector<8x64xf32> to vector<8x4xf32>
    %286 = vector.extract_strided_slice %284 {offsets = [0, 0], sizes = [8, 60], strides = [1, 1]} : vector<8x64xf32> to vector<8x60xf32>
    %287 = tpu.concatenate %285, %286 in 1 : vector<8x4xf32>, vector<8x60xf32> -> vector<8x64xf32>
    %c10 = arith.constant 10 : index
    %c0_91 = arith.constant 0 : index
    %288 = vector.load %arg9[%c10, %c0_91] : memref<27x64xf32, #tpu.memory_space<vmem>>, vector<1x64xf32>
    %289 = vector.shape_cast %288 : vector<1x64xf32> to vector<64xf32>
    %290 = vector.shape_cast %289 : vector<64xf32> to vector<1x64xf32>
    %291 = vector.broadcast %290 : vector<1x64xf32> to vector<8x64xf32>
    %292 = arith.mulf %287, %291 : vector<8x64xf32>
    %293 = arith.truncf %292 : vector<8x64xf32> to vector<8x64xbf16>
    %c192 = arith.constant 192 : index
    %c0_92 = arith.constant 0 : index
    %294 = vector.load %arg11[%c192, %c0_92] : memref<1024x64xbf16, #tpu.memory_space<vmem>>, vector<8x64xbf16>
    tpu.vector_store %arg11[%c192, %c0_92], %293 {strides = array<i32>} : memref<1024x64xbf16, #tpu.memory_space<vmem>>, vector<8x64xbf16>,
    %295 = vector.extract_strided_slice %83 {offsets = [16, 0], sizes = [8, 64], strides = [1, 1]} : vector<64x64xf32> to vector<8x64xf32>
    %296 = vector.extract_strided_slice %295 {offsets = [0, 60], sizes = [8, 4], strides = [1, 1]} : vector<8x64xf32> to vector<8x4xf32>
    %297 = vector.extract_strided_slice %295 {offsets = [0, 0], sizes = [8, 60], strides = [1, 1]} : vector<8x64xf32> to vector<8x60xf32>
    %298 = tpu.concatenate %296, %297 in 1 : vector<8x4xf32>, vector<8x60xf32> -> vector<8x64xf32>
    %c10_93 = arith.constant 10 : index
    %c0_94 = arith.constant 0 : index
    %299 = vector.load %arg9[%c10_93, %c0_94] : memref<27x64xf32, #tpu.memory_space<vmem>>, vector<1x64xf32>
    %300 = vector.shape_cast %299 : vector<1x64xf32> to vector<64xf32>
    %301 = vector.shape_cast %300 : vector<64xf32> to vector<1x64xf32>
    %302 = vector.broadcast %301 : vector<1x64xf32> to vector<8x64xf32>
    %303 = arith.mulf %298, %302 : vector<8x64xf32>
    %304 = arith.truncf %303 : vector<8x64xf32> to vector<8x64xbf16>
    %c200 = arith.constant 200 : index
    %c0_95 = arith.constant 0 : index
    %305 = vector.load %arg11[%c200, %c0_95] : memref<1024x64xbf16, #tpu.memory_space<vmem>>, vector<8x64xbf16>
    tpu.vector_store %arg11[%c200, %c0_95], %304 {strides = array<i32>} : memref<1024x64xbf16, #tpu.memory_space<vmem>>, vector<8x64xbf16>,
    %306 = vector.extract_strided_slice %81 {offsets = [24, 0], sizes = [8, 64], strides = [1, 1]} : vector<64x64xf32> to vector<8x64xf32>
    %307 = vector.extract_strided_slice %306 {offsets = [0, 60], sizes = [8, 4], strides = [1, 1]} : vector<8x64xf32> to vector<8x4xf32>
    %308 = vector.extract_strided_slice %306 {offsets = [0, 0], sizes = [8, 60], strides = [1, 1]} : vector<8x64xf32> to vector<8x60xf32>
    %309 = tpu.concatenate %307, %308 in 1 : vector<8x4xf32>, vector<8x60xf32> -> vector<8x64xf32>
    %c10_96 = arith.constant 10 : index
    %c0_97 = arith.constant 0 : index
    %310 = vector.load %arg9[%c10_96, %c0_97] : memref<27x64xf32, #tpu.memory_space<vmem>>, vector<1x64xf32>
    %311 = vector.shape_cast %310 : vector<1x64xf32> to vector<64xf32>
    %312 = vector.shape_cast %311 : vector<64xf32> to vector<1x64xf32>
    %313 = vector.broadcast %312 : vector<1x64xf32> to vector<8x64xf32>
    %314 = arith.mulf %309, %313 : vector<8x64xf32>
    %315 = arith.truncf %314 : vector<8x64xf32> to vector<8x64xbf16>
    %c208 = arith.constant 208 : index
    %c0_98 = arith.constant 0 : index
    %316 = vector.load %arg11[%c208, %c0_98] : memref<1024x64xbf16, #tpu.memory_space<vmem>>, vector<8x64xbf16>
    tpu.vector_store %arg11[%c208, %c0_98], %315 {strides = array<i32>} : memref<1024x64xbf16, #tpu.memory_space<vmem>>, vector<8x64xbf16>,
    %317 = vector.extract_strided_slice %83 {offsets = [24, 0], sizes = [8, 64], strides = [1, 1]} : vector<64x64xf32> to vector<8x64xf32>
    %318 = vector.extract_strided_slice %317 {offsets = [0, 60], sizes = [8, 4], strides = [1, 1]} : vector<8x64xf32> to vector<8x4xf32>
    %319 = vector.extract_strided_slice %317 {offsets = [0, 0], sizes = [8, 60], strides = [1, 1]} : vector<8x64xf32> to vector<8x60xf32>
    %320 = tpu.concatenate %318, %319 in 1 : vector<8x4xf32>, vector<8x60xf32> -> vector<8x64xf32>
    %c10_99 = arith.constant 10 : index
    %c0_100 = arith.constant 0 : index
    %321 = vector.load %arg9[%c10_99, %c0_100] : memref<27x64xf32, #tpu.memory_space<vmem>>, vector<1x64xf32>
    %322 = vector.shape_cast %321 : vector<1x64xf32> to vector<64xf32>
    %323 = vector.shape_cast %322 : vector<64xf32> to vector<1x64xf32>
    %324 = vector.broadcast %323 : vector<1x64xf32> to vector<8x64xf32>
    %325 = arith.mulf %320, %324 : vector<8x64xf32>
    %326 = arith.truncf %325 : vector<8x64xf32> to vector<8x64xbf16>
    %c216 = arith.constant 216 : index
    %c0_101 = arith.constant 0 : index
    %327 = vector.load %arg11[%c216, %c0_101] : memref<1024x64xbf16, #tpu.memory_space<vmem>>, vector<8x64xbf16>
    tpu.vector_store %arg11[%c216, %c0_101], %326 {strides = array<i32>} : memref<1024x64xbf16, #tpu.memory_space<vmem>>, vector<8x64xbf16>,
    %328 = vector.extract_strided_slice %81 {offsets = [16, 0], sizes = [8, 64], strides = [1, 1]} : vector<64x64xf32> to vector<8x64xf32>
    %329 = vector.extract_strided_slice %328 {offsets = [0, 61], sizes = [8, 3], strides = [1, 1]} : vector<8x64xf32> to vector<8x3xf32>
    %330 = vector.extract_strided_slice %328 {offsets = [0, 0], sizes = [8, 61], strides = [1, 1]} : vector<8x64xf32> to vector<8x61xf32>
    %331 = tpu.concatenate %329, %330 in 1 : vector<8x3xf32>, vector<8x61xf32> -> vector<8x64xf32>
    %c11 = arith.constant 11 : index
    %c0_102 = arith.constant 0 : index
    %332 = vector.load %arg9[%c11, %c0_102] : memref<27x64xf32, #tpu.memory_space<vmem>>, vector<1x64xf32>
    %333 = vector.shape_cast %332 : vector<1x64xf32> to vector<64xf32>
    %334 = vector.shape_cast %333 : vector<64xf32> to vector<1x64xf32>
    %335 = vector.broadcast %334 : vector<1x64xf32> to vector<8x64xf32>
    %336 = arith.mulf %331, %335 : vector<8x64xf32>
    %337 = arith.truncf %336 : vector<8x64xf32> to vector<8x64xbf16>
    %c224 = arith.constant 224 : index
    %c0_103 = arith.constant 0 : index
    %338 = vector.load %arg11[%c224, %c0_103] : memref<1024x64xbf16, #tpu.memory_space<vmem>>, vector<8x64xbf16>
    tpu.vector_store %arg11[%c224, %c0_103], %337 {strides = array<i32>} : memref<1024x64xbf16, #tpu.memory_space<vmem>>, vector<8x64xbf16>,
    %339 = vector.extract_strided_slice %83 {offsets = [16, 0], sizes = [8, 64], strides = [1, 1]} : vector<64x64xf32> to vector<8x64xf32>
    %340 = vector.extract_strided_slice %339 {offsets = [0, 61], sizes = [8, 3], strides = [1, 1]} : vector<8x64xf32> to vector<8x3xf32>
    %341 = vector.extract_strided_slice %339 {offsets = [0, 0], sizes = [8, 61], strides = [1, 1]} : vector<8x64xf32> to vector<8x61xf32>
    %342 = tpu.concatenate %340, %341 in 1 : vector<8x3xf32>, vector<8x61xf32> -> vector<8x64xf32>
    %c11_104 = arith.constant 11 : index
    %c0_105 = arith.constant 0 : index
    %343 = vector.load %arg9[%c11_104, %c0_105] : memref<27x64xf32, #tpu.memory_space<vmem>>, vector<1x64xf32>
    %344 = vector.shape_cast %343 : vector<1x64xf32> to vector<64xf32>
    %345 = vector.shape_cast %344 : vector<64xf32> to vector<1x64xf32>
    %346 = vector.broadcast %345 : vector<1x64xf32> to vector<8x64xf32>
    %347 = arith.mulf %342, %346 : vector<8x64xf32>
    %348 = arith.truncf %347 : vector<8x64xf32> to vector<8x64xbf16>
    %c232 = arith.constant 232 : index
    %c0_106 = arith.constant 0 : index
    %349 = vector.load %arg11[%c232, %c0_106] : memref<1024x64xbf16, #tpu.memory_space<vmem>>, vector<8x64xbf16>
    tpu.vector_store %arg11[%c232, %c0_106], %348 {strides = array<i32>} : memref<1024x64xbf16, #tpu.memory_space<vmem>>, vector<8x64xbf16>,
    %350 = vector.extract_strided_slice %81 {offsets = [24, 0], sizes = [8, 64], strides = [1, 1]} : vector<64x64xf32> to vector<8x64xf32>
    %351 = vector.extract_strided_slice %350 {offsets = [0, 59], sizes = [8, 5], strides = [1, 1]} : vector<8x64xf32> to vector<8x5xf32>
    %352 = vector.extract_strided_slice %350 {offsets = [0, 0], sizes = [8, 59], strides = [1, 1]} : vector<8x64xf32> to vector<8x59xf32>
    %353 = tpu.concatenate %351, %352 in 1 : vector<8x5xf32>, vector<8x59xf32> -> vector<8x64xf32>
    %c9 = arith.constant 9 : index
    %c0_107 = arith.constant 0 : index
    %354 = vector.load %arg9[%c9, %c0_107] : memref<27x64xf32, #tpu.memory_space<vmem>>, vector<1x64xf32>
    %355 = vector.shape_cast %354 : vector<1x64xf32> to vector<64xf32>
    %356 = vector.shape_cast %355 : vector<64xf32> to vector<1x64xf32>
    %357 = vector.broadcast %356 : vector<1x64xf32> to vector<8x64xf32>
    %358 = arith.mulf %353, %357 : vector<8x64xf32>
    %359 = arith.truncf %358 : vector<8x64xf32> to vector<8x64xbf16>
    %c240 = arith.constant 240 : index
    %c0_108 = arith.constant 0 : index
    %360 = vector.load %arg11[%c240, %c0_108] : memref<1024x64xbf16, #tpu.memory_space<vmem>>, vector<8x64xbf16>
    tpu.vector_store %arg11[%c240, %c0_108], %359 {strides = array<i32>} : memref<1024x64xbf16, #tpu.memory_space<vmem>>, vector<8x64xbf16>,
    %361 = vector.extract_strided_slice %83 {offsets = [24, 0], sizes = [8, 64], strides = [1, 1]} : vector<64x64xf32> to vector<8x64xf32>
    %362 = vector.extract_strided_slice %361 {offsets = [0, 59], sizes = [8, 5], strides = [1, 1]} : vector<8x64xf32> to vector<8x5xf32>
    %363 = vector.extract_strided_slice %361 {offsets = [0, 0], sizes = [8, 59], strides = [1, 1]} : vector<8x64xf32> to vector<8x59xf32>
    %364 = tpu.concatenate %362, %363 in 1 : vector<8x5xf32>, vector<8x59xf32> -> vector<8x64xf32>
    %c9_109 = arith.constant 9 : index
    %c0_110 = arith.constant 0 : index
    %365 = vector.load %arg9[%c9_109, %c0_110] : memref<27x64xf32, #tpu.memory_space<vmem>>, vector<1x64xf32>
    %366 = vector.shape_cast %365 : vector<1x64xf32> to vector<64xf32>
    %367 = vector.shape_cast %366 : vector<64xf32> to vector<1x64xf32>
    %368 = vector.broadcast %367 : vector<1x64xf32> to vector<8x64xf32>
    %369 = arith.mulf %364, %368 : vector<8x64xf32>
    %370 = arith.truncf %369 : vector<8x64xf32> to vector<8x64xbf16>
    %c248 = arith.constant 248 : index
    %c0_111 = arith.constant 0 : index
    %371 = vector.load %arg11[%c248, %c0_111] : memref<1024x64xbf16, #tpu.memory_space<vmem>>, vector<8x64xbf16>
    tpu.vector_store %arg11[%c248, %c0_111], %370 {strides = array<i32>} : memref<1024x64xbf16, #tpu.memory_space<vmem>>, vector<8x64xbf16>,
    %372 = vector.extract_strided_slice %81 {offsets = [32, 0], sizes = [8, 64], strides = [1, 1]} : vector<64x64xf32> to vector<8x64xf32>
    %373 = arith.truncf %372 : vector<8x64xf32> to vector<8x64xbf16>
    %c256 = arith.constant 256 : index
    %c0_112 = arith.constant 0 : index
    %374 = vector.load %arg11[%c256, %c0_112] : memref<1024x64xbf16, #tpu.memory_space<vmem>>, vector<8x64xbf16>
    tpu.vector_store %arg11[%c256, %c0_112], %373 {strides = array<i32>} : memref<1024x64xbf16, #tpu.memory_space<vmem>>, vector<8x64xbf16>,
    %375 = vector.extract_strided_slice %83 {offsets = [32, 0], sizes = [8, 64], strides = [1, 1]} : vector<64x64xf32> to vector<8x64xf32>
    %376 = arith.truncf %375 : vector<8x64xf32> to vector<8x64xbf16>
    %c264 = arith.constant 264 : index
    %c0_113 = arith.constant 0 : index
    %377 = vector.load %arg11[%c264, %c0_113] : memref<1024x64xbf16, #tpu.memory_space<vmem>>, vector<8x64xbf16>
    tpu.vector_store %arg11[%c264, %c0_113], %376 {strides = array<i32>} : memref<1024x64xbf16, #tpu.memory_space<vmem>>, vector<8x64xbf16>,
    %378 = vector.extract_strided_slice %81 {offsets = [40, 0], sizes = [8, 64], strides = [1, 1]} : vector<64x64xf32> to vector<8x64xf32>
    %379 = arith.truncf %378 : vector<8x64xf32> to vector<8x64xbf16>
    %c272 = arith.constant 272 : index
    %c0_114 = arith.constant 0 : index
    %380 = vector.load %arg11[%c272, %c0_114] : memref<1024x64xbf16, #tpu.memory_space<vmem>>, vector<8x64xbf16>
    tpu.vector_store %arg11[%c272, %c0_114], %379 {strides = array<i32>} : memref<1024x64xbf16, #tpu.memory_space<vmem>>, vector<8x64xbf16>,
    %381 = vector.extract_strided_slice %83 {offsets = [40, 0], sizes = [8, 64], strides = [1, 1]} : vector<64x64xf32> to vector<8x64xf32>
    %382 = arith.truncf %381 : vector<8x64xf32> to vector<8x64xbf16>
    %c280 = arith.constant 280 : index
    %c0_115 = arith.constant 0 : index
    %383 = vector.load %arg11[%c280, %c0_115] : memref<1024x64xbf16, #tpu.memory_space<vmem>>, vector<8x64xbf16>
    tpu.vector_store %arg11[%c280, %c0_115], %382 {strides = array<i32>} : memref<1024x64xbf16, #tpu.memory_space<vmem>>, vector<8x64xbf16>,
    %384 = vector.extract_strided_slice %81 {offsets = [32, 0], sizes = [8, 64], strides = [1, 1]} : vector<64x64xf32> to vector<8x64xf32>
    %385 = vector.extract_strided_slice %384 {offsets = [0, 1], sizes = [8, 63], strides = [1, 1]} : vector<8x64xf32> to vector<8x63xf32>
    %386 = vector.extract_strided_slice %384 {offsets = [0, 0], sizes = [8, 1], strides = [1, 1]} : vector<8x64xf32> to vector<8x1xf32>
    %387 = tpu.concatenate %385, %386 in 1 : vector<8x63xf32>, vector<8x1xf32> -> vector<8x64xf32>
    %c14_116 = arith.constant 14 : index
    %c0_117 = arith.constant 0 : index
    %388 = vector.load %arg9[%c14_116, %c0_117] : memref<27x64xf32, #tpu.memory_space<vmem>>, vector<1x64xf32>
    %389 = vector.shape_cast %388 : vector<1x64xf32> to vector<64xf32>
    %390 = vector.shape_cast %389 : vector<64xf32> to vector<1x64xf32>
    %391 = vector.broadcast %390 : vector<1x64xf32> to vector<8x64xf32>
    %392 = arith.mulf %387, %391 : vector<8x64xf32>
    %393 = arith.truncf %392 : vector<8x64xf32> to vector<8x64xbf16>
    %c288 = arith.constant 288 : index
    %c0_118 = arith.constant 0 : index
    %394 = vector.load %arg11[%c288, %c0_118] : memref<1024x64xbf16, #tpu.memory_space<vmem>>, vector<8x64xbf16>
    tpu.vector_store %arg11[%c288, %c0_118], %393 {strides = array<i32>} : memref<1024x64xbf16, #tpu.memory_space<vmem>>, vector<8x64xbf16>,
    %395 = vector.extract_strided_slice %83 {offsets = [32, 0], sizes = [8, 64], strides = [1, 1]} : vector<64x64xf32> to vector<8x64xf32>
    %396 = vector.extract_strided_slice %395 {offsets = [0, 1], sizes = [8, 63], strides = [1, 1]} : vector<8x64xf32> to vector<8x63xf32>
    %397 = vector.extract_strided_slice %395 {offsets = [0, 0], sizes = [8, 1], strides = [1, 1]} : vector<8x64xf32> to vector<8x1xf32>
    %398 = tpu.concatenate %396, %397 in 1 : vector<8x63xf32>, vector<8x1xf32> -> vector<8x64xf32>
    %c14_119 = arith.constant 14 : index
    %c0_120 = arith.constant 0 : index
    %399 = vector.load %arg9[%c14_119, %c0_120] : memref<27x64xf32, #tpu.memory_space<vmem>>, vector<1x64xf32>
    %400 = vector.shape_cast %399 : vector<1x64xf32> to vector<64xf32>
    %401 = vector.shape_cast %400 : vector<64xf32> to vector<1x64xf32>
    %402 = vector.broadcast %401 : vector<1x64xf32> to vector<8x64xf32>
    %403 = arith.mulf %398, %402 : vector<8x64xf32>
    %404 = arith.truncf %403 : vector<8x64xf32> to vector<8x64xbf16>
    %c296 = arith.constant 296 : index
    %c0_121 = arith.constant 0 : index
    %405 = vector.load %arg11[%c296, %c0_121] : memref<1024x64xbf16, #tpu.memory_space<vmem>>, vector<8x64xbf16>
    tpu.vector_store %arg11[%c296, %c0_121], %404 {strides = array<i32>} : memref<1024x64xbf16, #tpu.memory_space<vmem>>, vector<8x64xbf16>,
    %406 = vector.extract_strided_slice %81 {offsets = [40, 0], sizes = [8, 64], strides = [1, 1]} : vector<64x64xf32> to vector<8x64xf32>
    %407 = vector.extract_strided_slice %406 {offsets = [0, 63], sizes = [8, 1], strides = [1, 1]} : vector<8x64xf32> to vector<8x1xf32>
    %408 = vector.extract_strided_slice %406 {offsets = [0, 0], sizes = [8, 63], strides = [1, 1]} : vector<8x64xf32> to vector<8x63xf32>
    %409 = tpu.concatenate %407, %408 in 1 : vector<8x1xf32>, vector<8x63xf32> -> vector<8x64xf32>
    %c12_122 = arith.constant 12 : index
    %c0_123 = arith.constant 0 : index
    %410 = vector.load %arg9[%c12_122, %c0_123] : memref<27x64xf32, #tpu.memory_space<vmem>>, vector<1x64xf32>
    %411 = vector.shape_cast %410 : vector<1x64xf32> to vector<64xf32>
    %412 = vector.shape_cast %411 : vector<64xf32> to vector<1x64xf32>
    %413 = vector.broadcast %412 : vector<1x64xf32> to vector<8x64xf32>
    %414 = arith.mulf %409, %413 : vector<8x64xf32>
    %415 = arith.truncf %414 : vector<8x64xf32> to vector<8x64xbf16>
    %c304 = arith.constant 304 : index
    %c0_124 = arith.constant 0 : index
    %416 = vector.load %arg11[%c304, %c0_124] : memref<1024x64xbf16, #tpu.memory_space<vmem>>, vector<8x64xbf16>
    tpu.vector_store %arg11[%c304, %c0_124], %415 {strides = array<i32>} : memref<1024x64xbf16, #tpu.memory_space<vmem>>, vector<8x64xbf16>,
    %417 = vector.extract_strided_slice %83 {offsets = [40, 0], sizes = [8, 64], strides = [1, 1]} : vector<64x64xf32> to vector<8x64xf32>
    %418 = vector.extract_strided_slice %417 {offsets = [0, 63], sizes = [8, 1], strides = [1, 1]} : vector<8x64xf32> to vector<8x1xf32>
    %419 = vector.extract_strided_slice %417 {offsets = [0, 0], sizes = [8, 63], strides = [1, 1]} : vector<8x64xf32> to vector<8x63xf32>
    %420 = tpu.concatenate %418, %419 in 1 : vector<8x1xf32>, vector<8x63xf32> -> vector<8x64xf32>
    %c12_125 = arith.constant 12 : index
    %c0_126 = arith.constant 0 : index
    %421 = vector.load %arg9[%c12_125, %c0_126] : memref<27x64xf32, #tpu.memory_space<vmem>>, vector<1x64xf32>
    %422 = vector.shape_cast %421 : vector<1x64xf32> to vector<64xf32>
    %423 = vector.shape_cast %422 : vector<64xf32> to vector<1x64xf32>
    %424 = vector.broadcast %423 : vector<1x64xf32> to vector<8x64xf32>
    %425 = arith.mulf %420, %424 : vector<8x64xf32>
    %426 = arith.truncf %425 : vector<8x64xf32> to vector<8x64xbf16>
    %c312 = arith.constant 312 : index
    %c0_127 = arith.constant 0 : index
    %427 = vector.load %arg11[%c312, %c0_127] : memref<1024x64xbf16, #tpu.memory_space<vmem>>, vector<8x64xbf16>
    tpu.vector_store %arg11[%c312, %c0_127], %426 {strides = array<i32>} : memref<1024x64xbf16, #tpu.memory_space<vmem>>, vector<8x64xbf16>,
    %428 = vector.extract_strided_slice %81 {offsets = [48, 0], sizes = [8, 64], strides = [1, 1]} : vector<64x64xf32> to vector<8x64xf32>
    %429 = arith.truncf %428 : vector<8x64xf32> to vector<8x64xbf16>
    %c320 = arith.constant 320 : index
    %c0_128 = arith.constant 0 : index
    %430 = vector.load %arg11[%c320, %c0_128] : memref<1024x64xbf16, #tpu.memory_space<vmem>>, vector<8x64xbf16>
    tpu.vector_store %arg11[%c320, %c0_128], %429 {strides = array<i32>} : memref<1024x64xbf16, #tpu.memory_space<vmem>>, vector<8x64xbf16>,
    %431 = vector.extract_strided_slice %83 {offsets = [48, 0], sizes = [8, 64], strides = [1, 1]} : vector<64x64xf32> to vector<8x64xf32>
    %432 = arith.truncf %431 : vector<8x64xf32> to vector<8x64xbf16>
    %c328 = arith.constant 328 : index
    %c0_129 = arith.constant 0 : index
    %433 = vector.load %arg11[%c328, %c0_129] : memref<1024x64xbf16, #tpu.memory_space<vmem>>, vector<8x64xbf16>
    tpu.vector_store %arg11[%c328, %c0_129], %432 {strides = array<i32>} : memref<1024x64xbf16, #tpu.memory_space<vmem>>, vector<8x64xbf16>,
    %434 = vector.extract_strided_slice %81 {offsets = [56, 0], sizes = [8, 64], strides = [1, 1]} : vector<64x64xf32> to vector<8x64xf32>
    %435 = arith.truncf %434 : vector<8x64xf32> to vector<8x64xbf16>
    %c336 = arith.constant 336 : index
    %c0_130 = arith.constant 0 : index
    %436 = vector.load %arg11[%c336, %c0_130] : memref<1024x64xbf16, #tpu.memory_space<vmem>>, vector<8x64xbf16>
    tpu.vector_store %arg11[%c336, %c0_130], %435 {strides = array<i32>} : memref<1024x64xbf16, #tpu.memory_space<vmem>>, vector<8x64xbf16>,
    %437 = vector.extract_strided_slice %83 {offsets = [56, 0], sizes = [8, 64], strides = [1, 1]} : vector<64x64xf32> to vector<8x64xf32>
    %438 = arith.truncf %437 : vector<8x64xf32> to vector<8x64xbf16>
    %c344 = arith.constant 344 : index
    %c0_131 = arith.constant 0 : index
    %439 = vector.load %arg11[%c344, %c0_131] : memref<1024x64xbf16, #tpu.memory_space<vmem>>, vector<8x64xbf16>
    tpu.vector_store %arg11[%c344, %c0_131], %438 {strides = array<i32>} : memref<1024x64xbf16, #tpu.memory_space<vmem>>, vector<8x64xbf16>,
    %440 = vector.extract_strided_slice %81 {offsets = [48, 0], sizes = [8, 64], strides = [1, 1]} : vector<64x64xf32> to vector<8x64xf32>
    %441 = vector.extract_strided_slice %440 {offsets = [0, 1], sizes = [8, 63], strides = [1, 1]} : vector<8x64xf32> to vector<8x63xf32>
    %442 = vector.extract_strided_slice %440 {offsets = [0, 0], sizes = [8, 1], strides = [1, 1]} : vector<8x64xf32> to vector<8x1xf32>
    %443 = tpu.concatenate %441, %442 in 1 : vector<8x63xf32>, vector<8x1xf32> -> vector<8x64xf32>
    %c14_132 = arith.constant 14 : index
    %c0_133 = arith.constant 0 : index
    %444 = vector.load %arg9[%c14_132, %c0_133] : memref<27x64xf32, #tpu.memory_space<vmem>>, vector<1x64xf32>
    %445 = vector.shape_cast %444 : vector<1x64xf32> to vector<64xf32>
    %446 = vector.shape_cast %445 : vector<64xf32> to vector<1x64xf32>
    %447 = vector.broadcast %446 : vector<1x64xf32> to vector<8x64xf32>
    %448 = arith.mulf %443, %447 : vector<8x64xf32>
    %449 = arith.truncf %448 : vector<8x64xf32> to vector<8x64xbf16>
    %c352 = arith.constant 352 : index
    %c0_134 = arith.constant 0 : index
    %450 = vector.load %arg11[%c352, %c0_134] : memref<1024x64xbf16, #tpu.memory_space<vmem>>, vector<8x64xbf16>
    tpu.vector_store %arg11[%c352, %c0_134], %449 {strides = array<i32>} : memref<1024x64xbf16, #tpu.memory_space<vmem>>, vector<8x64xbf16>,
    %451 = vector.extract_strided_slice %83 {offsets = [48, 0], sizes = [8, 64], strides = [1, 1]} : vector<64x64xf32> to vector<8x64xf32>
    %452 = vector.extract_strided_slice %451 {offsets = [0, 1], sizes = [8, 63], strides = [1, 1]} : vector<8x64xf32> to vector<8x63xf32>
    %453 = vector.extract_strided_slice %451 {offsets = [0, 0], sizes = [8, 1], strides = [1, 1]} : vector<8x64xf32> to vector<8x1xf32>
    %454 = tpu.concatenate %452, %453 in 1 : vector<8x63xf32>, vector<8x1xf32> -> vector<8x64xf32>
    %c14_135 = arith.constant 14 : index
    %c0_136 = arith.constant 0 : index
    %455 = vector.load %arg9[%c14_135, %c0_136] : memref<27x64xf32, #tpu.memory_space<vmem>>, vector<1x64xf32>
    %456 = vector.shape_cast %455 : vector<1x64xf32> to vector<64xf32>
    %457 = vector.shape_cast %456 : vector<64xf32> to vector<1x64xf32>
    %458 = vector.broadcast %457 : vector<1x64xf32> to vector<8x64xf32>
    %459 = arith.mulf %454, %458 : vector<8x64xf32>
    %460 = arith.truncf %459 : vector<8x64xf32> to vector<8x64xbf16>
    %c360 = arith.constant 360 : index
    %c0_137 = arith.constant 0 : index
    %461 = vector.load %arg11[%c360, %c0_137] : memref<1024x64xbf16, #tpu.memory_space<vmem>>, vector<8x64xbf16>
    tpu.vector_store %arg11[%c360, %c0_137], %460 {strides = array<i32>} : memref<1024x64xbf16, #tpu.memory_space<vmem>>, vector<8x64xbf16>,
    %462 = vector.extract_strided_slice %81 {offsets = [56, 0], sizes = [8, 64], strides = [1, 1]} : vector<64x64xf32> to vector<8x64xf32>
    %463 = vector.extract_strided_slice %462 {offsets = [0, 63], sizes = [8, 1], strides = [1, 1]} : vector<8x64xf32> to vector<8x1xf32>
    %464 = vector.extract_strided_slice %462 {offsets = [0, 0], sizes = [8, 63], strides = [1, 1]} : vector<8x64xf32> to vector<8x63xf32>
    %465 = tpu.concatenate %463, %464 in 1 : vector<8x1xf32>, vector<8x63xf32> -> vector<8x64xf32>
    %c12_138 = arith.constant 12 : index
    %c0_139 = arith.constant 0 : index
    %466 = vector.load %arg9[%c12_138, %c0_139] : memref<27x64xf32, #tpu.memory_space<vmem>>, vector<1x64xf32>
    %467 = vector.shape_cast %466 : vector<1x64xf32> to vector<64xf32>
    %468 = vector.shape_cast %467 : vector<64xf32> to vector<1x64xf32>
    %469 = vector.broadcast %468 : vector<1x64xf32> to vector<8x64xf32>
    %470 = arith.mulf %465, %469 : vector<8x64xf32>
    %471 = arith.truncf %470 : vector<8x64xf32> to vector<8x64xbf16>
    %c368 = arith.constant 368 : index
    %c0_140 = arith.constant 0 : index
    %472 = vector.load %arg11[%c368, %c0_140] : memref<1024x64xbf16, #tpu.memory_space<vmem>>, vector<8x64xbf16>
    tpu.vector_store %arg11[%c368, %c0_140], %471 {strides = array<i32>} : memref<1024x64xbf16, #tpu.memory_space<vmem>>, vector<8x64xbf16>,
    %473 = vector.extract_strided_slice %83 {offsets = [56, 0], sizes = [8, 64], strides = [1, 1]} : vector<64x64xf32> to vector<8x64xf32>
    %474 = vector.extract_strided_slice %473 {offsets = [0, 63], sizes = [8, 1], strides = [1, 1]} : vector<8x64xf32> to vector<8x1xf32>
    %475 = vector.extract_strided_slice %473 {offsets = [0, 0], sizes = [8, 63], strides = [1, 1]} : vector<8x64xf32> to vector<8x63xf32>
    %476 = tpu.concatenate %474, %475 in 1 : vector<8x1xf32>, vector<8x63xf32> -> vector<8x64xf32>
    %c12_141 = arith.constant 12 : index
    %c0_142 = arith.constant 0 : index
    %477 = vector.load %arg9[%c12_141, %c0_142] : memref<27x64xf32, #tpu.memory_space<vmem>>, vector<1x64xf32>
    %478 = vector.shape_cast %477 : vector<1x64xf32> to vector<64xf32>
    %479 = vector.shape_cast %478 : vector<64xf32> to vector<1x64xf32>
    %480 = vector.broadcast %479 : vector<1x64xf32> to vector<8x64xf32>
    %481 = arith.mulf %476, %480 : vector<8x64xf32>
    %482 = arith.truncf %481 : vector<8x64xf32> to vector<8x64xbf16>
    %c376 = arith.constant 376 : index
    %c0_143 = arith.constant 0 : index
    %483 = vector.load %arg11[%c376, %c0_143] : memref<1024x64xbf16, #tpu.memory_space<vmem>>, vector<8x64xbf16>
    tpu.vector_store %arg11[%c376, %c0_143], %482 {strides = array<i32>} : memref<1024x64xbf16, #tpu.memory_space<vmem>>, vector<8x64xbf16>,
    %484 = vector.extract_strided_slice %81 {offsets = [32, 0], sizes = [8, 64], strides = [1, 1]} : vector<64x64xf32> to vector<8x64xf32>
    %485 = vector.extract_strided_slice %484 {offsets = [0, 4], sizes = [8, 60], strides = [1, 1]} : vector<8x64xf32> to vector<8x60xf32>
    %486 = vector.extract_strided_slice %484 {offsets = [0, 0], sizes = [8, 4], strides = [1, 1]} : vector<8x64xf32> to vector<8x4xf32>
    %487 = tpu.concatenate %485, %486 in 1 : vector<8x60xf32>, vector<8x4xf32> -> vector<8x64xf32>
    %c16_144 = arith.constant 16 : index
    %c0_145 = arith.constant 0 : index
    %488 = vector.load %arg9[%c16_144, %c0_145] : memref<27x64xf32, #tpu.memory_space<vmem>>, vector<1x64xf32>
    %489 = vector.shape_cast %488 : vector<1x64xf32> to vector<64xf32>
    %490 = vector.shape_cast %489 : vector<64xf32> to vector<1x64xf32>
    %491 = vector.broadcast %490 : vector<1x64xf32> to vector<8x64xf32>
    %492 = arith.mulf %487, %491 : vector<8x64xf32>
    %493 = arith.truncf %492 : vector<8x64xf32> to vector<8x64xbf16>
    %c384 = arith.constant 384 : index
    %c0_146 = arith.constant 0 : index
    %494 = vector.load %arg11[%c384, %c0_146] : memref<1024x64xbf16, #tpu.memory_space<vmem>>, vector<8x64xbf16>
    tpu.vector_store %arg11[%c384, %c0_146], %493 {strides = array<i32>} : memref<1024x64xbf16, #tpu.memory_space<vmem>>, vector<8x64xbf16>,
    %495 = vector.extract_strided_slice %83 {offsets = [32, 0], sizes = [8, 64], strides = [1, 1]} : vector<64x64xf32> to vector<8x64xf32>
    %496 = vector.extract_strided_slice %495 {offsets = [0, 4], sizes = [8, 60], strides = [1, 1]} : vector<8x64xf32> to vector<8x60xf32>
    %497 = vector.extract_strided_slice %495 {offsets = [0, 0], sizes = [8, 4], strides = [1, 1]} : vector<8x64xf32> to vector<8x4xf32>
    %498 = tpu.concatenate %496, %497 in 1 : vector<8x60xf32>, vector<8x4xf32> -> vector<8x64xf32>
    %c16_147 = arith.constant 16 : index
    %c0_148 = arith.constant 0 : index
    %499 = vector.load %arg9[%c16_147, %c0_148] : memref<27x64xf32, #tpu.memory_space<vmem>>, vector<1x64xf32>
    %500 = vector.shape_cast %499 : vector<1x64xf32> to vector<64xf32>
    %501 = vector.shape_cast %500 : vector<64xf32> to vector<1x64xf32>
    %502 = vector.broadcast %501 : vector<1x64xf32> to vector<8x64xf32>
    %503 = arith.mulf %498, %502 : vector<8x64xf32>
    %504 = arith.truncf %503 : vector<8x64xf32> to vector<8x64xbf16>
    %c392 = arith.constant 392 : index
    %c0_149 = arith.constant 0 : index
    %505 = vector.load %arg11[%c392, %c0_149] : memref<1024x64xbf16, #tpu.memory_space<vmem>>, vector<8x64xbf16>
    tpu.vector_store %arg11[%c392, %c0_149], %504 {strides = array<i32>} : memref<1024x64xbf16, #tpu.memory_space<vmem>>, vector<8x64xbf16>,
    %506 = vector.extract_strided_slice %81 {offsets = [40, 0], sizes = [8, 64], strides = [1, 1]} : vector<64x64xf32> to vector<8x64xf32>
    %507 = vector.extract_strided_slice %506 {offsets = [0, 4], sizes = [8, 60], strides = [1, 1]} : vector<8x64xf32> to vector<8x60xf32>
    %508 = vector.extract_strided_slice %506 {offsets = [0, 0], sizes = [8, 4], strides = [1, 1]} : vector<8x64xf32> to vector<8x4xf32>
    %509 = tpu.concatenate %507, %508 in 1 : vector<8x60xf32>, vector<8x4xf32> -> vector<8x64xf32>
    %c16_150 = arith.constant 16 : index
    %c0_151 = arith.constant 0 : index
    %510 = vector.load %arg9[%c16_150, %c0_151] : memref<27x64xf32, #tpu.memory_space<vmem>>, vector<1x64xf32>
    %511 = vector.shape_cast %510 : vector<1x64xf32> to vector<64xf32>
    %512 = vector.shape_cast %511 : vector<64xf32> to vector<1x64xf32>
    %513 = vector.broadcast %512 : vector<1x64xf32> to vector<8x64xf32>
    %514 = arith.mulf %509, %513 : vector<8x64xf32>
    %515 = arith.truncf %514 : vector<8x64xf32> to vector<8x64xbf16>
    %c400 = arith.constant 400 : index
    %c0_152 = arith.constant 0 : index
    %516 = vector.load %arg11[%c400, %c0_152] : memref<1024x64xbf16, #tpu.memory_space<vmem>>, vector<8x64xbf16>
    tpu.vector_store %arg11[%c400, %c0_152], %515 {strides = array<i32>} : memref<1024x64xbf16, #tpu.memory_space<vmem>>, vector<8x64xbf16>,
    %517 = vector.extract_strided_slice %83 {offsets = [40, 0], sizes = [8, 64], strides = [1, 1]} : vector<64x64xf32> to vector<8x64xf32>
    %518 = vector.extract_strided_slice %517 {offsets = [0, 4], sizes = [8, 60], strides = [1, 1]} : vector<8x64xf32> to vector<8x60xf32>
    %519 = vector.extract_strided_slice %517 {offsets = [0, 0], sizes = [8, 4], strides = [1, 1]} : vector<8x64xf32> to vector<8x4xf32>
    %520 = tpu.concatenate %518, %519 in 1 : vector<8x60xf32>, vector<8x4xf32> -> vector<8x64xf32>
    %c16_153 = arith.constant 16 : index
    %c0_154 = arith.constant 0 : index
    %521 = vector.load %arg9[%c16_153, %c0_154] : memref<27x64xf32, #tpu.memory_space<vmem>>, vector<1x64xf32>
    %522 = vector.shape_cast %521 : vector<1x64xf32> to vector<64xf32>
    %523 = vector.shape_cast %522 : vector<64xf32> to vector<1x64xf32>
    %524 = vector.broadcast %523 : vector<1x64xf32> to vector<8x64xf32>
    %525 = arith.mulf %520, %524 : vector<8x64xf32>
    %526 = arith.truncf %525 : vector<8x64xf32> to vector<8x64xbf16>
    %c408 = arith.constant 408 : index
    %c0_155 = arith.constant 0 : index
    %527 = vector.load %arg11[%c408, %c0_155] : memref<1024x64xbf16, #tpu.memory_space<vmem>>, vector<8x64xbf16>
    tpu.vector_store %arg11[%c408, %c0_155], %526 {strides = array<i32>} : memref<1024x64xbf16, #tpu.memory_space<vmem>>, vector<8x64xbf16>,
    %528 = vector.extract_strided_slice %81 {offsets = [32, 0], sizes = [8, 64], strides = [1, 1]} : vector<64x64xf32> to vector<8x64xf32>
    %529 = vector.extract_strided_slice %528 {offsets = [0, 5], sizes = [8, 59], strides = [1, 1]} : vector<8x64xf32> to vector<8x59xf32>
    %530 = vector.extract_strided_slice %528 {offsets = [0, 0], sizes = [8, 5], strides = [1, 1]} : vector<8x64xf32> to vector<8x5xf32>
    %531 = tpu.concatenate %529, %530 in 1 : vector<8x59xf32>, vector<8x5xf32> -> vector<8x64xf32>
    %c17_156 = arith.constant 17 : index
    %c0_157 = arith.constant 0 : index
    %532 = vector.load %arg9[%c17_156, %c0_157] : memref<27x64xf32, #tpu.memory_space<vmem>>, vector<1x64xf32>
    %533 = vector.shape_cast %532 : vector<1x64xf32> to vector<64xf32>
    %534 = vector.shape_cast %533 : vector<64xf32> to vector<1x64xf32>
    %535 = vector.broadcast %534 : vector<1x64xf32> to vector<8x64xf32>
    %536 = arith.mulf %531, %535 : vector<8x64xf32>
    %537 = arith.truncf %536 : vector<8x64xf32> to vector<8x64xbf16>
    %c416 = arith.constant 416 : index
    %c0_158 = arith.constant 0 : index
    %538 = vector.load %arg11[%c416, %c0_158] : memref<1024x64xbf16, #tpu.memory_space<vmem>>, vector<8x64xbf16>
    tpu.vector_store %arg11[%c416, %c0_158], %537 {strides = array<i32>} : memref<1024x64xbf16, #tpu.memory_space<vmem>>, vector<8x64xbf16>,
    %539 = vector.extract_strided_slice %83 {offsets = [32, 0], sizes = [8, 64], strides = [1, 1]} : vector<64x64xf32> to vector<8x64xf32>
    %540 = vector.extract_strided_slice %539 {offsets = [0, 5], sizes = [8, 59], strides = [1, 1]} : vector<8x64xf32> to vector<8x59xf32>
    %541 = vector.extract_strided_slice %539 {offsets = [0, 0], sizes = [8, 5], strides = [1, 1]} : vector<8x64xf32> to vector<8x5xf32>
    %542 = tpu.concatenate %540, %541 in 1 : vector<8x59xf32>, vector<8x5xf32> -> vector<8x64xf32>
    %c17_159 = arith.constant 17 : index
    %c0_160 = arith.constant 0 : index
    %543 = vector.load %arg9[%c17_159, %c0_160] : memref<27x64xf32, #tpu.memory_space<vmem>>, vector<1x64xf32>
    %544 = vector.shape_cast %543 : vector<1x64xf32> to vector<64xf32>
    %545 = vector.shape_cast %544 : vector<64xf32> to vector<1x64xf32>
    %546 = vector.broadcast %545 : vector<1x64xf32> to vector<8x64xf32>
    %547 = arith.mulf %542, %546 : vector<8x64xf32>
    %548 = arith.truncf %547 : vector<8x64xf32> to vector<8x64xbf16>
    %c424 = arith.constant 424 : index
    %c0_161 = arith.constant 0 : index
    %549 = vector.load %arg11[%c424, %c0_161] : memref<1024x64xbf16, #tpu.memory_space<vmem>>, vector<8x64xbf16>
    tpu.vector_store %arg11[%c424, %c0_161], %548 {strides = array<i32>} : memref<1024x64xbf16, #tpu.memory_space<vmem>>, vector<8x64xbf16>,
    %550 = vector.extract_strided_slice %81 {offsets = [40, 0], sizes = [8, 64], strides = [1, 1]} : vector<64x64xf32> to vector<8x64xf32>
    %551 = vector.extract_strided_slice %550 {offsets = [0, 3], sizes = [8, 61], strides = [1, 1]} : vector<8x64xf32> to vector<8x61xf32>
    %552 = vector.extract_strided_slice %550 {offsets = [0, 0], sizes = [8, 3], strides = [1, 1]} : vector<8x64xf32> to vector<8x3xf32>
    %553 = tpu.concatenate %551, %552 in 1 : vector<8x61xf32>, vector<8x3xf32> -> vector<8x64xf32>
    %c15_162 = arith.constant 15 : index
    %c0_163 = arith.constant 0 : index
    %554 = vector.load %arg9[%c15_162, %c0_163] : memref<27x64xf32, #tpu.memory_space<vmem>>, vector<1x64xf32>
    %555 = vector.shape_cast %554 : vector<1x64xf32> to vector<64xf32>
    %556 = vector.shape_cast %555 : vector<64xf32> to vector<1x64xf32>
    %557 = vector.broadcast %556 : vector<1x64xf32> to vector<8x64xf32>
    %558 = arith.mulf %553, %557 : vector<8x64xf32>
    %559 = arith.truncf %558 : vector<8x64xf32> to vector<8x64xbf16>
    %c432 = arith.constant 432 : index
    %c0_164 = arith.constant 0 : index
    %560 = vector.load %arg11[%c432, %c0_164] : memref<1024x64xbf16, #tpu.memory_space<vmem>>, vector<8x64xbf16>
    tpu.vector_store %arg11[%c432, %c0_164], %559 {strides = array<i32>} : memref<1024x64xbf16, #tpu.memory_space<vmem>>, vector<8x64xbf16>,
    %561 = vector.extract_strided_slice %83 {offsets = [40, 0], sizes = [8, 64], strides = [1, 1]} : vector<64x64xf32> to vector<8x64xf32>
    %562 = vector.extract_strided_slice %561 {offsets = [0, 3], sizes = [8, 61], strides = [1, 1]} : vector<8x64xf32> to vector<8x61xf32>
    %563 = vector.extract_strided_slice %561 {offsets = [0, 0], sizes = [8, 3], strides = [1, 1]} : vector<8x64xf32> to vector<8x3xf32>
    %564 = tpu.concatenate %562, %563 in 1 : vector<8x61xf32>, vector<8x3xf32> -> vector<8x64xf32>
    %c15_165 = arith.constant 15 : index
    %c0_166 = arith.constant 0 : index
    %565 = vector.load %arg9[%c15_165, %c0_166] : memref<27x64xf32, #tpu.memory_space<vmem>>, vector<1x64xf32>
    %566 = vector.shape_cast %565 : vector<1x64xf32> to vector<64xf32>
    %567 = vector.shape_cast %566 : vector<64xf32> to vector<1x64xf32>
    %568 = vector.broadcast %567 : vector<1x64xf32> to vector<8x64xf32>
    %569 = arith.mulf %564, %568 : vector<8x64xf32>
    %570 = arith.truncf %569 : vector<8x64xf32> to vector<8x64xbf16>
    %c440 = arith.constant 440 : index
    %c0_167 = arith.constant 0 : index
    %571 = vector.load %arg11[%c440, %c0_167] : memref<1024x64xbf16, #tpu.memory_space<vmem>>, vector<8x64xbf16>
    tpu.vector_store %arg11[%c440, %c0_167], %570 {strides = array<i32>} : memref<1024x64xbf16, #tpu.memory_space<vmem>>, vector<8x64xbf16>,
    %572 = vector.extract_strided_slice %81 {offsets = [48, 0], sizes = [8, 64], strides = [1, 1]} : vector<64x64xf32> to vector<8x64xf32>
    %573 = vector.extract_strided_slice %572 {offsets = [0, 60], sizes = [8, 4], strides = [1, 1]} : vector<8x64xf32> to vector<8x4xf32>
    %574 = vector.extract_strided_slice %572 {offsets = [0, 0], sizes = [8, 60], strides = [1, 1]} : vector<8x64xf32> to vector<8x60xf32>
    %575 = tpu.concatenate %573, %574 in 1 : vector<8x4xf32>, vector<8x60xf32> -> vector<8x64xf32>
    %c10_168 = arith.constant 10 : index
    %c0_169 = arith.constant 0 : index
    %576 = vector.load %arg9[%c10_168, %c0_169] : memref<27x64xf32, #tpu.memory_space<vmem>>, vector<1x64xf32>
    %577 = vector.shape_cast %576 : vector<1x64xf32> to vector<64xf32>
    %578 = vector.shape_cast %577 : vector<64xf32> to vector<1x64xf32>
    %579 = vector.broadcast %578 : vector<1x64xf32> to vector<8x64xf32>
    %580 = arith.mulf %575, %579 : vector<8x64xf32>
    %581 = arith.truncf %580 : vector<8x64xf32> to vector<8x64xbf16>
    %c448 = arith.constant 448 : index
    %c0_170 = arith.constant 0 : index
    %582 = vector.load %arg11[%c448, %c0_170] : memref<1024x64xbf16, #tpu.memory_space<vmem>>, vector<8x64xbf16>
    tpu.vector_store %arg11[%c448, %c0_170], %581 {strides = array<i32>} : memref<1024x64xbf16, #tpu.memory_space<vmem>>, vector<8x64xbf16>,
    %583 = vector.extract_strided_slice %83 {offsets = [48, 0], sizes = [8, 64], strides = [1, 1]} : vector<64x64xf32> to vector<8x64xf32>
    %584 = vector.extract_strided_slice %583 {offsets = [0, 60], sizes = [8, 4], strides = [1, 1]} : vector<8x64xf32> to vector<8x4xf32>
    %585 = vector.extract_strided_slice %583 {offsets = [0, 0], sizes = [8, 60], strides = [1, 1]} : vector<8x64xf32> to vector<8x60xf32>
    %586 = tpu.concatenate %584, %585 in 1 : vector<8x4xf32>, vector<8x60xf32> -> vector<8x64xf32>
    %c10_171 = arith.constant 10 : index
    %c0_172 = arith.constant 0 : index
    %587 = vector.load %arg9[%c10_171, %c0_172] : memref<27x64xf32, #tpu.memory_space<vmem>>, vector<1x64xf32>
    %588 = vector.shape_cast %587 : vector<1x64xf32> to vector<64xf32>
    %589 = vector.shape_cast %588 : vector<64xf32> to vector<1x64xf32>
    %590 = vector.broadcast %589 : vector<1x64xf32> to vector<8x64xf32>
    %591 = arith.mulf %586, %590 : vector<8x64xf32>
    %592 = arith.truncf %591 : vector<8x64xf32> to vector<8x64xbf16>
    %c456 = arith.constant 456 : index
    %c0_173 = arith.constant 0 : index
    %593 = vector.load %arg11[%c456, %c0_173] : memref<1024x64xbf16, #tpu.memory_space<vmem>>, vector<8x64xbf16>
    tpu.vector_store %arg11[%c456, %c0_173], %592 {strides = array<i32>} : memref<1024x64xbf16, #tpu.memory_space<vmem>>, vector<8x64xbf16>,
    %594 = vector.extract_strided_slice %81 {offsets = [56, 0], sizes = [8, 64], strides = [1, 1]} : vector<64x64xf32> to vector<8x64xf32>
    %595 = vector.extract_strided_slice %594 {offsets = [0, 60], sizes = [8, 4], strides = [1, 1]} : vector<8x64xf32> to vector<8x4xf32>
    %596 = vector.extract_strided_slice %594 {offsets = [0, 0], sizes = [8, 60], strides = [1, 1]} : vector<8x64xf32> to vector<8x60xf32>
    %597 = tpu.concatenate %595, %596 in 1 : vector<8x4xf32>, vector<8x60xf32> -> vector<8x64xf32>
    %c10_174 = arith.constant 10 : index
    %c0_175 = arith.constant 0 : index
    %598 = vector.load %arg9[%c10_174, %c0_175] : memref<27x64xf32, #tpu.memory_space<vmem>>, vector<1x64xf32>
    %599 = vector.shape_cast %598 : vector<1x64xf32> to vector<64xf32>
    %600 = vector.shape_cast %599 : vector<64xf32> to vector<1x64xf32>
    %601 = vector.broadcast %600 : vector<1x64xf32> to vector<8x64xf32>
    %602 = arith.mulf %597, %601 : vector<8x64xf32>
    %603 = arith.truncf %602 : vector<8x64xf32> to vector<8x64xbf16>
    %c464 = arith.constant 464 : index
    %c0_176 = arith.constant 0 : index
    %604 = vector.load %arg11[%c464, %c0_176] : memref<1024x64xbf16, #tpu.memory_space<vmem>>, vector<8x64xbf16>
    tpu.vector_store %arg11[%c464, %c0_176], %603 {strides = array<i32>} : memref<1024x64xbf16, #tpu.memory_space<vmem>>, vector<8x64xbf16>,
    %605 = vector.extract_strided_slice %83 {offsets = [56, 0], sizes = [8, 64], strides = [1, 1]} : vector<64x64xf32> to vector<8x64xf32>
    %606 = vector.extract_strided_slice %605 {offsets = [0, 60], sizes = [8, 4], strides = [1, 1]} : vector<8x64xf32> to vector<8x4xf32>
    %607 = vector.extract_strided_slice %605 {offsets = [0, 0], sizes = [8, 60], strides = [1, 1]} : vector<8x64xf32> to vector<8x60xf32>
    %608 = tpu.concatenate %606, %607 in 1 : vector<8x4xf32>, vector<8x60xf32> -> vector<8x64xf32>
    %c10_177 = arith.constant 10 : index
    %c0_178 = arith.constant 0 : index
    %609 = vector.load %arg9[%c10_177, %c0_178] : memref<27x64xf32, #tpu.memory_space<vmem>>, vector<1x64xf32>
    %610 = vector.shape_cast %609 : vector<1x64xf32> to vector<64xf32>
    %611 = vector.shape_cast %610 : vector<64xf32> to vector<1x64xf32>
    %612 = vector.broadcast %611 : vector<1x64xf32> to vector<8x64xf32>
    %613 = arith.mulf %608, %612 : vector<8x64xf32>
    %614 = arith.truncf %613 : vector<8x64xf32> to vector<8x64xbf16>
    %c472 = arith.constant 472 : index
    %c0_179 = arith.constant 0 : index
    %615 = vector.load %arg11[%c472, %c0_179] : memref<1024x64xbf16, #tpu.memory_space<vmem>>, vector<8x64xbf16>
    tpu.vector_store %arg11[%c472, %c0_179], %614 {strides = array<i32>} : memref<1024x64xbf16, #tpu.memory_space<vmem>>, vector<8x64xbf16>,
    %616 = vector.extract_strided_slice %81 {offsets = [48, 0], sizes = [8, 64], strides = [1, 1]} : vector<64x64xf32> to vector<8x64xf32>
    %617 = vector.extract_strided_slice %616 {offsets = [0, 61], sizes = [8, 3], strides = [1, 1]} : vector<8x64xf32> to vector<8x3xf32>
    %618 = vector.extract_strided_slice %616 {offsets = [0, 0], sizes = [8, 61], strides = [1, 1]} : vector<8x64xf32> to vector<8x61xf32>
    %619 = tpu.concatenate %617, %618 in 1 : vector<8x3xf32>, vector<8x61xf32> -> vector<8x64xf32>
    %c11_180 = arith.constant 11 : index
    %c0_181 = arith.constant 0 : index
    %620 = vector.load %arg9[%c11_180, %c0_181] : memref<27x64xf32, #tpu.memory_space<vmem>>, vector<1x64xf32>
    %621 = vector.shape_cast %620 : vector<1x64xf32> to vector<64xf32>
    %622 = vector.shape_cast %621 : vector<64xf32> to vector<1x64xf32>
    %623 = vector.broadcast %622 : vector<1x64xf32> to vector<8x64xf32>
    %624 = arith.mulf %619, %623 : vector<8x64xf32>
    %625 = arith.truncf %624 : vector<8x64xf32> to vector<8x64xbf16>
    %c480 = arith.constant 480 : index
    %c0_182 = arith.constant 0 : index
    %626 = vector.load %arg11[%c480, %c0_182] : memref<1024x64xbf16, #tpu.memory_space<vmem>>, vector<8x64xbf16>
    tpu.vector_store %arg11[%c480, %c0_182], %625 {strides = array<i32>} : memref<1024x64xbf16, #tpu.memory_space<vmem>>, vector<8x64xbf16>,
    %627 = vector.extract_strided_slice %83 {offsets = [48, 0], sizes = [8, 64], strides = [1, 1]} : vector<64x64xf32> to vector<8x64xf32>
    %628 = vector.extract_strided_slice %627 {offsets = [0, 61], sizes = [8, 3], strides = [1, 1]} : vector<8x64xf32> to vector<8x3xf32>
    %629 = vector.extract_strided_slice %627 {offsets = [0, 0], sizes = [8, 61], strides = [1, 1]} : vector<8x64xf32> to vector<8x61xf32>
    %630 = tpu.concatenate %628, %629 in 1 : vector<8x3xf32>, vector<8x61xf32> -> vector<8x64xf32>
    %c11_183 = arith.constant 11 : index
    %c0_184 = arith.constant 0 : index
    %631 = vector.load %arg9[%c11_183, %c0_184] : memref<27x64xf32, #tpu.memory_space<vmem>>, vector<1x64xf32>
    %632 = vector.shape_cast %631 : vector<1x64xf32> to vector<64xf32>
    %633 = vector.shape_cast %632 : vector<64xf32> to vector<1x64xf32>
    %634 = vector.broadcast %633 : vector<1x64xf32> to vector<8x64xf32>
    %635 = arith.mulf %630, %634 : vector<8x64xf32>
    %636 = arith.truncf %635 : vector<8x64xf32> to vector<8x64xbf16>
    %c488 = arith.constant 488 : index
    %c0_185 = arith.constant 0 : index
    %637 = vector.load %arg11[%c488, %c0_185] : memref<1024x64xbf16, #tpu.memory_space<vmem>>, vector<8x64xbf16>
    tpu.vector_store %arg11[%c488, %c0_185], %636 {strides = array<i32>} : memref<1024x64xbf16, #tpu.memory_space<vmem>>, vector<8x64xbf16>,
    %638 = vector.extract_strided_slice %81 {offsets = [56, 0], sizes = [8, 64], strides = [1, 1]} : vector<64x64xf32> to vector<8x64xf32>
    %639 = vector.extract_strided_slice %638 {offsets = [0, 59], sizes = [8, 5], strides = [1, 1]} : vector<8x64xf32> to vector<8x5xf32>
    %640 = vector.extract_strided_slice %638 {offsets = [0, 0], sizes = [8, 59], strides = [1, 1]} : vector<8x64xf32> to vector<8x59xf32>
    %641 = tpu.concatenate %639, %640 in 1 : vector<8x5xf32>, vector<8x59xf32> -> vector<8x64xf32>
    %c9_186 = arith.constant 9 : index
    %c0_187 = arith.constant 0 : index
    %642 = vector.load %arg9[%c9_186, %c0_187] : memref<27x64xf32, #tpu.memory_space<vmem>>, vector<1x64xf32>
    %643 = vector.shape_cast %642 : vector<1x64xf32> to vector<64xf32>
    %644 = vector.shape_cast %643 : vector<64xf32> to vector<1x64xf32>
    %645 = vector.broadcast %644 : vector<1x64xf32> to vector<8x64xf32>
    %646 = arith.mulf %641, %645 : vector<8x64xf32>
    %647 = arith.truncf %646 : vector<8x64xf32> to vector<8x64xbf16>
    %c496 = arith.constant 496 : index
    %c0_188 = arith.constant 0 : index
    %648 = vector.load %arg11[%c496, %c0_188] : memref<1024x64xbf16, #tpu.memory_space<vmem>>, vector<8x64xbf16>
    tpu.vector_store %arg11[%c496, %c0_188], %647 {strides = array<i32>} : memref<1024x64xbf16, #tpu.memory_space<vmem>>, vector<8x64xbf16>,
    %649 = vector.extract_strided_slice %83 {offsets = [56, 0], sizes = [8, 64], strides = [1, 1]} : vector<64x64xf32> to vector<8x64xf32>
    %650 = vector.extract_strided_slice %649 {offsets = [0, 59], sizes = [8, 5], strides = [1, 1]} : vector<8x64xf32> to vector<8x5xf32>
    %651 = vector.extract_strided_slice %649 {offsets = [0, 0], sizes = [8, 59], strides = [1, 1]} : vector<8x64xf32> to vector<8x59xf32>
    %652 = tpu.concatenate %650, %651 in 1 : vector<8x5xf32>, vector<8x59xf32> -> vector<8x64xf32>
    %c9_189 = arith.constant 9 : index
    %c0_190 = arith.constant 0 : index
    %653 = vector.load %arg9[%c9_189, %c0_190] : memref<27x64xf32, #tpu.memory_space<vmem>>, vector<1x64xf32>
    %654 = vector.shape_cast %653 : vector<1x64xf32> to vector<64xf32>
    %655 = vector.shape_cast %654 : vector<64xf32> to vector<1x64xf32>
    %656 = vector.broadcast %655 : vector<1x64xf32> to vector<8x64xf32>
    %657 = arith.mulf %652, %656 : vector<8x64xf32>
    %658 = arith.truncf %657 : vector<8x64xf32> to vector<8x64xbf16>
    %c504 = arith.constant 504 : index
    %c0_191 = arith.constant 0 : index
    %659 = vector.load %arg11[%c504, %c0_191] : memref<1024x64xbf16, #tpu.memory_space<vmem>>, vector<8x64xbf16>
    tpu.vector_store %arg11[%c504, %c0_191], %658 {strides = array<i32>} : memref<1024x64xbf16, #tpu.memory_space<vmem>>, vector<8x64xbf16>,
    %660 = vector.extract_strided_slice %81 {offsets = [0, 0], sizes = [8, 64], strides = [1, 1]} : vector<64x64xf32> to vector<8x64xf32>
    %661 = vector.extract_strided_slice %660 {offsets = [0, 16], sizes = [8, 48], strides = [1, 1]} : vector<8x64xf32> to vector<8x48xf32>
    %662 = vector.extract_strided_slice %660 {offsets = [0, 0], sizes = [8, 16], strides = [1, 1]} : vector<8x64xf32> to vector<8x16xf32>
    %663 = tpu.concatenate %661, %662 in 1 : vector<8x48xf32>, vector<8x16xf32> -> vector<8x64xf32>
    %c22_192 = arith.constant 22 : index
    %c0_193 = arith.constant 0 : index
    %664 = vector.load %arg9[%c22_192, %c0_193] : memref<27x64xf32, #tpu.memory_space<vmem>>, vector<1x64xf32>
    %665 = vector.shape_cast %664 : vector<1x64xf32> to vector<64xf32>
    %666 = vector.shape_cast %665 : vector<64xf32> to vector<1x64xf32>
    %667 = vector.broadcast %666 : vector<1x64xf32> to vector<8x64xf32>
    %668 = arith.mulf %663, %667 : vector<8x64xf32>
    %669 = arith.truncf %668 : vector<8x64xf32> to vector<8x64xbf16>
    %c512 = arith.constant 512 : index
    %c0_194 = arith.constant 0 : index
    %670 = vector.load %arg11[%c512, %c0_194] : memref<1024x64xbf16, #tpu.memory_space<vmem>>, vector<8x64xbf16>
    tpu.vector_store %arg11[%c512, %c0_194], %669 {strides = array<i32>} : memref<1024x64xbf16, #tpu.memory_space<vmem>>, vector<8x64xbf16>,
    %671 = vector.extract_strided_slice %83 {offsets = [0, 0], sizes = [8, 64], strides = [1, 1]} : vector<64x64xf32> to vector<8x64xf32>
    %672 = vector.extract_strided_slice %671 {offsets = [0, 16], sizes = [8, 48], strides = [1, 1]} : vector<8x64xf32> to vector<8x48xf32>
    %673 = vector.extract_strided_slice %671 {offsets = [0, 0], sizes = [8, 16], strides = [1, 1]} : vector<8x64xf32> to vector<8x16xf32>
    %674 = tpu.concatenate %672, %673 in 1 : vector<8x48xf32>, vector<8x16xf32> -> vector<8x64xf32>
    %c22_195 = arith.constant 22 : index
    %c0_196 = arith.constant 0 : index
    %675 = vector.load %arg9[%c22_195, %c0_196] : memref<27x64xf32, #tpu.memory_space<vmem>>, vector<1x64xf32>
    %676 = vector.shape_cast %675 : vector<1x64xf32> to vector<64xf32>
    %677 = vector.shape_cast %676 : vector<64xf32> to vector<1x64xf32>
    %678 = vector.broadcast %677 : vector<1x64xf32> to vector<8x64xf32>
    %679 = arith.mulf %674, %678 : vector<8x64xf32>
    %680 = arith.truncf %679 : vector<8x64xf32> to vector<8x64xbf16>
    %c520 = arith.constant 520 : index
    %c0_197 = arith.constant 0 : index
    %681 = vector.load %arg11[%c520, %c0_197] : memref<1024x64xbf16, #tpu.memory_space<vmem>>, vector<8x64xbf16>
    tpu.vector_store %arg11[%c520, %c0_197], %680 {strides = array<i32>} : memref<1024x64xbf16, #tpu.memory_space<vmem>>, vector<8x64xbf16>,
    %682 = vector.extract_strided_slice %81 {offsets = [8, 0], sizes = [8, 64], strides = [1, 1]} : vector<64x64xf32> to vector<8x64xf32>
    %683 = vector.extract_strided_slice %682 {offsets = [0, 16], sizes = [8, 48], strides = [1, 1]} : vector<8x64xf32> to vector<8x48xf32>
    %684 = vector.extract_strided_slice %682 {offsets = [0, 0], sizes = [8, 16], strides = [1, 1]} : vector<8x64xf32> to vector<8x16xf32>
    %685 = tpu.concatenate %683, %684 in 1 : vector<8x48xf32>, vector<8x16xf32> -> vector<8x64xf32>
    %c22_198 = arith.constant 22 : index
    %c0_199 = arith.constant 0 : index
    %686 = vector.load %arg9[%c22_198, %c0_199] : memref<27x64xf32, #tpu.memory_space<vmem>>, vector<1x64xf32>
    %687 = vector.shape_cast %686 : vector<1x64xf32> to vector<64xf32>
    %688 = vector.shape_cast %687 : vector<64xf32> to vector<1x64xf32>
    %689 = vector.broadcast %688 : vector<1x64xf32> to vector<8x64xf32>
    %690 = arith.mulf %685, %689 : vector<8x64xf32>
    %691 = arith.truncf %690 : vector<8x64xf32> to vector<8x64xbf16>
    %c528 = arith.constant 528 : index
    %c0_200 = arith.constant 0 : index
    %692 = vector.load %arg11[%c528, %c0_200] : memref<1024x64xbf16, #tpu.memory_space<vmem>>, vector<8x64xbf16>
    tpu.vector_store %arg11[%c528, %c0_200], %691 {strides = array<i32>} : memref<1024x64xbf16, #tpu.memory_space<vmem>>, vector<8x64xbf16>,
    %693 = vector.extract_strided_slice %83 {offsets = [8, 0], sizes = [8, 64], strides = [1, 1]} : vector<64x64xf32> to vector<8x64xf32>
    %694 = vector.extract_strided_slice %693 {offsets = [0, 16], sizes = [8, 48], strides = [1, 1]} : vector<8x64xf32> to vector<8x48xf32>
    %695 = vector.extract_strided_slice %693 {offsets = [0, 0], sizes = [8, 16], strides = [1, 1]} : vector<8x64xf32> to vector<8x16xf32>
    %696 = tpu.concatenate %694, %695 in 1 : vector<8x48xf32>, vector<8x16xf32> -> vector<8x64xf32>
    %c22_201 = arith.constant 22 : index
    %c0_202 = arith.constant 0 : index
    %697 = vector.load %arg9[%c22_201, %c0_202] : memref<27x64xf32, #tpu.memory_space<vmem>>, vector<1x64xf32>
    %698 = vector.shape_cast %697 : vector<1x64xf32> to vector<64xf32>
    %699 = vector.shape_cast %698 : vector<64xf32> to vector<1x64xf32>
    %700 = vector.broadcast %699 : vector<1x64xf32> to vector<8x64xf32>
    %701 = arith.mulf %696, %700 : vector<8x64xf32>
    %702 = arith.truncf %701 : vector<8x64xf32> to vector<8x64xbf16>
    %c536 = arith.constant 536 : index
    %c0_203 = arith.constant 0 : index
    %703 = vector.load %arg11[%c536, %c0_203] : memref<1024x64xbf16, #tpu.memory_space<vmem>>, vector<8x64xbf16>
    tpu.vector_store %arg11[%c536, %c0_203], %702 {strides = array<i32>} : memref<1024x64xbf16, #tpu.memory_space<vmem>>, vector<8x64xbf16>,
    %704 = vector.extract_strided_slice %81 {offsets = [0, 0], sizes = [8, 64], strides = [1, 1]} : vector<64x64xf32> to vector<8x64xf32>
    %705 = vector.extract_strided_slice %704 {offsets = [0, 17], sizes = [8, 47], strides = [1, 1]} : vector<8x64xf32> to vector<8x47xf32>
    %706 = vector.extract_strided_slice %704 {offsets = [0, 0], sizes = [8, 17], strides = [1, 1]} : vector<8x64xf32> to vector<8x17xf32>
    %707 = tpu.concatenate %705, %706 in 1 : vector<8x47xf32>, vector<8x17xf32> -> vector<8x64xf32>
    %c23_204 = arith.constant 23 : index
    %c0_205 = arith.constant 0 : index
    %708 = vector.load %arg9[%c23_204, %c0_205] : memref<27x64xf32, #tpu.memory_space<vmem>>, vector<1x64xf32>
    %709 = vector.shape_cast %708 : vector<1x64xf32> to vector<64xf32>
    %710 = vector.shape_cast %709 : vector<64xf32> to vector<1x64xf32>
    %711 = vector.broadcast %710 : vector<1x64xf32> to vector<8x64xf32>
    %712 = arith.mulf %707, %711 : vector<8x64xf32>
    %713 = arith.truncf %712 : vector<8x64xf32> to vector<8x64xbf16>
    %c544 = arith.constant 544 : index
    %c0_206 = arith.constant 0 : index
    %714 = vector.load %arg11[%c544, %c0_206] : memref<1024x64xbf16, #tpu.memory_space<vmem>>, vector<8x64xbf16>
    tpu.vector_store %arg11[%c544, %c0_206], %713 {strides = array<i32>} : memref<1024x64xbf16, #tpu.memory_space<vmem>>, vector<8x64xbf16>,
    %715 = vector.extract_strided_slice %83 {offsets = [0, 0], sizes = [8, 64], strides = [1, 1]} : vector<64x64xf32> to vector<8x64xf32>
    %716 = vector.extract_strided_slice %715 {offsets = [0, 17], sizes = [8, 47], strides = [1, 1]} : vector<8x64xf32> to vector<8x47xf32>
    %717 = vector.extract_strided_slice %715 {offsets = [0, 0], sizes = [8, 17], strides = [1, 1]} : vector<8x64xf32> to vector<8x17xf32>
    %718 = tpu.concatenate %716, %717 in 1 : vector<8x47xf32>, vector<8x17xf32> -> vector<8x64xf32>
    %c23_207 = arith.constant 23 : index
    %c0_208 = arith.constant 0 : index
    %719 = vector.load %arg9[%c23_207, %c0_208] : memref<27x64xf32, #tpu.memory_space<vmem>>, vector<1x64xf32>
    %720 = vector.shape_cast %719 : vector<1x64xf32> to vector<64xf32>
    %721 = vector.shape_cast %720 : vector<64xf32> to vector<1x64xf32>
    %722 = vector.broadcast %721 : vector<1x64xf32> to vector<8x64xf32>
    %723 = arith.mulf %718, %722 : vector<8x64xf32>
    %724 = arith.truncf %723 : vector<8x64xf32> to vector<8x64xbf16>
    %c552 = arith.constant 552 : index
    %c0_209 = arith.constant 0 : index
    %725 = vector.load %arg11[%c552, %c0_209] : memref<1024x64xbf16, #tpu.memory_space<vmem>>, vector<8x64xbf16>
    tpu.vector_store %arg11[%c552, %c0_209], %724 {strides = array<i32>} : memref<1024x64xbf16, #tpu.memory_space<vmem>>, vector<8x64xbf16>,
    %726 = vector.extract_strided_slice %81 {offsets = [8, 0], sizes = [8, 64], strides = [1, 1]} : vector<64x64xf32> to vector<8x64xf32>
    %727 = vector.extract_strided_slice %726 {offsets = [0, 15], sizes = [8, 49], strides = [1, 1]} : vector<8x64xf32> to vector<8x49xf32>
    %728 = vector.extract_strided_slice %726 {offsets = [0, 0], sizes = [8, 15], strides = [1, 1]} : vector<8x64xf32> to vector<8x15xf32>
    %729 = tpu.concatenate %727, %728 in 1 : vector<8x49xf32>, vector<8x15xf32> -> vector<8x64xf32>
    %c21 = arith.constant 21 : index
    %c0_210 = arith.constant 0 : index
    %730 = vector.load %arg9[%c21, %c0_210] : memref<27x64xf32, #tpu.memory_space<vmem>>, vector<1x64xf32>
    %731 = vector.shape_cast %730 : vector<1x64xf32> to vector<64xf32>
    %732 = vector.shape_cast %731 : vector<64xf32> to vector<1x64xf32>
    %733 = vector.broadcast %732 : vector<1x64xf32> to vector<8x64xf32>
    %734 = arith.mulf %729, %733 : vector<8x64xf32>
    %735 = arith.truncf %734 : vector<8x64xf32> to vector<8x64xbf16>
    %c560 = arith.constant 560 : index
    %c0_211 = arith.constant 0 : index
    %736 = vector.load %arg11[%c560, %c0_211] : memref<1024x64xbf16, #tpu.memory_space<vmem>>, vector<8x64xbf16>
    tpu.vector_store %arg11[%c560, %c0_211], %735 {strides = array<i32>} : memref<1024x64xbf16, #tpu.memory_space<vmem>>, vector<8x64xbf16>,
    %737 = vector.extract_strided_slice %83 {offsets = [8, 0], sizes = [8, 64], strides = [1, 1]} : vector<64x64xf32> to vector<8x64xf32>
    %738 = vector.extract_strided_slice %737 {offsets = [0, 15], sizes = [8, 49], strides = [1, 1]} : vector<8x64xf32> to vector<8x49xf32>
    %739 = vector.extract_strided_slice %737 {offsets = [0, 0], sizes = [8, 15], strides = [1, 1]} : vector<8x64xf32> to vector<8x15xf32>
    %740 = tpu.concatenate %738, %739 in 1 : vector<8x49xf32>, vector<8x15xf32> -> vector<8x64xf32>
    %c21_212 = arith.constant 21 : index
    %c0_213 = arith.constant 0 : index
    %741 = vector.load %arg9[%c21_212, %c0_213] : memref<27x64xf32, #tpu.memory_space<vmem>>, vector<1x64xf32>
    %742 = vector.shape_cast %741 : vector<1x64xf32> to vector<64xf32>
    %743 = vector.shape_cast %742 : vector<64xf32> to vector<1x64xf32>
    %744 = vector.broadcast %743 : vector<1x64xf32> to vector<8x64xf32>
    %745 = arith.mulf %740, %744 : vector<8x64xf32>
    %746 = arith.truncf %745 : vector<8x64xf32> to vector<8x64xbf16>
    %c568 = arith.constant 568 : index
    %c0_214 = arith.constant 0 : index
    %747 = vector.load %arg11[%c568, %c0_214] : memref<1024x64xbf16, #tpu.memory_space<vmem>>, vector<8x64xbf16>
    tpu.vector_store %arg11[%c568, %c0_214], %746 {strides = array<i32>} : memref<1024x64xbf16, #tpu.memory_space<vmem>>, vector<8x64xbf16>,
    %748 = vector.extract_strided_slice %81 {offsets = [16, 0], sizes = [8, 64], strides = [1, 1]} : vector<64x64xf32> to vector<8x64xf32>
    %749 = vector.extract_strided_slice %748 {offsets = [0, 16], sizes = [8, 48], strides = [1, 1]} : vector<8x64xf32> to vector<8x48xf32>
    %750 = vector.extract_strided_slice %748 {offsets = [0, 0], sizes = [8, 16], strides = [1, 1]} : vector<8x64xf32> to vector<8x16xf32>
    %751 = tpu.concatenate %749, %750 in 1 : vector<8x48xf32>, vector<8x16xf32> -> vector<8x64xf32>
    %c22_215 = arith.constant 22 : index
    %c0_216 = arith.constant 0 : index
    %752 = vector.load %arg9[%c22_215, %c0_216] : memref<27x64xf32, #tpu.memory_space<vmem>>, vector<1x64xf32>
    %753 = vector.shape_cast %752 : vector<1x64xf32> to vector<64xf32>
    %754 = vector.shape_cast %753 : vector<64xf32> to vector<1x64xf32>
    %755 = vector.broadcast %754 : vector<1x64xf32> to vector<8x64xf32>
    %756 = arith.mulf %751, %755 : vector<8x64xf32>
    %757 = arith.truncf %756 : vector<8x64xf32> to vector<8x64xbf16>
    %c576 = arith.constant 576 : index
    %c0_217 = arith.constant 0 : index
    %758 = vector.load %arg11[%c576, %c0_217] : memref<1024x64xbf16, #tpu.memory_space<vmem>>, vector<8x64xbf16>
    tpu.vector_store %arg11[%c576, %c0_217], %757 {strides = array<i32>} : memref<1024x64xbf16, #tpu.memory_space<vmem>>, vector<8x64xbf16>,
    %759 = vector.extract_strided_slice %83 {offsets = [16, 0], sizes = [8, 64], strides = [1, 1]} : vector<64x64xf32> to vector<8x64xf32>
    %760 = vector.extract_strided_slice %759 {offsets = [0, 16], sizes = [8, 48], strides = [1, 1]} : vector<8x64xf32> to vector<8x48xf32>
    %761 = vector.extract_strided_slice %759 {offsets = [0, 0], sizes = [8, 16], strides = [1, 1]} : vector<8x64xf32> to vector<8x16xf32>
    %762 = tpu.concatenate %760, %761 in 1 : vector<8x48xf32>, vector<8x16xf32> -> vector<8x64xf32>
    %c22_218 = arith.constant 22 : index
    %c0_219 = arith.constant 0 : index
    %763 = vector.load %arg9[%c22_218, %c0_219] : memref<27x64xf32, #tpu.memory_space<vmem>>, vector<1x64xf32>
    %764 = vector.shape_cast %763 : vector<1x64xf32> to vector<64xf32>
    %765 = vector.shape_cast %764 : vector<64xf32> to vector<1x64xf32>
    %766 = vector.broadcast %765 : vector<1x64xf32> to vector<8x64xf32>
    %767 = arith.mulf %762, %766 : vector<8x64xf32>
    %768 = arith.truncf %767 : vector<8x64xf32> to vector<8x64xbf16>
    %c584 = arith.constant 584 : index
    %c0_220 = arith.constant 0 : index
    %769 = vector.load %arg11[%c584, %c0_220] : memref<1024x64xbf16, #tpu.memory_space<vmem>>, vector<8x64xbf16>
    tpu.vector_store %arg11[%c584, %c0_220], %768 {strides = array<i32>} : memref<1024x64xbf16, #tpu.memory_space<vmem>>, vector<8x64xbf16>,
    %770 = vector.extract_strided_slice %81 {offsets = [24, 0], sizes = [8, 64], strides = [1, 1]} : vector<64x64xf32> to vector<8x64xf32>
    %771 = vector.extract_strided_slice %770 {offsets = [0, 16], sizes = [8, 48], strides = [1, 1]} : vector<8x64xf32> to vector<8x48xf32>
    %772 = vector.extract_strided_slice %770 {offsets = [0, 0], sizes = [8, 16], strides = [1, 1]} : vector<8x64xf32> to vector<8x16xf32>
    %773 = tpu.concatenate %771, %772 in 1 : vector<8x48xf32>, vector<8x16xf32> -> vector<8x64xf32>
    %c22_221 = arith.constant 22 : index
    %c0_222 = arith.constant 0 : index
    %774 = vector.load %arg9[%c22_221, %c0_222] : memref<27x64xf32, #tpu.memory_space<vmem>>, vector<1x64xf32>
    %775 = vector.shape_cast %774 : vector<1x64xf32> to vector<64xf32>
    %776 = vector.shape_cast %775 : vector<64xf32> to vector<1x64xf32>
    %777 = vector.broadcast %776 : vector<1x64xf32> to vector<8x64xf32>
    %778 = arith.mulf %773, %777 : vector<8x64xf32>
    %779 = arith.truncf %778 : vector<8x64xf32> to vector<8x64xbf16>
    %c592 = arith.constant 592 : index
    %c0_223 = arith.constant 0 : index
    %780 = vector.load %arg11[%c592, %c0_223] : memref<1024x64xbf16, #tpu.memory_space<vmem>>, vector<8x64xbf16>
    tpu.vector_store %arg11[%c592, %c0_223], %779 {strides = array<i32>} : memref<1024x64xbf16, #tpu.memory_space<vmem>>, vector<8x64xbf16>,
    %781 = vector.extract_strided_slice %83 {offsets = [24, 0], sizes = [8, 64], strides = [1, 1]} : vector<64x64xf32> to vector<8x64xf32>
    %782 = vector.extract_strided_slice %781 {offsets = [0, 16], sizes = [8, 48], strides = [1, 1]} : vector<8x64xf32> to vector<8x48xf32>
    %783 = vector.extract_strided_slice %781 {offsets = [0, 0], sizes = [8, 16], strides = [1, 1]} : vector<8x64xf32> to vector<8x16xf32>
    %784 = tpu.concatenate %782, %783 in 1 : vector<8x48xf32>, vector<8x16xf32> -> vector<8x64xf32>
    %c22_224 = arith.constant 22 : index
    %c0_225 = arith.constant 0 : index
    %785 = vector.load %arg9[%c22_224, %c0_225] : memref<27x64xf32, #tpu.memory_space<vmem>>, vector<1x64xf32>
    %786 = vector.shape_cast %785 : vector<1x64xf32> to vector<64xf32>
    %787 = vector.shape_cast %786 : vector<64xf32> to vector<1x64xf32>
    %788 = vector.broadcast %787 : vector<1x64xf32> to vector<8x64xf32>
    %789 = arith.mulf %784, %788 : vector<8x64xf32>
    %790 = arith.truncf %789 : vector<8x64xf32> to vector<8x64xbf16>
    %c600 = arith.constant 600 : index
    %c0_226 = arith.constant 0 : index
    %791 = vector.load %arg11[%c600, %c0_226] : memref<1024x64xbf16, #tpu.memory_space<vmem>>, vector<8x64xbf16>
    tpu.vector_store %arg11[%c600, %c0_226], %790 {strides = array<i32>} : memref<1024x64xbf16, #tpu.memory_space<vmem>>, vector<8x64xbf16>,
    %792 = vector.extract_strided_slice %81 {offsets = [16, 0], sizes = [8, 64], strides = [1, 1]} : vector<64x64xf32> to vector<8x64xf32>
    %793 = vector.extract_strided_slice %792 {offsets = [0, 17], sizes = [8, 47], strides = [1, 1]} : vector<8x64xf32> to vector<8x47xf32>
    %794 = vector.extract_strided_slice %792 {offsets = [0, 0], sizes = [8, 17], strides = [1, 1]} : vector<8x64xf32> to vector<8x17xf32>
    %795 = tpu.concatenate %793, %794 in 1 : vector<8x47xf32>, vector<8x17xf32> -> vector<8x64xf32>
    %c23_227 = arith.constant 23 : index
    %c0_228 = arith.constant 0 : index
    %796 = vector.load %arg9[%c23_227, %c0_228] : memref<27x64xf32, #tpu.memory_space<vmem>>, vector<1x64xf32>
    %797 = vector.shape_cast %796 : vector<1x64xf32> to vector<64xf32>
    %798 = vector.shape_cast %797 : vector<64xf32> to vector<1x64xf32>
    %799 = vector.broadcast %798 : vector<1x64xf32> to vector<8x64xf32>
    %800 = arith.mulf %795, %799 : vector<8x64xf32>
    %801 = arith.truncf %800 : vector<8x64xf32> to vector<8x64xbf16>
    %c608 = arith.constant 608 : index
    %c0_229 = arith.constant 0 : index
    %802 = vector.load %arg11[%c608, %c0_229] : memref<1024x64xbf16, #tpu.memory_space<vmem>>, vector<8x64xbf16>
    tpu.vector_store %arg11[%c608, %c0_229], %801 {strides = array<i32>} : memref<1024x64xbf16, #tpu.memory_space<vmem>>, vector<8x64xbf16>,
    %803 = vector.extract_strided_slice %83 {offsets = [16, 0], sizes = [8, 64], strides = [1, 1]} : vector<64x64xf32> to vector<8x64xf32>
    %804 = vector.extract_strided_slice %803 {offsets = [0, 17], sizes = [8, 47], strides = [1, 1]} : vector<8x64xf32> to vector<8x47xf32>
    %805 = vector.extract_strided_slice %803 {offsets = [0, 0], sizes = [8, 17], strides = [1, 1]} : vector<8x64xf32> to vector<8x17xf32>
    %806 = tpu.concatenate %804, %805 in 1 : vector<8x47xf32>, vector<8x17xf32> -> vector<8x64xf32>
    %c23_230 = arith.constant 23 : index
    %c0_231 = arith.constant 0 : index
    %807 = vector.load %arg9[%c23_230, %c0_231] : memref<27x64xf32, #tpu.memory_space<vmem>>, vector<1x64xf32>
    %808 = vector.shape_cast %807 : vector<1x64xf32> to vector<64xf32>
    %809 = vector.shape_cast %808 : vector<64xf32> to vector<1x64xf32>
    %810 = vector.broadcast %809 : vector<1x64xf32> to vector<8x64xf32>
    %811 = arith.mulf %806, %810 : vector<8x64xf32>
    %812 = arith.truncf %811 : vector<8x64xf32> to vector<8x64xbf16>
    %c616 = arith.constant 616 : index
    %c0_232 = arith.constant 0 : index
    %813 = vector.load %arg11[%c616, %c0_232] : memref<1024x64xbf16, #tpu.memory_space<vmem>>, vector<8x64xbf16>
    tpu.vector_store %arg11[%c616, %c0_232], %812 {strides = array<i32>} : memref<1024x64xbf16, #tpu.memory_space<vmem>>, vector<8x64xbf16>,
    %814 = vector.extract_strided_slice %81 {offsets = [24, 0], sizes = [8, 64], strides = [1, 1]} : vector<64x64xf32> to vector<8x64xf32>
    %815 = vector.extract_strided_slice %814 {offsets = [0, 15], sizes = [8, 49], strides = [1, 1]} : vector<8x64xf32> to vector<8x49xf32>
    %816 = vector.extract_strided_slice %814 {offsets = [0, 0], sizes = [8, 15], strides = [1, 1]} : vector<8x64xf32> to vector<8x15xf32>
    %817 = tpu.concatenate %815, %816 in 1 : vector<8x49xf32>, vector<8x15xf32> -> vector<8x64xf32>
    %c21_233 = arith.constant 21 : index
    %c0_234 = arith.constant 0 : index
    %818 = vector.load %arg9[%c21_233, %c0_234] : memref<27x64xf32, #tpu.memory_space<vmem>>, vector<1x64xf32>
    %819 = vector.shape_cast %818 : vector<1x64xf32> to vector<64xf32>
    %820 = vector.shape_cast %819 : vector<64xf32> to vector<1x64xf32>
    %821 = vector.broadcast %820 : vector<1x64xf32> to vector<8x64xf32>
    %822 = arith.mulf %817, %821 : vector<8x64xf32>
    %823 = arith.truncf %822 : vector<8x64xf32> to vector<8x64xbf16>
    %c624 = arith.constant 624 : index
    %c0_235 = arith.constant 0 : index
    %824 = vector.load %arg11[%c624, %c0_235] : memref<1024x64xbf16, #tpu.memory_space<vmem>>, vector<8x64xbf16>
    tpu.vector_store %arg11[%c624, %c0_235], %823 {strides = array<i32>} : memref<1024x64xbf16, #tpu.memory_space<vmem>>, vector<8x64xbf16>,
    %825 = vector.extract_strided_slice %83 {offsets = [24, 0], sizes = [8, 64], strides = [1, 1]} : vector<64x64xf32> to vector<8x64xf32>
    %826 = vector.extract_strided_slice %825 {offsets = [0, 15], sizes = [8, 49], strides = [1, 1]} : vector<8x64xf32> to vector<8x49xf32>
    %827 = vector.extract_strided_slice %825 {offsets = [0, 0], sizes = [8, 15], strides = [1, 1]} : vector<8x64xf32> to vector<8x15xf32>
    %828 = tpu.concatenate %826, %827 in 1 : vector<8x49xf32>, vector<8x15xf32> -> vector<8x64xf32>
    %c21_236 = arith.constant 21 : index
    %c0_237 = arith.constant 0 : index
    %829 = vector.load %arg9[%c21_236, %c0_237] : memref<27x64xf32, #tpu.memory_space<vmem>>, vector<1x64xf32>
    %830 = vector.shape_cast %829 : vector<1x64xf32> to vector<64xf32>
    %831 = vector.shape_cast %830 : vector<64xf32> to vector<1x64xf32>
    %832 = vector.broadcast %831 : vector<1x64xf32> to vector<8x64xf32>
    %833 = arith.mulf %828, %832 : vector<8x64xf32>
    %834 = arith.truncf %833 : vector<8x64xf32> to vector<8x64xbf16>
    %c632 = arith.constant 632 : index
    %c0_238 = arith.constant 0 : index
    %835 = vector.load %arg11[%c632, %c0_238] : memref<1024x64xbf16, #tpu.memory_space<vmem>>, vector<8x64xbf16>
    tpu.vector_store %arg11[%c632, %c0_238], %834 {strides = array<i32>} : memref<1024x64xbf16, #tpu.memory_space<vmem>>, vector<8x64xbf16>,
    %836 = vector.extract_strided_slice %81 {offsets = [0, 0], sizes = [8, 64], strides = [1, 1]} : vector<64x64xf32> to vector<8x64xf32>
    %837 = vector.extract_strided_slice %836 {offsets = [0, 20], sizes = [8, 44], strides = [1, 1]} : vector<8x64xf32> to vector<8x44xf32>
    %838 = vector.extract_strided_slice %836 {offsets = [0, 0], sizes = [8, 20], strides = [1, 1]} : vector<8x64xf32> to vector<8x20xf32>
    %839 = tpu.concatenate %837, %838 in 1 : vector<8x44xf32>, vector<8x20xf32> -> vector<8x64xf32>
    %c25_239 = arith.constant 25 : index
    %c0_240 = arith.constant 0 : index
    %840 = vector.load %arg9[%c25_239, %c0_240] : memref<27x64xf32, #tpu.memory_space<vmem>>, vector<1x64xf32>
    %841 = vector.shape_cast %840 : vector<1x64xf32> to vector<64xf32>
    %842 = vector.shape_cast %841 : vector<64xf32> to vector<1x64xf32>
    %843 = vector.broadcast %842 : vector<1x64xf32> to vector<8x64xf32>
    %844 = arith.mulf %839, %843 : vector<8x64xf32>
    %845 = arith.truncf %844 : vector<8x64xf32> to vector<8x64xbf16>
    %c640 = arith.constant 640 : index
    %c0_241 = arith.constant 0 : index
    %846 = vector.load %arg11[%c640, %c0_241] : memref<1024x64xbf16, #tpu.memory_space<vmem>>, vector<8x64xbf16>
    tpu.vector_store %arg11[%c640, %c0_241], %845 {strides = array<i32>} : memref<1024x64xbf16, #tpu.memory_space<vmem>>, vector<8x64xbf16>,
    %847 = vector.extract_strided_slice %83 {offsets = [0, 0], sizes = [8, 64], strides = [1, 1]} : vector<64x64xf32> to vector<8x64xf32>
    %848 = vector.extract_strided_slice %847 {offsets = [0, 20], sizes = [8, 44], strides = [1, 1]} : vector<8x64xf32> to vector<8x44xf32>
    %849 = vector.extract_strided_slice %847 {offsets = [0, 0], sizes = [8, 20], strides = [1, 1]} : vector<8x64xf32> to vector<8x20xf32>
    %850 = tpu.concatenate %848, %849 in 1 : vector<8x44xf32>, vector<8x20xf32> -> vector<8x64xf32>
    %c25_242 = arith.constant 25 : index
    %c0_243 = arith.constant 0 : index
    %851 = vector.load %arg9[%c25_242, %c0_243] : memref<27x64xf32, #tpu.memory_space<vmem>>, vector<1x64xf32>
    %852 = vector.shape_cast %851 : vector<1x64xf32> to vector<64xf32>
    %853 = vector.shape_cast %852 : vector<64xf32> to vector<1x64xf32>
    %854 = vector.broadcast %853 : vector<1x64xf32> to vector<8x64xf32>
    %855 = arith.mulf %850, %854 : vector<8x64xf32>
    %856 = arith.truncf %855 : vector<8x64xf32> to vector<8x64xbf16>
    %c648 = arith.constant 648 : index
    %c0_244 = arith.constant 0 : index
    %857 = vector.load %arg11[%c648, %c0_244] : memref<1024x64xbf16, #tpu.memory_space<vmem>>, vector<8x64xbf16>
    tpu.vector_store %arg11[%c648, %c0_244], %856 {strides = array<i32>} : memref<1024x64xbf16, #tpu.memory_space<vmem>>, vector<8x64xbf16>,
    %858 = vector.extract_strided_slice %81 {offsets = [8, 0], sizes = [8, 64], strides = [1, 1]} : vector<64x64xf32> to vector<8x64xf32>
    %859 = vector.extract_strided_slice %858 {offsets = [0, 20], sizes = [8, 44], strides = [1, 1]} : vector<8x64xf32> to vector<8x44xf32>
    %860 = vector.extract_strided_slice %858 {offsets = [0, 0], sizes = [8, 20], strides = [1, 1]} : vector<8x64xf32> to vector<8x20xf32>
    %861 = tpu.concatenate %859, %860 in 1 : vector<8x44xf32>, vector<8x20xf32> -> vector<8x64xf32>
    %c25_245 = arith.constant 25 : index
    %c0_246 = arith.constant 0 : index
    %862 = vector.load %arg9[%c25_245, %c0_246] : memref<27x64xf32, #tpu.memory_space<vmem>>, vector<1x64xf32>
    %863 = vector.shape_cast %862 : vector<1x64xf32> to vector<64xf32>
    %864 = vector.shape_cast %863 : vector<64xf32> to vector<1x64xf32>
    %865 = vector.broadcast %864 : vector<1x64xf32> to vector<8x64xf32>
    %866 = arith.mulf %861, %865 : vector<8x64xf32>
    %867 = arith.truncf %866 : vector<8x64xf32> to vector<8x64xbf16>
    %c656 = arith.constant 656 : index
    %c0_247 = arith.constant 0 : index
    %868 = vector.load %arg11[%c656, %c0_247] : memref<1024x64xbf16, #tpu.memory_space<vmem>>, vector<8x64xbf16>
    tpu.vector_store %arg11[%c656, %c0_247], %867 {strides = array<i32>} : memref<1024x64xbf16, #tpu.memory_space<vmem>>, vector<8x64xbf16>,
    %869 = vector.extract_strided_slice %83 {offsets = [8, 0], sizes = [8, 64], strides = [1, 1]} : vector<64x64xf32> to vector<8x64xf32>
    %870 = vector.extract_strided_slice %869 {offsets = [0, 20], sizes = [8, 44], strides = [1, 1]} : vector<8x64xf32> to vector<8x44xf32>
    %871 = vector.extract_strided_slice %869 {offsets = [0, 0], sizes = [8, 20], strides = [1, 1]} : vector<8x64xf32> to vector<8x20xf32>
    %872 = tpu.concatenate %870, %871 in 1 : vector<8x44xf32>, vector<8x20xf32> -> vector<8x64xf32>
    %c25_248 = arith.constant 25 : index
    %c0_249 = arith.constant 0 : index
    %873 = vector.load %arg9[%c25_248, %c0_249] : memref<27x64xf32, #tpu.memory_space<vmem>>, vector<1x64xf32>
    %874 = vector.shape_cast %873 : vector<1x64xf32> to vector<64xf32>
    %875 = vector.shape_cast %874 : vector<64xf32> to vector<1x64xf32>
    %876 = vector.broadcast %875 : vector<1x64xf32> to vector<8x64xf32>
    %877 = arith.mulf %872, %876 : vector<8x64xf32>
    %878 = arith.truncf %877 : vector<8x64xf32> to vector<8x64xbf16>
    %c664 = arith.constant 664 : index
    %c0_250 = arith.constant 0 : index
    %879 = vector.load %arg11[%c664, %c0_250] : memref<1024x64xbf16, #tpu.memory_space<vmem>>, vector<8x64xbf16>
    tpu.vector_store %arg11[%c664, %c0_250], %878 {strides = array<i32>} : memref<1024x64xbf16, #tpu.memory_space<vmem>>, vector<8x64xbf16>,
    %880 = vector.extract_strided_slice %81 {offsets = [0, 0], sizes = [8, 64], strides = [1, 1]} : vector<64x64xf32> to vector<8x64xf32>
    %881 = vector.extract_strided_slice %880 {offsets = [0, 21], sizes = [8, 43], strides = [1, 1]} : vector<8x64xf32> to vector<8x43xf32>
    %882 = vector.extract_strided_slice %880 {offsets = [0, 0], sizes = [8, 21], strides = [1, 1]} : vector<8x64xf32> to vector<8x21xf32>
    %883 = tpu.concatenate %881, %882 in 1 : vector<8x43xf32>, vector<8x21xf32> -> vector<8x64xf32>
    %c26_251 = arith.constant 26 : index
    %c0_252 = arith.constant 0 : index
    %884 = vector.load %arg9[%c26_251, %c0_252] : memref<27x64xf32, #tpu.memory_space<vmem>>, vector<1x64xf32>
    %885 = vector.shape_cast %884 : vector<1x64xf32> to vector<64xf32>
    %886 = vector.shape_cast %885 : vector<64xf32> to vector<1x64xf32>
    %887 = vector.broadcast %886 : vector<1x64xf32> to vector<8x64xf32>
    %888 = arith.mulf %883, %887 : vector<8x64xf32>
    %889 = arith.truncf %888 : vector<8x64xf32> to vector<8x64xbf16>
    %c672 = arith.constant 672 : index
    %c0_253 = arith.constant 0 : index
    %890 = vector.load %arg11[%c672, %c0_253] : memref<1024x64xbf16, #tpu.memory_space<vmem>>, vector<8x64xbf16>
    tpu.vector_store %arg11[%c672, %c0_253], %889 {strides = array<i32>} : memref<1024x64xbf16, #tpu.memory_space<vmem>>, vector<8x64xbf16>,
    %891 = vector.extract_strided_slice %83 {offsets = [0, 0], sizes = [8, 64], strides = [1, 1]} : vector<64x64xf32> to vector<8x64xf32>
    %892 = vector.extract_strided_slice %891 {offsets = [0, 21], sizes = [8, 43], strides = [1, 1]} : vector<8x64xf32> to vector<8x43xf32>
    %893 = vector.extract_strided_slice %891 {offsets = [0, 0], sizes = [8, 21], strides = [1, 1]} : vector<8x64xf32> to vector<8x21xf32>
    %894 = tpu.concatenate %892, %893 in 1 : vector<8x43xf32>, vector<8x21xf32> -> vector<8x64xf32>
    %c26_254 = arith.constant 26 : index
    %c0_255 = arith.constant 0 : index
    %895 = vector.load %arg9[%c26_254, %c0_255] : memref<27x64xf32, #tpu.memory_space<vmem>>, vector<1x64xf32>
    %896 = vector.shape_cast %895 : vector<1x64xf32> to vector<64xf32>
    %897 = vector.shape_cast %896 : vector<64xf32> to vector<1x64xf32>
    %898 = vector.broadcast %897 : vector<1x64xf32> to vector<8x64xf32>
    %899 = arith.mulf %894, %898 : vector<8x64xf32>
    %900 = arith.truncf %899 : vector<8x64xf32> to vector<8x64xbf16>
    %c680 = arith.constant 680 : index
    %c0_256 = arith.constant 0 : index
    %901 = vector.load %arg11[%c680, %c0_256] : memref<1024x64xbf16, #tpu.memory_space<vmem>>, vector<8x64xbf16>
    tpu.vector_store %arg11[%c680, %c0_256], %900 {strides = array<i32>} : memref<1024x64xbf16, #tpu.memory_space<vmem>>, vector<8x64xbf16>,
    %902 = vector.extract_strided_slice %81 {offsets = [8, 0], sizes = [8, 64], strides = [1, 1]} : vector<64x64xf32> to vector<8x64xf32>
    %903 = vector.extract_strided_slice %902 {offsets = [0, 19], sizes = [8, 45], strides = [1, 1]} : vector<8x64xf32> to vector<8x45xf32>
    %904 = vector.extract_strided_slice %902 {offsets = [0, 0], sizes = [8, 19], strides = [1, 1]} : vector<8x64xf32> to vector<8x19xf32>
    %905 = tpu.concatenate %903, %904 in 1 : vector<8x45xf32>, vector<8x19xf32> -> vector<8x64xf32>
    %c24_257 = arith.constant 24 : index
    %c0_258 = arith.constant 0 : index
    %906 = vector.load %arg9[%c24_257, %c0_258] : memref<27x64xf32, #tpu.memory_space<vmem>>, vector<1x64xf32>
    %907 = vector.shape_cast %906 : vector<1x64xf32> to vector<64xf32>
    %908 = vector.shape_cast %907 : vector<64xf32> to vector<1x64xf32>
    %909 = vector.broadcast %908 : vector<1x64xf32> to vector<8x64xf32>
    %910 = arith.mulf %905, %909 : vector<8x64xf32>
    %911 = arith.truncf %910 : vector<8x64xf32> to vector<8x64xbf16>
    %c688 = arith.constant 688 : index
    %c0_259 = arith.constant 0 : index
    %912 = vector.load %arg11[%c688, %c0_259] : memref<1024x64xbf16, #tpu.memory_space<vmem>>, vector<8x64xbf16>
    tpu.vector_store %arg11[%c688, %c0_259], %911 {strides = array<i32>} : memref<1024x64xbf16, #tpu.memory_space<vmem>>, vector<8x64xbf16>,
    %913 = vector.extract_strided_slice %83 {offsets = [8, 0], sizes = [8, 64], strides = [1, 1]} : vector<64x64xf32> to vector<8x64xf32>
    %914 = vector.extract_strided_slice %913 {offsets = [0, 19], sizes = [8, 45], strides = [1, 1]} : vector<8x64xf32> to vector<8x45xf32>
    %915 = vector.extract_strided_slice %913 {offsets = [0, 0], sizes = [8, 19], strides = [1, 1]} : vector<8x64xf32> to vector<8x19xf32>
    %916 = tpu.concatenate %914, %915 in 1 : vector<8x45xf32>, vector<8x19xf32> -> vector<8x64xf32>
    %c24_260 = arith.constant 24 : index
    %c0_261 = arith.constant 0 : index
    %917 = vector.load %arg9[%c24_260, %c0_261] : memref<27x64xf32, #tpu.memory_space<vmem>>, vector<1x64xf32>
    %918 = vector.shape_cast %917 : vector<1x64xf32> to vector<64xf32>
    %919 = vector.shape_cast %918 : vector<64xf32> to vector<1x64xf32>
    %920 = vector.broadcast %919 : vector<1x64xf32> to vector<8x64xf32>
    %921 = arith.mulf %916, %920 : vector<8x64xf32>
    %922 = arith.truncf %921 : vector<8x64xf32> to vector<8x64xbf16>
    %c696 = arith.constant 696 : index
    %c0_262 = arith.constant 0 : index
    %923 = vector.load %arg11[%c696, %c0_262] : memref<1024x64xbf16, #tpu.memory_space<vmem>>, vector<8x64xbf16>
    tpu.vector_store %arg11[%c696, %c0_262], %922 {strides = array<i32>} : memref<1024x64xbf16, #tpu.memory_space<vmem>>, vector<8x64xbf16>,
    %924 = vector.extract_strided_slice %81 {offsets = [16, 0], sizes = [8, 64], strides = [1, 1]} : vector<64x64xf32> to vector<8x64xf32>
    %925 = vector.extract_strided_slice %924 {offsets = [0, 12], sizes = [8, 52], strides = [1, 1]} : vector<8x64xf32> to vector<8x52xf32>
    %926 = vector.extract_strided_slice %924 {offsets = [0, 0], sizes = [8, 12], strides = [1, 1]} : vector<8x64xf32> to vector<8x12xf32>
    %927 = tpu.concatenate %925, %926 in 1 : vector<8x52xf32>, vector<8x12xf32> -> vector<8x64xf32>
    %c19 = arith.constant 19 : index
    %c0_263 = arith.constant 0 : index
    %928 = vector.load %arg9[%c19, %c0_263] : memref<27x64xf32, #tpu.memory_space<vmem>>, vector<1x64xf32>
    %929 = vector.shape_cast %928 : vector<1x64xf32> to vector<64xf32>
    %930 = vector.shape_cast %929 : vector<64xf32> to vector<1x64xf32>
    %931 = vector.broadcast %930 : vector<1x64xf32> to vector<8x64xf32>
    %932 = arith.mulf %927, %931 : vector<8x64xf32>
    %933 = arith.truncf %932 : vector<8x64xf32> to vector<8x64xbf16>
    %c704 = arith.constant 704 : index
    %c0_264 = arith.constant 0 : index
    %934 = vector.load %arg11[%c704, %c0_264] : memref<1024x64xbf16, #tpu.memory_space<vmem>>, vector<8x64xbf16>
    tpu.vector_store %arg11[%c704, %c0_264], %933 {strides = array<i32>} : memref<1024x64xbf16, #tpu.memory_space<vmem>>, vector<8x64xbf16>,
    %935 = vector.extract_strided_slice %83 {offsets = [16, 0], sizes = [8, 64], strides = [1, 1]} : vector<64x64xf32> to vector<8x64xf32>
    %936 = vector.extract_strided_slice %935 {offsets = [0, 12], sizes = [8, 52], strides = [1, 1]} : vector<8x64xf32> to vector<8x52xf32>
    %937 = vector.extract_strided_slice %935 {offsets = [0, 0], sizes = [8, 12], strides = [1, 1]} : vector<8x64xf32> to vector<8x12xf32>
    %938 = tpu.concatenate %936, %937 in 1 : vector<8x52xf32>, vector<8x12xf32> -> vector<8x64xf32>
    %c19_265 = arith.constant 19 : index
    %c0_266 = arith.constant 0 : index
    %939 = vector.load %arg9[%c19_265, %c0_266] : memref<27x64xf32, #tpu.memory_space<vmem>>, vector<1x64xf32>
    %940 = vector.shape_cast %939 : vector<1x64xf32> to vector<64xf32>
    %941 = vector.shape_cast %940 : vector<64xf32> to vector<1x64xf32>
    %942 = vector.broadcast %941 : vector<1x64xf32> to vector<8x64xf32>
    %943 = arith.mulf %938, %942 : vector<8x64xf32>
    %944 = arith.truncf %943 : vector<8x64xf32> to vector<8x64xbf16>
    %c712 = arith.constant 712 : index
    %c0_267 = arith.constant 0 : index
    %945 = vector.load %arg11[%c712, %c0_267] : memref<1024x64xbf16, #tpu.memory_space<vmem>>, vector<8x64xbf16>
    tpu.vector_store %arg11[%c712, %c0_267], %944 {strides = array<i32>} : memref<1024x64xbf16, #tpu.memory_space<vmem>>, vector<8x64xbf16>,
    %946 = vector.extract_strided_slice %81 {offsets = [24, 0], sizes = [8, 64], strides = [1, 1]} : vector<64x64xf32> to vector<8x64xf32>
    %947 = vector.extract_strided_slice %946 {offsets = [0, 12], sizes = [8, 52], strides = [1, 1]} : vector<8x64xf32> to vector<8x52xf32>
    %948 = vector.extract_strided_slice %946 {offsets = [0, 0], sizes = [8, 12], strides = [1, 1]} : vector<8x64xf32> to vector<8x12xf32>
    %949 = tpu.concatenate %947, %948 in 1 : vector<8x52xf32>, vector<8x12xf32> -> vector<8x64xf32>
    %c19_268 = arith.constant 19 : index
    %c0_269 = arith.constant 0 : index
    %950 = vector.load %arg9[%c19_268, %c0_269] : memref<27x64xf32, #tpu.memory_space<vmem>>, vector<1x64xf32>
    %951 = vector.shape_cast %950 : vector<1x64xf32> to vector<64xf32>
    %952 = vector.shape_cast %951 : vector<64xf32> to vector<1x64xf32>
    %953 = vector.broadcast %952 : vector<1x64xf32> to vector<8x64xf32>
    %954 = arith.mulf %949, %953 : vector<8x64xf32>
    %955 = arith.truncf %954 : vector<8x64xf32> to vector<8x64xbf16>
    %c720 = arith.constant 720 : index
    %c0_270 = arith.constant 0 : index
    %956 = vector.load %arg11[%c720, %c0_270] : memref<1024x64xbf16, #tpu.memory_space<vmem>>, vector<8x64xbf16>
    tpu.vector_store %arg11[%c720, %c0_270], %955 {strides = array<i32>} : memref<1024x64xbf16, #tpu.memory_space<vmem>>, vector<8x64xbf16>,
    %957 = vector.extract_strided_slice %83 {offsets = [24, 0], sizes = [8, 64], strides = [1, 1]} : vector<64x64xf32> to vector<8x64xf32>
    %958 = vector.extract_strided_slice %957 {offsets = [0, 12], sizes = [8, 52], strides = [1, 1]} : vector<8x64xf32> to vector<8x52xf32>
    %959 = vector.extract_strided_slice %957 {offsets = [0, 0], sizes = [8, 12], strides = [1, 1]} : vector<8x64xf32> to vector<8x12xf32>
    %960 = tpu.concatenate %958, %959 in 1 : vector<8x52xf32>, vector<8x12xf32> -> vector<8x64xf32>
    %c19_271 = arith.constant 19 : index
    %c0_272 = arith.constant 0 : index
    %961 = vector.load %arg9[%c19_271, %c0_272] : memref<27x64xf32, #tpu.memory_space<vmem>>, vector<1x64xf32>
    %962 = vector.shape_cast %961 : vector<1x64xf32> to vector<64xf32>
    %963 = vector.shape_cast %962 : vector<64xf32> to vector<1x64xf32>
    %964 = vector.broadcast %963 : vector<1x64xf32> to vector<8x64xf32>
    %965 = arith.mulf %960, %964 : vector<8x64xf32>
    %966 = arith.truncf %965 : vector<8x64xf32> to vector<8x64xbf16>
    %c728 = arith.constant 728 : index
    %c0_273 = arith.constant 0 : index
    %967 = vector.load %arg11[%c728, %c0_273] : memref<1024x64xbf16, #tpu.memory_space<vmem>>, vector<8x64xbf16>
    tpu.vector_store %arg11[%c728, %c0_273], %966 {strides = array<i32>} : memref<1024x64xbf16, #tpu.memory_space<vmem>>, vector<8x64xbf16>,
    %968 = vector.extract_strided_slice %81 {offsets = [16, 0], sizes = [8, 64], strides = [1, 1]} : vector<64x64xf32> to vector<8x64xf32>
    %969 = vector.extract_strided_slice %968 {offsets = [0, 13], sizes = [8, 51], strides = [1, 1]} : vector<8x64xf32> to vector<8x51xf32>
    %970 = vector.extract_strided_slice %968 {offsets = [0, 0], sizes = [8, 13], strides = [1, 1]} : vector<8x64xf32> to vector<8x13xf32>
    %971 = tpu.concatenate %969, %970 in 1 : vector<8x51xf32>, vector<8x13xf32> -> vector<8x64xf32>
    %c20 = arith.constant 20 : index
    %c0_274 = arith.constant 0 : index
    %972 = vector.load %arg9[%c20, %c0_274] : memref<27x64xf32, #tpu.memory_space<vmem>>, vector<1x64xf32>
    %973 = vector.shape_cast %972 : vector<1x64xf32> to vector<64xf32>
    %974 = vector.shape_cast %973 : vector<64xf32> to vector<1x64xf32>
    %975 = vector.broadcast %974 : vector<1x64xf32> to vector<8x64xf32>
    %976 = arith.mulf %971, %975 : vector<8x64xf32>
    %977 = arith.truncf %976 : vector<8x64xf32> to vector<8x64xbf16>
    %c736 = arith.constant 736 : index
    %c0_275 = arith.constant 0 : index
    %978 = vector.load %arg11[%c736, %c0_275] : memref<1024x64xbf16, #tpu.memory_space<vmem>>, vector<8x64xbf16>
    tpu.vector_store %arg11[%c736, %c0_275], %977 {strides = array<i32>} : memref<1024x64xbf16, #tpu.memory_space<vmem>>, vector<8x64xbf16>,
    %979 = vector.extract_strided_slice %83 {offsets = [16, 0], sizes = [8, 64], strides = [1, 1]} : vector<64x64xf32> to vector<8x64xf32>
    %980 = vector.extract_strided_slice %979 {offsets = [0, 13], sizes = [8, 51], strides = [1, 1]} : vector<8x64xf32> to vector<8x51xf32>
    %981 = vector.extract_strided_slice %979 {offsets = [0, 0], sizes = [8, 13], strides = [1, 1]} : vector<8x64xf32> to vector<8x13xf32>
    %982 = tpu.concatenate %980, %981 in 1 : vector<8x51xf32>, vector<8x13xf32> -> vector<8x64xf32>
    %c20_276 = arith.constant 20 : index
    %c0_277 = arith.constant 0 : index
    %983 = vector.load %arg9[%c20_276, %c0_277] : memref<27x64xf32, #tpu.memory_space<vmem>>, vector<1x64xf32>
    %984 = vector.shape_cast %983 : vector<1x64xf32> to vector<64xf32>
    %985 = vector.shape_cast %984 : vector<64xf32> to vector<1x64xf32>
    %986 = vector.broadcast %985 : vector<1x64xf32> to vector<8x64xf32>
    %987 = arith.mulf %982, %986 : vector<8x64xf32>
    %988 = arith.truncf %987 : vector<8x64xf32> to vector<8x64xbf16>
    %c744 = arith.constant 744 : index
    %c0_278 = arith.constant 0 : index
    %989 = vector.load %arg11[%c744, %c0_278] : memref<1024x64xbf16, #tpu.memory_space<vmem>>, vector<8x64xbf16>
    tpu.vector_store %arg11[%c744, %c0_278], %988 {strides = array<i32>} : memref<1024x64xbf16, #tpu.memory_space<vmem>>, vector<8x64xbf16>,
    %990 = vector.extract_strided_slice %81 {offsets = [24, 0], sizes = [8, 64], strides = [1, 1]} : vector<64x64xf32> to vector<8x64xf32>
    %991 = vector.extract_strided_slice %990 {offsets = [0, 11], sizes = [8, 53], strides = [1, 1]} : vector<8x64xf32> to vector<8x53xf32>
    %992 = vector.extract_strided_slice %990 {offsets = [0, 0], sizes = [8, 11], strides = [1, 1]} : vector<8x64xf32> to vector<8x11xf32>
    %993 = tpu.concatenate %991, %992 in 1 : vector<8x53xf32>, vector<8x11xf32> -> vector<8x64xf32>
    %c18 = arith.constant 18 : index
    %c0_279 = arith.constant 0 : index
    %994 = vector.load %arg9[%c18, %c0_279] : memref<27x64xf32, #tpu.memory_space<vmem>>, vector<1x64xf32>
    %995 = vector.shape_cast %994 : vector<1x64xf32> to vector<64xf32>
    %996 = vector.shape_cast %995 : vector<64xf32> to vector<1x64xf32>
    %997 = vector.broadcast %996 : vector<1x64xf32> to vector<8x64xf32>
    %998 = arith.mulf %993, %997 : vector<8x64xf32>
    %999 = arith.truncf %998 : vector<8x64xf32> to vector<8x64xbf16>
    %c752 = arith.constant 752 : index
    %c0_280 = arith.constant 0 : index
    %1000 = vector.load %arg11[%c752, %c0_280] : memref<1024x64xbf16, #tpu.memory_space<vmem>>, vector<8x64xbf16>
    tpu.vector_store %arg11[%c752, %c0_280], %999 {strides = array<i32>} : memref<1024x64xbf16, #tpu.memory_space<vmem>>, vector<8x64xbf16>,
    %1001 = vector.extract_strided_slice %83 {offsets = [24, 0], sizes = [8, 64], strides = [1, 1]} : vector<64x64xf32> to vector<8x64xf32>
    %1002 = vector.extract_strided_slice %1001 {offsets = [0, 11], sizes = [8, 53], strides = [1, 1]} : vector<8x64xf32> to vector<8x53xf32>
    %1003 = vector.extract_strided_slice %1001 {offsets = [0, 0], sizes = [8, 11], strides = [1, 1]} : vector<8x64xf32> to vector<8x11xf32>
    %1004 = tpu.concatenate %1002, %1003 in 1 : vector<8x53xf32>, vector<8x11xf32> -> vector<8x64xf32>
    %c18_281 = arith.constant 18 : index
    %c0_282 = arith.constant 0 : index
    %1005 = vector.load %arg9[%c18_281, %c0_282] : memref<27x64xf32, #tpu.memory_space<vmem>>, vector<1x64xf32>
    %1006 = vector.shape_cast %1005 : vector<1x64xf32> to vector<64xf32>
    %1007 = vector.shape_cast %1006 : vector<64xf32> to vector<1x64xf32>
    %1008 = vector.broadcast %1007 : vector<1x64xf32> to vector<8x64xf32>
    %1009 = arith.mulf %1004, %1008 : vector<8x64xf32>
    %1010 = arith.truncf %1009 : vector<8x64xf32> to vector<8x64xbf16>
    %c760 = arith.constant 760 : index
    %c0_283 = arith.constant 0 : index
    %1011 = vector.load %arg11[%c760, %c0_283] : memref<1024x64xbf16, #tpu.memory_space<vmem>>, vector<8x64xbf16>
    tpu.vector_store %arg11[%c760, %c0_283], %1010 {strides = array<i32>} : memref<1024x64xbf16, #tpu.memory_space<vmem>>, vector<8x64xbf16>,
    %1012 = vector.extract_strided_slice %81 {offsets = [32, 0], sizes = [8, 64], strides = [1, 1]} : vector<64x64xf32> to vector<8x64xf32>
    %1013 = vector.extract_strided_slice %1012 {offsets = [0, 48], sizes = [8, 16], strides = [1, 1]} : vector<8x64xf32> to vector<8x16xf32>
    %1014 = vector.extract_strided_slice %1012 {offsets = [0, 0], sizes = [8, 48], strides = [1, 1]} : vector<8x64xf32> to vector<8x48xf32>
    %1015 = tpu.concatenate %1013, %1014 in 1 : vector<8x16xf32>, vector<8x48xf32> -> vector<8x64xf32>
    %c4 = arith.constant 4 : index
    %c0_284 = arith.constant 0 : index
    %1016 = vector.load %arg9[%c4, %c0_284] : memref<27x64xf32, #tpu.memory_space<vmem>>, vector<1x64xf32>
    %1017 = vector.shape_cast %1016 : vector<1x64xf32> to vector<64xf32>
    %1018 = vector.shape_cast %1017 : vector<64xf32> to vector<1x64xf32>
    %1019 = vector.broadcast %1018 : vector<1x64xf32> to vector<8x64xf32>
    %1020 = arith.mulf %1015, %1019 : vector<8x64xf32>
    %1021 = arith.truncf %1020 : vector<8x64xf32> to vector<8x64xbf16>
    %c768 = arith.constant 768 : index
    %c0_285 = arith.constant 0 : index
    %1022 = vector.load %arg11[%c768, %c0_285] : memref<1024x64xbf16, #tpu.memory_space<vmem>>, vector<8x64xbf16>
    tpu.vector_store %arg11[%c768, %c0_285], %1021 {strides = array<i32>} : memref<1024x64xbf16, #tpu.memory_space<vmem>>, vector<8x64xbf16>,
    %1023 = vector.extract_strided_slice %83 {offsets = [32, 0], sizes = [8, 64], strides = [1, 1]} : vector<64x64xf32> to vector<8x64xf32>
    %1024 = vector.extract_strided_slice %1023 {offsets = [0, 48], sizes = [8, 16], strides = [1, 1]} : vector<8x64xf32> to vector<8x16xf32>
    %1025 = vector.extract_strided_slice %1023 {offsets = [0, 0], sizes = [8, 48], strides = [1, 1]} : vector<8x64xf32> to vector<8x48xf32>
    %1026 = tpu.concatenate %1024, %1025 in 1 : vector<8x16xf32>, vector<8x48xf32> -> vector<8x64xf32>
    %c4_286 = arith.constant 4 : index
    %c0_287 = arith.constant 0 : index
    %1027 = vector.load %arg9[%c4_286, %c0_287] : memref<27x64xf32, #tpu.memory_space<vmem>>, vector<1x64xf32>
    %1028 = vector.shape_cast %1027 : vector<1x64xf32> to vector<64xf32>
    %1029 = vector.shape_cast %1028 : vector<64xf32> to vector<1x64xf32>
    %1030 = vector.broadcast %1029 : vector<1x64xf32> to vector<8x64xf32>
    %1031 = arith.mulf %1026, %1030 : vector<8x64xf32>
    %1032 = arith.truncf %1031 : vector<8x64xf32> to vector<8x64xbf16>
    %c776 = arith.constant 776 : index
    %c0_288 = arith.constant 0 : index
    %1033 = vector.load %arg11[%c776, %c0_288] : memref<1024x64xbf16, #tpu.memory_space<vmem>>, vector<8x64xbf16>
    tpu.vector_store %arg11[%c776, %c0_288], %1032 {strides = array<i32>} : memref<1024x64xbf16, #tpu.memory_space<vmem>>, vector<8x64xbf16>,
    %1034 = vector.extract_strided_slice %81 {offsets = [40, 0], sizes = [8, 64], strides = [1, 1]} : vector<64x64xf32> to vector<8x64xf32>
    %1035 = vector.extract_strided_slice %1034 {offsets = [0, 48], sizes = [8, 16], strides = [1, 1]} : vector<8x64xf32> to vector<8x16xf32>
    %1036 = vector.extract_strided_slice %1034 {offsets = [0, 0], sizes = [8, 48], strides = [1, 1]} : vector<8x64xf32> to vector<8x48xf32>
    %1037 = tpu.concatenate %1035, %1036 in 1 : vector<8x16xf32>, vector<8x48xf32> -> vector<8x64xf32>
    %c4_289 = arith.constant 4 : index
    %c0_290 = arith.constant 0 : index
    %1038 = vector.load %arg9[%c4_289, %c0_290] : memref<27x64xf32, #tpu.memory_space<vmem>>, vector<1x64xf32>
    %1039 = vector.shape_cast %1038 : vector<1x64xf32> to vector<64xf32>
    %1040 = vector.shape_cast %1039 : vector<64xf32> to vector<1x64xf32>
    %1041 = vector.broadcast %1040 : vector<1x64xf32> to vector<8x64xf32>
    %1042 = arith.mulf %1037, %1041 : vector<8x64xf32>
    %1043 = arith.truncf %1042 : vector<8x64xf32> to vector<8x64xbf16>
    %c784 = arith.constant 784 : index
    %c0_291 = arith.constant 0 : index
    %1044 = vector.load %arg11[%c784, %c0_291] : memref<1024x64xbf16, #tpu.memory_space<vmem>>, vector<8x64xbf16>
    tpu.vector_store %arg11[%c784, %c0_291], %1043 {strides = array<i32>} : memref<1024x64xbf16, #tpu.memory_space<vmem>>, vector<8x64xbf16>,
    %1045 = vector.extract_strided_slice %83 {offsets = [40, 0], sizes = [8, 64], strides = [1, 1]} : vector<64x64xf32> to vector<8x64xf32>
    %1046 = vector.extract_strided_slice %1045 {offsets = [0, 48], sizes = [8, 16], strides = [1, 1]} : vector<8x64xf32> to vector<8x16xf32>
    %1047 = vector.extract_strided_slice %1045 {offsets = [0, 0], sizes = [8, 48], strides = [1, 1]} : vector<8x64xf32> to vector<8x48xf32>
    %1048 = tpu.concatenate %1046, %1047 in 1 : vector<8x16xf32>, vector<8x48xf32> -> vector<8x64xf32>
    %c4_292 = arith.constant 4 : index
    %c0_293 = arith.constant 0 : index
    %1049 = vector.load %arg9[%c4_292, %c0_293] : memref<27x64xf32, #tpu.memory_space<vmem>>, vector<1x64xf32>
    %1050 = vector.shape_cast %1049 : vector<1x64xf32> to vector<64xf32>
    %1051 = vector.shape_cast %1050 : vector<64xf32> to vector<1x64xf32>
    %1052 = vector.broadcast %1051 : vector<1x64xf32> to vector<8x64xf32>
    %1053 = arith.mulf %1048, %1052 : vector<8x64xf32>
    %1054 = arith.truncf %1053 : vector<8x64xf32> to vector<8x64xbf16>
    %c792 = arith.constant 792 : index
    %c0_294 = arith.constant 0 : index
    %1055 = vector.load %arg11[%c792, %c0_294] : memref<1024x64xbf16, #tpu.memory_space<vmem>>, vector<8x64xbf16>
    tpu.vector_store %arg11[%c792, %c0_294], %1054 {strides = array<i32>} : memref<1024x64xbf16, #tpu.memory_space<vmem>>, vector<8x64xbf16>,
    %1056 = vector.extract_strided_slice %81 {offsets = [32, 0], sizes = [8, 64], strides = [1, 1]} : vector<64x64xf32> to vector<8x64xf32>
    %1057 = vector.extract_strided_slice %1056 {offsets = [0, 49], sizes = [8, 15], strides = [1, 1]} : vector<8x64xf32> to vector<8x15xf32>
    %1058 = vector.extract_strided_slice %1056 {offsets = [0, 0], sizes = [8, 49], strides = [1, 1]} : vector<8x64xf32> to vector<8x49xf32>
    %1059 = tpu.concatenate %1057, %1058 in 1 : vector<8x15xf32>, vector<8x49xf32> -> vector<8x64xf32>
    %c5 = arith.constant 5 : index
    %c0_295 = arith.constant 0 : index
    %1060 = vector.load %arg9[%c5, %c0_295] : memref<27x64xf32, #tpu.memory_space<vmem>>, vector<1x64xf32>
    %1061 = vector.shape_cast %1060 : vector<1x64xf32> to vector<64xf32>
    %1062 = vector.shape_cast %1061 : vector<64xf32> to vector<1x64xf32>
    %1063 = vector.broadcast %1062 : vector<1x64xf32> to vector<8x64xf32>
    %1064 = arith.mulf %1059, %1063 : vector<8x64xf32>
    %1065 = arith.truncf %1064 : vector<8x64xf32> to vector<8x64xbf16>
    %c800 = arith.constant 800 : index
    %c0_296 = arith.constant 0 : index
    %1066 = vector.load %arg11[%c800, %c0_296] : memref<1024x64xbf16, #tpu.memory_space<vmem>>, vector<8x64xbf16>
    tpu.vector_store %arg11[%c800, %c0_296], %1065 {strides = array<i32>} : memref<1024x64xbf16, #tpu.memory_space<vmem>>, vector<8x64xbf16>,
    %1067 = vector.extract_strided_slice %83 {offsets = [32, 0], sizes = [8, 64], strides = [1, 1]} : vector<64x64xf32> to vector<8x64xf32>
    %1068 = vector.extract_strided_slice %1067 {offsets = [0, 49], sizes = [8, 15], strides = [1, 1]} : vector<8x64xf32> to vector<8x15xf32>
    %1069 = vector.extract_strided_slice %1067 {offsets = [0, 0], sizes = [8, 49], strides = [1, 1]} : vector<8x64xf32> to vector<8x49xf32>
    %1070 = tpu.concatenate %1068, %1069 in 1 : vector<8x15xf32>, vector<8x49xf32> -> vector<8x64xf32>
    %c5_297 = arith.constant 5 : index
    %c0_298 = arith.constant 0 : index
    %1071 = vector.load %arg9[%c5_297, %c0_298] : memref<27x64xf32, #tpu.memory_space<vmem>>, vector<1x64xf32>
    %1072 = vector.shape_cast %1071 : vector<1x64xf32> to vector<64xf32>
    %1073 = vector.shape_cast %1072 : vector<64xf32> to vector<1x64xf32>
    %1074 = vector.broadcast %1073 : vector<1x64xf32> to vector<8x64xf32>
    %1075 = arith.mulf %1070, %1074 : vector<8x64xf32>
    %1076 = arith.truncf %1075 : vector<8x64xf32> to vector<8x64xbf16>
    %c808 = arith.constant 808 : index
    %c0_299 = arith.constant 0 : index
    %1077 = vector.load %arg11[%c808, %c0_299] : memref<1024x64xbf16, #tpu.memory_space<vmem>>, vector<8x64xbf16>
    tpu.vector_store %arg11[%c808, %c0_299], %1076 {strides = array<i32>} : memref<1024x64xbf16, #tpu.memory_space<vmem>>, vector<8x64xbf16>,
    %1078 = vector.extract_strided_slice %81 {offsets = [40, 0], sizes = [8, 64], strides = [1, 1]} : vector<64x64xf32> to vector<8x64xf32>
    %1079 = vector.extract_strided_slice %1078 {offsets = [0, 47], sizes = [8, 17], strides = [1, 1]} : vector<8x64xf32> to vector<8x17xf32>
    %1080 = vector.extract_strided_slice %1078 {offsets = [0, 0], sizes = [8, 47], strides = [1, 1]} : vector<8x64xf32> to vector<8x47xf32>
    %1081 = tpu.concatenate %1079, %1080 in 1 : vector<8x17xf32>, vector<8x47xf32> -> vector<8x64xf32>
    %c3 = arith.constant 3 : index
    %c0_300 = arith.constant 0 : index
    %1082 = vector.load %arg9[%c3, %c0_300] : memref<27x64xf32, #tpu.memory_space<vmem>>, vector<1x64xf32>
    %1083 = vector.shape_cast %1082 : vector<1x64xf32> to vector<64xf32>
    %1084 = vector.shape_cast %1083 : vector<64xf32> to vector<1x64xf32>
    %1085 = vector.broadcast %1084 : vector<1x64xf32> to vector<8x64xf32>
    %1086 = arith.mulf %1081, %1085 : vector<8x64xf32>
    %1087 = arith.truncf %1086 : vector<8x64xf32> to vector<8x64xbf16>
    %c816 = arith.constant 816 : index
    %c0_301 = arith.constant 0 : index
    %1088 = vector.load %arg11[%c816, %c0_301] : memref<1024x64xbf16, #tpu.memory_space<vmem>>, vector<8x64xbf16>
    tpu.vector_store %arg11[%c816, %c0_301], %1087 {strides = array<i32>} : memref<1024x64xbf16, #tpu.memory_space<vmem>>, vector<8x64xbf16>,
    %1089 = vector.extract_strided_slice %83 {offsets = [40, 0], sizes = [8, 64], strides = [1, 1]} : vector<64x64xf32> to vector<8x64xf32>
    %1090 = vector.extract_strided_slice %1089 {offsets = [0, 47], sizes = [8, 17], strides = [1, 1]} : vector<8x64xf32> to vector<8x17xf32>
    %1091 = vector.extract_strided_slice %1089 {offsets = [0, 0], sizes = [8, 47], strides = [1, 1]} : vector<8x64xf32> to vector<8x47xf32>
    %1092 = tpu.concatenate %1090, %1091 in 1 : vector<8x17xf32>, vector<8x47xf32> -> vector<8x64xf32>
    %c3_302 = arith.constant 3 : index
    %c0_303 = arith.constant 0 : index
    %1093 = vector.load %arg9[%c3_302, %c0_303] : memref<27x64xf32, #tpu.memory_space<vmem>>, vector<1x64xf32>
    %1094 = vector.shape_cast %1093 : vector<1x64xf32> to vector<64xf32>
    %1095 = vector.shape_cast %1094 : vector<64xf32> to vector<1x64xf32>
    %1096 = vector.broadcast %1095 : vector<1x64xf32> to vector<8x64xf32>
    %1097 = arith.mulf %1092, %1096 : vector<8x64xf32>
    %1098 = arith.truncf %1097 : vector<8x64xf32> to vector<8x64xbf16>
    %c824 = arith.constant 824 : index
    %c0_304 = arith.constant 0 : index
    %1099 = vector.load %arg11[%c824, %c0_304] : memref<1024x64xbf16, #tpu.memory_space<vmem>>, vector<8x64xbf16>
    tpu.vector_store %arg11[%c824, %c0_304], %1098 {strides = array<i32>} : memref<1024x64xbf16, #tpu.memory_space<vmem>>, vector<8x64xbf16>,
    %1100 = vector.extract_strided_slice %81 {offsets = [48, 0], sizes = [8, 64], strides = [1, 1]} : vector<64x64xf32> to vector<8x64xf32>
    %1101 = vector.extract_strided_slice %1100 {offsets = [0, 48], sizes = [8, 16], strides = [1, 1]} : vector<8x64xf32> to vector<8x16xf32>
    %1102 = vector.extract_strided_slice %1100 {offsets = [0, 0], sizes = [8, 48], strides = [1, 1]} : vector<8x64xf32> to vector<8x48xf32>
    %1103 = tpu.concatenate %1101, %1102 in 1 : vector<8x16xf32>, vector<8x48xf32> -> vector<8x64xf32>
    %c4_305 = arith.constant 4 : index
    %c0_306 = arith.constant 0 : index
    %1104 = vector.load %arg9[%c4_305, %c0_306] : memref<27x64xf32, #tpu.memory_space<vmem>>, vector<1x64xf32>
    %1105 = vector.shape_cast %1104 : vector<1x64xf32> to vector<64xf32>
    %1106 = vector.shape_cast %1105 : vector<64xf32> to vector<1x64xf32>
    %1107 = vector.broadcast %1106 : vector<1x64xf32> to vector<8x64xf32>
    %1108 = arith.mulf %1103, %1107 : vector<8x64xf32>
    %1109 = arith.truncf %1108 : vector<8x64xf32> to vector<8x64xbf16>
    %c832 = arith.constant 832 : index
    %c0_307 = arith.constant 0 : index
    %1110 = vector.load %arg11[%c832, %c0_307] : memref<1024x64xbf16, #tpu.memory_space<vmem>>, vector<8x64xbf16>
    tpu.vector_store %arg11[%c832, %c0_307], %1109 {strides = array<i32>} : memref<1024x64xbf16, #tpu.memory_space<vmem>>, vector<8x64xbf16>,
    %1111 = vector.extract_strided_slice %83 {offsets = [48, 0], sizes = [8, 64], strides = [1, 1]} : vector<64x64xf32> to vector<8x64xf32>
    %1112 = vector.extract_strided_slice %1111 {offsets = [0, 48], sizes = [8, 16], strides = [1, 1]} : vector<8x64xf32> to vector<8x16xf32>
    %1113 = vector.extract_strided_slice %1111 {offsets = [0, 0], sizes = [8, 48], strides = [1, 1]} : vector<8x64xf32> to vector<8x48xf32>
    %1114 = tpu.concatenate %1112, %1113 in 1 : vector<8x16xf32>, vector<8x48xf32> -> vector<8x64xf32>
    %c4_308 = arith.constant 4 : index
    %c0_309 = arith.constant 0 : index
    %1115 = vector.load %arg9[%c4_308, %c0_309] : memref<27x64xf32, #tpu.memory_space<vmem>>, vector<1x64xf32>
    %1116 = vector.shape_cast %1115 : vector<1x64xf32> to vector<64xf32>
    %1117 = vector.shape_cast %1116 : vector<64xf32> to vector<1x64xf32>
    %1118 = vector.broadcast %1117 : vector<1x64xf32> to vector<8x64xf32>
    %1119 = arith.mulf %1114, %1118 : vector<8x64xf32>
    %1120 = arith.truncf %1119 : vector<8x64xf32> to vector<8x64xbf16>
    %c840 = arith.constant 840 : index
    %c0_310 = arith.constant 0 : index
    %1121 = vector.load %arg11[%c840, %c0_310] : memref<1024x64xbf16, #tpu.memory_space<vmem>>, vector<8x64xbf16>
    tpu.vector_store %arg11[%c840, %c0_310], %1120 {strides = array<i32>} : memref<1024x64xbf16, #tpu.memory_space<vmem>>, vector<8x64xbf16>,
    %1122 = vector.extract_strided_slice %81 {offsets = [56, 0], sizes = [8, 64], strides = [1, 1]} : vector<64x64xf32> to vector<8x64xf32>
    %1123 = vector.extract_strided_slice %1122 {offsets = [0, 48], sizes = [8, 16], strides = [1, 1]} : vector<8x64xf32> to vector<8x16xf32>
    %1124 = vector.extract_strided_slice %1122 {offsets = [0, 0], sizes = [8, 48], strides = [1, 1]} : vector<8x64xf32> to vector<8x48xf32>
    %1125 = tpu.concatenate %1123, %1124 in 1 : vector<8x16xf32>, vector<8x48xf32> -> vector<8x64xf32>
    %c4_311 = arith.constant 4 : index
    %c0_312 = arith.constant 0 : index
    %1126 = vector.load %arg9[%c4_311, %c0_312] : memref<27x64xf32, #tpu.memory_space<vmem>>, vector<1x64xf32>
    %1127 = vector.shape_cast %1126 : vector<1x64xf32> to vector<64xf32>
    %1128 = vector.shape_cast %1127 : vector<64xf32> to vector<1x64xf32>
    %1129 = vector.broadcast %1128 : vector<1x64xf32> to vector<8x64xf32>
    %1130 = arith.mulf %1125, %1129 : vector<8x64xf32>
    %1131 = arith.truncf %1130 : vector<8x64xf32> to vector<8x64xbf16>
    %c848 = arith.constant 848 : index
    %c0_313 = arith.constant 0 : index
    %1132 = vector.load %arg11[%c848, %c0_313] : memref<1024x64xbf16, #tpu.memory_space<vmem>>, vector<8x64xbf16>
    tpu.vector_store %arg11[%c848, %c0_313], %1131 {strides = array<i32>} : memref<1024x64xbf16, #tpu.memory_space<vmem>>, vector<8x64xbf16>,
    %1133 = vector.extract_strided_slice %83 {offsets = [56, 0], sizes = [8, 64], strides = [1, 1]} : vector<64x64xf32> to vector<8x64xf32>
    %1134 = vector.extract_strided_slice %1133 {offsets = [0, 48], sizes = [8, 16], strides = [1, 1]} : vector<8x64xf32> to vector<8x16xf32>
    %1135 = vector.extract_strided_slice %1133 {offsets = [0, 0], sizes = [8, 48], strides = [1, 1]} : vector<8x64xf32> to vector<8x48xf32>
    %1136 = tpu.concatenate %1134, %1135 in 1 : vector<8x16xf32>, vector<8x48xf32> -> vector<8x64xf32>
    %c4_314 = arith.constant 4 : index
    %c0_315 = arith.constant 0 : index
    %1137 = vector.load %arg9[%c4_314, %c0_315] : memref<27x64xf32, #tpu.memory_space<vmem>>, vector<1x64xf32>
    %1138 = vector.shape_cast %1137 : vector<1x64xf32> to vector<64xf32>
    %1139 = vector.shape_cast %1138 : vector<64xf32> to vector<1x64xf32>
    %1140 = vector.broadcast %1139 : vector<1x64xf32> to vector<8x64xf32>
    %1141 = arith.mulf %1136, %1140 : vector<8x64xf32>
    %1142 = arith.truncf %1141 : vector<8x64xf32> to vector<8x64xbf16>
    %c856 = arith.constant 856 : index
    %c0_316 = arith.constant 0 : index
    %1143 = vector.load %arg11[%c856, %c0_316] : memref<1024x64xbf16, #tpu.memory_space<vmem>>, vector<8x64xbf16>
    tpu.vector_store %arg11[%c856, %c0_316], %1142 {strides = array<i32>} : memref<1024x64xbf16, #tpu.memory_space<vmem>>, vector<8x64xbf16>,
    %1144 = vector.extract_strided_slice %81 {offsets = [48, 0], sizes = [8, 64], strides = [1, 1]} : vector<64x64xf32> to vector<8x64xf32>
    %1145 = vector.extract_strided_slice %1144 {offsets = [0, 49], sizes = [8, 15], strides = [1, 1]} : vector<8x64xf32> to vector<8x15xf32>
    %1146 = vector.extract_strided_slice %1144 {offsets = [0, 0], sizes = [8, 49], strides = [1, 1]} : vector<8x64xf32> to vector<8x49xf32>
    %1147 = tpu.concatenate %1145, %1146 in 1 : vector<8x15xf32>, vector<8x49xf32> -> vector<8x64xf32>
    %c5_317 = arith.constant 5 : index
    %c0_318 = arith.constant 0 : index
    %1148 = vector.load %arg9[%c5_317, %c0_318] : memref<27x64xf32, #tpu.memory_space<vmem>>, vector<1x64xf32>
    %1149 = vector.shape_cast %1148 : vector<1x64xf32> to vector<64xf32>
    %1150 = vector.shape_cast %1149 : vector<64xf32> to vector<1x64xf32>
    %1151 = vector.broadcast %1150 : vector<1x64xf32> to vector<8x64xf32>
    %1152 = arith.mulf %1147, %1151 : vector<8x64xf32>
    %1153 = arith.truncf %1152 : vector<8x64xf32> to vector<8x64xbf16>
    %c864 = arith.constant 864 : index
    %c0_319 = arith.constant 0 : index
    %1154 = vector.load %arg11[%c864, %c0_319] : memref<1024x64xbf16, #tpu.memory_space<vmem>>, vector<8x64xbf16>
    tpu.vector_store %arg11[%c864, %c0_319], %1153 {strides = array<i32>} : memref<1024x64xbf16, #tpu.memory_space<vmem>>, vector<8x64xbf16>,
    %1155 = vector.extract_strided_slice %83 {offsets = [48, 0], sizes = [8, 64], strides = [1, 1]} : vector<64x64xf32> to vector<8x64xf32>
    %1156 = vector.extract_strided_slice %1155 {offsets = [0, 49], sizes = [8, 15], strides = [1, 1]} : vector<8x64xf32> to vector<8x15xf32>
    %1157 = vector.extract_strided_slice %1155 {offsets = [0, 0], sizes = [8, 49], strides = [1, 1]} : vector<8x64xf32> to vector<8x49xf32>
    %1158 = tpu.concatenate %1156, %1157 in 1 : vector<8x15xf32>, vector<8x49xf32> -> vector<8x64xf32>
    %c5_320 = arith.constant 5 : index
    %c0_321 = arith.constant 0 : index
    %1159 = vector.load %arg9[%c5_320, %c0_321] : memref<27x64xf32, #tpu.memory_space<vmem>>, vector<1x64xf32>
    %1160 = vector.shape_cast %1159 : vector<1x64xf32> to vector<64xf32>
    %1161 = vector.shape_cast %1160 : vector<64xf32> to vector<1x64xf32>
    %1162 = vector.broadcast %1161 : vector<1x64xf32> to vector<8x64xf32>
    %1163 = arith.mulf %1158, %1162 : vector<8x64xf32>
    %1164 = arith.truncf %1163 : vector<8x64xf32> to vector<8x64xbf16>
    %c872 = arith.constant 872 : index
    %c0_322 = arith.constant 0 : index
    %1165 = vector.load %arg11[%c872, %c0_322] : memref<1024x64xbf16, #tpu.memory_space<vmem>>, vector<8x64xbf16>
    tpu.vector_store %arg11[%c872, %c0_322], %1164 {strides = array<i32>} : memref<1024x64xbf16, #tpu.memory_space<vmem>>, vector<8x64xbf16>,
    %1166 = vector.extract_strided_slice %81 {offsets = [56, 0], sizes = [8, 64], strides = [1, 1]} : vector<64x64xf32> to vector<8x64xf32>
    %1167 = vector.extract_strided_slice %1166 {offsets = [0, 47], sizes = [8, 17], strides = [1, 1]} : vector<8x64xf32> to vector<8x17xf32>
    %1168 = vector.extract_strided_slice %1166 {offsets = [0, 0], sizes = [8, 47], strides = [1, 1]} : vector<8x64xf32> to vector<8x47xf32>
    %1169 = tpu.concatenate %1167, %1168 in 1 : vector<8x17xf32>, vector<8x47xf32> -> vector<8x64xf32>
    %c3_323 = arith.constant 3 : index
    %c0_324 = arith.constant 0 : index
    %1170 = vector.load %arg9[%c3_323, %c0_324] : memref<27x64xf32, #tpu.memory_space<vmem>>, vector<1x64xf32>
    %1171 = vector.shape_cast %1170 : vector<1x64xf32> to vector<64xf32>
    %1172 = vector.shape_cast %1171 : vector<64xf32> to vector<1x64xf32>
    %1173 = vector.broadcast %1172 : vector<1x64xf32> to vector<8x64xf32>
    %1174 = arith.mulf %1169, %1173 : vector<8x64xf32>
    %1175 = arith.truncf %1174 : vector<8x64xf32> to vector<8x64xbf16>
    %c880 = arith.constant 880 : index
    %c0_325 = arith.constant 0 : index
    %1176 = vector.load %arg11[%c880, %c0_325] : memref<1024x64xbf16, #tpu.memory_space<vmem>>, vector<8x64xbf16>
    tpu.vector_store %arg11[%c880, %c0_325], %1175 {strides = array<i32>} : memref<1024x64xbf16, #tpu.memory_space<vmem>>, vector<8x64xbf16>,
    %1177 = vector.extract_strided_slice %83 {offsets = [56, 0], sizes = [8, 64], strides = [1, 1]} : vector<64x64xf32> to vector<8x64xf32>
    %1178 = vector.extract_strided_slice %1177 {offsets = [0, 47], sizes = [8, 17], strides = [1, 1]} : vector<8x64xf32> to vector<8x17xf32>
    %1179 = vector.extract_strided_slice %1177 {offsets = [0, 0], sizes = [8, 47], strides = [1, 1]} : vector<8x64xf32> to vector<8x47xf32>
    %1180 = tpu.concatenate %1178, %1179 in 1 : vector<8x17xf32>, vector<8x47xf32> -> vector<8x64xf32>
    %c3_326 = arith.constant 3 : index
    %c0_327 = arith.constant 0 : index
    %1181 = vector.load %arg9[%c3_326, %c0_327] : memref<27x64xf32, #tpu.memory_space<vmem>>, vector<1x64xf32>
    %1182 = vector.shape_cast %1181 : vector<1x64xf32> to vector<64xf32>
    %1183 = vector.shape_cast %1182 : vector<64xf32> to vector<1x64xf32>
    %1184 = vector.broadcast %1183 : vector<1x64xf32> to vector<8x64xf32>
    %1185 = arith.mulf %1180, %1184 : vector<8x64xf32>
    %1186 = arith.truncf %1185 : vector<8x64xf32> to vector<8x64xbf16>
    %c888 = arith.constant 888 : index
    %c0_328 = arith.constant 0 : index
    %1187 = vector.load %arg11[%c888, %c0_328] : memref<1024x64xbf16, #tpu.memory_space<vmem>>, vector<8x64xbf16>
    tpu.vector_store %arg11[%c888, %c0_328], %1186 {strides = array<i32>} : memref<1024x64xbf16, #tpu.memory_space<vmem>>, vector<8x64xbf16>,
    %1188 = vector.extract_strided_slice %81 {offsets = [32, 0], sizes = [8, 64], strides = [1, 1]} : vector<64x64xf32> to vector<8x64xf32>
    %1189 = vector.extract_strided_slice %1188 {offsets = [0, 52], sizes = [8, 12], strides = [1, 1]} : vector<8x64xf32> to vector<8x12xf32>
    %1190 = vector.extract_strided_slice %1188 {offsets = [0, 0], sizes = [8, 52], strides = [1, 1]} : vector<8x64xf32> to vector<8x52xf32>
    %1191 = tpu.concatenate %1189, %1190 in 1 : vector<8x12xf32>, vector<8x52xf32> -> vector<8x64xf32>
    %c7 = arith.constant 7 : index
    %c0_329 = arith.constant 0 : index
    %1192 = vector.load %arg9[%c7, %c0_329] : memref<27x64xf32, #tpu.memory_space<vmem>>, vector<1x64xf32>
    %1193 = vector.shape_cast %1192 : vector<1x64xf32> to vector<64xf32>
    %1194 = vector.shape_cast %1193 : vector<64xf32> to vector<1x64xf32>
    %1195 = vector.broadcast %1194 : vector<1x64xf32> to vector<8x64xf32>
    %1196 = arith.mulf %1191, %1195 : vector<8x64xf32>
    %1197 = arith.truncf %1196 : vector<8x64xf32> to vector<8x64xbf16>
    %c896 = arith.constant 896 : index
    %c0_330 = arith.constant 0 : index
    %1198 = vector.load %arg11[%c896, %c0_330] : memref<1024x64xbf16, #tpu.memory_space<vmem>>, vector<8x64xbf16>
    tpu.vector_store %arg11[%c896, %c0_330], %1197 {strides = array<i32>} : memref<1024x64xbf16, #tpu.memory_space<vmem>>, vector<8x64xbf16>,
    %1199 = vector.extract_strided_slice %83 {offsets = [32, 0], sizes = [8, 64], strides = [1, 1]} : vector<64x64xf32> to vector<8x64xf32>
    %1200 = vector.extract_strided_slice %1199 {offsets = [0, 52], sizes = [8, 12], strides = [1, 1]} : vector<8x64xf32> to vector<8x12xf32>
    %1201 = vector.extract_strided_slice %1199 {offsets = [0, 0], sizes = [8, 52], strides = [1, 1]} : vector<8x64xf32> to vector<8x52xf32>
    %1202 = tpu.concatenate %1200, %1201 in 1 : vector<8x12xf32>, vector<8x52xf32> -> vector<8x64xf32>
    %c7_331 = arith.constant 7 : index
    %c0_332 = arith.constant 0 : index
    %1203 = vector.load %arg9[%c7_331, %c0_332] : memref<27x64xf32, #tpu.memory_space<vmem>>, vector<1x64xf32>
    %1204 = vector.shape_cast %1203 : vector<1x64xf32> to vector<64xf32>
    %1205 = vector.shape_cast %1204 : vector<64xf32> to vector<1x64xf32>
    %1206 = vector.broadcast %1205 : vector<1x64xf32> to vector<8x64xf32>
    %1207 = arith.mulf %1202, %1206 : vector<8x64xf32>
    %1208 = arith.truncf %1207 : vector<8x64xf32> to vector<8x64xbf16>
    %c904 = arith.constant 904 : index
    %c0_333 = arith.constant 0 : index
    %1209 = vector.load %arg11[%c904, %c0_333] : memref<1024x64xbf16, #tpu.memory_space<vmem>>, vector<8x64xbf16>
    tpu.vector_store %arg11[%c904, %c0_333], %1208 {strides = array<i32>} : memref<1024x64xbf16, #tpu.memory_space<vmem>>, vector<8x64xbf16>,
    %1210 = vector.extract_strided_slice %81 {offsets = [40, 0], sizes = [8, 64], strides = [1, 1]} : vector<64x64xf32> to vector<8x64xf32>
    %1211 = vector.extract_strided_slice %1210 {offsets = [0, 52], sizes = [8, 12], strides = [1, 1]} : vector<8x64xf32> to vector<8x12xf32>
    %1212 = vector.extract_strided_slice %1210 {offsets = [0, 0], sizes = [8, 52], strides = [1, 1]} : vector<8x64xf32> to vector<8x52xf32>
    %1213 = tpu.concatenate %1211, %1212 in 1 : vector<8x12xf32>, vector<8x52xf32> -> vector<8x64xf32>
    %c7_334 = arith.constant 7 : index
    %c0_335 = arith.constant 0 : index
    %1214 = vector.load %arg9[%c7_334, %c0_335] : memref<27x64xf32, #tpu.memory_space<vmem>>, vector<1x64xf32>
    %1215 = vector.shape_cast %1214 : vector<1x64xf32> to vector<64xf32>
    %1216 = vector.shape_cast %1215 : vector<64xf32> to vector<1x64xf32>
    %1217 = vector.broadcast %1216 : vector<1x64xf32> to vector<8x64xf32>
    %1218 = arith.mulf %1213, %1217 : vector<8x64xf32>
    %1219 = arith.truncf %1218 : vector<8x64xf32> to vector<8x64xbf16>
    %c912 = arith.constant 912 : index
    %c0_336 = arith.constant 0 : index
    %1220 = vector.load %arg11[%c912, %c0_336] : memref<1024x64xbf16, #tpu.memory_space<vmem>>, vector<8x64xbf16>
    tpu.vector_store %arg11[%c912, %c0_336], %1219 {strides = array<i32>} : memref<1024x64xbf16, #tpu.memory_space<vmem>>, vector<8x64xbf16>,
    %1221 = vector.extract_strided_slice %83 {offsets = [40, 0], sizes = [8, 64], strides = [1, 1]} : vector<64x64xf32> to vector<8x64xf32>
    %1222 = vector.extract_strided_slice %1221 {offsets = [0, 52], sizes = [8, 12], strides = [1, 1]} : vector<8x64xf32> to vector<8x12xf32>
    %1223 = vector.extract_strided_slice %1221 {offsets = [0, 0], sizes = [8, 52], strides = [1, 1]} : vector<8x64xf32> to vector<8x52xf32>
    %1224 = tpu.concatenate %1222, %1223 in 1 : vector<8x12xf32>, vector<8x52xf32> -> vector<8x64xf32>
    %c7_337 = arith.constant 7 : index
    %c0_338 = arith.constant 0 : index
    %1225 = vector.load %arg9[%c7_337, %c0_338] : memref<27x64xf32, #tpu.memory_space<vmem>>, vector<1x64xf32>
    %1226 = vector.shape_cast %1225 : vector<1x64xf32> to vector<64xf32>
    %1227 = vector.shape_cast %1226 : vector<64xf32> to vector<1x64xf32>
    %1228 = vector.broadcast %1227 : vector<1x64xf32> to vector<8x64xf32>
    %1229 = arith.mulf %1224, %1228 : vector<8x64xf32>
    %1230 = arith.truncf %1229 : vector<8x64xf32> to vector<8x64xbf16>
    %c920 = arith.constant 920 : index
    %c0_339 = arith.constant 0 : index
    %1231 = vector.load %arg11[%c920, %c0_339] : memref<1024x64xbf16, #tpu.memory_space<vmem>>, vector<8x64xbf16>
    tpu.vector_store %arg11[%c920, %c0_339], %1230 {strides = array<i32>} : memref<1024x64xbf16, #tpu.memory_space<vmem>>, vector<8x64xbf16>,
    %1232 = vector.extract_strided_slice %81 {offsets = [32, 0], sizes = [8, 64], strides = [1, 1]} : vector<64x64xf32> to vector<8x64xf32>
    %1233 = vector.extract_strided_slice %1232 {offsets = [0, 53], sizes = [8, 11], strides = [1, 1]} : vector<8x64xf32> to vector<8x11xf32>
    %1234 = vector.extract_strided_slice %1232 {offsets = [0, 0], sizes = [8, 53], strides = [1, 1]} : vector<8x64xf32> to vector<8x53xf32>
    %1235 = tpu.concatenate %1233, %1234 in 1 : vector<8x11xf32>, vector<8x53xf32> -> vector<8x64xf32>
    %c8_340 = arith.constant 8 : index
    %c0_341 = arith.constant 0 : index
    %1236 = vector.load %arg9[%c8_340, %c0_341] : memref<27x64xf32, #tpu.memory_space<vmem>>, vector<1x64xf32>
    %1237 = vector.shape_cast %1236 : vector<1x64xf32> to vector<64xf32>
    %1238 = vector.shape_cast %1237 : vector<64xf32> to vector<1x64xf32>
    %1239 = vector.broadcast %1238 : vector<1x64xf32> to vector<8x64xf32>
    %1240 = arith.mulf %1235, %1239 : vector<8x64xf32>
    %1241 = arith.truncf %1240 : vector<8x64xf32> to vector<8x64xbf16>
    %c928 = arith.constant 928 : index
    %c0_342 = arith.constant 0 : index
    %1242 = vector.load %arg11[%c928, %c0_342] : memref<1024x64xbf16, #tpu.memory_space<vmem>>, vector<8x64xbf16>
    tpu.vector_store %arg11[%c928, %c0_342], %1241 {strides = array<i32>} : memref<1024x64xbf16, #tpu.memory_space<vmem>>, vector<8x64xbf16>,
    %1243 = vector.extract_strided_slice %83 {offsets = [32, 0], sizes = [8, 64], strides = [1, 1]} : vector<64x64xf32> to vector<8x64xf32>
    %1244 = vector.extract_strided_slice %1243 {offsets = [0, 53], sizes = [8, 11], strides = [1, 1]} : vector<8x64xf32> to vector<8x11xf32>
    %1245 = vector.extract_strided_slice %1243 {offsets = [0, 0], sizes = [8, 53], strides = [1, 1]} : vector<8x64xf32> to vector<8x53xf32>
    %1246 = tpu.concatenate %1244, %1245 in 1 : vector<8x11xf32>, vector<8x53xf32> -> vector<8x64xf32>
    %c8_343 = arith.constant 8 : index
    %c0_344 = arith.constant 0 : index
    %1247 = vector.load %arg9[%c8_343, %c0_344] : memref<27x64xf32, #tpu.memory_space<vmem>>, vector<1x64xf32>
    %1248 = vector.shape_cast %1247 : vector<1x64xf32> to vector<64xf32>
    %1249 = vector.shape_cast %1248 : vector<64xf32> to vector<1x64xf32>
    %1250 = vector.broadcast %1249 : vector<1x64xf32> to vector<8x64xf32>
    %1251 = arith.mulf %1246, %1250 : vector<8x64xf32>
    %1252 = arith.truncf %1251 : vector<8x64xf32> to vector<8x64xbf16>
    %c936 = arith.constant 936 : index
    %c0_345 = arith.constant 0 : index
    %1253 = vector.load %arg11[%c936, %c0_345] : memref<1024x64xbf16, #tpu.memory_space<vmem>>, vector<8x64xbf16>
    tpu.vector_store %arg11[%c936, %c0_345], %1252 {strides = array<i32>} : memref<1024x64xbf16, #tpu.memory_space<vmem>>, vector<8x64xbf16>,
    %1254 = vector.extract_strided_slice %81 {offsets = [40, 0], sizes = [8, 64], strides = [1, 1]} : vector<64x64xf32> to vector<8x64xf32>
    %1255 = vector.extract_strided_slice %1254 {offsets = [0, 51], sizes = [8, 13], strides = [1, 1]} : vector<8x64xf32> to vector<8x13xf32>
    %1256 = vector.extract_strided_slice %1254 {offsets = [0, 0], sizes = [8, 51], strides = [1, 1]} : vector<8x64xf32> to vector<8x51xf32>
    %1257 = tpu.concatenate %1255, %1256 in 1 : vector<8x13xf32>, vector<8x51xf32> -> vector<8x64xf32>
    %c6 = arith.constant 6 : index
    %c0_346 = arith.constant 0 : index
    %1258 = vector.load %arg9[%c6, %c0_346] : memref<27x64xf32, #tpu.memory_space<vmem>>, vector<1x64xf32>
    %1259 = vector.shape_cast %1258 : vector<1x64xf32> to vector<64xf32>
    %1260 = vector.shape_cast %1259 : vector<64xf32> to vector<1x64xf32>
    %1261 = vector.broadcast %1260 : vector<1x64xf32> to vector<8x64xf32>
    %1262 = arith.mulf %1257, %1261 : vector<8x64xf32>
    %1263 = arith.truncf %1262 : vector<8x64xf32> to vector<8x64xbf16>
    %c944 = arith.constant 944 : index
    %c0_347 = arith.constant 0 : index
    %1264 = vector.load %arg11[%c944, %c0_347] : memref<1024x64xbf16, #tpu.memory_space<vmem>>, vector<8x64xbf16>
    tpu.vector_store %arg11[%c944, %c0_347], %1263 {strides = array<i32>} : memref<1024x64xbf16, #tpu.memory_space<vmem>>, vector<8x64xbf16>,
    %1265 = vector.extract_strided_slice %83 {offsets = [40, 0], sizes = [8, 64], strides = [1, 1]} : vector<64x64xf32> to vector<8x64xf32>
    %1266 = vector.extract_strided_slice %1265 {offsets = [0, 51], sizes = [8, 13], strides = [1, 1]} : vector<8x64xf32> to vector<8x13xf32>
    %1267 = vector.extract_strided_slice %1265 {offsets = [0, 0], sizes = [8, 51], strides = [1, 1]} : vector<8x64xf32> to vector<8x51xf32>
    %1268 = tpu.concatenate %1266, %1267 in 1 : vector<8x13xf32>, vector<8x51xf32> -> vector<8x64xf32>
    %c6_348 = arith.constant 6 : index
    %c0_349 = arith.constant 0 : index
    %1269 = vector.load %arg9[%c6_348, %c0_349] : memref<27x64xf32, #tpu.memory_space<vmem>>, vector<1x64xf32>
    %1270 = vector.shape_cast %1269 : vector<1x64xf32> to vector<64xf32>
    %1271 = vector.shape_cast %1270 : vector<64xf32> to vector<1x64xf32>
    %1272 = vector.broadcast %1271 : vector<1x64xf32> to vector<8x64xf32>
    %1273 = arith.mulf %1268, %1272 : vector<8x64xf32>
    %1274 = arith.truncf %1273 : vector<8x64xf32> to vector<8x64xbf16>
    %c952 = arith.constant 952 : index
    %c0_350 = arith.constant 0 : index
    %1275 = vector.load %arg11[%c952, %c0_350] : memref<1024x64xbf16, #tpu.memory_space<vmem>>, vector<8x64xbf16>
    tpu.vector_store %arg11[%c952, %c0_350], %1274 {strides = array<i32>} : memref<1024x64xbf16, #tpu.memory_space<vmem>>, vector<8x64xbf16>,
    %1276 = vector.extract_strided_slice %81 {offsets = [48, 0], sizes = [8, 64], strides = [1, 1]} : vector<64x64xf32> to vector<8x64xf32>
    %1277 = vector.extract_strided_slice %1276 {offsets = [0, 44], sizes = [8, 20], strides = [1, 1]} : vector<8x64xf32> to vector<8x20xf32>
    %1278 = vector.extract_strided_slice %1276 {offsets = [0, 0], sizes = [8, 44], strides = [1, 1]} : vector<8x64xf32> to vector<8x44xf32>
    %1279 = tpu.concatenate %1277, %1278 in 1 : vector<8x20xf32>, vector<8x44xf32> -> vector<8x64xf32>
    %c1 = arith.constant 1 : index
    %c0_351 = arith.constant 0 : index
    %1280 = vector.load %arg9[%c1, %c0_351] : memref<27x64xf32, #tpu.memory_space<vmem>>, vector<1x64xf32>
    %1281 = vector.shape_cast %1280 : vector<1x64xf32> to vector<64xf32>
    %1282 = vector.shape_cast %1281 : vector<64xf32> to vector<1x64xf32>
    %1283 = vector.broadcast %1282 : vector<1x64xf32> to vector<8x64xf32>
    %1284 = arith.mulf %1279, %1283 : vector<8x64xf32>
    %1285 = arith.truncf %1284 : vector<8x64xf32> to vector<8x64xbf16>
    %c960 = arith.constant 960 : index
    %c0_352 = arith.constant 0 : index
    %1286 = vector.load %arg11[%c960, %c0_352] : memref<1024x64xbf16, #tpu.memory_space<vmem>>, vector<8x64xbf16>
    tpu.vector_store %arg11[%c960, %c0_352], %1285 {strides = array<i32>} : memref<1024x64xbf16, #tpu.memory_space<vmem>>, vector<8x64xbf16>,
    %1287 = vector.extract_strided_slice %83 {offsets = [48, 0], sizes = [8, 64], strides = [1, 1]} : vector<64x64xf32> to vector<8x64xf32>
    %1288 = vector.extract_strided_slice %1287 {offsets = [0, 44], sizes = [8, 20], strides = [1, 1]} : vector<8x64xf32> to vector<8x20xf32>
    %1289 = vector.extract_strided_slice %1287 {offsets = [0, 0], sizes = [8, 44], strides = [1, 1]} : vector<8x64xf32> to vector<8x44xf32>
    %1290 = tpu.concatenate %1288, %1289 in 1 : vector<8x20xf32>, vector<8x44xf32> -> vector<8x64xf32>
    %c1_353 = arith.constant 1 : index
    %c0_354 = arith.constant 0 : index
    %1291 = vector.load %arg9[%c1_353, %c0_354] : memref<27x64xf32, #tpu.memory_space<vmem>>, vector<1x64xf32>
    %1292 = vector.shape_cast %1291 : vector<1x64xf32> to vector<64xf32>
    %1293 = vector.shape_cast %1292 : vector<64xf32> to vector<1x64xf32>
    %1294 = vector.broadcast %1293 : vector<1x64xf32> to vector<8x64xf32>
    %1295 = arith.mulf %1290, %1294 : vector<8x64xf32>
    %1296 = arith.truncf %1295 : vector<8x64xf32> to vector<8x64xbf16>
    %c968 = arith.constant 968 : index
    %c0_355 = arith.constant 0 : index
    %1297 = vector.load %arg11[%c968, %c0_355] : memref<1024x64xbf16, #tpu.memory_space<vmem>>, vector<8x64xbf16>
    tpu.vector_store %arg11[%c968, %c0_355], %1296 {strides = array<i32>} : memref<1024x64xbf16, #tpu.memory_space<vmem>>, vector<8x64xbf16>,
    %1298 = vector.extract_strided_slice %81 {offsets = [56, 0], sizes = [8, 64], strides = [1, 1]} : vector<64x64xf32> to vector<8x64xf32>
    %1299 = vector.extract_strided_slice %1298 {offsets = [0, 44], sizes = [8, 20], strides = [1, 1]} : vector<8x64xf32> to vector<8x20xf32>
    %1300 = vector.extract_strided_slice %1298 {offsets = [0, 0], sizes = [8, 44], strides = [1, 1]} : vector<8x64xf32> to vector<8x44xf32>
    %1301 = tpu.concatenate %1299, %1300 in 1 : vector<8x20xf32>, vector<8x44xf32> -> vector<8x64xf32>
    %c1_356 = arith.constant 1 : index
    %c0_357 = arith.constant 0 : index
    %1302 = vector.load %arg9[%c1_356, %c0_357] : memref<27x64xf32, #tpu.memory_space<vmem>>, vector<1x64xf32>
    %1303 = vector.shape_cast %1302 : vector<1x64xf32> to vector<64xf32>
    %1304 = vector.shape_cast %1303 : vector<64xf32> to vector<1x64xf32>
    %1305 = vector.broadcast %1304 : vector<1x64xf32> to vector<8x64xf32>
    %1306 = arith.mulf %1301, %1305 : vector<8x64xf32>
    %1307 = arith.truncf %1306 : vector<8x64xf32> to vector<8x64xbf16>
    %c976 = arith.constant 976 : index
    %c0_358 = arith.constant 0 : index
    %1308 = vector.load %arg11[%c976, %c0_358] : memref<1024x64xbf16, #tpu.memory_space<vmem>>, vector<8x64xbf16>
    tpu.vector_store %arg11[%c976, %c0_358], %1307 {strides = array<i32>} : memref<1024x64xbf16, #tpu.memory_space<vmem>>, vector<8x64xbf16>,
    %1309 = vector.extract_strided_slice %83 {offsets = [56, 0], sizes = [8, 64], strides = [1, 1]} : vector<64x64xf32> to vector<8x64xf32>
    %1310 = vector.extract_strided_slice %1309 {offsets = [0, 44], sizes = [8, 20], strides = [1, 1]} : vector<8x64xf32> to vector<8x20xf32>
    %1311 = vector.extract_strided_slice %1309 {offsets = [0, 0], sizes = [8, 44], strides = [1, 1]} : vector<8x64xf32> to vector<8x44xf32>
    %1312 = tpu.concatenate %1310, %1311 in 1 : vector<8x20xf32>, vector<8x44xf32> -> vector<8x64xf32>
    %c1_359 = arith.constant 1 : index
    %c0_360 = arith.constant 0 : index
    %1313 = vector.load %arg9[%c1_359, %c0_360] : memref<27x64xf32, #tpu.memory_space<vmem>>, vector<1x64xf32>
    %1314 = vector.shape_cast %1313 : vector<1x64xf32> to vector<64xf32>
    %1315 = vector.shape_cast %1314 : vector<64xf32> to vector<1x64xf32>
    %1316 = vector.broadcast %1315 : vector<1x64xf32> to vector<8x64xf32>
    %1317 = arith.mulf %1312, %1316 : vector<8x64xf32>
    %1318 = arith.truncf %1317 : vector<8x64xf32> to vector<8x64xbf16>
    %c984 = arith.constant 984 : index
    %c0_361 = arith.constant 0 : index
    %1319 = vector.load %arg11[%c984, %c0_361] : memref<1024x64xbf16, #tpu.memory_space<vmem>>, vector<8x64xbf16>
    tpu.vector_store %arg11[%c984, %c0_361], %1318 {strides = array<i32>} : memref<1024x64xbf16, #tpu.memory_space<vmem>>, vector<8x64xbf16>,
    %1320 = vector.extract_strided_slice %81 {offsets = [48, 0], sizes = [8, 64], strides = [1, 1]} : vector<64x64xf32> to vector<8x64xf32>
    %1321 = vector.extract_strided_slice %1320 {offsets = [0, 45], sizes = [8, 19], strides = [1, 1]} : vector<8x64xf32> to vector<8x19xf32>
    %1322 = vector.extract_strided_slice %1320 {offsets = [0, 0], sizes = [8, 45], strides = [1, 1]} : vector<8x64xf32> to vector<8x45xf32>
    %1323 = tpu.concatenate %1321, %1322 in 1 : vector<8x19xf32>, vector<8x45xf32> -> vector<8x64xf32>
    %c2 = arith.constant 2 : index
    %c0_362 = arith.constant 0 : index
    %1324 = vector.load %arg9[%c2, %c0_362] : memref<27x64xf32, #tpu.memory_space<vmem>>, vector<1x64xf32>
    %1325 = vector.shape_cast %1324 : vector<1x64xf32> to vector<64xf32>
    %1326 = vector.shape_cast %1325 : vector<64xf32> to vector<1x64xf32>
    %1327 = vector.broadcast %1326 : vector<1x64xf32> to vector<8x64xf32>
    %1328 = arith.mulf %1323, %1327 : vector<8x64xf32>
    %1329 = arith.truncf %1328 : vector<8x64xf32> to vector<8x64xbf16>
    %c992 = arith.constant 992 : index
    %c0_363 = arith.constant 0 : index
    %1330 = vector.load %arg11[%c992, %c0_363] : memref<1024x64xbf16, #tpu.memory_space<vmem>>, vector<8x64xbf16>
    tpu.vector_store %arg11[%c992, %c0_363], %1329 {strides = array<i32>} : memref<1024x64xbf16, #tpu.memory_space<vmem>>, vector<8x64xbf16>,
    %1331 = vector.extract_strided_slice %83 {offsets = [48, 0], sizes = [8, 64], strides = [1, 1]} : vector<64x64xf32> to vector<8x64xf32>
    %1332 = vector.extract_strided_slice %1331 {offsets = [0, 45], sizes = [8, 19], strides = [1, 1]} : vector<8x64xf32> to vector<8x19xf32>
    %1333 = vector.extract_strided_slice %1331 {offsets = [0, 0], sizes = [8, 45], strides = [1, 1]} : vector<8x64xf32> to vector<8x45xf32>
    %1334 = tpu.concatenate %1332, %1333 in 1 : vector<8x19xf32>, vector<8x45xf32> -> vector<8x64xf32>
    %c2_364 = arith.constant 2 : index
    %c0_365 = arith.constant 0 : index
    %1335 = vector.load %arg9[%c2_364, %c0_365] : memref<27x64xf32, #tpu.memory_space<vmem>>, vector<1x64xf32>
    %1336 = vector.shape_cast %1335 : vector<1x64xf32> to vector<64xf32>
    %1337 = vector.shape_cast %1336 : vector<64xf32> to vector<1x64xf32>
    %1338 = vector.broadcast %1337 : vector<1x64xf32> to vector<8x64xf32>
    %1339 = arith.mulf %1334, %1338 : vector<8x64xf32>
    %1340 = arith.truncf %1339 : vector<8x64xf32> to vector<8x64xbf16>
    %c1000 = arith.constant 1000 : index
    %c0_366 = arith.constant 0 : index
    %1341 = vector.load %arg11[%c1000, %c0_366] : memref<1024x64xbf16, #tpu.memory_space<vmem>>, vector<8x64xbf16>
    tpu.vector_store %arg11[%c1000, %c0_366], %1340 {strides = array<i32>} : memref<1024x64xbf16, #tpu.memory_space<vmem>>, vector<8x64xbf16>,
    %1342 = vector.extract_strided_slice %81 {offsets = [56, 0], sizes = [8, 64], strides = [1, 1]} : vector<64x64xf32> to vector<8x64xf32>
    %1343 = vector.extract_strided_slice %1342 {offsets = [0, 43], sizes = [8, 21], strides = [1, 1]} : vector<8x64xf32> to vector<8x21xf32>
    %1344 = vector.extract_strided_slice %1342 {offsets = [0, 0], sizes = [8, 43], strides = [1, 1]} : vector<8x64xf32> to vector<8x43xf32>
    %1345 = tpu.concatenate %1343, %1344 in 1 : vector<8x21xf32>, vector<8x43xf32> -> vector<8x64xf32>
    %c0_367 = arith.constant 0 : index
    %c0_368 = arith.constant 0 : index
    %1346 = vector.load %arg9[%c0_367, %c0_368] : memref<27x64xf32, #tpu.memory_space<vmem>>, vector<1x64xf32>
    %1347 = vector.shape_cast %1346 : vector<1x64xf32> to vector<64xf32>
    %1348 = vector.shape_cast %1347 : vector<64xf32> to vector<1x64xf32>
    %1349 = vector.broadcast %1348 : vector<1x64xf32> to vector<8x64xf32>
    %1350 = arith.mulf %1345, %1349 : vector<8x64xf32>
    %1351 = arith.truncf %1350 : vector<8x64xf32> to vector<8x64xbf16>
    %c1008 = arith.constant 1008 : index
    %c0_369 = arith.constant 0 : index
    %1352 = vector.load %arg11[%c1008, %c0_369] : memref<1024x64xbf16, #tpu.memory_space<vmem>>, vector<8x64xbf16>
    tpu.vector_store %arg11[%c1008, %c0_369], %1351 {strides = array<i32>} : memref<1024x64xbf16, #tpu.memory_space<vmem>>, vector<8x64xbf16>,
    %1353 = vector.extract_strided_slice %83 {offsets = [56, 0], sizes = [8, 64], strides = [1, 1]} : vector<64x64xf32> to vector<8x64xf32>
    %1354 = vector.extract_strided_slice %1353 {offsets = [0, 43], sizes = [8, 21], strides = [1, 1]} : vector<8x64xf32> to vector<8x21xf32>
    %1355 = vector.extract_strided_slice %1353 {offsets = [0, 0], sizes = [8, 43], strides = [1, 1]} : vector<8x64xf32> to vector<8x43xf32>
    %1356 = tpu.concatenate %1354, %1355 in 1 : vector<8x21xf32>, vector<8x43xf32> -> vector<8x64xf32>
    %c0_370 = arith.constant 0 : index
    %c0_371 = arith.constant 0 : index
    %1357 = vector.load %arg9[%c0_370, %c0_371] : memref<27x64xf32, #tpu.memory_space<vmem>>, vector<1x64xf32>
    %1358 = vector.shape_cast %1357 : vector<1x64xf32> to vector<64xf32>
    %1359 = vector.shape_cast %1358 : vector<64xf32> to vector<1x64xf32>
    %1360 = vector.broadcast %1359 : vector<1x64xf32> to vector<8x64xf32>
    %1361 = arith.mulf %1356, %1360 : vector<8x64xf32>
    %1362 = arith.truncf %1361 : vector<8x64xf32> to vector<8x64xbf16>
    %c1016 = arith.constant 1016 : index
    %c0_372 = arith.constant 0 : index
    %1363 = vector.load %arg11[%c1016, %c0_372] : memref<1024x64xbf16, #tpu.memory_space<vmem>>, vector<8x64xbf16>
    tpu.vector_store %arg11[%c1016, %c0_372], %1362 {strides = array<i32>} : memref<1024x64xbf16, #tpu.memory_space<vmem>>, vector<8x64xbf16>,
    %c0_373 = arith.constant 0 : index
    %c0_374 = arith.constant 0 : index
    %1364 = vector.load %arg4[%c0_373, %c0_374] : memref<64x1024xbf16, #tpu.memory_space<vmem>>, vector<64x1024xbf16>
    %c0_375 = arith.constant 0 : index
    %c0_376 = arith.constant 0 : index
    %1365 = vector.load %arg11[%c0_375, %c0_376] : memref<1024x64xbf16, #tpu.memory_space<vmem>>, vector<1024x64xbf16>
    %cst_377 = arith.constant dense<0.000000e+00> : vector<64x64xf32>
    %1366 = tpu.matmul %1364, %1365, %cst_377 {dimension_numbers = #tpu.dot_dimension_numbers<[1], [0], [0], [1], [0, 0, 1, 1], [], []>} : vector<64x1024xbf16>, vector<1024x64xbf16>, vector<64x64xf32> -> vector<64x64xf32>
    %c0_378 = arith.constant 0 : index
    %c0_379 = arith.constant 0 : index
    %1367 = vector.load %arg7[%c0_378, %c0_379] : memref<64x1xf32, #tpu.memory_space<vmem>>, vector<64x1xf32>
    %1368 = vector.broadcast %1367 : vector<64x1xf32> to vector<64x64xf32>
    %1369 = arith.addf %1366, %1368 : vector<64x64xf32>
    %cst_380 = arith.constant 0.000000e+00 : f32
    %1370 = vector.broadcast %cst_380 : f32 to vector<64x64xf32>
    %1371 = arith.maximumf %1369, %1370 : vector<64x64xf32>
    %1372 = vector.extract_strided_slice %1371 {offsets = [0, 0], sizes = [8, 64], strides = [1, 1]} : vector<64x64xf32> to vector<8x64xf32>
    %1373 = arith.truncf %1372 : vector<8x64xf32> to vector<8x64xbf16>
    %c0_381 = arith.constant 0 : index
    %c0_382 = arith.constant 0 : index
    %1374 = vector.load %arg11[%c0_381, %c0_382] : memref<1024x64xbf16, #tpu.memory_space<vmem>>, vector<8x64xbf16>
    tpu.vector_store %arg11[%c0_381, %c0_382], %1373 {strides = array<i32>} : memref<1024x64xbf16, #tpu.memory_space<vmem>>, vector<8x64xbf16>,
    %1375 = vector.extract_strided_slice %1371 {offsets = [8, 0], sizes = [8, 64], strides = [1, 1]} : vector<64x64xf32> to vector<8x64xf32>
    %1376 = arith.truncf %1375 : vector<8x64xf32> to vector<8x64xbf16>
    %c8_383 = arith.constant 8 : index
    %c0_384 = arith.constant 0 : index
    %1377 = vector.load %arg11[%c8_383, %c0_384] : memref<1024x64xbf16, #tpu.memory_space<vmem>>, vector<8x64xbf16>
    tpu.vector_store %arg11[%c8_383, %c0_384], %1376 {strides = array<i32>} : memref<1024x64xbf16, #tpu.memory_space<vmem>>, vector<8x64xbf16>,
    %1378 = vector.extract_strided_slice %1371 {offsets = [0, 0], sizes = [8, 64], strides = [1, 1]} : vector<64x64xf32> to vector<8x64xf32>
    %1379 = vector.extract_strided_slice %1378 {offsets = [0, 1], sizes = [8, 63], strides = [1, 1]} : vector<8x64xf32> to vector<8x63xf32>
    %1380 = vector.extract_strided_slice %1378 {offsets = [0, 0], sizes = [8, 1], strides = [1, 1]} : vector<8x64xf32> to vector<8x1xf32>
    %1381 = tpu.concatenate %1379, %1380 in 1 : vector<8x63xf32>, vector<8x1xf32> -> vector<8x64xf32>
    %c14_385 = arith.constant 14 : index
    %c0_386 = arith.constant 0 : index
    %1382 = vector.load %arg9[%c14_385, %c0_386] : memref<27x64xf32, #tpu.memory_space<vmem>>, vector<1x64xf32>
    %1383 = vector.shape_cast %1382 : vector<1x64xf32> to vector<64xf32>
    %1384 = vector.shape_cast %1383 : vector<64xf32> to vector<1x64xf32>
    %1385 = vector.broadcast %1384 : vector<1x64xf32> to vector<8x64xf32>
    %1386 = arith.mulf %1381, %1385 : vector<8x64xf32>
    %1387 = arith.truncf %1386 : vector<8x64xf32> to vector<8x64xbf16>
    %c16_387 = arith.constant 16 : index
    %c0_388 = arith.constant 0 : index
    %1388 = vector.load %arg11[%c16_387, %c0_388] : memref<1024x64xbf16, #tpu.memory_space<vmem>>, vector<8x64xbf16>
    tpu.vector_store %arg11[%c16_387, %c0_388], %1387 {strides = array<i32>} : memref<1024x64xbf16, #tpu.memory_space<vmem>>, vector<8x64xbf16>,
    %1389 = vector.extract_strided_slice %1371 {offsets = [8, 0], sizes = [8, 64], strides = [1, 1]} : vector<64x64xf32> to vector<8x64xf32>
    %1390 = vector.extract_strided_slice %1389 {offsets = [0, 63], sizes = [8, 1], strides = [1, 1]} : vector<8x64xf32> to vector<8x1xf32>
    %1391 = vector.extract_strided_slice %1389 {offsets = [0, 0], sizes = [8, 63], strides = [1, 1]} : vector<8x64xf32> to vector<8x63xf32>
    %1392 = tpu.concatenate %1390, %1391 in 1 : vector<8x1xf32>, vector<8x63xf32> -> vector<8x64xf32>
    %c12_389 = arith.constant 12 : index
    %c0_390 = arith.constant 0 : index
    %1393 = vector.load %arg9[%c12_389, %c0_390] : memref<27x64xf32, #tpu.memory_space<vmem>>, vector<1x64xf32>
    %1394 = vector.shape_cast %1393 : vector<1x64xf32> to vector<64xf32>
    %1395 = vector.shape_cast %1394 : vector<64xf32> to vector<1x64xf32>
    %1396 = vector.broadcast %1395 : vector<1x64xf32> to vector<8x64xf32>
    %1397 = arith.mulf %1392, %1396 : vector<8x64xf32>
    %1398 = arith.truncf %1397 : vector<8x64xf32> to vector<8x64xbf16>
    %c24_391 = arith.constant 24 : index
    %c0_392 = arith.constant 0 : index
    %1399 = vector.load %arg11[%c24_391, %c0_392] : memref<1024x64xbf16, #tpu.memory_space<vmem>>, vector<8x64xbf16>
    tpu.vector_store %arg11[%c24_391, %c0_392], %1398 {strides = array<i32>} : memref<1024x64xbf16, #tpu.memory_space<vmem>>, vector<8x64xbf16>,
    %1400 = vector.extract_strided_slice %1371 {offsets = [16, 0], sizes = [8, 64], strides = [1, 1]} : vector<64x64xf32> to vector<8x64xf32>
    %1401 = arith.truncf %1400 : vector<8x64xf32> to vector<8x64xbf16>
    %c32_393 = arith.constant 32 : index
    %c0_394 = arith.constant 0 : index
    %1402 = vector.load %arg11[%c32_393, %c0_394] : memref<1024x64xbf16, #tpu.memory_space<vmem>>, vector<8x64xbf16>
    tpu.vector_store %arg11[%c32_393, %c0_394], %1401 {strides = array<i32>} : memref<1024x64xbf16, #tpu.memory_space<vmem>>, vector<8x64xbf16>,
    %1403 = vector.extract_strided_slice %1371 {offsets = [24, 0], sizes = [8, 64], strides = [1, 1]} : vector<64x64xf32> to vector<8x64xf32>
    %1404 = arith.truncf %1403 : vector<8x64xf32> to vector<8x64xbf16>
    %c40_395 = arith.constant 40 : index
    %c0_396 = arith.constant 0 : index
    %1405 = vector.load %arg11[%c40_395, %c0_396] : memref<1024x64xbf16, #tpu.memory_space<vmem>>, vector<8x64xbf16>
    tpu.vector_store %arg11[%c40_395, %c0_396], %1404 {strides = array<i32>} : memref<1024x64xbf16, #tpu.memory_space<vmem>>, vector<8x64xbf16>,
    %1406 = vector.extract_strided_slice %1371 {offsets = [16, 0], sizes = [8, 64], strides = [1, 1]} : vector<64x64xf32> to vector<8x64xf32>
    %1407 = vector.extract_strided_slice %1406 {offsets = [0, 1], sizes = [8, 63], strides = [1, 1]} : vector<8x64xf32> to vector<8x63xf32>
    %1408 = vector.extract_strided_slice %1406 {offsets = [0, 0], sizes = [8, 1], strides = [1, 1]} : vector<8x64xf32> to vector<8x1xf32>
    %1409 = tpu.concatenate %1407, %1408 in 1 : vector<8x63xf32>, vector<8x1xf32> -> vector<8x64xf32>
    %c14_397 = arith.constant 14 : index
    %c0_398 = arith.constant 0 : index
    %1410 = vector.load %arg9[%c14_397, %c0_398] : memref<27x64xf32, #tpu.memory_space<vmem>>, vector<1x64xf32>
    %1411 = vector.shape_cast %1410 : vector<1x64xf32> to vector<64xf32>
    %1412 = vector.shape_cast %1411 : vector<64xf32> to vector<1x64xf32>
    %1413 = vector.broadcast %1412 : vector<1x64xf32> to vector<8x64xf32>
    %1414 = arith.mulf %1409, %1413 : vector<8x64xf32>
    %1415 = arith.truncf %1414 : vector<8x64xf32> to vector<8x64xbf16>
    %c48_399 = arith.constant 48 : index
    %c0_400 = arith.constant 0 : index
    %1416 = vector.load %arg11[%c48_399, %c0_400] : memref<1024x64xbf16, #tpu.memory_space<vmem>>, vector<8x64xbf16>
    tpu.vector_store %arg11[%c48_399, %c0_400], %1415 {strides = array<i32>} : memref<1024x64xbf16, #tpu.memory_space<vmem>>, vector<8x64xbf16>,
    %1417 = vector.extract_strided_slice %1371 {offsets = [24, 0], sizes = [8, 64], strides = [1, 1]} : vector<64x64xf32> to vector<8x64xf32>
    %1418 = vector.extract_strided_slice %1417 {offsets = [0, 63], sizes = [8, 1], strides = [1, 1]} : vector<8x64xf32> to vector<8x1xf32>
    %1419 = vector.extract_strided_slice %1417 {offsets = [0, 0], sizes = [8, 63], strides = [1, 1]} : vector<8x64xf32> to vector<8x63xf32>
    %1420 = tpu.concatenate %1418, %1419 in 1 : vector<8x1xf32>, vector<8x63xf32> -> vector<8x64xf32>
    %c12_401 = arith.constant 12 : index
    %c0_402 = arith.constant 0 : index
    %1421 = vector.load %arg9[%c12_401, %c0_402] : memref<27x64xf32, #tpu.memory_space<vmem>>, vector<1x64xf32>
    %1422 = vector.shape_cast %1421 : vector<1x64xf32> to vector<64xf32>
    %1423 = vector.shape_cast %1422 : vector<64xf32> to vector<1x64xf32>
    %1424 = vector.broadcast %1423 : vector<1x64xf32> to vector<8x64xf32>
    %1425 = arith.mulf %1420, %1424 : vector<8x64xf32>
    %1426 = arith.truncf %1425 : vector<8x64xf32> to vector<8x64xbf16>
    %c56_403 = arith.constant 56 : index
    %c0_404 = arith.constant 0 : index
    %1427 = vector.load %arg11[%c56_403, %c0_404] : memref<1024x64xbf16, #tpu.memory_space<vmem>>, vector<8x64xbf16>
    tpu.vector_store %arg11[%c56_403, %c0_404], %1426 {strides = array<i32>} : memref<1024x64xbf16, #tpu.memory_space<vmem>>, vector<8x64xbf16>,
    %1428 = vector.extract_strided_slice %1371 {offsets = [0, 0], sizes = [8, 64], strides = [1, 1]} : vector<64x64xf32> to vector<8x64xf32>
    %1429 = vector.extract_strided_slice %1428 {offsets = [0, 4], sizes = [8, 60], strides = [1, 1]} : vector<8x64xf32> to vector<8x60xf32>
    %1430 = vector.extract_strided_slice %1428 {offsets = [0, 0], sizes = [8, 4], strides = [1, 1]} : vector<8x64xf32> to vector<8x4xf32>
    %1431 = tpu.concatenate %1429, %1430 in 1 : vector<8x60xf32>, vector<8x4xf32> -> vector<8x64xf32>
    %c16_405 = arith.constant 16 : index
    %c0_406 = arith.constant 0 : index
    %1432 = vector.load %arg9[%c16_405, %c0_406] : memref<27x64xf32, #tpu.memory_space<vmem>>, vector<1x64xf32>
    %1433 = vector.shape_cast %1432 : vector<1x64xf32> to vector<64xf32>
    %1434 = vector.shape_cast %1433 : vector<64xf32> to vector<1x64xf32>
    %1435 = vector.broadcast %1434 : vector<1x64xf32> to vector<8x64xf32>
    %1436 = arith.mulf %1431, %1435 : vector<8x64xf32>
    %1437 = arith.truncf %1436 : vector<8x64xf32> to vector<8x64xbf16>
    %c64_407 = arith.constant 64 : index
    %c0_408 = arith.constant 0 : index
    %1438 = vector.load %arg11[%c64_407, %c0_408] : memref<1024x64xbf16, #tpu.memory_space<vmem>>, vector<8x64xbf16>
    tpu.vector_store %arg11[%c64_407, %c0_408], %1437 {strides = array<i32>} : memref<1024x64xbf16, #tpu.memory_space<vmem>>, vector<8x64xbf16>,
    %1439 = vector.extract_strided_slice %1371 {offsets = [8, 0], sizes = [8, 64], strides = [1, 1]} : vector<64x64xf32> to vector<8x64xf32>
    %1440 = vector.extract_strided_slice %1439 {offsets = [0, 4], sizes = [8, 60], strides = [1, 1]} : vector<8x64xf32> to vector<8x60xf32>
    %1441 = vector.extract_strided_slice %1439 {offsets = [0, 0], sizes = [8, 4], strides = [1, 1]} : vector<8x64xf32> to vector<8x4xf32>
    %1442 = tpu.concatenate %1440, %1441 in 1 : vector<8x60xf32>, vector<8x4xf32> -> vector<8x64xf32>
    %c16_409 = arith.constant 16 : index
    %c0_410 = arith.constant 0 : index
    %1443 = vector.load %arg9[%c16_409, %c0_410] : memref<27x64xf32, #tpu.memory_space<vmem>>, vector<1x64xf32>
    %1444 = vector.shape_cast %1443 : vector<1x64xf32> to vector<64xf32>
    %1445 = vector.shape_cast %1444 : vector<64xf32> to vector<1x64xf32>
    %1446 = vector.broadcast %1445 : vector<1x64xf32> to vector<8x64xf32>
    %1447 = arith.mulf %1442, %1446 : vector<8x64xf32>
    %1448 = arith.truncf %1447 : vector<8x64xf32> to vector<8x64xbf16>
    %c72_411 = arith.constant 72 : index
    %c0_412 = arith.constant 0 : index
    %1449 = vector.load %arg11[%c72_411, %c0_412] : memref<1024x64xbf16, #tpu.memory_space<vmem>>, vector<8x64xbf16>
    tpu.vector_store %arg11[%c72_411, %c0_412], %1448 {strides = array<i32>} : memref<1024x64xbf16, #tpu.memory_space<vmem>>, vector<8x64xbf16>,
    %1450 = vector.extract_strided_slice %1371 {offsets = [0, 0], sizes = [8, 64], strides = [1, 1]} : vector<64x64xf32> to vector<8x64xf32>
    %1451 = vector.extract_strided_slice %1450 {offsets = [0, 5], sizes = [8, 59], strides = [1, 1]} : vector<8x64xf32> to vector<8x59xf32>
    %1452 = vector.extract_strided_slice %1450 {offsets = [0, 0], sizes = [8, 5], strides = [1, 1]} : vector<8x64xf32> to vector<8x5xf32>
    %1453 = tpu.concatenate %1451, %1452 in 1 : vector<8x59xf32>, vector<8x5xf32> -> vector<8x64xf32>
    %c17_413 = arith.constant 17 : index
    %c0_414 = arith.constant 0 : index
    %1454 = vector.load %arg9[%c17_413, %c0_414] : memref<27x64xf32, #tpu.memory_space<vmem>>, vector<1x64xf32>
    %1455 = vector.shape_cast %1454 : vector<1x64xf32> to vector<64xf32>
    %1456 = vector.shape_cast %1455 : vector<64xf32> to vector<1x64xf32>
    %1457 = vector.broadcast %1456 : vector<1x64xf32> to vector<8x64xf32>
    %1458 = arith.mulf %1453, %1457 : vector<8x64xf32>
    %1459 = arith.truncf %1458 : vector<8x64xf32> to vector<8x64xbf16>
    %c80_415 = arith.constant 80 : index
    %c0_416 = arith.constant 0 : index
    %1460 = vector.load %arg11[%c80_415, %c0_416] : memref<1024x64xbf16, #tpu.memory_space<vmem>>, vector<8x64xbf16>
    tpu.vector_store %arg11[%c80_415, %c0_416], %1459 {strides = array<i32>} : memref<1024x64xbf16, #tpu.memory_space<vmem>>, vector<8x64xbf16>,
    %1461 = vector.extract_strided_slice %1371 {offsets = [8, 0], sizes = [8, 64], strides = [1, 1]} : vector<64x64xf32> to vector<8x64xf32>
    %1462 = vector.extract_strided_slice %1461 {offsets = [0, 3], sizes = [8, 61], strides = [1, 1]} : vector<8x64xf32> to vector<8x61xf32>
    %1463 = vector.extract_strided_slice %1461 {offsets = [0, 0], sizes = [8, 3], strides = [1, 1]} : vector<8x64xf32> to vector<8x3xf32>
    %1464 = tpu.concatenate %1462, %1463 in 1 : vector<8x61xf32>, vector<8x3xf32> -> vector<8x64xf32>
    %c15_417 = arith.constant 15 : index
    %c0_418 = arith.constant 0 : index
    %1465 = vector.load %arg9[%c15_417, %c0_418] : memref<27x64xf32, #tpu.memory_space<vmem>>, vector<1x64xf32>
    %1466 = vector.shape_cast %1465 : vector<1x64xf32> to vector<64xf32>
    %1467 = vector.shape_cast %1466 : vector<64xf32> to vector<1x64xf32>
    %1468 = vector.broadcast %1467 : vector<1x64xf32> to vector<8x64xf32>
    %1469 = arith.mulf %1464, %1468 : vector<8x64xf32>
    %1470 = arith.truncf %1469 : vector<8x64xf32> to vector<8x64xbf16>
    %c88_419 = arith.constant 88 : index
    %c0_420 = arith.constant 0 : index
    %1471 = vector.load %arg11[%c88_419, %c0_420] : memref<1024x64xbf16, #tpu.memory_space<vmem>>, vector<8x64xbf16>
    tpu.vector_store %arg11[%c88_419, %c0_420], %1470 {strides = array<i32>} : memref<1024x64xbf16, #tpu.memory_space<vmem>>, vector<8x64xbf16>,
    %1472 = vector.extract_strided_slice %1371 {offsets = [16, 0], sizes = [8, 64], strides = [1, 1]} : vector<64x64xf32> to vector<8x64xf32>
    %1473 = vector.extract_strided_slice %1472 {offsets = [0, 60], sizes = [8, 4], strides = [1, 1]} : vector<8x64xf32> to vector<8x4xf32>
    %1474 = vector.extract_strided_slice %1472 {offsets = [0, 0], sizes = [8, 60], strides = [1, 1]} : vector<8x64xf32> to vector<8x60xf32>
    %1475 = tpu.concatenate %1473, %1474 in 1 : vector<8x4xf32>, vector<8x60xf32> -> vector<8x64xf32>
    %c10_421 = arith.constant 10 : index
    %c0_422 = arith.constant 0 : index
    %1476 = vector.load %arg9[%c10_421, %c0_422] : memref<27x64xf32, #tpu.memory_space<vmem>>, vector<1x64xf32>
    %1477 = vector.shape_cast %1476 : vector<1x64xf32> to vector<64xf32>
    %1478 = vector.shape_cast %1477 : vector<64xf32> to vector<1x64xf32>
    %1479 = vector.broadcast %1478 : vector<1x64xf32> to vector<8x64xf32>
    %1480 = arith.mulf %1475, %1479 : vector<8x64xf32>
    %1481 = arith.truncf %1480 : vector<8x64xf32> to vector<8x64xbf16>
    %c96_423 = arith.constant 96 : index
    %c0_424 = arith.constant 0 : index
    %1482 = vector.load %arg11[%c96_423, %c0_424] : memref<1024x64xbf16, #tpu.memory_space<vmem>>, vector<8x64xbf16>
    tpu.vector_store %arg11[%c96_423, %c0_424], %1481 {strides = array<i32>} : memref<1024x64xbf16, #tpu.memory_space<vmem>>, vector<8x64xbf16>,
    %1483 = vector.extract_strided_slice %1371 {offsets = [24, 0], sizes = [8, 64], strides = [1, 1]} : vector<64x64xf32> to vector<8x64xf32>
    %1484 = vector.extract_strided_slice %1483 {offsets = [0, 60], sizes = [8, 4], strides = [1, 1]} : vector<8x64xf32> to vector<8x4xf32>
    %1485 = vector.extract_strided_slice %1483 {offsets = [0, 0], sizes = [8, 60], strides = [1, 1]} : vector<8x64xf32> to vector<8x60xf32>
    %1486 = tpu.concatenate %1484, %1485 in 1 : vector<8x4xf32>, vector<8x60xf32> -> vector<8x64xf32>
    %c10_425 = arith.constant 10 : index
    %c0_426 = arith.constant 0 : index
    %1487 = vector.load %arg9[%c10_425, %c0_426] : memref<27x64xf32, #tpu.memory_space<vmem>>, vector<1x64xf32>
    %1488 = vector.shape_cast %1487 : vector<1x64xf32> to vector<64xf32>
    %1489 = vector.shape_cast %1488 : vector<64xf32> to vector<1x64xf32>
    %1490 = vector.broadcast %1489 : vector<1x64xf32> to vector<8x64xf32>
    %1491 = arith.mulf %1486, %1490 : vector<8x64xf32>
    %1492 = arith.truncf %1491 : vector<8x64xf32> to vector<8x64xbf16>
    %c104_427 = arith.constant 104 : index
    %c0_428 = arith.constant 0 : index
    %1493 = vector.load %arg11[%c104_427, %c0_428] : memref<1024x64xbf16, #tpu.memory_space<vmem>>, vector<8x64xbf16>
    tpu.vector_store %arg11[%c104_427, %c0_428], %1492 {strides = array<i32>} : memref<1024x64xbf16, #tpu.memory_space<vmem>>, vector<8x64xbf16>,
    %1494 = vector.extract_strided_slice %1371 {offsets = [16, 0], sizes = [8, 64], strides = [1, 1]} : vector<64x64xf32> to vector<8x64xf32>
    %1495 = vector.extract_strided_slice %1494 {offsets = [0, 61], sizes = [8, 3], strides = [1, 1]} : vector<8x64xf32> to vector<8x3xf32>
    %1496 = vector.extract_strided_slice %1494 {offsets = [0, 0], sizes = [8, 61], strides = [1, 1]} : vector<8x64xf32> to vector<8x61xf32>
    %1497 = tpu.concatenate %1495, %1496 in 1 : vector<8x3xf32>, vector<8x61xf32> -> vector<8x64xf32>
    %c11_429 = arith.constant 11 : index
    %c0_430 = arith.constant 0 : index
    %1498 = vector.load %arg9[%c11_429, %c0_430] : memref<27x64xf32, #tpu.memory_space<vmem>>, vector<1x64xf32>
    %1499 = vector.shape_cast %1498 : vector<1x64xf32> to vector<64xf32>
    %1500 = vector.shape_cast %1499 : vector<64xf32> to vector<1x64xf32>
    %1501 = vector.broadcast %1500 : vector<1x64xf32> to vector<8x64xf32>
    %1502 = arith.mulf %1497, %1501 : vector<8x64xf32>
    %1503 = arith.truncf %1502 : vector<8x64xf32> to vector<8x64xbf16>
    %c112_431 = arith.constant 112 : index
    %c0_432 = arith.constant 0 : index
    %1504 = vector.load %arg11[%c112_431, %c0_432] : memref<1024x64xbf16, #tpu.memory_space<vmem>>, vector<8x64xbf16>
    tpu.vector_store %arg11[%c112_431, %c0_432], %1503 {strides = array<i32>} : memref<1024x64xbf16, #tpu.memory_space<vmem>>, vector<8x64xbf16>,
    %1505 = vector.extract_strided_slice %1371 {offsets = [24, 0], sizes = [8, 64], strides = [1, 1]} : vector<64x64xf32> to vector<8x64xf32>
    %1506 = vector.extract_strided_slice %1505 {offsets = [0, 59], sizes = [8, 5], strides = [1, 1]} : vector<8x64xf32> to vector<8x5xf32>
    %1507 = vector.extract_strided_slice %1505 {offsets = [0, 0], sizes = [8, 59], strides = [1, 1]} : vector<8x64xf32> to vector<8x59xf32>
    %1508 = tpu.concatenate %1506, %1507 in 1 : vector<8x5xf32>, vector<8x59xf32> -> vector<8x64xf32>
    %c9_433 = arith.constant 9 : index
    %c0_434 = arith.constant 0 : index
    %1509 = vector.load %arg9[%c9_433, %c0_434] : memref<27x64xf32, #tpu.memory_space<vmem>>, vector<1x64xf32>
    %1510 = vector.shape_cast %1509 : vector<1x64xf32> to vector<64xf32>
    %1511 = vector.shape_cast %1510 : vector<64xf32> to vector<1x64xf32>
    %1512 = vector.broadcast %1511 : vector<1x64xf32> to vector<8x64xf32>
    %1513 = arith.mulf %1508, %1512 : vector<8x64xf32>
    %1514 = arith.truncf %1513 : vector<8x64xf32> to vector<8x64xbf16>
    %c120_435 = arith.constant 120 : index
    %c0_436 = arith.constant 0 : index
    %1515 = vector.load %arg11[%c120_435, %c0_436] : memref<1024x64xbf16, #tpu.memory_space<vmem>>, vector<8x64xbf16>
    tpu.vector_store %arg11[%c120_435, %c0_436], %1514 {strides = array<i32>} : memref<1024x64xbf16, #tpu.memory_space<vmem>>, vector<8x64xbf16>,
    %1516 = vector.extract_strided_slice %1371 {offsets = [32, 0], sizes = [8, 64], strides = [1, 1]} : vector<64x64xf32> to vector<8x64xf32>
    %1517 = arith.truncf %1516 : vector<8x64xf32> to vector<8x64xbf16>
    %c128_437 = arith.constant 128 : index
    %c0_438 = arith.constant 0 : index
    %1518 = vector.load %arg11[%c128_437, %c0_438] : memref<1024x64xbf16, #tpu.memory_space<vmem>>, vector<8x64xbf16>
    tpu.vector_store %arg11[%c128_437, %c0_438], %1517 {strides = array<i32>} : memref<1024x64xbf16, #tpu.memory_space<vmem>>, vector<8x64xbf16>,
    %1519 = vector.extract_strided_slice %1371 {offsets = [40, 0], sizes = [8, 64], strides = [1, 1]} : vector<64x64xf32> to vector<8x64xf32>
    %1520 = arith.truncf %1519 : vector<8x64xf32> to vector<8x64xbf16>
    %c136_439 = arith.constant 136 : index
    %c0_440 = arith.constant 0 : index
    %1521 = vector.load %arg11[%c136_439, %c0_440] : memref<1024x64xbf16, #tpu.memory_space<vmem>>, vector<8x64xbf16>
    tpu.vector_store %arg11[%c136_439, %c0_440], %1520 {strides = array<i32>} : memref<1024x64xbf16, #tpu.memory_space<vmem>>, vector<8x64xbf16>,
    %1522 = vector.extract_strided_slice %1371 {offsets = [32, 0], sizes = [8, 64], strides = [1, 1]} : vector<64x64xf32> to vector<8x64xf32>
    %1523 = vector.extract_strided_slice %1522 {offsets = [0, 1], sizes = [8, 63], strides = [1, 1]} : vector<8x64xf32> to vector<8x63xf32>
    %1524 = vector.extract_strided_slice %1522 {offsets = [0, 0], sizes = [8, 1], strides = [1, 1]} : vector<8x64xf32> to vector<8x1xf32>
    %1525 = tpu.concatenate %1523, %1524 in 1 : vector<8x63xf32>, vector<8x1xf32> -> vector<8x64xf32>
    %c14_441 = arith.constant 14 : index
    %c0_442 = arith.constant 0 : index
    %1526 = vector.load %arg9[%c14_441, %c0_442] : memref<27x64xf32, #tpu.memory_space<vmem>>, vector<1x64xf32>
    %1527 = vector.shape_cast %1526 : vector<1x64xf32> to vector<64xf32>
    %1528 = vector.shape_cast %1527 : vector<64xf32> to vector<1x64xf32>
    %1529 = vector.broadcast %1528 : vector<1x64xf32> to vector<8x64xf32>
    %1530 = arith.mulf %1525, %1529 : vector<8x64xf32>
    %1531 = arith.truncf %1530 : vector<8x64xf32> to vector<8x64xbf16>
    %c144_443 = arith.constant 144 : index
    %c0_444 = arith.constant 0 : index
    %1532 = vector.load %arg11[%c144_443, %c0_444] : memref<1024x64xbf16, #tpu.memory_space<vmem>>, vector<8x64xbf16>
    tpu.vector_store %arg11[%c144_443, %c0_444], %1531 {strides = array<i32>} : memref<1024x64xbf16, #tpu.memory_space<vmem>>, vector<8x64xbf16>,
    %1533 = vector.extract_strided_slice %1371 {offsets = [40, 0], sizes = [8, 64], strides = [1, 1]} : vector<64x64xf32> to vector<8x64xf32>
    %1534 = vector.extract_strided_slice %1533 {offsets = [0, 63], sizes = [8, 1], strides = [1, 1]} : vector<8x64xf32> to vector<8x1xf32>
    %1535 = vector.extract_strided_slice %1533 {offsets = [0, 0], sizes = [8, 63], strides = [1, 1]} : vector<8x64xf32> to vector<8x63xf32>
    %1536 = tpu.concatenate %1534, %1535 in 1 : vector<8x1xf32>, vector<8x63xf32> -> vector<8x64xf32>
    %c12_445 = arith.constant 12 : index
    %c0_446 = arith.constant 0 : index
    %1537 = vector.load %arg9[%c12_445, %c0_446] : memref<27x64xf32, #tpu.memory_space<vmem>>, vector<1x64xf32>
    %1538 = vector.shape_cast %1537 : vector<1x64xf32> to vector<64xf32>
    %1539 = vector.shape_cast %1538 : vector<64xf32> to vector<1x64xf32>
    %1540 = vector.broadcast %1539 : vector<1x64xf32> to vector<8x64xf32>
    %1541 = arith.mulf %1536, %1540 : vector<8x64xf32>
    %1542 = arith.truncf %1541 : vector<8x64xf32> to vector<8x64xbf16>
    %c152_447 = arith.constant 152 : index
    %c0_448 = arith.constant 0 : index
    %1543 = vector.load %arg11[%c152_447, %c0_448] : memref<1024x64xbf16, #tpu.memory_space<vmem>>, vector<8x64xbf16>
    tpu.vector_store %arg11[%c152_447, %c0_448], %1542 {strides = array<i32>} : memref<1024x64xbf16, #tpu.memory_space<vmem>>, vector<8x64xbf16>,
    %1544 = vector.extract_strided_slice %1371 {offsets = [48, 0], sizes = [8, 64], strides = [1, 1]} : vector<64x64xf32> to vector<8x64xf32>
    %1545 = arith.truncf %1544 : vector<8x64xf32> to vector<8x64xbf16>
    %c160_449 = arith.constant 160 : index
    %c0_450 = arith.constant 0 : index
    %1546 = vector.load %arg11[%c160_449, %c0_450] : memref<1024x64xbf16, #tpu.memory_space<vmem>>, vector<8x64xbf16>
    tpu.vector_store %arg11[%c160_449, %c0_450], %1545 {strides = array<i32>} : memref<1024x64xbf16, #tpu.memory_space<vmem>>, vector<8x64xbf16>,
    %1547 = vector.extract_strided_slice %1371 {offsets = [56, 0], sizes = [8, 64], strides = [1, 1]} : vector<64x64xf32> to vector<8x64xf32>
    %1548 = arith.truncf %1547 : vector<8x64xf32> to vector<8x64xbf16>
    %c168_451 = arith.constant 168 : index
    %c0_452 = arith.constant 0 : index
    %1549 = vector.load %arg11[%c168_451, %c0_452] : memref<1024x64xbf16, #tpu.memory_space<vmem>>, vector<8x64xbf16>
    tpu.vector_store %arg11[%c168_451, %c0_452], %1548 {strides = array<i32>} : memref<1024x64xbf16, #tpu.memory_space<vmem>>, vector<8x64xbf16>,
    %1550 = vector.extract_strided_slice %1371 {offsets = [48, 0], sizes = [8, 64], strides = [1, 1]} : vector<64x64xf32> to vector<8x64xf32>
    %1551 = vector.extract_strided_slice %1550 {offsets = [0, 1], sizes = [8, 63], strides = [1, 1]} : vector<8x64xf32> to vector<8x63xf32>
    %1552 = vector.extract_strided_slice %1550 {offsets = [0, 0], sizes = [8, 1], strides = [1, 1]} : vector<8x64xf32> to vector<8x1xf32>
    %1553 = tpu.concatenate %1551, %1552 in 1 : vector<8x63xf32>, vector<8x1xf32> -> vector<8x64xf32>
    %c14_453 = arith.constant 14 : index
    %c0_454 = arith.constant 0 : index
    %1554 = vector.load %arg9[%c14_453, %c0_454] : memref<27x64xf32, #tpu.memory_space<vmem>>, vector<1x64xf32>
    %1555 = vector.shape_cast %1554 : vector<1x64xf32> to vector<64xf32>
    %1556 = vector.shape_cast %1555 : vector<64xf32> to vector<1x64xf32>
    %1557 = vector.broadcast %1556 : vector<1x64xf32> to vector<8x64xf32>
    %1558 = arith.mulf %1553, %1557 : vector<8x64xf32>
    %1559 = arith.truncf %1558 : vector<8x64xf32> to vector<8x64xbf16>
    %c176_455 = arith.constant 176 : index
    %c0_456 = arith.constant 0 : index
    %1560 = vector.load %arg11[%c176_455, %c0_456] : memref<1024x64xbf16, #tpu.memory_space<vmem>>, vector<8x64xbf16>
    tpu.vector_store %arg11[%c176_455, %c0_456], %1559 {strides = array<i32>} : memref<1024x64xbf16, #tpu.memory_space<vmem>>, vector<8x64xbf16>,
    %1561 = vector.extract_strided_slice %1371 {offsets = [56, 0], sizes = [8, 64], strides = [1, 1]} : vector<64x64xf32> to vector<8x64xf32>
    %1562 = vector.extract_strided_slice %1561 {offsets = [0, 63], sizes = [8, 1], strides = [1, 1]} : vector<8x64xf32> to vector<8x1xf32>
    %1563 = vector.extract_strided_slice %1561 {offsets = [0, 0], sizes = [8, 63], strides = [1, 1]} : vector<8x64xf32> to vector<8x63xf32>
    %1564 = tpu.concatenate %1562, %1563 in 1 : vector<8x1xf32>, vector<8x63xf32> -> vector<8x64xf32>
    %c12_457 = arith.constant 12 : index
    %c0_458 = arith.constant 0 : index
    %1565 = vector.load %arg9[%c12_457, %c0_458] : memref<27x64xf32, #tpu.memory_space<vmem>>, vector<1x64xf32>
    %1566 = vector.shape_cast %1565 : vector<1x64xf32> to vector<64xf32>
    %1567 = vector.shape_cast %1566 : vector<64xf32> to vector<1x64xf32>
    %1568 = vector.broadcast %1567 : vector<1x64xf32> to vector<8x64xf32>
    %1569 = arith.mulf %1564, %1568 : vector<8x64xf32>
    %1570 = arith.truncf %1569 : vector<8x64xf32> to vector<8x64xbf16>
    %c184_459 = arith.constant 184 : index
    %c0_460 = arith.constant 0 : index
    %1571 = vector.load %arg11[%c184_459, %c0_460] : memref<1024x64xbf16, #tpu.memory_space<vmem>>, vector<8x64xbf16>
    tpu.vector_store %arg11[%c184_459, %c0_460], %1570 {strides = array<i32>} : memref<1024x64xbf16, #tpu.memory_space<vmem>>, vector<8x64xbf16>,
    %1572 = vector.extract_strided_slice %1371 {offsets = [32, 0], sizes = [8, 64], strides = [1, 1]} : vector<64x64xf32> to vector<8x64xf32>
    %1573 = vector.extract_strided_slice %1572 {offsets = [0, 4], sizes = [8, 60], strides = [1, 1]} : vector<8x64xf32> to vector<8x60xf32>
    %1574 = vector.extract_strided_slice %1572 {offsets = [0, 0], sizes = [8, 4], strides = [1, 1]} : vector<8x64xf32> to vector<8x4xf32>
    %1575 = tpu.concatenate %1573, %1574 in 1 : vector<8x60xf32>, vector<8x4xf32> -> vector<8x64xf32>
    %c16_461 = arith.constant 16 : index
    %c0_462 = arith.constant 0 : index
    %1576 = vector.load %arg9[%c16_461, %c0_462] : memref<27x64xf32, #tpu.memory_space<vmem>>, vector<1x64xf32>
    %1577 = vector.shape_cast %1576 : vector<1x64xf32> to vector<64xf32>
    %1578 = vector.shape_cast %1577 : vector<64xf32> to vector<1x64xf32>
    %1579 = vector.broadcast %1578 : vector<1x64xf32> to vector<8x64xf32>
    %1580 = arith.mulf %1575, %1579 : vector<8x64xf32>
    %1581 = arith.truncf %1580 : vector<8x64xf32> to vector<8x64xbf16>
    %c192_463 = arith.constant 192 : index
    %c0_464 = arith.constant 0 : index
    %1582 = vector.load %arg11[%c192_463, %c0_464] : memref<1024x64xbf16, #tpu.memory_space<vmem>>, vector<8x64xbf16>
    tpu.vector_store %arg11[%c192_463, %c0_464], %1581 {strides = array<i32>} : memref<1024x64xbf16, #tpu.memory_space<vmem>>, vector<8x64xbf16>,
    %1583 = vector.extract_strided_slice %1371 {offsets = [40, 0], sizes = [8, 64], strides = [1, 1]} : vector<64x64xf32> to vector<8x64xf32>
    %1584 = vector.extract_strided_slice %1583 {offsets = [0, 4], sizes = [8, 60], strides = [1, 1]} : vector<8x64xf32> to vector<8x60xf32>
    %1585 = vector.extract_strided_slice %1583 {offsets = [0, 0], sizes = [8, 4], strides = [1, 1]} : vector<8x64xf32> to vector<8x4xf32>
    %1586 = tpu.concatenate %1584, %1585 in 1 : vector<8x60xf32>, vector<8x4xf32> -> vector<8x64xf32>
    %c16_465 = arith.constant 16 : index
    %c0_466 = arith.constant 0 : index
    %1587 = vector.load %arg9[%c16_465, %c0_466] : memref<27x64xf32, #tpu.memory_space<vmem>>, vector<1x64xf32>
    %1588 = vector.shape_cast %1587 : vector<1x64xf32> to vector<64xf32>
    %1589 = vector.shape_cast %1588 : vector<64xf32> to vector<1x64xf32>
    %1590 = vector.broadcast %1589 : vector<1x64xf32> to vector<8x64xf32>
    %1591 = arith.mulf %1586, %1590 : vector<8x64xf32>
    %1592 = arith.truncf %1591 : vector<8x64xf32> to vector<8x64xbf16>
    %c200_467 = arith.constant 200 : index
    %c0_468 = arith.constant 0 : index
    %1593 = vector.load %arg11[%c200_467, %c0_468] : memref<1024x64xbf16, #tpu.memory_space<vmem>>, vector<8x64xbf16>
    tpu.vector_store %arg11[%c200_467, %c0_468], %1592 {strides = array<i32>} : memref<1024x64xbf16, #tpu.memory_space<vmem>>, vector<8x64xbf16>,
    %1594 = vector.extract_strided_slice %1371 {offsets = [32, 0], sizes = [8, 64], strides = [1, 1]} : vector<64x64xf32> to vector<8x64xf32>
    %1595 = vector.extract_strided_slice %1594 {offsets = [0, 5], sizes = [8, 59], strides = [1, 1]} : vector<8x64xf32> to vector<8x59xf32>
    %1596 = vector.extract_strided_slice %1594 {offsets = [0, 0], sizes = [8, 5], strides = [1, 1]} : vector<8x64xf32> to vector<8x5xf32>
    %1597 = tpu.concatenate %1595, %1596 in 1 : vector<8x59xf32>, vector<8x5xf32> -> vector<8x64xf32>
    %c17_469 = arith.constant 17 : index
    %c0_470 = arith.constant 0 : index
    %1598 = vector.load %arg9[%c17_469, %c0_470] : memref<27x64xf32, #tpu.memory_space<vmem>>, vector<1x64xf32>
    %1599 = vector.shape_cast %1598 : vector<1x64xf32> to vector<64xf32>
    %1600 = vector.shape_cast %1599 : vector<64xf32> to vector<1x64xf32>
    %1601 = vector.broadcast %1600 : vector<1x64xf32> to vector<8x64xf32>
    %1602 = arith.mulf %1597, %1601 : vector<8x64xf32>
    %1603 = arith.truncf %1602 : vector<8x64xf32> to vector<8x64xbf16>
    %c208_471 = arith.constant 208 : index
    %c0_472 = arith.constant 0 : index
    %1604 = vector.load %arg11[%c208_471, %c0_472] : memref<1024x64xbf16, #tpu.memory_space<vmem>>, vector<8x64xbf16>
    tpu.vector_store %arg11[%c208_471, %c0_472], %1603 {strides = array<i32>} : memref<1024x64xbf16, #tpu.memory_space<vmem>>, vector<8x64xbf16>,
    %1605 = vector.extract_strided_slice %1371 {offsets = [40, 0], sizes = [8, 64], strides = [1, 1]} : vector<64x64xf32> to vector<8x64xf32>
    %1606 = vector.extract_strided_slice %1605 {offsets = [0, 3], sizes = [8, 61], strides = [1, 1]} : vector<8x64xf32> to vector<8x61xf32>
    %1607 = vector.extract_strided_slice %1605 {offsets = [0, 0], sizes = [8, 3], strides = [1, 1]} : vector<8x64xf32> to vector<8x3xf32>
    %1608 = tpu.concatenate %1606, %1607 in 1 : vector<8x61xf32>, vector<8x3xf32> -> vector<8x64xf32>
    %c15_473 = arith.constant 15 : index
    %c0_474 = arith.constant 0 : index
    %1609 = vector.load %arg9[%c15_473, %c0_474] : memref<27x64xf32, #tpu.memory_space<vmem>>, vector<1x64xf32>
    %1610 = vector.shape_cast %1609 : vector<1x64xf32> to vector<64xf32>
    %1611 = vector.shape_cast %1610 : vector<64xf32> to vector<1x64xf32>
    %1612 = vector.broadcast %1611 : vector<1x64xf32> to vector<8x64xf32>
    %1613 = arith.mulf %1608, %1612 : vector<8x64xf32>
    %1614 = arith.truncf %1613 : vector<8x64xf32> to vector<8x64xbf16>
    %c216_475 = arith.constant 216 : index
    %c0_476 = arith.constant 0 : index
    %1615 = vector.load %arg11[%c216_475, %c0_476] : memref<1024x64xbf16, #tpu.memory_space<vmem>>, vector<8x64xbf16>
    tpu.vector_store %arg11[%c216_475, %c0_476], %1614 {strides = array<i32>} : memref<1024x64xbf16, #tpu.memory_space<vmem>>, vector<8x64xbf16>,
    %1616 = vector.extract_strided_slice %1371 {offsets = [48, 0], sizes = [8, 64], strides = [1, 1]} : vector<64x64xf32> to vector<8x64xf32>
    %1617 = vector.extract_strided_slice %1616 {offsets = [0, 60], sizes = [8, 4], strides = [1, 1]} : vector<8x64xf32> to vector<8x4xf32>
    %1618 = vector.extract_strided_slice %1616 {offsets = [0, 0], sizes = [8, 60], strides = [1, 1]} : vector<8x64xf32> to vector<8x60xf32>
    %1619 = tpu.concatenate %1617, %1618 in 1 : vector<8x4xf32>, vector<8x60xf32> -> vector<8x64xf32>
    %c10_477 = arith.constant 10 : index
    %c0_478 = arith.constant 0 : index
    %1620 = vector.load %arg9[%c10_477, %c0_478] : memref<27x64xf32, #tpu.memory_space<vmem>>, vector<1x64xf32>
    %1621 = vector.shape_cast %1620 : vector<1x64xf32> to vector<64xf32>
    %1622 = vector.shape_cast %1621 : vector<64xf32> to vector<1x64xf32>
    %1623 = vector.broadcast %1622 : vector<1x64xf32> to vector<8x64xf32>
    %1624 = arith.mulf %1619, %1623 : vector<8x64xf32>
    %1625 = arith.truncf %1624 : vector<8x64xf32> to vector<8x64xbf16>
    %c224_479 = arith.constant 224 : index
    %c0_480 = arith.constant 0 : index
    %1626 = vector.load %arg11[%c224_479, %c0_480] : memref<1024x64xbf16, #tpu.memory_space<vmem>>, vector<8x64xbf16>
    tpu.vector_store %arg11[%c224_479, %c0_480], %1625 {strides = array<i32>} : memref<1024x64xbf16, #tpu.memory_space<vmem>>, vector<8x64xbf16>,
    %1627 = vector.extract_strided_slice %1371 {offsets = [56, 0], sizes = [8, 64], strides = [1, 1]} : vector<64x64xf32> to vector<8x64xf32>
    %1628 = vector.extract_strided_slice %1627 {offsets = [0, 60], sizes = [8, 4], strides = [1, 1]} : vector<8x64xf32> to vector<8x4xf32>
    %1629 = vector.extract_strided_slice %1627 {offsets = [0, 0], sizes = [8, 60], strides = [1, 1]} : vector<8x64xf32> to vector<8x60xf32>
    %1630 = tpu.concatenate %1628, %1629 in 1 : vector<8x4xf32>, vector<8x60xf32> -> vector<8x64xf32>
    %c10_481 = arith.constant 10 : index
    %c0_482 = arith.constant 0 : index
    %1631 = vector.load %arg9[%c10_481, %c0_482] : memref<27x64xf32, #tpu.memory_space<vmem>>, vector<1x64xf32>
    %1632 = vector.shape_cast %1631 : vector<1x64xf32> to vector<64xf32>
    %1633 = vector.shape_cast %1632 : vector<64xf32> to vector<1x64xf32>
    %1634 = vector.broadcast %1633 : vector<1x64xf32> to vector<8x64xf32>
    %1635 = arith.mulf %1630, %1634 : vector<8x64xf32>
    %1636 = arith.truncf %1635 : vector<8x64xf32> to vector<8x64xbf16>
    %c232_483 = arith.constant 232 : index
    %c0_484 = arith.constant 0 : index
    %1637 = vector.load %arg11[%c232_483, %c0_484] : memref<1024x64xbf16, #tpu.memory_space<vmem>>, vector<8x64xbf16>
    tpu.vector_store %arg11[%c232_483, %c0_484], %1636 {strides = array<i32>} : memref<1024x64xbf16, #tpu.memory_space<vmem>>, vector<8x64xbf16>,
    %1638 = vector.extract_strided_slice %1371 {offsets = [48, 0], sizes = [8, 64], strides = [1, 1]} : vector<64x64xf32> to vector<8x64xf32>
    %1639 = vector.extract_strided_slice %1638 {offsets = [0, 61], sizes = [8, 3], strides = [1, 1]} : vector<8x64xf32> to vector<8x3xf32>
    %1640 = vector.extract_strided_slice %1638 {offsets = [0, 0], sizes = [8, 61], strides = [1, 1]} : vector<8x64xf32> to vector<8x61xf32>
    %1641 = tpu.concatenate %1639, %1640 in 1 : vector<8x3xf32>, vector<8x61xf32> -> vector<8x64xf32>
    %c11_485 = arith.constant 11 : index
    %c0_486 = arith.constant 0 : index
    %1642 = vector.load %arg9[%c11_485, %c0_486] : memref<27x64xf32, #tpu.memory_space<vmem>>, vector<1x64xf32>
    %1643 = vector.shape_cast %1642 : vector<1x64xf32> to vector<64xf32>
    %1644 = vector.shape_cast %1643 : vector<64xf32> to vector<1x64xf32>
    %1645 = vector.broadcast %1644 : vector<1x64xf32> to vector<8x64xf32>
    %1646 = arith.mulf %1641, %1645 : vector<8x64xf32>
    %1647 = arith.truncf %1646 : vector<8x64xf32> to vector<8x64xbf16>
    %c240_487 = arith.constant 240 : index
    %c0_488 = arith.constant 0 : index
    %1648 = vector.load %arg11[%c240_487, %c0_488] : memref<1024x64xbf16, #tpu.memory_space<vmem>>, vector<8x64xbf16>
    tpu.vector_store %arg11[%c240_487, %c0_488], %1647 {strides = array<i32>} : memref<1024x64xbf16, #tpu.memory_space<vmem>>, vector<8x64xbf16>,
    %1649 = vector.extract_strided_slice %1371 {offsets = [56, 0], sizes = [8, 64], strides = [1, 1]} : vector<64x64xf32> to vector<8x64xf32>
    %1650 = vector.extract_strided_slice %1649 {offsets = [0, 59], sizes = [8, 5], strides = [1, 1]} : vector<8x64xf32> to vector<8x5xf32>
    %1651 = vector.extract_strided_slice %1649 {offsets = [0, 0], sizes = [8, 59], strides = [1, 1]} : vector<8x64xf32> to vector<8x59xf32>
    %1652 = tpu.concatenate %1650, %1651 in 1 : vector<8x5xf32>, vector<8x59xf32> -> vector<8x64xf32>
    %c9_489 = arith.constant 9 : index
    %c0_490 = arith.constant 0 : index
    %1653 = vector.load %arg9[%c9_489, %c0_490] : memref<27x64xf32, #tpu.memory_space<vmem>>, vector<1x64xf32>
    %1654 = vector.shape_cast %1653 : vector<1x64xf32> to vector<64xf32>
    %1655 = vector.shape_cast %1654 : vector<64xf32> to vector<1x64xf32>
    %1656 = vector.broadcast %1655 : vector<1x64xf32> to vector<8x64xf32>
    %1657 = arith.mulf %1652, %1656 : vector<8x64xf32>
    %1658 = arith.truncf %1657 : vector<8x64xf32> to vector<8x64xbf16>
    %c248_491 = arith.constant 248 : index
    %c0_492 = arith.constant 0 : index
    %1659 = vector.load %arg11[%c248_491, %c0_492] : memref<1024x64xbf16, #tpu.memory_space<vmem>>, vector<8x64xbf16>
    tpu.vector_store %arg11[%c248_491, %c0_492], %1658 {strides = array<i32>} : memref<1024x64xbf16, #tpu.memory_space<vmem>>, vector<8x64xbf16>,
    %1660 = vector.extract_strided_slice %1371 {offsets = [0, 0], sizes = [8, 64], strides = [1, 1]} : vector<64x64xf32> to vector<8x64xf32>
    %1661 = vector.extract_strided_slice %1660 {offsets = [0, 16], sizes = [8, 48], strides = [1, 1]} : vector<8x64xf32> to vector<8x48xf32>
    %1662 = vector.extract_strided_slice %1660 {offsets = [0, 0], sizes = [8, 16], strides = [1, 1]} : vector<8x64xf32> to vector<8x16xf32>
    %1663 = tpu.concatenate %1661, %1662 in 1 : vector<8x48xf32>, vector<8x16xf32> -> vector<8x64xf32>
    %c22_493 = arith.constant 22 : index
    %c0_494 = arith.constant 0 : index
    %1664 = vector.load %arg9[%c22_493, %c0_494] : memref<27x64xf32, #tpu.memory_space<vmem>>, vector<1x64xf32>
    %1665 = vector.shape_cast %1664 : vector<1x64xf32> to vector<64xf32>
    %1666 = vector.shape_cast %1665 : vector<64xf32> to vector<1x64xf32>
    %1667 = vector.broadcast %1666 : vector<1x64xf32> to vector<8x64xf32>
    %1668 = arith.mulf %1663, %1667 : vector<8x64xf32>
    %1669 = arith.truncf %1668 : vector<8x64xf32> to vector<8x64xbf16>
    %c256_495 = arith.constant 256 : index
    %c0_496 = arith.constant 0 : index
    %1670 = vector.load %arg11[%c256_495, %c0_496] : memref<1024x64xbf16, #tpu.memory_space<vmem>>, vector<8x64xbf16>
    tpu.vector_store %arg11[%c256_495, %c0_496], %1669 {strides = array<i32>} : memref<1024x64xbf16, #tpu.memory_space<vmem>>, vector<8x64xbf16>,
    %1671 = vector.extract_strided_slice %1371 {offsets = [8, 0], sizes = [8, 64], strides = [1, 1]} : vector<64x64xf32> to vector<8x64xf32>
    %1672 = vector.extract_strided_slice %1671 {offsets = [0, 16], sizes = [8, 48], strides = [1, 1]} : vector<8x64xf32> to vector<8x48xf32>
    %1673 = vector.extract_strided_slice %1671 {offsets = [0, 0], sizes = [8, 16], strides = [1, 1]} : vector<8x64xf32> to vector<8x16xf32>
    %1674 = tpu.concatenate %1672, %1673 in 1 : vector<8x48xf32>, vector<8x16xf32> -> vector<8x64xf32>
    %c22_497 = arith.constant 22 : index
    %c0_498 = arith.constant 0 : index
    %1675 = vector.load %arg9[%c22_497, %c0_498] : memref<27x64xf32, #tpu.memory_space<vmem>>, vector<1x64xf32>
    %1676 = vector.shape_cast %1675 : vector<1x64xf32> to vector<64xf32>
    %1677 = vector.shape_cast %1676 : vector<64xf32> to vector<1x64xf32>
    %1678 = vector.broadcast %1677 : vector<1x64xf32> to vector<8x64xf32>
    %1679 = arith.mulf %1674, %1678 : vector<8x64xf32>
    %1680 = arith.truncf %1679 : vector<8x64xf32> to vector<8x64xbf16>
    %c264_499 = arith.constant 264 : index
    %c0_500 = arith.constant 0 : index
    %1681 = vector.load %arg11[%c264_499, %c0_500] : memref<1024x64xbf16, #tpu.memory_space<vmem>>, vector<8x64xbf16>
    tpu.vector_store %arg11[%c264_499, %c0_500], %1680 {strides = array<i32>} : memref<1024x64xbf16, #tpu.memory_space<vmem>>, vector<8x64xbf16>,
    %1682 = vector.extract_strided_slice %1371 {offsets = [0, 0], sizes = [8, 64], strides = [1, 1]} : vector<64x64xf32> to vector<8x64xf32>
    %1683 = vector.extract_strided_slice %1682 {offsets = [0, 17], sizes = [8, 47], strides = [1, 1]} : vector<8x64xf32> to vector<8x47xf32>
    %1684 = vector.extract_strided_slice %1682 {offsets = [0, 0], sizes = [8, 17], strides = [1, 1]} : vector<8x64xf32> to vector<8x17xf32>
    %1685 = tpu.concatenate %1683, %1684 in 1 : vector<8x47xf32>, vector<8x17xf32> -> vector<8x64xf32>
    %c23_501 = arith.constant 23 : index
    %c0_502 = arith.constant 0 : index
    %1686 = vector.load %arg9[%c23_501, %c0_502] : memref<27x64xf32, #tpu.memory_space<vmem>>, vector<1x64xf32>
    %1687 = vector.shape_cast %1686 : vector<1x64xf32> to vector<64xf32>
    %1688 = vector.shape_cast %1687 : vector<64xf32> to vector<1x64xf32>
    %1689 = vector.broadcast %1688 : vector<1x64xf32> to vector<8x64xf32>
    %1690 = arith.mulf %1685, %1689 : vector<8x64xf32>
    %1691 = arith.truncf %1690 : vector<8x64xf32> to vector<8x64xbf16>
    %c272_503 = arith.constant 272 : index
    %c0_504 = arith.constant 0 : index
    %1692 = vector.load %arg11[%c272_503, %c0_504] : memref<1024x64xbf16, #tpu.memory_space<vmem>>, vector<8x64xbf16>
    tpu.vector_store %arg11[%c272_503, %c0_504], %1691 {strides = array<i32>} : memref<1024x64xbf16, #tpu.memory_space<vmem>>, vector<8x64xbf16>,
    %1693 = vector.extract_strided_slice %1371 {offsets = [8, 0], sizes = [8, 64], strides = [1, 1]} : vector<64x64xf32> to vector<8x64xf32>
    %1694 = vector.extract_strided_slice %1693 {offsets = [0, 15], sizes = [8, 49], strides = [1, 1]} : vector<8x64xf32> to vector<8x49xf32>
    %1695 = vector.extract_strided_slice %1693 {offsets = [0, 0], sizes = [8, 15], strides = [1, 1]} : vector<8x64xf32> to vector<8x15xf32>
    %1696 = tpu.concatenate %1694, %1695 in 1 : vector<8x49xf32>, vector<8x15xf32> -> vector<8x64xf32>
    %c21_505 = arith.constant 21 : index
    %c0_506 = arith.constant 0 : index
    %1697 = vector.load %arg9[%c21_505, %c0_506] : memref<27x64xf32, #tpu.memory_space<vmem>>, vector<1x64xf32>
    %1698 = vector.shape_cast %1697 : vector<1x64xf32> to vector<64xf32>
    %1699 = vector.shape_cast %1698 : vector<64xf32> to vector<1x64xf32>
    %1700 = vector.broadcast %1699 : vector<1x64xf32> to vector<8x64xf32>
    %1701 = arith.mulf %1696, %1700 : vector<8x64xf32>
    %1702 = arith.truncf %1701 : vector<8x64xf32> to vector<8x64xbf16>
    %c280_507 = arith.constant 280 : index
    %c0_508 = arith.constant 0 : index
    %1703 = vector.load %arg11[%c280_507, %c0_508] : memref<1024x64xbf16, #tpu.memory_space<vmem>>, vector<8x64xbf16>
    tpu.vector_store %arg11[%c280_507, %c0_508], %1702 {strides = array<i32>} : memref<1024x64xbf16, #tpu.memory_space<vmem>>, vector<8x64xbf16>,
    %1704 = vector.extract_strided_slice %1371 {offsets = [16, 0], sizes = [8, 64], strides = [1, 1]} : vector<64x64xf32> to vector<8x64xf32>
    %1705 = vector.extract_strided_slice %1704 {offsets = [0, 16], sizes = [8, 48], strides = [1, 1]} : vector<8x64xf32> to vector<8x48xf32>
    %1706 = vector.extract_strided_slice %1704 {offsets = [0, 0], sizes = [8, 16], strides = [1, 1]} : vector<8x64xf32> to vector<8x16xf32>
    %1707 = tpu.concatenate %1705, %1706 in 1 : vector<8x48xf32>, vector<8x16xf32> -> vector<8x64xf32>
    %c22_509 = arith.constant 22 : index
    %c0_510 = arith.constant 0 : index
    %1708 = vector.load %arg9[%c22_509, %c0_510] : memref<27x64xf32, #tpu.memory_space<vmem>>, vector<1x64xf32>
    %1709 = vector.shape_cast %1708 : vector<1x64xf32> to vector<64xf32>
    %1710 = vector.shape_cast %1709 : vector<64xf32> to vector<1x64xf32>
    %1711 = vector.broadcast %1710 : vector<1x64xf32> to vector<8x64xf32>
    %1712 = arith.mulf %1707, %1711 : vector<8x64xf32>
    %1713 = arith.truncf %1712 : vector<8x64xf32> to vector<8x64xbf16>
    %c288_511 = arith.constant 288 : index
    %c0_512 = arith.constant 0 : index
    %1714 = vector.load %arg11[%c288_511, %c0_512] : memref<1024x64xbf16, #tpu.memory_space<vmem>>, vector<8x64xbf16>
    tpu.vector_store %arg11[%c288_511, %c0_512], %1713 {strides = array<i32>} : memref<1024x64xbf16, #tpu.memory_space<vmem>>, vector<8x64xbf16>,
    %1715 = vector.extract_strided_slice %1371 {offsets = [24, 0], sizes = [8, 64], strides = [1, 1]} : vector<64x64xf32> to vector<8x64xf32>
    %1716 = vector.extract_strided_slice %1715 {offsets = [0, 16], sizes = [8, 48], strides = [1, 1]} : vector<8x64xf32> to vector<8x48xf32>
    %1717 = vector.extract_strided_slice %1715 {offsets = [0, 0], sizes = [8, 16], strides = [1, 1]} : vector<8x64xf32> to vector<8x16xf32>
    %1718 = tpu.concatenate %1716, %1717 in 1 : vector<8x48xf32>, vector<8x16xf32> -> vector<8x64xf32>
    %c22_513 = arith.constant 22 : index
    %c0_514 = arith.constant 0 : index
    %1719 = vector.load %arg9[%c22_513, %c0_514] : memref<27x64xf32, #tpu.memory_space<vmem>>, vector<1x64xf32>
    %1720 = vector.shape_cast %1719 : vector<1x64xf32> to vector<64xf32>
    %1721 = vector.shape_cast %1720 : vector<64xf32> to vector<1x64xf32>
    %1722 = vector.broadcast %1721 : vector<1x64xf32> to vector<8x64xf32>
    %1723 = arith.mulf %1718, %1722 : vector<8x64xf32>
    %1724 = arith.truncf %1723 : vector<8x64xf32> to vector<8x64xbf16>
    %c296_515 = arith.constant 296 : index
    %c0_516 = arith.constant 0 : index
    %1725 = vector.load %arg11[%c296_515, %c0_516] : memref<1024x64xbf16, #tpu.memory_space<vmem>>, vector<8x64xbf16>
    tpu.vector_store %arg11[%c296_515, %c0_516], %1724 {strides = array<i32>} : memref<1024x64xbf16, #tpu.memory_space<vmem>>, vector<8x64xbf16>,
    %1726 = vector.extract_strided_slice %1371 {offsets = [16, 0], sizes = [8, 64], strides = [1, 1]} : vector<64x64xf32> to vector<8x64xf32>
    %1727 = vector.extract_strided_slice %1726 {offsets = [0, 17], sizes = [8, 47], strides = [1, 1]} : vector<8x64xf32> to vector<8x47xf32>
    %1728 = vector.extract_strided_slice %1726 {offsets = [0, 0], sizes = [8, 17], strides = [1, 1]} : vector<8x64xf32> to vector<8x17xf32>
    %1729 = tpu.concatenate %1727, %1728 in 1 : vector<8x47xf32>, vector<8x17xf32> -> vector<8x64xf32>
    %c23_517 = arith.constant 23 : index
    %c0_518 = arith.constant 0 : index
    %1730 = vector.load %arg9[%c23_517, %c0_518] : memref<27x64xf32, #tpu.memory_space<vmem>>, vector<1x64xf32>
    %1731 = vector.shape_cast %1730 : vector<1x64xf32> to vector<64xf32>
    %1732 = vector.shape_cast %1731 : vector<64xf32> to vector<1x64xf32>
    %1733 = vector.broadcast %1732 : vector<1x64xf32> to vector<8x64xf32>
    %1734 = arith.mulf %1729, %1733 : vector<8x64xf32>
    %1735 = arith.truncf %1734 : vector<8x64xf32> to vector<8x64xbf16>
    %c304_519 = arith.constant 304 : index
    %c0_520 = arith.constant 0 : index
    %1736 = vector.load %arg11[%c304_519, %c0_520] : memref<1024x64xbf16, #tpu.memory_space<vmem>>, vector<8x64xbf16>
    tpu.vector_store %arg11[%c304_519, %c0_520], %1735 {strides = array<i32>} : memref<1024x64xbf16, #tpu.memory_space<vmem>>, vector<8x64xbf16>,
    %1737 = vector.extract_strided_slice %1371 {offsets = [24, 0], sizes = [8, 64], strides = [1, 1]} : vector<64x64xf32> to vector<8x64xf32>
    %1738 = vector.extract_strided_slice %1737 {offsets = [0, 15], sizes = [8, 49], strides = [1, 1]} : vector<8x64xf32> to vector<8x49xf32>
    %1739 = vector.extract_strided_slice %1737 {offsets = [0, 0], sizes = [8, 15], strides = [1, 1]} : vector<8x64xf32> to vector<8x15xf32>
    %1740 = tpu.concatenate %1738, %1739 in 1 : vector<8x49xf32>, vector<8x15xf32> -> vector<8x64xf32>
    %c21_521 = arith.constant 21 : index
    %c0_522 = arith.constant 0 : index
    %1741 = vector.load %arg9[%c21_521, %c0_522] : memref<27x64xf32, #tpu.memory_space<vmem>>, vector<1x64xf32>
    %1742 = vector.shape_cast %1741 : vector<1x64xf32> to vector<64xf32>
    %1743 = vector.shape_cast %1742 : vector<64xf32> to vector<1x64xf32>
    %1744 = vector.broadcast %1743 : vector<1x64xf32> to vector<8x64xf32>
    %1745 = arith.mulf %1740, %1744 : vector<8x64xf32>
    %1746 = arith.truncf %1745 : vector<8x64xf32> to vector<8x64xbf16>
    %c312_523 = arith.constant 312 : index
    %c0_524 = arith.constant 0 : index
    %1747 = vector.load %arg11[%c312_523, %c0_524] : memref<1024x64xbf16, #tpu.memory_space<vmem>>, vector<8x64xbf16>
    tpu.vector_store %arg11[%c312_523, %c0_524], %1746 {strides = array<i32>} : memref<1024x64xbf16, #tpu.memory_space<vmem>>, vector<8x64xbf16>,
    %1748 = vector.extract_strided_slice %1371 {offsets = [0, 0], sizes = [8, 64], strides = [1, 1]} : vector<64x64xf32> to vector<8x64xf32>
    %1749 = vector.extract_strided_slice %1748 {offsets = [0, 20], sizes = [8, 44], strides = [1, 1]} : vector<8x64xf32> to vector<8x44xf32>
    %1750 = vector.extract_strided_slice %1748 {offsets = [0, 0], sizes = [8, 20], strides = [1, 1]} : vector<8x64xf32> to vector<8x20xf32>
    %1751 = tpu.concatenate %1749, %1750 in 1 : vector<8x44xf32>, vector<8x20xf32> -> vector<8x64xf32>
    %c25_525 = arith.constant 25 : index
    %c0_526 = arith.constant 0 : index
    %1752 = vector.load %arg9[%c25_525, %c0_526] : memref<27x64xf32, #tpu.memory_space<vmem>>, vector<1x64xf32>
    %1753 = vector.shape_cast %1752 : vector<1x64xf32> to vector<64xf32>
    %1754 = vector.shape_cast %1753 : vector<64xf32> to vector<1x64xf32>
    %1755 = vector.broadcast %1754 : vector<1x64xf32> to vector<8x64xf32>
    %1756 = arith.mulf %1751, %1755 : vector<8x64xf32>
    %1757 = arith.truncf %1756 : vector<8x64xf32> to vector<8x64xbf16>
    %c320_527 = arith.constant 320 : index
    %c0_528 = arith.constant 0 : index
    %1758 = vector.load %arg11[%c320_527, %c0_528] : memref<1024x64xbf16, #tpu.memory_space<vmem>>, vector<8x64xbf16>
    tpu.vector_store %arg11[%c320_527, %c0_528], %1757 {strides = array<i32>} : memref<1024x64xbf16, #tpu.memory_space<vmem>>, vector<8x64xbf16>,
    %1759 = vector.extract_strided_slice %1371 {offsets = [8, 0], sizes = [8, 64], strides = [1, 1]} : vector<64x64xf32> to vector<8x64xf32>
    %1760 = vector.extract_strided_slice %1759 {offsets = [0, 20], sizes = [8, 44], strides = [1, 1]} : vector<8x64xf32> to vector<8x44xf32>
    %1761 = vector.extract_strided_slice %1759 {offsets = [0, 0], sizes = [8, 20], strides = [1, 1]} : vector<8x64xf32> to vector<8x20xf32>
    %1762 = tpu.concatenate %1760, %1761 in 1 : vector<8x44xf32>, vector<8x20xf32> -> vector<8x64xf32>
    %c25_529 = arith.constant 25 : index
    %c0_530 = arith.constant 0 : index
    %1763 = vector.load %arg9[%c25_529, %c0_530] : memref<27x64xf32, #tpu.memory_space<vmem>>, vector<1x64xf32>
    %1764 = vector.shape_cast %1763 : vector<1x64xf32> to vector<64xf32>
    %1765 = vector.shape_cast %1764 : vector<64xf32> to vector<1x64xf32>
    %1766 = vector.broadcast %1765 : vector<1x64xf32> to vector<8x64xf32>
    %1767 = arith.mulf %1762, %1766 : vector<8x64xf32>
    %1768 = arith.truncf %1767 : vector<8x64xf32> to vector<8x64xbf16>
    %c328_531 = arith.constant 328 : index
    %c0_532 = arith.constant 0 : index
    %1769 = vector.load %arg11[%c328_531, %c0_532] : memref<1024x64xbf16, #tpu.memory_space<vmem>>, vector<8x64xbf16>
    tpu.vector_store %arg11[%c328_531, %c0_532], %1768 {strides = array<i32>} : memref<1024x64xbf16, #tpu.memory_space<vmem>>, vector<8x64xbf16>,
    %1770 = vector.extract_strided_slice %1371 {offsets = [0, 0], sizes = [8, 64], strides = [1, 1]} : vector<64x64xf32> to vector<8x64xf32>
    %1771 = vector.extract_strided_slice %1770 {offsets = [0, 21], sizes = [8, 43], strides = [1, 1]} : vector<8x64xf32> to vector<8x43xf32>
    %1772 = vector.extract_strided_slice %1770 {offsets = [0, 0], sizes = [8, 21], strides = [1, 1]} : vector<8x64xf32> to vector<8x21xf32>
    %1773 = tpu.concatenate %1771, %1772 in 1 : vector<8x43xf32>, vector<8x21xf32> -> vector<8x64xf32>
    %c26_533 = arith.constant 26 : index
    %c0_534 = arith.constant 0 : index
    %1774 = vector.load %arg9[%c26_533, %c0_534] : memref<27x64xf32, #tpu.memory_space<vmem>>, vector<1x64xf32>
    %1775 = vector.shape_cast %1774 : vector<1x64xf32> to vector<64xf32>
    %1776 = vector.shape_cast %1775 : vector<64xf32> to vector<1x64xf32>
    %1777 = vector.broadcast %1776 : vector<1x64xf32> to vector<8x64xf32>
    %1778 = arith.mulf %1773, %1777 : vector<8x64xf32>
    %1779 = arith.truncf %1778 : vector<8x64xf32> to vector<8x64xbf16>
    %c336_535 = arith.constant 336 : index
    %c0_536 = arith.constant 0 : index
    %1780 = vector.load %arg11[%c336_535, %c0_536] : memref<1024x64xbf16, #tpu.memory_space<vmem>>, vector<8x64xbf16>
    tpu.vector_store %arg11[%c336_535, %c0_536], %1779 {strides = array<i32>} : memref<1024x64xbf16, #tpu.memory_space<vmem>>, vector<8x64xbf16>,
    %1781 = vector.extract_strided_slice %1371 {offsets = [8, 0], sizes = [8, 64], strides = [1, 1]} : vector<64x64xf32> to vector<8x64xf32>
    %1782 = vector.extract_strided_slice %1781 {offsets = [0, 19], sizes = [8, 45], strides = [1, 1]} : vector<8x64xf32> to vector<8x45xf32>
    %1783 = vector.extract_strided_slice %1781 {offsets = [0, 0], sizes = [8, 19], strides = [1, 1]} : vector<8x64xf32> to vector<8x19xf32>
    %1784 = tpu.concatenate %1782, %1783 in 1 : vector<8x45xf32>, vector<8x19xf32> -> vector<8x64xf32>
    %c24_537 = arith.constant 24 : index
    %c0_538 = arith.constant 0 : index
    %1785 = vector.load %arg9[%c24_537, %c0_538] : memref<27x64xf32, #tpu.memory_space<vmem>>, vector<1x64xf32>
    %1786 = vector.shape_cast %1785 : vector<1x64xf32> to vector<64xf32>
    %1787 = vector.shape_cast %1786 : vector<64xf32> to vector<1x64xf32>
    %1788 = vector.broadcast %1787 : vector<1x64xf32> to vector<8x64xf32>
    %1789 = arith.mulf %1784, %1788 : vector<8x64xf32>
    %1790 = arith.truncf %1789 : vector<8x64xf32> to vector<8x64xbf16>
    %c344_539 = arith.constant 344 : index
    %c0_540 = arith.constant 0 : index
    %1791 = vector.load %arg11[%c344_539, %c0_540] : memref<1024x64xbf16, #tpu.memory_space<vmem>>, vector<8x64xbf16>
    tpu.vector_store %arg11[%c344_539, %c0_540], %1790 {strides = array<i32>} : memref<1024x64xbf16, #tpu.memory_space<vmem>>, vector<8x64xbf16>,
    %1792 = vector.extract_strided_slice %1371 {offsets = [16, 0], sizes = [8, 64], strides = [1, 1]} : vector<64x64xf32> to vector<8x64xf32>
    %1793 = vector.extract_strided_slice %1792 {offsets = [0, 12], sizes = [8, 52], strides = [1, 1]} : vector<8x64xf32> to vector<8x52xf32>
    %1794 = vector.extract_strided_slice %1792 {offsets = [0, 0], sizes = [8, 12], strides = [1, 1]} : vector<8x64xf32> to vector<8x12xf32>
    %1795 = tpu.concatenate %1793, %1794 in 1 : vector<8x52xf32>, vector<8x12xf32> -> vector<8x64xf32>
    %c19_541 = arith.constant 19 : index
    %c0_542 = arith.constant 0 : index
    %1796 = vector.load %arg9[%c19_541, %c0_542] : memref<27x64xf32, #tpu.memory_space<vmem>>, vector<1x64xf32>
    %1797 = vector.shape_cast %1796 : vector<1x64xf32> to vector<64xf32>
    %1798 = vector.shape_cast %1797 : vector<64xf32> to vector<1x64xf32>
    %1799 = vector.broadcast %1798 : vector<1x64xf32> to vector<8x64xf32>
    %1800 = arith.mulf %1795, %1799 : vector<8x64xf32>
    %1801 = arith.truncf %1800 : vector<8x64xf32> to vector<8x64xbf16>
    %c352_543 = arith.constant 352 : index
    %c0_544 = arith.constant 0 : index
    %1802 = vector.load %arg11[%c352_543, %c0_544] : memref<1024x64xbf16, #tpu.memory_space<vmem>>, vector<8x64xbf16>
    tpu.vector_store %arg11[%c352_543, %c0_544], %1801 {strides = array<i32>} : memref<1024x64xbf16, #tpu.memory_space<vmem>>, vector<8x64xbf16>,
    %1803 = vector.extract_strided_slice %1371 {offsets = [24, 0], sizes = [8, 64], strides = [1, 1]} : vector<64x64xf32> to vector<8x64xf32>
    %1804 = vector.extract_strided_slice %1803 {offsets = [0, 12], sizes = [8, 52], strides = [1, 1]} : vector<8x64xf32> to vector<8x52xf32>
    %1805 = vector.extract_strided_slice %1803 {offsets = [0, 0], sizes = [8, 12], strides = [1, 1]} : vector<8x64xf32> to vector<8x12xf32>
    %1806 = tpu.concatenate %1804, %1805 in 1 : vector<8x52xf32>, vector<8x12xf32> -> vector<8x64xf32>
    %c19_545 = arith.constant 19 : index
    %c0_546 = arith.constant 0 : index
    %1807 = vector.load %arg9[%c19_545, %c0_546] : memref<27x64xf32, #tpu.memory_space<vmem>>, vector<1x64xf32>
    %1808 = vector.shape_cast %1807 : vector<1x64xf32> to vector<64xf32>
    %1809 = vector.shape_cast %1808 : vector<64xf32> to vector<1x64xf32>
    %1810 = vector.broadcast %1809 : vector<1x64xf32> to vector<8x64xf32>
    %1811 = arith.mulf %1806, %1810 : vector<8x64xf32>
    %1812 = arith.truncf %1811 : vector<8x64xf32> to vector<8x64xbf16>
    %c360_547 = arith.constant 360 : index
    %c0_548 = arith.constant 0 : index
    %1813 = vector.load %arg11[%c360_547, %c0_548] : memref<1024x64xbf16, #tpu.memory_space<vmem>>, vector<8x64xbf16>
    tpu.vector_store %arg11[%c360_547, %c0_548], %1812 {strides = array<i32>} : memref<1024x64xbf16, #tpu.memory_space<vmem>>, vector<8x64xbf16>,
    %1814 = vector.extract_strided_slice %1371 {offsets = [16, 0], sizes = [8, 64], strides = [1, 1]} : vector<64x64xf32> to vector<8x64xf32>
    %1815 = vector.extract_strided_slice %1814 {offsets = [0, 13], sizes = [8, 51], strides = [1, 1]} : vector<8x64xf32> to vector<8x51xf32>
    %1816 = vector.extract_strided_slice %1814 {offsets = [0, 0], sizes = [8, 13], strides = [1, 1]} : vector<8x64xf32> to vector<8x13xf32>
    %1817 = tpu.concatenate %1815, %1816 in 1 : vector<8x51xf32>, vector<8x13xf32> -> vector<8x64xf32>
    %c20_549 = arith.constant 20 : index
    %c0_550 = arith.constant 0 : index
    %1818 = vector.load %arg9[%c20_549, %c0_550] : memref<27x64xf32, #tpu.memory_space<vmem>>, vector<1x64xf32>
    %1819 = vector.shape_cast %1818 : vector<1x64xf32> to vector<64xf32>
    %1820 = vector.shape_cast %1819 : vector<64xf32> to vector<1x64xf32>
    %1821 = vector.broadcast %1820 : vector<1x64xf32> to vector<8x64xf32>
    %1822 = arith.mulf %1817, %1821 : vector<8x64xf32>
    %1823 = arith.truncf %1822 : vector<8x64xf32> to vector<8x64xbf16>
    %c368_551 = arith.constant 368 : index
    %c0_552 = arith.constant 0 : index
    %1824 = vector.load %arg11[%c368_551, %c0_552] : memref<1024x64xbf16, #tpu.memory_space<vmem>>, vector<8x64xbf16>
    tpu.vector_store %arg11[%c368_551, %c0_552], %1823 {strides = array<i32>} : memref<1024x64xbf16, #tpu.memory_space<vmem>>, vector<8x64xbf16>,
    %1825 = vector.extract_strided_slice %1371 {offsets = [24, 0], sizes = [8, 64], strides = [1, 1]} : vector<64x64xf32> to vector<8x64xf32>
    %1826 = vector.extract_strided_slice %1825 {offsets = [0, 11], sizes = [8, 53], strides = [1, 1]} : vector<8x64xf32> to vector<8x53xf32>
    %1827 = vector.extract_strided_slice %1825 {offsets = [0, 0], sizes = [8, 11], strides = [1, 1]} : vector<8x64xf32> to vector<8x11xf32>
    %1828 = tpu.concatenate %1826, %1827 in 1 : vector<8x53xf32>, vector<8x11xf32> -> vector<8x64xf32>
    %c18_553 = arith.constant 18 : index
    %c0_554 = arith.constant 0 : index
    %1829 = vector.load %arg9[%c18_553, %c0_554] : memref<27x64xf32, #tpu.memory_space<vmem>>, vector<1x64xf32>
    %1830 = vector.shape_cast %1829 : vector<1x64xf32> to vector<64xf32>
    %1831 = vector.shape_cast %1830 : vector<64xf32> to vector<1x64xf32>
    %1832 = vector.broadcast %1831 : vector<1x64xf32> to vector<8x64xf32>
    %1833 = arith.mulf %1828, %1832 : vector<8x64xf32>
    %1834 = arith.truncf %1833 : vector<8x64xf32> to vector<8x64xbf16>
    %c376_555 = arith.constant 376 : index
    %c0_556 = arith.constant 0 : index
    %1835 = vector.load %arg11[%c376_555, %c0_556] : memref<1024x64xbf16, #tpu.memory_space<vmem>>, vector<8x64xbf16>
    tpu.vector_store %arg11[%c376_555, %c0_556], %1834 {strides = array<i32>} : memref<1024x64xbf16, #tpu.memory_space<vmem>>, vector<8x64xbf16>,
    %1836 = vector.extract_strided_slice %1371 {offsets = [32, 0], sizes = [8, 64], strides = [1, 1]} : vector<64x64xf32> to vector<8x64xf32>
    %1837 = vector.extract_strided_slice %1836 {offsets = [0, 48], sizes = [8, 16], strides = [1, 1]} : vector<8x64xf32> to vector<8x16xf32>
    %1838 = vector.extract_strided_slice %1836 {offsets = [0, 0], sizes = [8, 48], strides = [1, 1]} : vector<8x64xf32> to vector<8x48xf32>
    %1839 = tpu.concatenate %1837, %1838 in 1 : vector<8x16xf32>, vector<8x48xf32> -> vector<8x64xf32>
    %c4_557 = arith.constant 4 : index
    %c0_558 = arith.constant 0 : index
    %1840 = vector.load %arg9[%c4_557, %c0_558] : memref<27x64xf32, #tpu.memory_space<vmem>>, vector<1x64xf32>
    %1841 = vector.shape_cast %1840 : vector<1x64xf32> to vector<64xf32>
    %1842 = vector.shape_cast %1841 : vector<64xf32> to vector<1x64xf32>
    %1843 = vector.broadcast %1842 : vector<1x64xf32> to vector<8x64xf32>
    %1844 = arith.mulf %1839, %1843 : vector<8x64xf32>
    %1845 = arith.truncf %1844 : vector<8x64xf32> to vector<8x64xbf16>
    %c384_559 = arith.constant 384 : index
    %c0_560 = arith.constant 0 : index
    %1846 = vector.load %arg11[%c384_559, %c0_560] : memref<1024x64xbf16, #tpu.memory_space<vmem>>, vector<8x64xbf16>
    tpu.vector_store %arg11[%c384_559, %c0_560], %1845 {strides = array<i32>} : memref<1024x64xbf16, #tpu.memory_space<vmem>>, vector<8x64xbf16>,
    %1847 = vector.extract_strided_slice %1371 {offsets = [40, 0], sizes = [8, 64], strides = [1, 1]} : vector<64x64xf32> to vector<8x64xf32>
    %1848 = vector.extract_strided_slice %1847 {offsets = [0, 48], sizes = [8, 16], strides = [1, 1]} : vector<8x64xf32> to vector<8x16xf32>
    %1849 = vector.extract_strided_slice %1847 {offsets = [0, 0], sizes = [8, 48], strides = [1, 1]} : vector<8x64xf32> to vector<8x48xf32>
    %1850 = tpu.concatenate %1848, %1849 in 1 : vector<8x16xf32>, vector<8x48xf32> -> vector<8x64xf32>
    %c4_561 = arith.constant 4 : index
    %c0_562 = arith.constant 0 : index
    %1851 = vector.load %arg9[%c4_561, %c0_562] : memref<27x64xf32, #tpu.memory_space<vmem>>, vector<1x64xf32>
    %1852 = vector.shape_cast %1851 : vector<1x64xf32> to vector<64xf32>
    %1853 = vector.shape_cast %1852 : vector<64xf32> to vector<1x64xf32>
    %1854 = vector.broadcast %1853 : vector<1x64xf32> to vector<8x64xf32>
    %1855 = arith.mulf %1850, %1854 : vector<8x64xf32>
    %1856 = arith.truncf %1855 : vector<8x64xf32> to vector<8x64xbf16>
    %c392_563 = arith.constant 392 : index
    %c0_564 = arith.constant 0 : index
    %1857 = vector.load %arg11[%c392_563, %c0_564] : memref<1024x64xbf16, #tpu.memory_space<vmem>>, vector<8x64xbf16>
    tpu.vector_store %arg11[%c392_563, %c0_564], %1856 {strides = array<i32>} : memref<1024x64xbf16, #tpu.memory_space<vmem>>, vector<8x64xbf16>,
    %1858 = vector.extract_strided_slice %1371 {offsets = [32, 0], sizes = [8, 64], strides = [1, 1]} : vector<64x64xf32> to vector<8x64xf32>
    %1859 = vector.extract_strided_slice %1858 {offsets = [0, 49], sizes = [8, 15], strides = [1, 1]} : vector<8x64xf32> to vector<8x15xf32>
    %1860 = vector.extract_strided_slice %1858 {offsets = [0, 0], sizes = [8, 49], strides = [1, 1]} : vector<8x64xf32> to vector<8x49xf32>
    %1861 = tpu.concatenate %1859, %1860 in 1 : vector<8x15xf32>, vector<8x49xf32> -> vector<8x64xf32>
    %c5_565 = arith.constant 5 : index
    %c0_566 = arith.constant 0 : index
    %1862 = vector.load %arg9[%c5_565, %c0_566] : memref<27x64xf32, #tpu.memory_space<vmem>>, vector<1x64xf32>
    %1863 = vector.shape_cast %1862 : vector<1x64xf32> to vector<64xf32>
    %1864 = vector.shape_cast %1863 : vector<64xf32> to vector<1x64xf32>
    %1865 = vector.broadcast %1864 : vector<1x64xf32> to vector<8x64xf32>
    %1866 = arith.mulf %1861, %1865 : vector<8x64xf32>
    %1867 = arith.truncf %1866 : vector<8x64xf32> to vector<8x64xbf16>
    %c400_567 = arith.constant 400 : index
    %c0_568 = arith.constant 0 : index
    %1868 = vector.load %arg11[%c400_567, %c0_568] : memref<1024x64xbf16, #tpu.memory_space<vmem>>, vector<8x64xbf16>
    tpu.vector_store %arg11[%c400_567, %c0_568], %1867 {strides = array<i32>} : memref<1024x64xbf16, #tpu.memory_space<vmem>>, vector<8x64xbf16>,
    %1869 = vector.extract_strided_slice %1371 {offsets = [40, 0], sizes = [8, 64], strides = [1, 1]} : vector<64x64xf32> to vector<8x64xf32>
    %1870 = vector.extract_strided_slice %1869 {offsets = [0, 47], sizes = [8, 17], strides = [1, 1]} : vector<8x64xf32> to vector<8x17xf32>
    %1871 = vector.extract_strided_slice %1869 {offsets = [0, 0], sizes = [8, 47], strides = [1, 1]} : vector<8x64xf32> to vector<8x47xf32>
    %1872 = tpu.concatenate %1870, %1871 in 1 : vector<8x17xf32>, vector<8x47xf32> -> vector<8x64xf32>
    %c3_569 = arith.constant 3 : index
    %c0_570 = arith.constant 0 : index
    %1873 = vector.load %arg9[%c3_569, %c0_570] : memref<27x64xf32, #tpu.memory_space<vmem>>, vector<1x64xf32>
    %1874 = vector.shape_cast %1873 : vector<1x64xf32> to vector<64xf32>
    %1875 = vector.shape_cast %1874 : vector<64xf32> to vector<1x64xf32>
    %1876 = vector.broadcast %1875 : vector<1x64xf32> to vector<8x64xf32>
    %1877 = arith.mulf %1872, %1876 : vector<8x64xf32>
    %1878 = arith.truncf %1877 : vector<8x64xf32> to vector<8x64xbf16>
    %c408_571 = arith.constant 408 : index
    %c0_572 = arith.constant 0 : index
    %1879 = vector.load %arg11[%c408_571, %c0_572] : memref<1024x64xbf16, #tpu.memory_space<vmem>>, vector<8x64xbf16>
    tpu.vector_store %arg11[%c408_571, %c0_572], %1878 {strides = array<i32>} : memref<1024x64xbf16, #tpu.memory_space<vmem>>, vector<8x64xbf16>,
    %1880 = vector.extract_strided_slice %1371 {offsets = [48, 0], sizes = [8, 64], strides = [1, 1]} : vector<64x64xf32> to vector<8x64xf32>
    %1881 = vector.extract_strided_slice %1880 {offsets = [0, 48], sizes = [8, 16], strides = [1, 1]} : vector<8x64xf32> to vector<8x16xf32>
    %1882 = vector.extract_strided_slice %1880 {offsets = [0, 0], sizes = [8, 48], strides = [1, 1]} : vector<8x64xf32> to vector<8x48xf32>
    %1883 = tpu.concatenate %1881, %1882 in 1 : vector<8x16xf32>, vector<8x48xf32> -> vector<8x64xf32>
    %c4_573 = arith.constant 4 : index
    %c0_574 = arith.constant 0 : index
    %1884 = vector.load %arg9[%c4_573, %c0_574] : memref<27x64xf32, #tpu.memory_space<vmem>>, vector<1x64xf32>
    %1885 = vector.shape_cast %1884 : vector<1x64xf32> to vector<64xf32>
    %1886 = vector.shape_cast %1885 : vector<64xf32> to vector<1x64xf32>
    %1887 = vector.broadcast %1886 : vector<1x64xf32> to vector<8x64xf32>
    %1888 = arith.mulf %1883, %1887 : vector<8x64xf32>
    %1889 = arith.truncf %1888 : vector<8x64xf32> to vector<8x64xbf16>
    %c416_575 = arith.constant 416 : index
    %c0_576 = arith.constant 0 : index
    %1890 = vector.load %arg11[%c416_575, %c0_576] : memref<1024x64xbf16, #tpu.memory_space<vmem>>, vector<8x64xbf16>
    tpu.vector_store %arg11[%c416_575, %c0_576], %1889 {strides = array<i32>} : memref<1024x64xbf16, #tpu.memory_space<vmem>>, vector<8x64xbf16>,
    %1891 = vector.extract_strided_slice %1371 {offsets = [56, 0], sizes = [8, 64], strides = [1, 1]} : vector<64x64xf32> to vector<8x64xf32>
    %1892 = vector.extract_strided_slice %1891 {offsets = [0, 48], sizes = [8, 16], strides = [1, 1]} : vector<8x64xf32> to vector<8x16xf32>
    %1893 = vector.extract_strided_slice %1891 {offsets = [0, 0], sizes = [8, 48], strides = [1, 1]} : vector<8x64xf32> to vector<8x48xf32>
    %1894 = tpu.concatenate %1892, %1893 in 1 : vector<8x16xf32>, vector<8x48xf32> -> vector<8x64xf32>
    %c4_577 = arith.constant 4 : index
    %c0_578 = arith.constant 0 : index
    %1895 = vector.load %arg9[%c4_577, %c0_578] : memref<27x64xf32, #tpu.memory_space<vmem>>, vector<1x64xf32>
    %1896 = vector.shape_cast %1895 : vector<1x64xf32> to vector<64xf32>
    %1897 = vector.shape_cast %1896 : vector<64xf32> to vector<1x64xf32>
    %1898 = vector.broadcast %1897 : vector<1x64xf32> to vector<8x64xf32>
    %1899 = arith.mulf %1894, %1898 : vector<8x64xf32>
    %1900 = arith.truncf %1899 : vector<8x64xf32> to vector<8x64xbf16>
    %c424_579 = arith.constant 424 : index
    %c0_580 = arith.constant 0 : index
    %1901 = vector.load %arg11[%c424_579, %c0_580] : memref<1024x64xbf16, #tpu.memory_space<vmem>>, vector<8x64xbf16>
    tpu.vector_store %arg11[%c424_579, %c0_580], %1900 {strides = array<i32>} : memref<1024x64xbf16, #tpu.memory_space<vmem>>, vector<8x64xbf16>,
    %1902 = vector.extract_strided_slice %1371 {offsets = [48, 0], sizes = [8, 64], strides = [1, 1]} : vector<64x64xf32> to vector<8x64xf32>
    %1903 = vector.extract_strided_slice %1902 {offsets = [0, 49], sizes = [8, 15], strides = [1, 1]} : vector<8x64xf32> to vector<8x15xf32>
    %1904 = vector.extract_strided_slice %1902 {offsets = [0, 0], sizes = [8, 49], strides = [1, 1]} : vector<8x64xf32> to vector<8x49xf32>
    %1905 = tpu.concatenate %1903, %1904 in 1 : vector<8x15xf32>, vector<8x49xf32> -> vector<8x64xf32>
    %c5_581 = arith.constant 5 : index
    %c0_582 = arith.constant 0 : index
    %1906 = vector.load %arg9[%c5_581, %c0_582] : memref<27x64xf32, #tpu.memory_space<vmem>>, vector<1x64xf32>
    %1907 = vector.shape_cast %1906 : vector<1x64xf32> to vector<64xf32>
    %1908 = vector.shape_cast %1907 : vector<64xf32> to vector<1x64xf32>
    %1909 = vector.broadcast %1908 : vector<1x64xf32> to vector<8x64xf32>
    %1910 = arith.mulf %1905, %1909 : vector<8x64xf32>
    %1911 = arith.truncf %1910 : vector<8x64xf32> to vector<8x64xbf16>
    %c432_583 = arith.constant 432 : index
    %c0_584 = arith.constant 0 : index
    %1912 = vector.load %arg11[%c432_583, %c0_584] : memref<1024x64xbf16, #tpu.memory_space<vmem>>, vector<8x64xbf16>
    tpu.vector_store %arg11[%c432_583, %c0_584], %1911 {strides = array<i32>} : memref<1024x64xbf16, #tpu.memory_space<vmem>>, vector<8x64xbf16>,
    %1913 = vector.extract_strided_slice %1371 {offsets = [56, 0], sizes = [8, 64], strides = [1, 1]} : vector<64x64xf32> to vector<8x64xf32>
    %1914 = vector.extract_strided_slice %1913 {offsets = [0, 47], sizes = [8, 17], strides = [1, 1]} : vector<8x64xf32> to vector<8x17xf32>
    %1915 = vector.extract_strided_slice %1913 {offsets = [0, 0], sizes = [8, 47], strides = [1, 1]} : vector<8x64xf32> to vector<8x47xf32>
    %1916 = tpu.concatenate %1914, %1915 in 1 : vector<8x17xf32>, vector<8x47xf32> -> vector<8x64xf32>
    %c3_585 = arith.constant 3 : index
    %c0_586 = arith.constant 0 : index
    %1917 = vector.load %arg9[%c3_585, %c0_586] : memref<27x64xf32, #tpu.memory_space<vmem>>, vector<1x64xf32>
    %1918 = vector.shape_cast %1917 : vector<1x64xf32> to vector<64xf32>
    %1919 = vector.shape_cast %1918 : vector<64xf32> to vector<1x64xf32>
    %1920 = vector.broadcast %1919 : vector<1x64xf32> to vector<8x64xf32>
    %1921 = arith.mulf %1916, %1920 : vector<8x64xf32>
    %1922 = arith.truncf %1921 : vector<8x64xf32> to vector<8x64xbf16>
    %c440_587 = arith.constant 440 : index
    %c0_588 = arith.constant 0 : index
    %1923 = vector.load %arg11[%c440_587, %c0_588] : memref<1024x64xbf16, #tpu.memory_space<vmem>>, vector<8x64xbf16>
    tpu.vector_store %arg11[%c440_587, %c0_588], %1922 {strides = array<i32>} : memref<1024x64xbf16, #tpu.memory_space<vmem>>, vector<8x64xbf16>,
    %1924 = vector.extract_strided_slice %1371 {offsets = [32, 0], sizes = [8, 64], strides = [1, 1]} : vector<64x64xf32> to vector<8x64xf32>
    %1925 = vector.extract_strided_slice %1924 {offsets = [0, 52], sizes = [8, 12], strides = [1, 1]} : vector<8x64xf32> to vector<8x12xf32>
    %1926 = vector.extract_strided_slice %1924 {offsets = [0, 0], sizes = [8, 52], strides = [1, 1]} : vector<8x64xf32> to vector<8x52xf32>
    %1927 = tpu.concatenate %1925, %1926 in 1 : vector<8x12xf32>, vector<8x52xf32> -> vector<8x64xf32>
    %c7_589 = arith.constant 7 : index
    %c0_590 = arith.constant 0 : index
    %1928 = vector.load %arg9[%c7_589, %c0_590] : memref<27x64xf32, #tpu.memory_space<vmem>>, vector<1x64xf32>
    %1929 = vector.shape_cast %1928 : vector<1x64xf32> to vector<64xf32>
    %1930 = vector.shape_cast %1929 : vector<64xf32> to vector<1x64xf32>
    %1931 = vector.broadcast %1930 : vector<1x64xf32> to vector<8x64xf32>
    %1932 = arith.mulf %1927, %1931 : vector<8x64xf32>
    %1933 = arith.truncf %1932 : vector<8x64xf32> to vector<8x64xbf16>
    %c448_591 = arith.constant 448 : index
    %c0_592 = arith.constant 0 : index
    %1934 = vector.load %arg11[%c448_591, %c0_592] : memref<1024x64xbf16, #tpu.memory_space<vmem>>, vector<8x64xbf16>
    tpu.vector_store %arg11[%c448_591, %c0_592], %1933 {strides = array<i32>} : memref<1024x64xbf16, #tpu.memory_space<vmem>>, vector<8x64xbf16>,
    %1935 = vector.extract_strided_slice %1371 {offsets = [40, 0], sizes = [8, 64], strides = [1, 1]} : vector<64x64xf32> to vector<8x64xf32>
    %1936 = vector.extract_strided_slice %1935 {offsets = [0, 52], sizes = [8, 12], strides = [1, 1]} : vector<8x64xf32> to vector<8x12xf32>
    %1937 = vector.extract_strided_slice %1935 {offsets = [0, 0], sizes = [8, 52], strides = [1, 1]} : vector<8x64xf32> to vector<8x52xf32>
    %1938 = tpu.concatenate %1936, %1937 in 1 : vector<8x12xf32>, vector<8x52xf32> -> vector<8x64xf32>
    %c7_593 = arith.constant 7 : index
    %c0_594 = arith.constant 0 : index
    %1939 = vector.load %arg9[%c7_593, %c0_594] : memref<27x64xf32, #tpu.memory_space<vmem>>, vector<1x64xf32>
    %1940 = vector.shape_cast %1939 : vector<1x64xf32> to vector<64xf32>
    %1941 = vector.shape_cast %1940 : vector<64xf32> to vector<1x64xf32>
    %1942 = vector.broadcast %1941 : vector<1x64xf32> to vector<8x64xf32>
    %1943 = arith.mulf %1938, %1942 : vector<8x64xf32>
    %1944 = arith.truncf %1943 : vector<8x64xf32> to vector<8x64xbf16>
    %c456_595 = arith.constant 456 : index
    %c0_596 = arith.constant 0 : index
    %1945 = vector.load %arg11[%c456_595, %c0_596] : memref<1024x64xbf16, #tpu.memory_space<vmem>>, vector<8x64xbf16>
    tpu.vector_store %arg11[%c456_595, %c0_596], %1944 {strides = array<i32>} : memref<1024x64xbf16, #tpu.memory_space<vmem>>, vector<8x64xbf16>,
    %1946 = vector.extract_strided_slice %1371 {offsets = [32, 0], sizes = [8, 64], strides = [1, 1]} : vector<64x64xf32> to vector<8x64xf32>
    %1947 = vector.extract_strided_slice %1946 {offsets = [0, 53], sizes = [8, 11], strides = [1, 1]} : vector<8x64xf32> to vector<8x11xf32>
    %1948 = vector.extract_strided_slice %1946 {offsets = [0, 0], sizes = [8, 53], strides = [1, 1]} : vector<8x64xf32> to vector<8x53xf32>
    %1949 = tpu.concatenate %1947, %1948 in 1 : vector<8x11xf32>, vector<8x53xf32> -> vector<8x64xf32>
    %c8_597 = arith.constant 8 : index
    %c0_598 = arith.constant 0 : index
    %1950 = vector.load %arg9[%c8_597, %c0_598] : memref<27x64xf32, #tpu.memory_space<vmem>>, vector<1x64xf32>
    %1951 = vector.shape_cast %1950 : vector<1x64xf32> to vector<64xf32>
    %1952 = vector.shape_cast %1951 : vector<64xf32> to vector<1x64xf32>
    %1953 = vector.broadcast %1952 : vector<1x64xf32> to vector<8x64xf32>
    %1954 = arith.mulf %1949, %1953 : vector<8x64xf32>
    %1955 = arith.truncf %1954 : vector<8x64xf32> to vector<8x64xbf16>
    %c464_599 = arith.constant 464 : index
    %c0_600 = arith.constant 0 : index
    %1956 = vector.load %arg11[%c464_599, %c0_600] : memref<1024x64xbf16, #tpu.memory_space<vmem>>, vector<8x64xbf16>
    tpu.vector_store %arg11[%c464_599, %c0_600], %1955 {strides = array<i32>} : memref<1024x64xbf16, #tpu.memory_space<vmem>>, vector<8x64xbf16>,
    %1957 = vector.extract_strided_slice %1371 {offsets = [40, 0], sizes = [8, 64], strides = [1, 1]} : vector<64x64xf32> to vector<8x64xf32>
    %1958 = vector.extract_strided_slice %1957 {offsets = [0, 51], sizes = [8, 13], strides = [1, 1]} : vector<8x64xf32> to vector<8x13xf32>
    %1959 = vector.extract_strided_slice %1957 {offsets = [0, 0], sizes = [8, 51], strides = [1, 1]} : vector<8x64xf32> to vector<8x51xf32>
    %1960 = tpu.concatenate %1958, %1959 in 1 : vector<8x13xf32>, vector<8x51xf32> -> vector<8x64xf32>
    %c6_601 = arith.constant 6 : index
    %c0_602 = arith.constant 0 : index
    %1961 = vector.load %arg9[%c6_601, %c0_602] : memref<27x64xf32, #tpu.memory_space<vmem>>, vector<1x64xf32>
    %1962 = vector.shape_cast %1961 : vector<1x64xf32> to vector<64xf32>
    %1963 = vector.shape_cast %1962 : vector<64xf32> to vector<1x64xf32>
    %1964 = vector.broadcast %1963 : vector<1x64xf32> to vector<8x64xf32>
    %1965 = arith.mulf %1960, %1964 : vector<8x64xf32>
    %1966 = arith.truncf %1965 : vector<8x64xf32> to vector<8x64xbf16>
    %c472_603 = arith.constant 472 : index
    %c0_604 = arith.constant 0 : index
    %1967 = vector.load %arg11[%c472_603, %c0_604] : memref<1024x64xbf16, #tpu.memory_space<vmem>>, vector<8x64xbf16>
    tpu.vector_store %arg11[%c472_603, %c0_604], %1966 {strides = array<i32>} : memref<1024x64xbf16, #tpu.memory_space<vmem>>, vector<8x64xbf16>,
    %1968 = vector.extract_strided_slice %1371 {offsets = [48, 0], sizes = [8, 64], strides = [1, 1]} : vector<64x64xf32> to vector<8x64xf32>
    %1969 = vector.extract_strided_slice %1968 {offsets = [0, 44], sizes = [8, 20], strides = [1, 1]} : vector<8x64xf32> to vector<8x20xf32>
    %1970 = vector.extract_strided_slice %1968 {offsets = [0, 0], sizes = [8, 44], strides = [1, 1]} : vector<8x64xf32> to vector<8x44xf32>
    %1971 = tpu.concatenate %1969, %1970 in 1 : vector<8x20xf32>, vector<8x44xf32> -> vector<8x64xf32>
    %c1_605 = arith.constant 1 : index
    %c0_606 = arith.constant 0 : index
    %1972 = vector.load %arg9[%c1_605, %c0_606] : memref<27x64xf32, #tpu.memory_space<vmem>>, vector<1x64xf32>
    %1973 = vector.shape_cast %1972 : vector<1x64xf32> to vector<64xf32>
    %1974 = vector.shape_cast %1973 : vector<64xf32> to vector<1x64xf32>
    %1975 = vector.broadcast %1974 : vector<1x64xf32> to vector<8x64xf32>
    %1976 = arith.mulf %1971, %1975 : vector<8x64xf32>
    %1977 = arith.truncf %1976 : vector<8x64xf32> to vector<8x64xbf16>
    %c480_607 = arith.constant 480 : index
    %c0_608 = arith.constant 0 : index
    %1978 = vector.load %arg11[%c480_607, %c0_608] : memref<1024x64xbf16, #tpu.memory_space<vmem>>, vector<8x64xbf16>
    tpu.vector_store %arg11[%c480_607, %c0_608], %1977 {strides = array<i32>} : memref<1024x64xbf16, #tpu.memory_space<vmem>>, vector<8x64xbf16>,
    %1979 = vector.extract_strided_slice %1371 {offsets = [56, 0], sizes = [8, 64], strides = [1, 1]} : vector<64x64xf32> to vector<8x64xf32>
    %1980 = vector.extract_strided_slice %1979 {offsets = [0, 44], sizes = [8, 20], strides = [1, 1]} : vector<8x64xf32> to vector<8x20xf32>
    %1981 = vector.extract_strided_slice %1979 {offsets = [0, 0], sizes = [8, 44], strides = [1, 1]} : vector<8x64xf32> to vector<8x44xf32>
    %1982 = tpu.concatenate %1980, %1981 in 1 : vector<8x20xf32>, vector<8x44xf32> -> vector<8x64xf32>
    %c1_609 = arith.constant 1 : index
    %c0_610 = arith.constant 0 : index
    %1983 = vector.load %arg9[%c1_609, %c0_610] : memref<27x64xf32, #tpu.memory_space<vmem>>, vector<1x64xf32>
    %1984 = vector.shape_cast %1983 : vector<1x64xf32> to vector<64xf32>
    %1985 = vector.shape_cast %1984 : vector<64xf32> to vector<1x64xf32>
    %1986 = vector.broadcast %1985 : vector<1x64xf32> to vector<8x64xf32>
    %1987 = arith.mulf %1982, %1986 : vector<8x64xf32>
    %1988 = arith.truncf %1987 : vector<8x64xf32> to vector<8x64xbf16>
    %c488_611 = arith.constant 488 : index
    %c0_612 = arith.constant 0 : index
    %1989 = vector.load %arg11[%c488_611, %c0_612] : memref<1024x64xbf16, #tpu.memory_space<vmem>>, vector<8x64xbf16>
    tpu.vector_store %arg11[%c488_611, %c0_612], %1988 {strides = array<i32>} : memref<1024x64xbf16, #tpu.memory_space<vmem>>, vector<8x64xbf16>,
    %1990 = vector.extract_strided_slice %1371 {offsets = [48, 0], sizes = [8, 64], strides = [1, 1]} : vector<64x64xf32> to vector<8x64xf32>
    %1991 = vector.extract_strided_slice %1990 {offsets = [0, 45], sizes = [8, 19], strides = [1, 1]} : vector<8x64xf32> to vector<8x19xf32>
    %1992 = vector.extract_strided_slice %1990 {offsets = [0, 0], sizes = [8, 45], strides = [1, 1]} : vector<8x64xf32> to vector<8x45xf32>
    %1993 = tpu.concatenate %1991, %1992 in 1 : vector<8x19xf32>, vector<8x45xf32> -> vector<8x64xf32>
    %c2_613 = arith.constant 2 : index
    %c0_614 = arith.constant 0 : index
    %1994 = vector.load %arg9[%c2_613, %c0_614] : memref<27x64xf32, #tpu.memory_space<vmem>>, vector<1x64xf32>
    %1995 = vector.shape_cast %1994 : vector<1x64xf32> to vector<64xf32>
    %1996 = vector.shape_cast %1995 : vector<64xf32> to vector<1x64xf32>
    %1997 = vector.broadcast %1996 : vector<1x64xf32> to vector<8x64xf32>
    %1998 = arith.mulf %1993, %1997 : vector<8x64xf32>
    %1999 = arith.truncf %1998 : vector<8x64xf32> to vector<8x64xbf16>
    %c496_615 = arith.constant 496 : index
    %c0_616 = arith.constant 0 : index
    %2000 = vector.load %arg11[%c496_615, %c0_616] : memref<1024x64xbf16, #tpu.memory_space<vmem>>, vector<8x64xbf16>
    tpu.vector_store %arg11[%c496_615, %c0_616], %1999 {strides = array<i32>} : memref<1024x64xbf16, #tpu.memory_space<vmem>>, vector<8x64xbf16>,
    %2001 = vector.extract_strided_slice %1371 {offsets = [56, 0], sizes = [8, 64], strides = [1, 1]} : vector<64x64xf32> to vector<8x64xf32>
    %2002 = vector.extract_strided_slice %2001 {offsets = [0, 43], sizes = [8, 21], strides = [1, 1]} : vector<8x64xf32> to vector<8x21xf32>
    %2003 = vector.extract_strided_slice %2001 {offsets = [0, 0], sizes = [8, 43], strides = [1, 1]} : vector<8x64xf32> to vector<8x43xf32>
    %2004 = tpu.concatenate %2002, %2003 in 1 : vector<8x21xf32>, vector<8x43xf32> -> vector<8x64xf32>
    %c0_617 = arith.constant 0 : index
    %c0_618 = arith.constant 0 : index
    %2005 = vector.load %arg9[%c0_617, %c0_618] : memref<27x64xf32, #tpu.memory_space<vmem>>, vector<1x64xf32>
    %2006 = vector.shape_cast %2005 : vector<1x64xf32> to vector<64xf32>
    %2007 = vector.shape_cast %2006 : vector<64xf32> to vector<1x64xf32>
    %2008 = vector.broadcast %2007 : vector<1x64xf32> to vector<8x64xf32>
    %2009 = arith.mulf %2004, %2008 : vector<8x64xf32>
    %2010 = arith.truncf %2009 : vector<8x64xf32> to vector<8x64xbf16>
    %c504_619 = arith.constant 504 : index
    %c0_620 = arith.constant 0 : index
    %2011 = vector.load %arg11[%c504_619, %c0_620] : memref<1024x64xbf16, #tpu.memory_space<vmem>>, vector<8x64xbf16>
    tpu.vector_store %arg11[%c504_619, %c0_620], %2010 {strides = array<i32>} : memref<1024x64xbf16, #tpu.memory_space<vmem>>, vector<8x64xbf16>,
    %c0_621 = arith.constant 0 : index
    %c0_622 = arith.constant 0 : index
    %2012 = vector.load %arg5[%c0_621, %c0_622] : memref<64x512xbf16, #tpu.memory_space<vmem>>, vector<64x512xbf16>
    %c0_623 = arith.constant 0 : index
    %c0_624 = arith.constant 0 : index
    %2013 = vector.load %arg11[%c0_623, %c0_624] : memref<1024x64xbf16, #tpu.memory_space<vmem>>, vector<512x64xbf16>
    %cst_625 = arith.constant dense<0.000000e+00> : vector<64x64xf32>
    %2014 = tpu.matmul %2012, %2013, %cst_625 {dimension_numbers = #tpu.dot_dimension_numbers<[1], [0], [0], [1], [0, 0, 1, 1], [], []>} : vector<64x512xbf16>, vector<512x64xbf16>, vector<64x64xf32> -> vector<64x64xf32>
    %c0_626 = arith.constant 0 : index
    %c0_627 = arith.constant 0 : index
    %2015 = vector.load %arg8[%c0_626, %c0_627] : memref<64x1xf32, #tpu.memory_space<vmem>>, vector<64x1xf32>
    %2016 = vector.broadcast %2015 : vector<64x1xf32> to vector<64x64xf32>
    %2017 = arith.addf %2014, %2016 : vector<64x64xf32>
    %cst_628 = arith.constant 0.000000e+00 : f32
    %2018 = vector.broadcast %cst_628 : f32 to vector<64x64xf32>
    %2019 = arith.maximumf %2017, %2018 : vector<64x64xf32>
    %c0_629 = arith.constant 0 : index
    %c0_630 = arith.constant 0 : index
    %c0_631 = arith.constant 0 : index
    %2020 = vector.load %arg10[%c0_629, %c0_630, %c0_631] : memref<1x64x64xf32, #tpu.memory_space<vmem>>, vector<1x64x64xf32>
    %2021 = vector.shape_cast %2020 : vector<1x64x64xf32> to vector<64x64xf32>
    %2022 = vector.shape_cast %2019 : vector<64x64xf32> to vector<1x64x64xf32>
    tpu.vector_store %arg10[%c0_629, %c0_630, %c0_631], %2022 {strides = array<i32>} : memref<1x64x64xf32, #tpu.memory_space<vmem>>, vector<1x64x64xf32>,
    return
  }
  func.func @transform_0(%arg0: i32) -> (i32, i32, i32) {
    %c0_i32 = arith.constant 0 : i32
    %c0_i32_0 = arith.constant 0 : i32
    %c0_i32_1 = arith.constant 0 : i32
    return %arg0, %c0_i32, %c0_i32_0 : i32, i32, i32
  }
  func.func @transform_1(%arg0: i32) -> (i32, i32, i32) {
    %c0_i32 = arith.constant 0 : i32
    %c0_i32_0 = arith.constant 0 : i32
    %c0_i32_1 = arith.constant 0 : i32
    return %arg0, %c0_i32, %c0_i32_0 : i32, i32, i32
  }
  func.func @transform_2(%arg0: i32) -> (i32, i32) {
    %c0_i32 = arith.constant 0 : i32
    %c0_i32_0 = arith.constant 0 : i32
    %c0_i32_1 = arith.constant 0 : i32
    return %c0_i32, %c0_i32_0 : i32, i32
  }
  func.func @transform_3(%arg0: i32) -> (i32, i32) {
    %c0_i32 = arith.constant 0 : i32
    %c0_i32_0 = arith.constant 0 : i32
    %c0_i32_1 = arith.constant 0 : i32
    return %c0_i32, %c0_i32_0 : i32, i32
  }
  func.func @transform_4(%arg0: i32) -> (i32, i32) {
    %c0_i32 = arith.constant 0 : i32
    %c0_i32_0 = arith.constant 0 : i32
    %c0_i32_1 = arith.constant 0 : i32
    return %c0_i32, %c0_i32_0 : i32, i32
  }
  func.func @transform_5(%arg0: i32) -> (i32, i32) {
    %c0_i32 = arith.constant 0 : i32
    %c0_i32_0 = arith.constant 0 : i32
    %c0_i32_1 = arith.constant 0 : i32
    return %c0_i32, %c0_i32_0 : i32, i32
  }
  func.func @transform_6(%arg0: i32) -> (i32, i32) {
    %c0_i32 = arith.constant 0 : i32
    %c0_i32_0 = arith.constant 0 : i32
    %c0_i32_1 = arith.constant 0 : i32
    return %c0_i32, %c0_i32_0 : i32, i32
  }
  func.func @transform_7(%arg0: i32) -> (i32, i32) {
    %c0_i32 = arith.constant 0 : i32
    %c0_i32_0 = arith.constant 0 : i32
    %c0_i32_1 = arith.constant 0 : i32
    return %c0_i32, %c0_i32_0 : i32, i32
  }
  func.func @transform_8(%arg0: i32) -> (i32, i32) {
    %c0_i32 = arith.constant 0 : i32
    %c0_i32_0 = arith.constant 0 : i32
    %c0_i32_1 = arith.constant 0 : i32
    return %c0_i32, %c0_i32_0 : i32, i32
  }
  func.func @transform_9(%arg0: i32) -> (i32, i32, i32) {
    %c0_i32 = arith.constant 0 : i32
    %c0_i32_0 = arith.constant 0 : i32
    %c0_i32_1 = arith.constant 0 : i32
    return %arg0, %c0_i32, %c0_i32_0 : i32, i32, i32
  }
}

</mosaic_0001>

<llo_original>
// kernel: upblock_forward.1
$region0: #{upblock_forward.1}
  #allocation0 [shape = 'u32[]', space=smem, size = 0x4, offset = 0x4, fixed_abs, tag = 'smem constant byte address 0x4 - core index']
  #allocation1 [shape = 'u32[144,128]{1,0:T(1,128)}', space=vmem, size = 0x12000, scoped, tag = 'internal scratch']
  #allocation2 [shape = 'bf16[1024,64]{1,0:T(16,128)(2,1)}', space=vmem, size = 0x40000, scoped, tag = 'scratch operand']
  %s0 = inlined_call_operand.vmem [shape: f32[2,8,64], index: 0, kind: input, shape index: {}]
  %s1 = inlined_call_operand.vmem [shape: f32[2,64,64], index: 1, kind: input, shape index: {}]
  %s2 = inlined_call_operand.vmem [shape: bf16[64,64], index: 2, kind: input, shape index: {}]
  %s3 = inlined_call_operand.vmem [shape: bf16[64,1024], index: 3, kind: input, shape index: {}]
  %s4 = inlined_call_operand.vmem [shape: bf16[64,512], index: 4, kind: input, shape index: {}]
  %s5 = inlined_call_operand.vmem [shape: f32[64,1], index: 5, kind: input, shape index: {}]
  %s6 = inlined_call_operand.vmem [shape: f32[64,1], index: 6, kind: input, shape index: {}]
  %s7 = inlined_call_operand.vmem [shape: f32[64,1], index: 7, kind: input, shape index: {}]
  %s8 = inlined_call_operand.vmem [shape: f32[27,64], index: 8, kind: input, shape index: {}]
  %s9 = inlined_call_operand.vmem [shape: f32[2,64,64], index: 9, kind: output, shape index: {}]
  %s10 = sld [smem:[#allocation0]]
  $region69: #{upblock_forward.1} parent=0
    _
  %s12 = ssub.s32 1, %s10
  %s13 = scalar_select 0, %s12, %s10
  loop: start=0, step=1, limit=4
  $region2: #{upblock_forward.1} parent=0 // loop_pre_header
    _
  $region3: #{upblock_forward.1} parent=0 // loop_header
    %s15 = sphi 0, %s19
    %p16 = scmp.ge.s32.totalorder %s15, 4
    %s25 = sphi 0, %s27
    %s28 = sphi 0, %s25
    %s29 = sphi 0, %s28
    %s45 = sphi 0, %s29
    %s51 = sphi 0, %s53
    %s54 = sphi 0, %s51
    %s55 = sphi 0, %s54
    %s71 = sphi 0, %s55
    %s75 = sphi 0, %s75
    %s77 = sphi 0, %s75
    %s78 = sphi 0, %s77
    %s92 = sphi 0, %s78
    %s96 = sphi 0, %s96
    %s98 = sphi 0, %s96
    %s99 = sphi 0, %s98
    %s113 = sphi 0, %s99
    %s117 = sphi 0, %s117
    %s119 = sphi 0, %s117
    %s120 = sphi 0, %s119
    %s134 = sphi 0, %s120
    %s138 = sphi 0, %s138
    %s140 = sphi 0, %s138
    %s141 = sphi 0, %s140
    %s155 = sphi 0, %s141
    %s159 = sphi 0, %s159
    %s161 = sphi 0, %s159
    %s162 = sphi 0, %s161
    %s176 = sphi 0, %s162
    %s180 = sphi 0, %s180
    %s182 = sphi 0, %s180
    %s183 = sphi 0, %s182
    %s197 = sphi 0, %s183
    %s201 = sphi 0, %s201
    %s203 = sphi 0, %s201
    %s204 = sphi 0, %s203
    %s218 = sphi 0, %s204
    %s224 = sphi 0, %s226
    %s227 = sphi 0, %s224
    %s228 = sphi 0, %s227
    %s244 = sphi 0, %s228
  $region4: #{upblock_forward.1} parent=0 // loop_header_branch
    %18 = sbr.rel (%p16) target = $region8
  $region5: #{upblock_forward.1} parent=0 // loop_body
    %s20 = ssub.s32 %s15, 1
    %s21 = ssub.s32 %s15, 2
    %s22 = sadd.s32 %s15, 1
    %s23 = ssub.s32 %s15, %s22
    %p24 = scmp.eq.s32.totalorder %s23, 0
    %s26 = sadd.s32 %s25, 1
    %s27 = scalar_select %p24, %s25, %s26
    %p30 = pneg %p24
    %p31 = scmp.eq.s32.totalorder %s15, 1
    %p32 = por %p30, %p31
    %p33 = scmp.ne.s32.totalorder %s25, %s28
    %p34 = scmp.eq.s32.totalorder %s15, 0
    %p35 = por %p33, %p34
    %p36 = scmp.ne.s32.totalorder %s25, %s28
    %p37 = scmp.eq.s32.totalorder %s20, 1
    %p38 = por %p36, %p37
    %p39 = scmp.ne.s32.totalorder %s28, %s29
    %p40 = scmp.eq.s32.totalorder %s20, 0
    %p41 = por %p39, %p40
    %p42 = scmp.ne.s32.totalorder %s28, %s29
    %p43 = scmp.eq.s32.totalorder %s21, 1
    %p44 = por %p42, %p43
    %p46 = scmp.ne.s32.totalorder %s29, %s45
    %p47 = scmp.eq.s32.totalorder %s21, 0
    %p48 = por %p46, %p47
    %s49 = ssub.s32 %s15, %s22
    %p50 = scmp.eq.s32.totalorder %s49, 0
    %s52 = sadd.s32 %s51, 1
    %s53 = scalar_select %p50, %s51, %s52
    %p56 = pneg %p50
    %p57 = scmp.eq.s32.totalorder %s15, 1
    %p58 = por %p56, %p57
    %p59 = scmp.ne.s32.totalorder %s51, %s54
    %p60 = scmp.eq.s32.totalorder %s15, 0
    %p61 = por %p59, %p60
    %p62 = scmp.ne.s32.totalorder %s51, %s54
    %p63 = scmp.eq.s32.totalorder %s20, 1
    %p64 = por %p62, %p63
    %p65 = scmp.ne.s32.totalorder %s54, %s55
    %p66 = scmp.eq.s32.totalorder %s20, 0
    %p67 = por %p65, %p66
    %p68 = scmp.ne.s32.totalorder %s54, %s55
    %p69 = scmp.eq.s32.totalorder %s21, 1
    %p70 = por %p68, %p69
    %p72 = scmp.ne.s32.totalorder %s55, %s71
    %p73 = scmp.eq.s32.totalorder %s21, 0
    %p74 = por %p72, %p73
    %s76 = sadd.s32 %s75, 1
    %p79 = scmp.eq.s32.totalorder %s15, 1
    %p80 = scmp.ne.s32.totalorder %s75, %s77
    %p81 = scmp.eq.s32.totalorder %s15, 0
    %p82 = por %p80, %p81
    %p83 = scmp.ne.s32.totalorder %s75, %s77
    %p84 = scmp.eq.s32.totalorder %s20, 1
    %p85 = por %p83, %p84
    %p86 = scmp.ne.s32.totalorder %s77, %s78
    %p87 = scmp.eq.s32.totalorder %s20, 0
    %p88 = por %p86, %p87
    %p89 = scmp.ne.s32.totalorder %s77, %s78
    %p90 = scmp.eq.s32.totalorder %s21, 1
    %p91 = por %p89, %p90
    %p93 = scmp.ne.s32.totalorder %s78, %s92
    %p94 = scmp.eq.s32.totalorder %s21, 0
    %p95 = por %p93, %p94
    %s97 = sadd.s32 %s96, 1
    %p100 = scmp.eq.s32.totalorder %s15, 1
    %p101 = scmp.ne.s32.totalorder %s96, %s98
    %p102 = scmp.eq.s32.totalorder %s15, 0
    %p103 = por %p101, %p102
    %p104 = scmp.ne.s32.totalorder %s96, %s98
    %p105 = scmp.eq.s32.totalorder %s20, 1
    %p106 = por %p104, %p105
    %p107 = scmp.ne.s32.totalorder %s98, %s99
    %p108 = scmp.eq.s32.totalorder %s20, 0
    %p109 = por %p107, %p108
    %p110 = scmp.ne.s32.totalorder %s98, %s99
    %p111 = scmp.eq.s32.totalorder %s21, 1
    %p112 = por %p110, %p111
    %p114 = scmp.ne.s32.totalorder %s99, %s113
    %p115 = scmp.eq.s32.totalorder %s21, 0
    %p116 = por %p114, %p115
    %s118 = sadd.s32 %s117, 1
    %p121 = scmp.eq.s32.totalorder %s15, 1
    %p122 = scmp.ne.s32.totalorder %s117, %s119
    %p123 = scmp.eq.s32.totalorder %s15, 0
    %p124 = por %p122, %p123
    %p125 = scmp.ne.s32.totalorder %s117, %s119
    %p126 = scmp.eq.s32.totalorder %s20, 1
    %p127 = por %p125, %p126
    %p128 = scmp.ne.s32.totalorder %s119, %s120
    %p129 = scmp.eq.s32.totalorder %s20, 0
    %p130 = por %p128, %p129
    %p131 = scmp.ne.s32.totalorder %s119, %s120
    %p132 = scmp.eq.s32.totalorder %s21, 1
    %p133 = por %p131, %p132
    %p135 = scmp.ne.s32.totalorder %s120, %s134
    %p136 = scmp.eq.s32.totalorder %s21, 0
    %p137 = por %p135, %p136
    %s139 = sadd.s32 %s138, 1
    %p142 = scmp.eq.s32.totalorder %s15, 1
    %p143 = scmp.ne.s32.totalorder %s138, %s140
    %p144 = scmp.eq.s32.totalorder %s15, 0
    %p145 = por %p143, %p144
    %p146 = scmp.ne.s32.totalorder %s138, %s140
    %p147 = scmp.eq.s32.totalorder %s20, 1
    %p148 = por %p146, %p147
    %p149 = scmp.ne.s32.totalorder %s140, %s141
    %p150 = scmp.eq.s32.totalorder %s20, 0
    %p151 = por %p149, %p150
    %p152 = scmp.ne.s32.totalorder %s140, %s141
    %p153 = scmp.eq.s32.totalorder %s21, 1
    %p154 = por %p152, %p153
    %p156 = scmp.ne.s32.totalorder %s141, %s155
    %p157 = scmp.eq.s32.totalorder %s21, 0
    %p158 = por %p156, %p157
    %s160 = sadd.s32 %s159, 1
    %p163 = scmp.eq.s32.totalorder %s15, 1
    %p164 = scmp.ne.s32.totalorder %s159, %s161
    %p165 = scmp.eq.s32.totalorder %s15, 0
    %p166 = por %p164, %p165
    %p167 = scmp.ne.s32.totalorder %s159, %s161
    %p168 = scmp.eq.s32.totalorder %s20, 1
    %p169 = por %p167, %p168
    %p170 = scmp.ne.s32.totalorder %s161, %s162
    %p171 = scmp.eq.s32.totalorder %s20, 0
    %p172 = por %p170, %p171
    %p173 = scmp.ne.s32.totalorder %s161, %s162
    %p174 = scmp.eq.s32.totalorder %s21, 1
    %p175 = por %p173, %p174
    %p177 = scmp.ne.s32.totalorder %s162, %s176
    %p178 = scmp.eq.s32.totalorder %s21, 0
    %p179 = por %p177, %p178
    %s181 = sadd.s32 %s180, 1
    %p184 = scmp.eq.s32.totalorder %s15, 1
    %p185 = scmp.ne.s32.totalorder %s180, %s182
    %p186 = scmp.eq.s32.totalorder %s15, 0
    %p187 = por %p185, %p186
    %p188 = scmp.ne.s32.totalorder %s180, %s182
    %p189 = scmp.eq.s32.totalorder %s20, 1
    %p190 = por %p188, %p189
    %p191 = scmp.ne.s32.totalorder %s182, %s183
    %p192 = scmp.eq.s32.totalorder %s20, 0
    %p193 = por %p191, %p192
    %p194 = scmp.ne.s32.totalorder %s182, %s183
    %p195 = scmp.eq.s32.totalorder %s21, 1
    %p196 = por %p194, %p195
    %p198 = scmp.ne.s32.totalorder %s183, %s197
    %p199 = scmp.eq.s32.totalorder %s21, 0
    %p200 = por %p198, %p199
    %s202 = sadd.s32 %s201, 1
    %p205 = scmp.eq.s32.totalorder %s15, 1
    %p206 = scmp.ne.s32.totalorder %s201, %s203
    %p207 = scmp.eq.s32.totalorder %s15, 0
    %p208 = por %p206, %p207
    %p209 = scmp.ne.s32.totalorder %s201, %s203
    %p210 = scmp.eq.s32.totalorder %s20, 1
    %p211 = por %p209, %p210
    %p212 = scmp.ne.s32.totalorder %s203, %s204
    %p213 = scmp.eq.s32.totalorder %s20, 0
    %p214 = por %p212, %p213
    %p215 = scmp.ne.s32.totalorder %s203, %s204
    %p216 = scmp.eq.s32.totalorder %s21, 1
    %p217 = por %p215, %p216
    %p219 = scmp.ne.s32.totalorder %s204, %s218
    %p220 = scmp.eq.s32.totalorder %s21, 0
    %p221 = por %p219, %p220
    %s222 = ssub.s32 %s15, %s22
    %p223 = scmp.eq.s32.totalorder %s222, 0
    %s225 = sadd.s32 %s224, 1
    %s226 = scalar_select %p223, %s224, %s225
    %p229 = pneg %p223
    %p230 = scmp.eq.s32.totalorder %s15, 1
    %p231 = por %p229, %p230
    %p232 = scmp.ne.s32.totalorder %s224, %s227
    %p233 = scmp.eq.s32.totalorder %s15, 0
    %p234 = por %p232, %p233
    %p235 = scmp.ne.s32.totalorder %s224, %s227
    %p236 = scmp.eq.s32.totalorder %s20, 1
    %p237 = por %p235, %p236
    %p238 = scmp.ne.s32.totalorder %s227, %s228
    %p239 = scmp.eq.s32.totalorder %s20, 0
    %p240 = por %p238, %p239
    %p241 = scmp.ne.s32.totalorder %s227, %s228
    %p242 = scmp.eq.s32.totalorder %s21, 1
    %p243 = por %p241, %p242
    %p245 = scmp.ne.s32.totalorder %s228, %s244
    %p246 = scmp.eq.s32.totalorder %s21, 0
    %p247 = por %p245, %p246
    %p248 = scmp.le.s32.totalorder 1, %s15
    %p249 = scmp.lt.s32.totalorder %s15, 3
    %p250 = pnand %p248, %p249
    %p251 = pneg %p250
    // Predicated region
    $region9: #{upblock_forward.1} parent=5 // pred_check
      _
    $region10: #{upblock_forward.1} parent=5 // pred_check_branch
      %253 = sbr.rel (%p250) target = $region12
    $region11: #{upblock_forward.1} parent=5 // pred_region
      %s254 = ssub.s32 %s15, 1
      // Predicated region
      $region13: #{upblock_forward.1} parent=11 // pred_check
        %p255 = pneg %p88
      $region14: #{upblock_forward.1} parent=11 // pred_check_branch
        %257 = sbr.rel (%p255) target = $region16
      $region15: #{upblock_forward.1} parent=11 // pred_region
        _
      $region16: #{upblock_forward.1} parent=11 // pred_fallthru
        _
      // Predicated region
      $region17: #{upblock_forward.1} parent=11 // pred_check
        %p258 = pneg %p109
      $region18: #{upblock_forward.1} parent=11 // pred_check_branch
        %260 = sbr.rel (%p258) target = $region20
      $region19: #{upblock_forward.1} parent=11 // pred_region
        _
      $region20: #{upblock_forward.1} parent=11 // pred_fallthru
        _
      // Predicated region
      $region21: #{upblock_forward.1} parent=11 // pred_check
        %p261 = pneg %p130
      $region22: #{upblock_forward.1} parent=11 // pred_check_branch
        %263 = sbr.rel (%p261) target = $region24
      $region23: #{upblock_forward.1} parent=11 // pred_region
        _
      $region24: #{upblock_forward.1} parent=11 // pred_fallthru
        _
      // Predicated region
      $region25: #{upblock_forward.1} parent=11 // pred_check
        %p264 = pneg %p151
      $region26: #{upblock_forward.1} parent=11 // pred_check_branch
        %266 = sbr.rel (%p264) target = $region28
      $region27: #{upblock_forward.1} parent=11 // pred_region
        _
      $region28: #{upblock_forward.1} parent=11 // pred_fallthru
        _
      // Predicated region
      $region29: #{upblock_forward.1} parent=11 // pred_check
        %p267 = pneg %p172
      $region30: #{upblock_forward.1} parent=11 // pred_check_branch
        %269 = sbr.rel (%p267) target = $region32
      $region31: #{upblock_forward.1} parent=11 // pred_region
        _
      $region32: #{upblock_forward.1} parent=11 // pred_fallthru
        _
      // Predicated region
      $region33: #{upblock_forward.1} parent=11 // pred_check
        %p270 = pneg %p193
      $region34: #{upblock_forward.1} parent=11 // pred_check_branch
        %272 = sbr.rel (%p270) target = $region36
      $region35: #{upblock_forward.1} parent=11 // pred_region
        _
      $region36: #{upblock_forward.1} parent=11 // pred_fallthru
        _
      // Predicated region
      $region37: #{upblock_forward.1} parent=11 // pred_check
        %p273 = pneg %p214
      $region38: #{upblock_forward.1} parent=11 // pred_check_branch
        %275 = sbr.rel (%p273) target = $region40
      $region39: #{upblock_forward.1} parent=11 // pred_region
        _
      $region40: #{upblock_forward.1} parent=11 // pred_fallthru
        _
    $region12: #{upblock_forward.1} parent=5 // pred_fallthru
      _
    %p276 = scmp.lt.s32.totalorder %s15, 2
    // Predicated region
    $region41: #{upblock_forward.1} parent=5 // pred_check
      %p277 = pneg %p276
    $region42: #{upblock_forward.1} parent=5 // pred_check_branch
      %279 = sbr.rel (%p277) target = $region44
    $region43: #{upblock_forward.1} parent=5 // pred_region
      // Predicated region
      $region45: #{upblock_forward.1} parent=43 // pred_check
        %p280 = pneg %p35
      $region46: #{upblock_forward.1} parent=43 // pred_check_branch
        %282 = sbr.rel (%p280) target = $region48
      $region47: #{upblock_forward.1} parent=43 // pred_region
        %p283 = scmp.lt.s32.totalorder %s15, 1
        %s284 = scalar_select %p283, %s15, 1
        %s285 = smul.addr %s284, 8
        %s286 = scalar_lea.vmem %s0, %s285
      $region48: #{upblock_forward.1} parent=43 // pred_fallthru
        _
      // Predicated region
      $region49: #{upblock_forward.1} parent=43 // pred_check
        %p287 = pneg %p61
      $region50: #{upblock_forward.1} parent=43 // pred_check_branch
        %289 = sbr.rel (%p287) target = $region52
      $region51: #{upblock_forward.1} parent=43 // pred_region
        %p290 = scmp.lt.s32.totalorder %s15, 1
        %s291 = scalar_select %p290, %s15, 1
        %s292 = smul.addr %s291, 8
        %s293 = smul.addr %s292, 8
        %s294 = scalar_lea.vmem %s1, %s293
      $region52: #{upblock_forward.1} parent=43 // pred_fallthru
        _
    $region44: #{upblock_forward.1} parent=5 // pred_fallthru
      _
    %p295 = scmp.le.s32.totalorder 1, %s15
    %p296 = scmp.lt.s32.totalorder %s15, 3
    %p297 = pnand %p295, %p296
    %p298 = pneg %p297
    // Predicated region
    $region53: #{upblock_forward.1} parent=5 // pred_check
      _
    $region54: #{upblock_forward.1} parent=5 // pred_check_branch
      %300 = sbr.rel (%p297) target = $region56
    $region55: #{upblock_forward.1} parent=5 // pred_region
      %s301 = ssub.s32 %s15, 1
      %p302 = scmp.lt.s32.totalorder %s20, 1
      %s303 = scalar_select %p302, %s20, 1
      %s304 = smul.addr %s303, 8
      %s305 = scalar_lea.vmem %s0, %s304
      %p306 = pneg %p41
      %p307 = pneg %p38
      %p308 = scmp.lt.s32.totalorder %s20, 1
      %s309 = scalar_select %p308, %s20, 1
      %s310 = smul.addr %s309, 8
      %s311 = smul.addr %s310, 8
      %s312 = scalar_lea.vmem %s1, %s311
      %p313 = pneg %p67
      %p314 = pneg %p64
      %p315 = pneg %p88
      %p316 = pneg %p85
      %p317 = pneg %p109
      %p318 = pneg %p106
      %p319 = pneg %p130
      %p320 = pneg %p127
      %p321 = pneg %p151
      %p322 = pneg %p148
      %p323 = pneg %p172
      %p324 = pneg %p169
      %p325 = pneg %p193
      %p326 = pneg %p190
      %p327 = pneg %p214
      %p328 = pneg %p211
      %p329 = pneg %p240
      %p330 = pneg %p237
      %p331 = scmp.lt.s32.totalorder %s20, 1
      %s332 = scalar_select %p331, %s20, 1
      %s333 = smul.addr %s332, 8
      %s334 = smul.addr %s333, 8
      %s335 = scalar_lea.vmem %s9, %s334
      %p336 = scmp.lt.s32.totalorder %s20, 1
      %s337 = scalar_select %p336, %s20, 1
      %s338 = smul.addr %s337, 8
      %s339 = scalar_lea.vmem %s0, %s338
      %p340 = scmp.lt.s32.totalorder %s20, 1
      %s341 = scalar_select %p340, %s20, 1
      %s342 = smul.addr %s341, 8
      %s343 = smul.addr %s342, 8
      %s344 = scalar_lea.vmem %s1, %s343
      %p345 = scmp.lt.s32.totalorder %s20, 1
      %s346 = scalar_select %p345, %s20, 1
      %s347 = smul.addr %s346, 8
      %s348 = smul.addr %s347, 8
      %s349 = scalar_lea.vmem %s9, %s348
      %v351 = vld [vmem:[%s339] sm:$0xff]
      %v352 = vpack.c.bf16 %v351, %v351
      %vm353 = vcmask 519168
      %354 = vst.msk [vmem:[#allocation2] sm:$0xf] %vm353, %v352
      %356 = vrot.lane.b32.xlu0 %v351, 127
      %v357 = vpop.permute.xlu0 %356
      %359 = vrot.lane.b32.xlu0 %v351, 63
      %v360 = vpop.permute.xlu0 %359
      %vm362 = vcmask 515072
      %v363 = vsel %vm362, %v357, %v360
      %v364 = vld [vmem:[%s8 + $0xe] sm:$0x1]
      %v365 = vlaneseq
      %v366 = vshrl.u32 %v365, 7
      %v367 = vsub.s32 0, %v366
      %v368 = vrot.slane %v364, %v367
      %v369 = vmul.f32 %v363, %v368
      %v370 = vpack.c.bf16 %v369, %v369
      %v372 = vrot.slane %v370, 4
      %vm374 = vcmask 523268
      %375 = vst.msk [vmem:[#allocation2] sm:$0xf0] %vm374, %v372
      %376 = vrot.lane.b32.xlu0 %v351, 124
      %v377 = vpop.permute.xlu0 %376
      %379 = vrot.lane.b32.xlu0 %v351, 60
      %v380 = vpop.permute.xlu0 %379
      %vm382 = vcmask 490496
      %v383 = vsel %vm382, %v377, %v380
      %v384 = vld [vmem:[%s8 + $0x10] sm:$0x1]
      %v385 = vlaneseq
      %v386 = vshrl.u32 %v385, 7
      %v387 = vsub.s32 0, %v386
      %v388 = vrot.slane %v384, %v387
      %v389 = vmul.f32 %v383, %v388
      %v390 = vpack.c.bf16 %v389, %v389
      %391 = vst.msk [vmem:[#allocation2 + $0x8] sm:$0xf] %vm353, %v390
      %392 = vrot.lane.b32.xlu0 %v351, 123
      %v393 = vpop.permute.xlu0 %392
      %395 = vrot.lane.b32.xlu0 %v351, 59
      %v396 = vpop.permute.xlu0 %395
      %vm398 = vcmask 482304
      %v399 = vsel %vm398, %v393, %v396
      %v400 = vld [vmem:[%s8 + $0x11] sm:$0x1]
      %v401 = vlaneseq
      %v402 = vshrl.u32 %v401, 7
      %v403 = vsub.s32 0, %v402
      %v404 = vrot.slane %v400, %v403
      %v405 = vmul.f32 %v399, %v404
      %v406 = vpack.c.bf16 %v405, %v405
      %v408 = vrot.slane %v406, 4
      %410 = vst.msk [vmem:[#allocation2 + $0x8] sm:$0xf0] %vm374, %v408
      %411 = vrot.lane.b32.xlu0 %v351, 112
      %v412 = vpop.permute.xlu0 %411
      %414 = vrot.lane.b32.xlu0 %v351, 48
      %v415 = vpop.permute.xlu0 %414
      %vm417 = vcmask 392192
      %v418 = vsel %vm417, %v412, %v415
      %v419 = vld [vmem:[%s8 + $0x16] sm:$0x1]
      %v420 = vlaneseq
      %v421 = vshrl.u32 %v420, 7
      %v422 = vsub.s32 0, %v421
      %v423 = vrot.slane %v419, %v422
      %v424 = vmul.f32 %v418, %v423
      %v425 = vpack.c.bf16 %v424, %v424
      %426 = vst.msk [vmem:[#allocation2 + $0x10] sm:$0xf] %vm353, %v425
      %427 = vrot.lane.b32.xlu0 %v351, 111
      %v428 = vpop.permute.xlu0 %427
      %430 = vrot.lane.b32.xlu0 %v351, 47
      %v431 = vpop.permute.xlu0 %430
      %vm433 = vcmask 384000
      %v434 = vsel %vm433, %v428, %v431
      %v435 = vld [vmem:[%s8 + $0x17] sm:$0x1]
      %v436 = vlaneseq
      %v437 = vshrl.u32 %v436, 7
      %v438 = vsub.s32 0, %v437
      %v439 = vrot.slane %v435, %v438
      %v440 = vmul.f32 %v434, %v439
      %v441 = vpack.c.bf16 %v440, %v440
      %v443 = vrot.slane %v441, 4
      %445 = vst.msk [vmem:[#allocation2 + $0x10] sm:$0xf0] %vm374, %v443
      %446 = vrot.lane.b32.xlu0 %v351, 108
      %v447 = vpop.permute.xlu0 %446
      %449 = vrot.lane.b32.xlu0 %v351, 44
      %v450 = vpop.permute.xlu0 %449
      %vm452 = vcmask 359424
      %v453 = vsel %vm452, %v447, %v450
      %v454 = vld [vmem:[%s8 + $0x19] sm:$0x1]
      %v455 = vlaneseq
      %v456 = vshrl.u32 %v455, 7
      %v457 = vsub.s32 0, %v456
      %v458 = vrot.slane %v454, %v457
      %v459 = vmul.f32 %v453, %v458
      %v460 = vpack.c.bf16 %v459, %v459
      %461 = vst.msk [vmem:[#allocation2 + $0x18] sm:$0xf] %vm353, %v460
      %462 = vrot.lane.b32.xlu0 %v351, 107
      %v463 = vpop.permute.xlu0 %462
      %465 = vrot.lane.b32.xlu0 %v351, 43
      %v466 = vpop.permute.xlu0 %465
      %vm468 = vcmask 351232
      %v469 = vsel %vm468, %v463, %v466
      %v470 = vld [vmem:[%s8 + $0x1a] sm:$0x1]
      %v471 = vlaneseq
      %v472 = vshrl.u32 %v471, 7
      %v473 = vsub.s32 0, %v472
      %v474 = vrot.slane %v470, %v473
      %v475 = vmul.f32 %v469, %v474
      %v476 = vpack.c.bf16 %v475, %v475
      %v478 = vrot.slane %v476, 4
      %480 = vst.msk [vmem:[#allocation2 + $0x18] sm:$0xf0] %vm374, %v478
      %v481 = vld [vmem:[%s2] sm:$0xf]
      %v482 = vld [vmem:[%s2 + $0x4] sm:$0xf]
      %v483 = vld [vmem:[%s2 + $0x8] sm:$0xf]
      %v484 = vld [vmem:[%s2 + $0xc] sm:$0xf]
      %v485 = vld [vmem:[%s2 + $0x10] sm:$0xf]
      %v486 = vld [vmem:[%s2 + $0x14] sm:$0xf]
      %v487 = vld [vmem:[%s2 + $0x18] sm:$0xf]
      %v488 = vld [vmem:[%s2 + $0x1c] sm:$0xf]
      %v489 = vld [vmem:[#allocation2] sm:$0xff]
      %v490 = vld [vmem:[#allocation2 + $0x8] sm:$0xff]
      %v491 = vld [vmem:[#allocation2 + $0x10] sm:$0xff]
      %v492 = vld [vmem:[#allocation2 + $0x18] sm:$0xff]
      %v493 = vld [vmem:[%s5] sm:$0xff]
      %v494 = vld [vmem:[%s5 + $0x8] sm:$0xff]
      %v495 = vld [vmem:[%s5 + $0x10] sm:$0xff]
      %v496 = vld [vmem:[%s5 + $0x18] sm:$0xff]
      %v497 = vld [vmem:[%s5 + $0x20] sm:$0xff]
      %v498 = vld [vmem:[%s5 + $0x28] sm:$0xff]
      %v499 = vld [vmem:[%s5 + $0x30] sm:$0xff]
      %v500 = vld [vmem:[%s5 + $0x38] sm:$0xff]
      %502 = vset.pattern.permute.xlu0 0
      %503 = vperm.xlu0 %502, %v493
      %v504 = vpop.permute.xlu0 %503
      %507 = vset.pattern.permute.xlu0 0
      %508 = vperm.xlu0 %507, %v494
      %v509 = vpop.permute.xlu0 %508
      %512 = vset.pattern.permute.xlu0 0
      %513 = vperm.xlu0 %512, %v495
      %v514 = vpop.permute.xlu0 %513
      %517 = vset.pattern.permute.xlu0 0
      %518 = vperm.xlu0 %517, %v496
      %v519 = vpop.permute.xlu0 %518
      %522 = vset.pattern.permute.xlu0 0
      %523 = vperm.xlu0 %522, %v497
      %v524 = vpop.permute.xlu0 %523
      %527 = vset.pattern.permute.xlu0 0
      %528 = vperm.xlu0 %527, %v498
      %v529 = vpop.permute.xlu0 %528
      %532 = vset.pattern.permute.xlu0 0
      %533 = vperm.xlu0 %532, %v499
      %v534 = vpop.permute.xlu0 %533
      %537 = vset.pattern.permute.xlu0 0
      %538 = vperm.xlu0 %537, %v500
      %v539 = vpop.permute.xlu0 %538
      %v549 = vunpack.c.l.b16 %v481
      %v550 = vunpack.c.l.b16 %v482
      %v551 = vunpack.c.l.b16 %v483
      %v552 = vunpack.c.l.b16 %v484
      %v553 = vunpack.c.l.b16 %v485
      %v554 = vunpack.c.l.b16 %v486
      %v555 = vunpack.c.l.b16 %v487
      %v556 = vunpack.c.l.b16 %v488
      %v557 = vpack.c.b16 %v550, %v549
      %v558 = vpack.c.b16 %v552, %v551
      %v559 = vpack.c.b16 %v554, %v553
      %v560 = vpack.c.b16 %v556, %v555
      %vm561 = vcmask 523264
      %v563 = vsel %vm561, %v557, 0
      %v566 = vsel %vm561, %v558, 0
      %v569 = vsel %vm561, %v559, 0
      %v572 = vsel %vm561, %v560, 0
      %574 = vmatprep.subr.bf16.mxu0 0
      %575 = vmatpush1.bf16.msra.mxu0 %v489
      %576 = vmatprep.subr.bf16.mxu0 0
      %577 = vmatpush1.bf16.msra.mxu0 %v490
      %578 = vmatprep.subr.bf16.mxu0 0
      %579 = vmatpush1.bf16.msra.mxu0 %v491
      %580 = vmatprep.subr.bf16.mxu0 0
      %581 = vmatpush1.bf16.msra.mxu0 %v492
      %582 = vmatprep.subr.bf16.mxu0 0
      %583 = vmatpush1.bf16.msra.mxu0 0
      %584 = vmatprep.subr.bf16.mxu0 0
      %585 = vmatpush1.bf16.msra.mxu0 0
      %586 = vmatprep.subr.bf16.mxu0 0
      %587 = vmatpush1.bf16.msra.mxu0 0
      %588 = vmatprep.subr.bf16.mxu0 0
      %589 = vmatpush1.bf16.msra.mxu0 0
      %590 = vmatprep.subr.bf16.mxu0 0
      %591 = vmatpush1.bf16.msra.mxu0 0
      %592 = vmatprep.subr.bf16.mxu0 0
      %593 = vmatpush1.bf16.msra.mxu0 0
      %594 = vmatprep.subr.bf16.mxu0 0
      %595 = vmatpush1.bf16.msra.mxu0 0
      %596 = vmatprep.subr.bf16.mxu0 0
      %597 = vmatpush1.bf16.msra.mxu0 0
      %598 = vmatprep.subr.bf16.mxu0 0
      %599 = vmatpush1.bf16.msra.mxu0 0
      %600 = vmatprep.subr.bf16.mxu0 0
      %601 = vmatpush1.bf16.msra.mxu0 0
      %602 = vmatprep.subr.bf16.mxu0 0
      %603 = vmatpush1.bf16.msra.mxu0 0
      %604 = vmatprep.subr.bf16.mxu0 0
      %605 = vmatpush1.bf16.msra.mxu0 0
      %606 = vmatprep.mubr.bf16.mxu0 0
      %607 = vmatmul.mubr.bf16.gmra.mrb[0].mxu0 %v563
      %v608 = vpop.f32.mrb[0].mxu0
      %v609 = vadd.f32 %v504, %v608
      %v610 = vpop.f32.mrb[0].mxu0
      %v611 = vpop.f32.mrb[0].mxu0
      %v612 = vadd.f32 %v509, %v611
      %v613 = vpop.f32.mrb[0].mxu0
      %614 = vmatprep.mubr.bf16.mxu0 0
      %615 = vmatmul.mubr.bf16.gmra.mrb[0].mxu0 %v566
      %v616 = vpop.f32.mrb[0].mxu0
      %v617 = vadd.f32 %v514, %v616
      %v618 = vpop.f32.mrb[0].mxu0
      %v619 = vpop.f32.mrb[0].mxu0
      %v620 = vadd.f32 %v519, %v619
      %v621 = vpop.f32.mrb[0].mxu0
      %622 = vmatprep.mubr.bf16.mxu0 0
      %623 = vmatmul.mubr.bf16.gmra.mrb[0].mxu0 %v569
      %v624 = vpop.f32.mrb[0].mxu0
      %v625 = vadd.f32 %v524, %v624
      %v626 = vpop.f32.mrb[0].mxu0
      %v627 = vpop.f32.mrb[0].mxu0
      %v628 = vadd.f32 %v529, %v627
      %v629 = vpop.f32.mrb[0].mxu0
      %630 = vmatprep.mubr.bf16.mxu0 0
      %631 = vmatmul.mubr.bf16.gmra.mrb[0].mxu0 %v572
      %v632 = vpop.f32.mrb[0].mxu0
      %v633 = vadd.f32 %v534, %v632
      %v634 = vpop.f32.mrb[0].mxu0
      %v635 = vpop.f32.mrb[0].mxu0
      %v636 = vadd.f32 %v539, %v635
      %v637 = vpop.f32.mrb[0].mxu0
      %638 = vdwg.mxu0
      %v639 = vmax.f32 %v609, 0.0
      %v640 = vmax.f32 %v612, 0.0
      %v641 = vmax.f32 %v617, 0.0
      %v642 = vmax.f32 %v620, 0.0
      %v643 = vmax.f32 %v625, 0.0
      %v644 = vmax.f32 %v628, 0.0
      %v645 = vmax.f32 %v633, 0.0
      %v646 = vmax.f32 %v636, 0.0
      %v647 = vld [vmem:[%s344] sm:$0xff]
      %v648 = vld [vmem:[%s344 + $0x8] sm:$0xff]
      %v649 = vld [vmem:[%s344 + $0x10] sm:$0xff]
      %v650 = vld [vmem:[%s344 + $0x18] sm:$0xff]
      %v651 = vld [vmem:[%s344 + $0x20] sm:$0xff]
      %v652 = vld [vmem:[%s344 + $0x28] sm:$0xff]
      %v653 = vld [vmem:[%s344 + $0x30] sm:$0xff]
      %v654 = vld [vmem:[%s344 + $0x38] sm:$0xff]
      %v655 = vpack.c.bf16 %v639, %v639
      %656 = vst.msk [vmem:[#allocation2] sm:$0xf] %vm353, %v655
      %v657 = vpack.c.bf16 %v647, %v647
      %v659 = vrot.slane %v657, 4
      %661 = vst.msk [vmem:[#allocation2] sm:$0xf0] %vm374, %v659
      %v662 = vpack.c.bf16 %v640, %v640
      %663 = vst.msk [vmem:[#allocation2 + $0x8] sm:$0xf] %vm353, %v662
      %v664 = vpack.c.bf16 %v648, %v648
      %v666 = vrot.slane %v664, 4
      %668 = vst.msk [vmem:[#allocation2 + $0x8] sm:$0xf0] %vm374, %v666
      %670 = vrot.lane.b32.xlu0 %v639, 127
      %v671 = vpop.permute.xlu0 %670
      %673 = vrot.lane.b32.xlu0 %v639, 63
      %v674 = vpop.permute.xlu0 %673
      %v676 = vsel %vm362, %v671, %v674
      %v677 = vld [vmem:[%s8 + $0xe] sm:$0x1]
      %v678 = vlaneseq
      %v679 = vshrl.u32 %v678, 7
      %v680 = vsub.s32 0, %v679
      %v681 = vrot.slane %v677, %v680
      %v682 = vmul.f32 %v676, %v681
      %v683 = vpack.c.bf16 %v682, %v682
      %684 = vst.msk [vmem:[#allocation2 + $0x10] sm:$0xf] %vm353, %v683
      %686 = vrot.lane.b32.xlu0 %v647, 127
      %v687 = vpop.permute.xlu0 %686
      %689 = vrot.lane.b32.xlu0 %v647, 63
      %v690 = vpop.permute.xlu0 %689
      %v692 = vsel %vm362, %v687, %v690
      %v693 = vld [vmem:[%s8 + $0xe] sm:$0x1]
      %v694 = vlaneseq
      %v695 = vshrl.u32 %v694, 7
      %v696 = vsub.s32 0, %v695
      %v697 = vrot.slane %v693, %v696
      %v698 = vmul.f32 %v692, %v697
      %v699 = vpack.c.bf16 %v698, %v698
      %v701 = vrot.slane %v699, 4
      %703 = vst.msk [vmem:[#allocation2 + $0x10] sm:$0xf0] %vm374, %v701
      %705 = vrot.lane.b32.xlu0 %v640, 65
      %v706 = vpop.permute.xlu0 %705
      %708 = vrot.lane.b32.xlu0 %v640, 1
      %v709 = vpop.permute.xlu0 %708
      %vm711 = vcmask 7168
      %v712 = vsel %vm711, %v706, %v709
      %v713 = vld [vmem:[%s8 + $0xc] sm:$0x1]
      %v714 = vlaneseq
      %v715 = vshrl.u32 %v714, 7
      %v716 = vsub.s32 0, %v715
      %v717 = vrot.slane %v713, %v716
      %v718 = vmul.f32 %v712, %v717
      %v719 = vpack.c.bf16 %v718, %v718
      %720 = vst.msk [vmem:[#allocation2 + $0x18] sm:$0xf] %vm353, %v719
      %722 = vrot.lane.b32.xlu0 %v648, 65
      %v723 = vpop.permute.xlu0 %722
      %725 = vrot.lane.b32.xlu0 %v648, 1
      %v726 = vpop.permute.xlu0 %725
      %v728 = vsel %vm711, %v723, %v726
      %v729 = vld [vmem:[%s8 + $0xc] sm:$0x1]
      %v730 = vlaneseq
      %v731 = vshrl.u32 %v730, 7
      %v732 = vsub.s32 0, %v731
      %v733 = vrot.slane %v729, %v732
      %v734 = vmul.f32 %v728, %v733
      %v735 = vpack.c.bf16 %v734, %v734
      %v737 = vrot.slane %v735, 4
      %739 = vst.msk [vmem:[#allocation2 + $0x18] sm:$0xf0] %vm374, %v737
      %v740 = vpack.c.bf16 %v641, %v641
      %741 = vst.msk [vmem:[#allocation2 + $0x20] sm:$0xf] %vm353, %v740
      %v742 = vpack.c.bf16 %v649, %v649
      %v744 = vrot.slane %v742, 4
      %746 = vst.msk [vmem:[#allocation2 + $0x20] sm:$0xf0] %vm374, %v744
      %v747 = vpack.c.bf16 %v642, %v642
      %748 = vst.msk [vmem:[#allocation2 + $0x28] sm:$0xf] %vm353, %v747
      %v749 = vpack.c.bf16 %v650, %v650
      %v751 = vrot.slane %v749, 4
      %753 = vst.msk [vmem:[#allocation2 + $0x28] sm:$0xf0] %vm374, %v751
      %755 = vrot.lane.b32.xlu0 %v641, 127
      %v756 = vpop.permute.xlu0 %755
      %758 = vrot.lane.b32.xlu0 %v641, 63
      %v759 = vpop.permute.xlu0 %758
      %v761 = vsel %vm362, %v756, %v759
      %v762 = vld [vmem:[%s8 + $0xe] sm:$0x1]
      %v763 = vlaneseq
      %v764 = vshrl.u32 %v763, 7
      %v765 = vsub.s32 0, %v764
      %v766 = vrot.slane %v762, %v765
      %v767 = vmul.f32 %v761, %v766
      %v768 = vpack.c.bf16 %v767, %v767
      %769 = vst.msk [vmem:[#allocation2 + $0x30] sm:$0xf] %vm353, %v768
      %771 = vrot.lane.b32.xlu0 %v649, 127
      %v772 = vpop.permute.xlu0 %771
      %774 = vrot.lane.b32.xlu0 %v649, 63
      %v775 = vpop.permute.xlu0 %774
      %v777 = vsel %vm362, %v772, %v775
      %v778 = vld [vmem:[%s8 + $0xe] sm:$0x1]
      %v779 = vlaneseq
      %v780 = vshrl.u32 %v779, 7
      %v781 = vsub.s32 0, %v780
      %v782 = vrot.slane %v778, %v781
      %v783 = vmul.f32 %v777, %v782
      %v784 = vpack.c.bf16 %v783, %v783
      %v786 = vrot.slane %v784, 4
      %788 = vst.msk [vmem:[#allocation2 + $0x30] sm:$0xf0] %vm374, %v786
      %790 = vrot.lane.b32.xlu0 %v642, 65
      %v791 = vpop.permute.xlu0 %790
      %793 = vrot.lane.b32.xlu0 %v642, 1
      %v794 = vpop.permute.xlu0 %793
      %v796 = vsel %vm711, %v791, %v794
      %v797 = vld [vmem:[%s8 + $0xc] sm:$0x1]
      %v798 = vlaneseq
      %v799 = vshrl.u32 %v798, 7
      %v800 = vsub.s32 0, %v799
      %v801 = vrot.slane %v797, %v800
      %v802 = vmul.f32 %v796, %v801
      %v803 = vpack.c.bf16 %v802, %v802
      %804 = vst.msk [vmem:[#allocation2 + $0x38] sm:$0xf] %vm353, %v803
      %806 = vrot.lane.b32.xlu0 %v650, 65
      %v807 = vpop.permute.xlu0 %806
      %809 = vrot.lane.b32.xlu0 %v650, 1
      %v810 = vpop.permute.xlu0 %809
      %v812 = vsel %vm711, %v807, %v810
      %v813 = vld [vmem:[%s8 + $0xc] sm:$0x1]
      %v814 = vlaneseq
      %v815 = vshrl.u32 %v814, 7
      %v816 = vsub.s32 0, %v815
      %v817 = vrot.slane %v813, %v816
      %v818 = vmul.f32 %v812, %v817
      %v819 = vpack.c.bf16 %v818, %v818
      %v821 = vrot.slane %v819, 4
      %823 = vst.msk [vmem:[#allocation2 + $0x38] sm:$0xf0] %vm374, %v821
      %824 = vrot.lane.b32.xlu0 %v639, 124
      %v825 = vpop.permute.xlu0 %824
      %827 = vrot.lane.b32.xlu0 %v639, 60
      %v828 = vpop.permute.xlu0 %827
      %v830 = vsel %vm382, %v825, %v828
      %v831 = vld [vmem:[%s8 + $0x10] sm:$0x1]
      %v832 = vlaneseq
      %v833 = vshrl.u32 %v832, 7
      %v834 = vsub.s32 0, %v833
      %v835 = vrot.slane %v831, %v834
      %v836 = vmul.f32 %v830, %v835
      %v837 = vpack.c.bf16 %v836, %v836
      %838 = vst.msk [vmem:[#allocation2 + $0x40] sm:$0xf] %vm353, %v837
      %839 = vrot.lane.b32.xlu0 %v647, 124
      %v840 = vpop.permute.xlu0 %839
      %842 = vrot.lane.b32.xlu0 %v647, 60
      %v843 = vpop.permute.xlu0 %842
      %v845 = vsel %vm382, %v840, %v843
      %v846 = vld [vmem:[%s8 + $0x10] sm:$0x1]
      %v847 = vlaneseq
      %v848 = vshrl.u32 %v847, 7
      %v849 = vsub.s32 0, %v848
      %v850 = vrot.slane %v846, %v849
      %v851 = vmul.f32 %v845, %v850
      %v852 = vpack.c.bf16 %v851, %v851
      %v854 = vrot.slane %v852, 4
      %856 = vst.msk [vmem:[#allocation2 + $0x40] sm:$0xf0] %vm374, %v854
      %857 = vrot.lane.b32.xlu0 %v640, 124
      %v858 = vpop.permute.xlu0 %857
      %860 = vrot.lane.b32.xlu0 %v640, 60
      %v861 = vpop.permute.xlu0 %860
      %v863 = vsel %vm382, %v858, %v861
      %v864 = vld [vmem:[%s8 + $0x10] sm:$0x1]
      %v865 = vlaneseq
      %v866 = vshrl.u32 %v865, 7
      %v867 = vsub.s32 0, %v866
      %v868 = vrot.slane %v864, %v867
      %v869 = vmul.f32 %v863, %v868
      %v870 = vpack.c.bf16 %v869, %v869
      %871 = vst.msk [vmem:[#allocation2 + $0x48] sm:$0xf] %vm353, %v870
      %872 = vrot.lane.b32.xlu0 %v648, 124
      %v873 = vpop.permute.xlu0 %872
      %875 = vrot.lane.b32.xlu0 %v648, 60
      %v876 = vpop.permute.xlu0 %875
      %v878 = vsel %vm382, %v873, %v876
      %v879 = vld [vmem:[%s8 + $0x10] sm:$0x1]
      %v880 = vlaneseq
      %v881 = vshrl.u32 %v880, 7
      %v882 = vsub.s32 0, %v881
      %v883 = vrot.slane %v879, %v882
      %v884 = vmul.f32 %v878, %v883
      %v885 = vpack.c.bf16 %v884, %v884
      %v887 = vrot.slane %v885, 4
      %889 = vst.msk [vmem:[#allocation2 + $0x48] sm:$0xf0] %vm374, %v887
      %890 = vrot.lane.b32.xlu0 %v639, 123
      %v891 = vpop.permute.xlu0 %890
      %893 = vrot.lane.b32.xlu0 %v639, 59
      %v894 = vpop.permute.xlu0 %893
      %v896 = vsel %vm398, %v891, %v894
      %v897 = vld [vmem:[%s8 + $0x11] sm:$0x1]
      %v898 = vlaneseq
      %v899 = vshrl.u32 %v898, 7
      %v900 = vsub.s32 0, %v899
      %v901 = vrot.slane %v897, %v900
      %v902 = vmul.f32 %v896, %v901
      %v903 = vpack.c.bf16 %v902, %v902
      %904 = vst.msk [vmem:[#allocation2 + $0x50] sm:$0xf] %vm353, %v903
      %905 = vrot.lane.b32.xlu0 %v647, 123
      %v906 = vpop.permute.xlu0 %905
      %908 = vrot.lane.b32.xlu0 %v647, 59
      %v909 = vpop.permute.xlu0 %908
      %v911 = vsel %vm398, %v906, %v909
      %v912 = vld [vmem:[%s8 + $0x11] sm:$0x1]
      %v913 = vlaneseq
      %v914 = vshrl.u32 %v913, 7
      %v915 = vsub.s32 0, %v914
      %v916 = vrot.slane %v912, %v915
      %v917 = vmul.f32 %v911, %v916
      %v918 = vpack.c.bf16 %v917, %v917
      %v920 = vrot.slane %v918, 4
      %922 = vst.msk [vmem:[#allocation2 + $0x50] sm:$0xf0] %vm374, %v920
      %923 = vrot.lane.b32.xlu0 %v640, 125
      %v924 = vpop.permute.xlu0 %923
      %926 = vrot.lane.b32.xlu0 %v640, 61
      %v927 = vpop.permute.xlu0 %926
      %vm929 = vcmask 498688
      %v930 = vsel %vm929, %v924, %v927
      %v931 = vld [vmem:[%s8 + $0xf] sm:$0x1]
      %v932 = vlaneseq
      %v933 = vshrl.u32 %v932, 7
      %v934 = vsub.s32 0, %v933
      %v935 = vrot.slane %v931, %v934
      %v936 = vmul.f32 %v930, %v935
      %v937 = vpack.c.bf16 %v936, %v936
      %938 = vst.msk [vmem:[#allocation2 + $0x58] sm:$0xf] %vm353, %v937
      %939 = vrot.lane.b32.xlu0 %v648, 125
      %v940 = vpop.permute.xlu0 %939
      %942 = vrot.lane.b32.xlu0 %v648, 61
      %v943 = vpop.permute.xlu0 %942
      %v945 = vsel %vm929, %v940, %v943
      %v946 = vld [vmem:[%s8 + $0xf] sm:$0x1]
      %v947 = vlaneseq
      %v948 = vshrl.u32 %v947, 7
      %v949 = vsub.s32 0, %v948
      %v950 = vrot.slane %v946, %v949
      %v951 = vmul.f32 %v945, %v950
      %v952 = vpack.c.bf16 %v951, %v951
      %v954 = vrot.slane %v952, 4
      %956 = vst.msk [vmem:[#allocation2 + $0x58] sm:$0xf0] %vm374, %v954
      %957 = vrot.lane.b32.xlu0 %v641, 68
      %v958 = vpop.permute.xlu0 %957
      %960 = vrot.lane.b32.xlu0 %v641, 4
      %v961 = vpop.permute.xlu0 %960
      %vm963 = vcmask 31744
      %v964 = vsel %vm963, %v958, %v961
      %v965 = vld [vmem:[%s8 + $0xa] sm:$0x1]
      %v966 = vlaneseq
      %v967 = vshrl.u32 %v966, 7
      %v968 = vsub.s32 0, %v967
      %v969 = vrot.slane %v965, %v968
      %v970 = vmul.f32 %v964, %v969
      %v971 = vpack.c.bf16 %v970, %v970
      %972 = vst.msk [vmem:[#allocation2 + $0x60] sm:$0xf] %vm353, %v971
      %973 = vrot.lane.b32.xlu0 %v649, 68
      %v974 = vpop.permute.xlu0 %973
      %976 = vrot.lane.b32.xlu0 %v649, 4
      %v977 = vpop.permute.xlu0 %976
      %v979 = vsel %vm963, %v974, %v977
      %v980 = vld [vmem:[%s8 + $0xa] sm:$0x1]
      %v981 = vlaneseq
      %v982 = vshrl.u32 %v981, 7
      %v983 = vsub.s32 0, %v982
      %v984 = vrot.slane %v980, %v983
      %v985 = vmul.f32 %v979, %v984
      %v986 = vpack.c.bf16 %v985, %v985
      %v988 = vrot.slane %v986, 4
      %990 = vst.msk [vmem:[#allocation2 + $0x60] sm:$0xf0] %vm374, %v988
      %991 = vrot.lane.b32.xlu0 %v642, 68
      %v992 = vpop.permute.xlu0 %991
      %994 = vrot.lane.b32.xlu0 %v642, 4
      %v995 = vpop.permute.xlu0 %994
      %v997 = vsel %vm963, %v992, %v995
      %v998 = vld [vmem:[%s8 + $0xa] sm:$0x1]
      %v999 = vlaneseq
      %v1000 = vshrl.u32 %v999, 7
      %v1001 = vsub.s32 0, %v1000
      %v1002 = vrot.slane %v998, %v1001
      %v1003 = vmul.f32 %v997, %v1002
      %v1004 = vpack.c.bf16 %v1003, %v1003
      %1005 = vst.msk [vmem:[#allocation2 + $0x68] sm:$0xf] %vm353, %v1004
      %1006 = vrot.lane.b32.xlu0 %v650, 68
      %v1007 = vpop.permute.xlu0 %1006
      %1009 = vrot.lane.b32.xlu0 %v650, 4
      %v1010 = vpop.permute.xlu0 %1009
      %v1012 = vsel %vm963, %v1007, %v1010
      %v1013 = vld [vmem:[%s8 + $0xa] sm:$0x1]
      %v1014 = vlaneseq
      %v1015 = vshrl.u32 %v1014, 7
      %v1016 = vsub.s32 0, %v1015
      %v1017 = vrot.slane %v1013, %v1016
      %v1018 = vmul.f32 %v1012, %v1017
      %v1019 = vpack.c.bf16 %v1018, %v1018
      %v1021 = vrot.slane %v1019, 4
      %1023 = vst.msk [vmem:[#allocation2 + $0x68] sm:$0xf0] %vm374, %v1021
      %1024 = vrot.lane.b32.xlu0 %v641, 67
      %v1025 = vpop.permute.xlu0 %1024
      %1027 = vrot.lane.b32.xlu0 %v641, 3
      %v1028 = vpop.permute.xlu0 %1027
      %vm1030 = vcmask 23552
      %v1031 = vsel %vm1030, %v1025, %v1028
      %v1032 = vld [vmem:[%s8 + $0xb] sm:$0x1]
      %v1033 = vlaneseq
      %v1034 = vshrl.u32 %v1033, 7
      %v1035 = vsub.s32 0, %v1034
      %v1036 = vrot.slane %v1032, %v1035
      %v1037 = vmul.f32 %v1031, %v1036
      %v1038 = vpack.c.bf16 %v1037, %v1037
      %1039 = vst.msk [vmem:[#allocation2 + $0x70] sm:$0xf] %vm353, %v1038
      %1040 = vrot.lane.b32.xlu0 %v649, 67
      %v1041 = vpop.permute.xlu0 %1040
      %1043 = vrot.lane.b32.xlu0 %v649, 3
      %v1044 = vpop.permute.xlu0 %1043
      %v1046 = vsel %vm1030, %v1041, %v1044
      %v1047 = vld [vmem:[%s8 + $0xb] sm:$0x1]
      %v1048 = vlaneseq
      %v1049 = vshrl.u32 %v1048, 7
      %v1050 = vsub.s32 0, %v1049
      %v1051 = vrot.slane %v1047, %v1050
      %v1052 = vmul.f32 %v1046, %v1051
      %v1053 = vpack.c.bf16 %v1052, %v1052
      %v1055 = vrot.slane %v1053, 4
      %1057 = vst.msk [vmem:[#allocation2 + $0x70] sm:$0xf0] %vm374, %v1055
      %1058 = vrot.lane.b32.xlu0 %v642, 69
      %v1059 = vpop.permute.xlu0 %1058
      %1061 = vrot.lane.b32.xlu0 %v642, 5
      %v1062 = vpop.permute.xlu0 %1061
      %vm1064 = vcmask 39936
      %v1065 = vsel %vm1064, %v1059, %v1062
      %v1066 = vld [vmem:[%s8 + $0x9] sm:$0x1]
      %v1067 = vlaneseq
      %v1068 = vshrl.u32 %v1067, 7
      %v1069 = vsub.s32 0, %v1068
      %v1070 = vrot.slane %v1066, %v1069
      %v1071 = vmul.f32 %v1065, %v1070
      %v1072 = vpack.c.bf16 %v1071, %v1071
      %1073 = vst.msk [vmem:[#allocation2 + $0x78] sm:$0xf] %vm353, %v1072
      %1074 = vrot.lane.b32.xlu0 %v650, 69
      %v1075 = vpop.permute.xlu0 %1074
      %1077 = vrot.lane.b32.xlu0 %v650, 5
      %v1078 = vpop.permute.xlu0 %1077
      %v1080 = vsel %vm1064, %v1075, %v1078
      %v1081 = vld [vmem:[%s8 + $0x9] sm:$0x1]
      %v1082 = vlaneseq
      %v1083 = vshrl.u32 %v1082, 7
      %v1084 = vsub.s32 0, %v1083
      %v1085 = vrot.slane %v1081, %v1084
      %v1086 = vmul.f32 %v1080, %v1085
      %v1087 = vpack.c.bf16 %v1086, %v1086
      %v1089 = vrot.slane %v1087, 4
      %1091 = vst.msk [vmem:[#allocation2 + $0x78] sm:$0xf0] %vm374, %v1089
      %v1092 = vpack.c.bf16 %v643, %v643
      %1093 = vst.msk [vmem:[#allocation2 + $0x80] sm:$0xf] %vm353, %v1092
      %v1094 = vpack.c.bf16 %v651, %v651
      %v1096 = vrot.slane %v1094, 4
      %1098 = vst.msk [vmem:[#allocation2 + $0x80] sm:$0xf0] %vm374, %v1096
      %v1099 = vpack.c.bf16 %v644, %v644
      %1100 = vst.msk [vmem:[#allocation2 + $0x88] sm:$0xf] %vm353, %v1099
      %v1101 = vpack.c.bf16 %v652, %v652
      %v1103 = vrot.slane %v1101, 4
      %1105 = vst.msk [vmem:[#allocation2 + $0x88] sm:$0xf0] %vm374, %v1103
      %1107 = vrot.lane.b32.xlu0 %v643, 127
      %v1108 = vpop.permute.xlu0 %1107
      %1110 = vrot.lane.b32.xlu0 %v643, 63
      %v1111 = vpop.permute.xlu0 %1110
      %v1113 = vsel %vm362, %v1108, %v1111
      %v1114 = vld [vmem:[%s8 + $0xe] sm:$0x1]
      %v1115 = vlaneseq
      %v1116 = vshrl.u32 %v1115, 7
      %v1117 = vsub.s32 0, %v1116
      %v1118 = vrot.slane %v1114, %v1117
      %v1119 = vmul.f32 %v1113, %v1118
      %v1120 = vpack.c.bf16 %v1119, %v1119
      %1121 = vst.msk [vmem:[#allocation2 + $0x90] sm:$0xf] %vm353, %v1120
      %1123 = vrot.lane.b32.xlu0 %v651, 127
      %v1124 = vpop.permute.xlu0 %1123
      %1126 = vrot.lane.b32.xlu0 %v651, 63
      %v1127 = vpop.permute.xlu0 %1126
      %v1129 = vsel %vm362, %v1124, %v1127
      %v1130 = vld [vmem:[%s8 + $0xe] sm:$0x1]
      %v1131 = vlaneseq
      %v1132 = vshrl.u32 %v1131, 7
      %v1133 = vsub.s32 0, %v1132
      %v1134 = vrot.slane %v1130, %v1133
      %v1135 = vmul.f32 %v1129, %v1134
      %v1136 = vpack.c.bf16 %v1135, %v1135
      %v1138 = vrot.slane %v1136, 4
      %1140 = vst.msk [vmem:[#allocation2 + $0x90] sm:$0xf0] %vm374, %v1138
      %1142 = vrot.lane.b32.xlu0 %v644, 65
      %v1143 = vpop.permute.xlu0 %1142
      %1145 = vrot.lane.b32.xlu0 %v644, 1
      %v1146 = vpop.permute.xlu0 %1145
      %v1148 = vsel %vm711, %v1143, %v1146
      %v1149 = vld [vmem:[%s8 + $0xc] sm:$0x1]
      %v1150 = vlaneseq
      %v1151 = vshrl.u32 %v1150, 7
      %v1152 = vsub.s32 0, %v1151
      %v1153 = vrot.slane %v1149, %v1152
      %v1154 = vmul.f32 %v1148, %v1153
      %v1155 = vpack.c.bf16 %v1154, %v1154
      %1156 = vst.msk [vmem:[#allocation2 + $0x98] sm:$0xf] %vm353, %v1155
      %1158 = vrot.lane.b32.xlu0 %v652, 65
      %v1159 = vpop.permute.xlu0 %1158
      %1161 = vrot.lane.b32.xlu0 %v652, 1
      %v1162 = vpop.permute.xlu0 %1161
      %v1164 = vsel %vm711, %v1159, %v1162
      %v1165 = vld [vmem:[%s8 + $0xc] sm:$0x1]
      %v1166 = vlaneseq
      %v1167 = vshrl.u32 %v1166, 7
      %v1168 = vsub.s32 0, %v1167
      %v1169 = vrot.slane %v1165, %v1168
      %v1170 = vmul.f32 %v1164, %v1169
      %v1171 = vpack.c.bf16 %v1170, %v1170
      %v1173 = vrot.slane %v1171, 4
      %1175 = vst.msk [vmem:[#allocation2 + $0x98] sm:$0xf0] %vm374, %v1173
      %v1176 = vpack.c.bf16 %v645, %v645
      %1177 = vst.msk [vmem:[#allocation2 + $0xa0] sm:$0xf] %vm353, %v1176
      %v1178 = vpack.c.bf16 %v653, %v653
      %v1180 = vrot.slane %v1178, 4
      %1182 = vst.msk [vmem:[#allocation2 + $0xa0] sm:$0xf0] %vm374, %v1180
      %v1183 = vpack.c.bf16 %v646, %v646
      %1184 = vst.msk [vmem:[#allocation2 + $0xa8] sm:$0xf] %vm353, %v1183
      %v1185 = vpack.c.bf16 %v654, %v654
      %v1187 = vrot.slane %v1185, 4
      %1189 = vst.msk [vmem:[#allocation2 + $0xa8] sm:$0xf0] %vm374, %v1187
      %1191 = vrot.lane.b32.xlu0 %v645, 127
      %v1192 = vpop.permute.xlu0 %1191
      %1194 = vrot.lane.b32.xlu0 %v645, 63
      %v1195 = vpop.permute.xlu0 %1194
      %v1197 = vsel %vm362, %v1192, %v1195
      %v1198 = vld [vmem:[%s8 + $0xe] sm:$0x1]
      %v1199 = vlaneseq
      %v1200 = vshrl.u32 %v1199, 7
      %v1201 = vsub.s32 0, %v1200
      %v1202 = vrot.slane %v1198, %v1201
      %v1203 = vmul.f32 %v1197, %v1202
      %v1204 = vpack.c.bf16 %v1203, %v1203
      %1205 = vst.msk [vmem:[#allocation2 + $0xb0] sm:$0xf] %vm353, %v1204
      %1207 = vrot.lane.b32.xlu0 %v653, 127
      %v1208 = vpop.permute.xlu0 %1207
      %1210 = vrot.lane.b32.xlu0 %v653, 63
      %v1211 = vpop.permute.xlu0 %1210
      %v1213 = vsel %vm362, %v1208, %v1211
      %v1214 = vld [vmem:[%s8 + $0xe] sm:$0x1]
      %v1215 = vlaneseq
      %v1216 = vshrl.u32 %v1215, 7
      %v1217 = vsub.s32 0, %v1216
      %v1218 = vrot.slane %v1214, %v1217
      %v1219 = vmul.f32 %v1213, %v1218
      %v1220 = vpack.c.bf16 %v1219, %v1219
      %v1222 = vrot.slane %v1220, 4
      %1224 = vst.msk [vmem:[#allocation2 + $0xb0] sm:$0xf0] %vm374, %v1222
      %1226 = vrot.lane.b32.xlu0 %v646, 65
      %v1227 = vpop.permute.xlu0 %1226
      %1229 = vrot.lane.b32.xlu0 %v646, 1
      %v1230 = vpop.permute.xlu0 %1229
      %v1232 = vsel %vm711, %v1227, %v1230
      %v1233 = vld [vmem:[%s8 + $0xc] sm:$0x1]
      %v1234 = vlaneseq
      %v1235 = vshrl.u32 %v1234, 7
      %v1236 = vsub.s32 0, %v1235
      %v1237 = vrot.slane %v1233, %v1236
      %v1238 = vmul.f32 %v1232, %v1237
      %v1239 = vpack.c.bf16 %v1238, %v1238
      %1240 = vst.msk [vmem:[#allocation2 + $0xb8] sm:$0xf] %vm353, %v1239
      %1242 = vrot.lane.b32.xlu0 %v654, 65
      %v1243 = vpop.permute.xlu0 %1242
      %1245 = vrot.lane.b32.xlu0 %v654, 1
      %v1246 = vpop.permute.xlu0 %1245
      %v1248 = vsel %vm711, %v1243, %v1246
      %v1249 = vld [vmem:[%s8 + $0xc] sm:$0x1]
      %v1250 = vlaneseq
      %v1251 = vshrl.u32 %v1250, 7
      %v1252 = vsub.s32 0, %v1251
      %v1253 = vrot.slane %v1249, %v1252
      %v1254 = vmul.f32 %v1248, %v1253
      %v1255 = vpack.c.bf16 %v1254, %v1254
      %v1257 = vrot.slane %v1255, 4
      %1259 = vst.msk [vmem:[#allocation2 + $0xb8] sm:$0xf0] %vm374, %v1257
      %1260 = vrot.lane.b32.xlu0 %v643, 124
      %v1261 = vpop.permute.xlu0 %1260
      %1263 = vrot.lane.b32.xlu0 %v643, 60
      %v1264 = vpop.permute.xlu0 %1263
      %v1266 = vsel %vm382, %v1261, %v1264
      %v1267 = vld [vmem:[%s8 + $0x10] sm:$0x1]
      %v1268 = vlaneseq
      %v1269 = vshrl.u32 %v1268, 7
      %v1270 = vsub.s32 0, %v1269
      %v1271 = vrot.slane %v1267, %v1270
      %v1272 = vmul.f32 %v1266, %v1271
      %v1273 = vpack.c.bf16 %v1272, %v1272
      %1274 = vst.msk [vmem:[#allocation2 + $0xc0] sm:$0xf] %vm353, %v1273
      %1275 = vrot.lane.b32.xlu0 %v651, 124
      %v1276 = vpop.permute.xlu0 %1275
      %1278 = vrot.lane.b32.xlu0 %v651, 60
      %v1279 = vpop.permute.xlu0 %1278
      %v1281 = vsel %vm382, %v1276, %v1279
      %v1282 = vld [vmem:[%s8 + $0x10] sm:$0x1]
      %v1283 = vlaneseq
      %v1284 = vshrl.u32 %v1283, 7
      %v1285 = vsub.s32 0, %v1284
      %v1286 = vrot.slane %v1282, %v1285
      %v1287 = vmul.f32 %v1281, %v1286
      %v1288 = vpack.c.bf16 %v1287, %v1287
      %v1290 = vrot.slane %v1288, 4
      %1292 = vst.msk [vmem:[#allocation2 + $0xc0] sm:$0xf0] %vm374, %v1290
      %1293 = vrot.lane.b32.xlu0 %v644, 124
      %v1294 = vpop.permute.xlu0 %1293
      %1296 = vrot.lane.b32.xlu0 %v644, 60
      %v1297 = vpop.permute.xlu0 %1296
      %v1299 = vsel %vm382, %v1294, %v1297
      %v1300 = vld [vmem:[%s8 + $0x10] sm:$0x1]
      %v1301 = vlaneseq
      %v1302 = vshrl.u32 %v1301, 7
      %v1303 = vsub.s32 0, %v1302
      %v1304 = vrot.slane %v1300, %v1303
      %v1305 = vmul.f32 %v1299, %v1304
      %v1306 = vpack.c.bf16 %v1305, %v1305
      %1307 = vst.msk [vmem:[#allocation2 + $0xc8] sm:$0xf] %vm353, %v1306
      %1308 = vrot.lane.b32.xlu0 %v652, 124
      %v1309 = vpop.permute.xlu0 %1308
      %1311 = vrot.lane.b32.xlu0 %v652, 60
      %v1312 = vpop.permute.xlu0 %1311
      %v1314 = vsel %vm382, %v1309, %v1312
      %v1315 = vld [vmem:[%s8 + $0x10] sm:$0x1]
      %v1316 = vlaneseq
      %v1317 = vshrl.u32 %v1316, 7
      %v1318 = vsub.s32 0, %v1317
      %v1319 = vrot.slane %v1315, %v1318
      %v1320 = vmul.f32 %v1314, %v1319
      %v1321 = vpack.c.bf16 %v1320, %v1320
      %v1323 = vrot.slane %v1321, 4
      %1325 = vst.msk [vmem:[#allocation2 + $0xc8] sm:$0xf0] %vm374, %v1323
      %1326 = vrot.lane.b32.xlu0 %v643, 123
      %v1327 = vpop.permute.xlu0 %1326
      %1329 = vrot.lane.b32.xlu0 %v643, 59
      %v1330 = vpop.permute.xlu0 %1329
      %v1332 = vsel %vm398, %v1327, %v1330
      %v1333 = vld [vmem:[%s8 + $0x11] sm:$0x1]
      %v1334 = vlaneseq
      %v1335 = vshrl.u32 %v1334, 7
      %v1336 = vsub.s32 0, %v1335
      %v1337 = vrot.slane %v1333, %v1336
      %v1338 = vmul.f32 %v1332, %v1337
      %v1339 = vpack.c.bf16 %v1338, %v1338
      %1340 = vst.msk [vmem:[#allocation2 + $0xd0] sm:$0xf] %vm353, %v1339
      %1341 = vrot.lane.b32.xlu0 %v651, 123
      %v1342 = vpop.permute.xlu0 %1341
      %1344 = vrot.lane.b32.xlu0 %v651, 59
      %v1345 = vpop.permute.xlu0 %1344
      %v1347 = vsel %vm398, %v1342, %v1345
      %v1348 = vld [vmem:[%s8 + $0x11] sm:$0x1]
      %v1349 = vlaneseq
      %v1350 = vshrl.u32 %v1349, 7
      %v1351 = vsub.s32 0, %v1350
      %v1352 = vrot.slane %v1348, %v1351
      %v1353 = vmul.f32 %v1347, %v1352
      %v1354 = vpack.c.bf16 %v1353, %v1353
      %v1356 = vrot.slane %v1354, 4
      %1358 = vst.msk [vmem:[#allocation2 + $0xd0] sm:$0xf0] %vm374, %v1356
      %1359 = vrot.lane.b32.xlu0 %v644, 125
      %v1360 = vpop.permute.xlu0 %1359
      %1362 = vrot.lane.b32.xlu0 %v644, 61
      %v1363 = vpop.permute.xlu0 %1362
      %v1365 = vsel %vm929, %v1360, %v1363
      %v1366 = vld [vmem:[%s8 + $0xf] sm:$0x1]
      %v1367 = vlaneseq
      %v1368 = vshrl.u32 %v1367, 7
      %v1369 = vsub.s32 0, %v1368
      %v1370 = vrot.slane %v1366, %v1369
      %v1371 = vmul.f32 %v1365, %v1370
      %v1372 = vpack.c.bf16 %v1371, %v1371
      %1373 = vst.msk [vmem:[#allocation2 + $0xd8] sm:$0xf] %vm353, %v1372
      %1374 = vrot.lane.b32.xlu0 %v652, 125
      %v1375 = vpop.permute.xlu0 %1374
      %1377 = vrot.lane.b32.xlu0 %v652, 61
      %v1378 = vpop.permute.xlu0 %1377
      %v1380 = vsel %vm929, %v1375, %v1378
      %v1381 = vld [vmem:[%s8 + $0xf] sm:$0x1]
      %v1382 = vlaneseq
      %v1383 = vshrl.u32 %v1382, 7
      %v1384 = vsub.s32 0, %v1383
      %v1385 = vrot.slane %v1381, %v1384
      %v1386 = vmul.f32 %v1380, %v1385
      %v1387 = vpack.c.bf16 %v1386, %v1386
      %v1389 = vrot.slane %v1387, 4
      %1391 = vst.msk [vmem:[#allocation2 + $0xd8] sm:$0xf0] %vm374, %v1389
      %1392 = vrot.lane.b32.xlu0 %v645, 68
      %v1393 = vpop.permute.xlu0 %1392
      %1395 = vrot.lane.b32.xlu0 %v645, 4
      %v1396 = vpop.permute.xlu0 %1395
      %v1398 = vsel %vm963, %v1393, %v1396
      %v1399 = vld [vmem:[%s8 + $0xa] sm:$0x1]
      %v1400 = vlaneseq
      %v1401 = vshrl.u32 %v1400, 7
      %v1402 = vsub.s32 0, %v1401
      %v1403 = vrot.slane %v1399, %v1402
      %v1404 = vmul.f32 %v1398, %v1403
      %v1405 = vpack.c.bf16 %v1404, %v1404
      %1406 = vst.msk [vmem:[#allocation2 + $0xe0] sm:$0xf] %vm353, %v1405
      %1407 = vrot.lane.b32.xlu0 %v653, 68
      %v1408 = vpop.permute.xlu0 %1407
      %1410 = vrot.lane.b32.xlu0 %v653, 4
      %v1411 = vpop.permute.xlu0 %1410
      %v1413 = vsel %vm963, %v1408, %v1411
      %v1414 = vld [vmem:[%s8 + $0xa] sm:$0x1]
      %v1415 = vlaneseq
      %v1416 = vshrl.u32 %v1415, 7
      %v1417 = vsub.s32 0, %v1416
      %v1418 = vrot.slane %v1414, %v1417
      %v1419 = vmul.f32 %v1413, %v1418
      %v1420 = vpack.c.bf16 %v1419, %v1419
      %v1422 = vrot.slane %v1420, 4
      %1424 = vst.msk [vmem:[#allocation2 + $0xe0] sm:$0xf0] %vm374, %v1422
      %1425 = vrot.lane.b32.xlu0 %v646, 68
      %v1426 = vpop.permute.xlu0 %1425
      %1428 = vrot.lane.b32.xlu0 %v646, 4
      %v1429 = vpop.permute.xlu0 %1428
      %v1431 = vsel %vm963, %v1426, %v1429
      %v1432 = vld [vmem:[%s8 + $0xa] sm:$0x1]
      %v1433 = vlaneseq
      %v1434 = vshrl.u32 %v1433, 7
      %v1435 = vsub.s32 0, %v1434
      %v1436 = vrot.slane %v1432, %v1435
      %v1437 = vmul.f32 %v1431, %v1436
      %v1438 = vpack.c.bf16 %v1437, %v1437
      %1439 = vst.msk [vmem:[#allocation2 + $0xe8] sm:$0xf] %vm353, %v1438
      %1440 = vrot.lane.b32.xlu0 %v654, 68
      %v1441 = vpop.permute.xlu0 %1440
      %1443 = vrot.lane.b32.xlu0 %v654, 4
      %v1444 = vpop.permute.xlu0 %1443
      %v1446 = vsel %vm963, %v1441, %v1444
      %v1447 = vld [vmem:[%s8 + $0xa] sm:$0x1]
      %v1448 = vlaneseq
      %v1449 = vshrl.u32 %v1448, 7
      %v1450 = vsub.s32 0, %v1449
      %v1451 = vrot.slane %v1447, %v1450
      %v1452 = vmul.f32 %v1446, %v1451
      %v1453 = vpack.c.bf16 %v1452, %v1452
      %v1455 = vrot.slane %v1453, 4
      %1457 = vst.msk [vmem:[#allocation2 + $0xe8] sm:$0xf0] %vm374, %v1455
      %1458 = vrot.lane.b32.xlu0 %v645, 67
      %v1459 = vpop.permute.xlu0 %1458
      %1461 = vrot.lane.b32.xlu0 %v645, 3
      %v1462 = vpop.permute.xlu0 %1461
      %v1464 = vsel %vm1030, %v1459, %v1462
      %v1465 = vld [vmem:[%s8 + $0xb] sm:$0x1]
      %v1466 = vlaneseq
      %v1467 = vshrl.u32 %v1466, 7
      %v1468 = vsub.s32 0, %v1467
      %v1469 = vrot.slane %v1465, %v1468
      %v1470 = vmul.f32 %v1464, %v1469
      %v1471 = vpack.c.bf16 %v1470, %v1470
      %1472 = vst.msk [vmem:[#allocation2 + $0xf0] sm:$0xf] %vm353, %v1471
      %1473 = vrot.lane.b32.xlu0 %v653, 67
      %v1474 = vpop.permute.xlu0 %1473
      %1476 = vrot.lane.b32.xlu0 %v653, 3
      %v1477 = vpop.permute.xlu0 %1476
      %v1479 = vsel %vm1030, %v1474, %v1477
      %v1480 = vld [vmem:[%s8 + $0xb] sm:$0x1]
      %v1481 = vlaneseq
      %v1482 = vshrl.u32 %v1481, 7
      %v1483 = vsub.s32 0, %v1482
      %v1484 = vrot.slane %v1480, %v1483
      %v1485 = vmul.f32 %v1479, %v1484
      %v1486 = vpack.c.bf16 %v1485, %v1485
      %v1488 = vrot.slane %v1486, 4
      %1490 = vst.msk [vmem:[#allocation2 + $0xf0] sm:$0xf0] %vm374, %v1488
      %1491 = vrot.lane.b32.xlu0 %v646, 69
      %v1492 = vpop.permute.xlu0 %1491
      %1494 = vrot.lane.b32.xlu0 %v646, 5
      %v1495 = vpop.permute.xlu0 %1494
      %v1497 = vsel %vm1064, %v1492, %v1495
      %v1498 = vld [vmem:[%s8 + $0x9] sm:$0x1]
      %v1499 = vlaneseq
      %v1500 = vshrl.u32 %v1499, 7
      %v1501 = vsub.s32 0, %v1500
      %v1502 = vrot.slane %v1498, %v1501
      %v1503 = vmul.f32 %v1497, %v1502
      %v1504 = vpack.c.bf16 %v1503, %v1503
      %1505 = vst.msk [vmem:[#allocation2 + $0xf8] sm:$0xf] %vm353, %v1504
      %1506 = vrot.lane.b32.xlu0 %v654, 69
      %v1507 = vpop.permute.xlu0 %1506
      %1509 = vrot.lane.b32.xlu0 %v654, 5
      %v1510 = vpop.permute.xlu0 %1509
      %v1512 = vsel %vm1064, %v1507, %v1510
      %v1513 = vld [vmem:[%s8 + $0x9] sm:$0x1]
      %v1514 = vlaneseq
      %v1515 = vshrl.u32 %v1514, 7
      %v1516 = vsub.s32 0, %v1515
      %v1517 = vrot.slane %v1513, %v1516
      %v1518 = vmul.f32 %v1512, %v1517
      %v1519 = vpack.c.bf16 %v1518, %v1518
      %v1521 = vrot.slane %v1519, 4
      %1523 = vst.msk [vmem:[#allocation2 + $0xf8] sm:$0xf0] %vm374, %v1521
      %1524 = vrot.lane.b32.xlu0 %v639, 112
      %v1525 = vpop.permute.xlu0 %1524
      %1527 = vrot.lane.b32.xlu0 %v639, 48
      %v1528 = vpop.permute.xlu0 %1527
      %v1530 = vsel %vm417, %v1525, %v1528
      %v1531 = vld [vmem:[%s8 + $0x16] sm:$0x1]
      %v1532 = vlaneseq
      %v1533 = vshrl.u32 %v1532, 7
      %v1534 = vsub.s32 0, %v1533
      %v1535 = vrot.slane %v1531, %v1534
      %v1536 = vmul.f32 %v1530, %v1535
      %v1537 = vpack.c.bf16 %v1536, %v1536
      %1538 = vst.msk [vmem:[#allocation2 + $0x100] sm:$0xf] %vm353, %v1537
      %1539 = vrot.lane.b32.xlu0 %v647, 112
      %v1540 = vpop.permute.xlu0 %1539
      %1542 = vrot.lane.b32.xlu0 %v647, 48
      %v1543 = vpop.permute.xlu0 %1542
      %v1545 = vsel %vm417, %v1540, %v1543
      %v1546 = vld [vmem:[%s8 + $0x16] sm:$0x1]
      %v1547 = vlaneseq
      %v1548 = vshrl.u32 %v1547, 7
      %v1549 = vsub.s32 0, %v1548
      %v1550 = vrot.slane %v1546, %v1549
      %v1551 = vmul.f32 %v1545, %v1550
      %v1552 = vpack.c.bf16 %v1551, %v1551
      %v1554 = vrot.slane %v1552, 4
      %1556 = vst.msk [vmem:[#allocation2 + $0x100] sm:$0xf0] %vm374, %v1554
      %1557 = vrot.lane.b32.xlu0 %v640, 112
      %v1558 = vpop.permute.xlu0 %1557
      %1560 = vrot.lane.b32.xlu0 %v640, 48
      %v1561 = vpop.permute.xlu0 %1560
      %v1563 = vsel %vm417, %v1558, %v1561
      %v1564 = vld [vmem:[%s8 + $0x16] sm:$0x1]
      %v1565 = vlaneseq
      %v1566 = vshrl.u32 %v1565, 7
      %v1567 = vsub.s32 0, %v1566
      %v1568 = vrot.slane %v1564, %v1567
      %v1569 = vmul.f32 %v1563, %v1568
      %v1570 = vpack.c.bf16 %v1569, %v1569
      %1571 = vst.msk [vmem:[#allocation2 + $0x108] sm:$0xf] %vm353, %v1570
      %1572 = vrot.lane.b32.xlu0 %v648, 112
      %v1573 = vpop.permute.xlu0 %1572
      %1575 = vrot.lane.b32.xlu0 %v648, 48
      %v1576 = vpop.permute.xlu0 %1575
      %v1578 = vsel %vm417, %v1573, %v1576
      %v1579 = vld [vmem:[%s8 + $0x16] sm:$0x1]
      %v1580 = vlaneseq
      %v1581 = vshrl.u32 %v1580, 7
      %v1582 = vsub.s32 0, %v1581
      %v1583 = vrot.slane %v1579, %v1582
      %v1584 = vmul.f32 %v1578, %v1583
      %v1585 = vpack.c.bf16 %v1584, %v1584
      %v1587 = vrot.slane %v1585, 4
      %1589 = vst.msk [vmem:[#allocation2 + $0x108] sm:$0xf0] %vm374, %v1587
      %1590 = vrot.lane.b32.xlu0 %v639, 111
      %v1591 = vpop.permute.xlu0 %1590
      %1593 = vrot.lane.b32.xlu0 %v639, 47
      %v1594 = vpop.permute.xlu0 %1593
      %v1596 = vsel %vm433, %v1591, %v1594
      %v1597 = vld [vmem:[%s8 + $0x17] sm:$0x1]
      %v1598 = vlaneseq
      %v1599 = vshrl.u32 %v1598, 7
      %v1600 = vsub.s32 0, %v1599
      %v1601 = vrot.slane %v1597, %v1600
      %v1602 = vmul.f32 %v1596, %v1601
      %v1603 = vpack.c.bf16 %v1602, %v1602
      %1604 = vst.msk [vmem:[#allocation2 + $0x110] sm:$0xf] %vm353, %v1603
      %1605 = vrot.lane.b32.xlu0 %v647, 111
      %v1606 = vpop.permute.xlu0 %1605
      %1608 = vrot.lane.b32.xlu0 %v647, 47
      %v1609 = vpop.permute.xlu0 %1608
      %v1611 = vsel %vm433, %v1606, %v1609
      %v1612 = vld [vmem:[%s8 + $0x17] sm:$0x1]
      %v1613 = vlaneseq
      %v1614 = vshrl.u32 %v1613, 7
      %v1615 = vsub.s32 0, %v1614
      %v1616 = vrot.slane %v1612, %v1615
      %v1617 = vmul.f32 %v1611, %v1616
      %v1618 = vpack.c.bf16 %v1617, %v1617
      %v1620 = vrot.slane %v1618, 4
      %1622 = vst.msk [vmem:[#allocation2 + $0x110] sm:$0xf0] %vm374, %v1620
      %1623 = vrot.lane.b32.xlu0 %v640, 113
      %v1624 = vpop.permute.xlu0 %1623
      %1626 = vrot.lane.b32.xlu0 %v640, 49
      %v1627 = vpop.permute.xlu0 %1626
      %vm1629 = vcmask 400384
      %v1630 = vsel %vm1629, %v1624, %v1627
      %v1631 = vld [vmem:[%s8 + $0x15] sm:$0x1]
      %v1632 = vlaneseq
      %v1633 = vshrl.u32 %v1632, 7
      %v1634 = vsub.s32 0, %v1633
      %v1635 = vrot.slane %v1631, %v1634
      %v1636 = vmul.f32 %v1630, %v1635
      %v1637 = vpack.c.bf16 %v1636, %v1636
      %1638 = vst.msk [vmem:[#allocation2 + $0x118] sm:$0xf] %vm353, %v1637
      %1639 = vrot.lane.b32.xlu0 %v648, 113
      %v1640 = vpop.permute.xlu0 %1639
      %1642 = vrot.lane.b32.xlu0 %v648, 49
      %v1643 = vpop.permute.xlu0 %1642
      %v1645 = vsel %vm1629, %v1640, %v1643
      %v1646 = vld [vmem:[%s8 + $0x15] sm:$0x1]
      %v1647 = vlaneseq
      %v1648 = vshrl.u32 %v1647, 7
      %v1649 = vsub.s32 0, %v1648
      %v1650 = vrot.slane %v1646, %v1649
      %v1651 = vmul.f32 %v1645, %v1650
      %v1652 = vpack.c.bf16 %v1651, %v1651
      %v1654 = vrot.slane %v1652, 4
      %1656 = vst.msk [vmem:[#allocation2 + $0x118] sm:$0xf0] %vm374, %v1654
      %1657 = vrot.lane.b32.xlu0 %v641, 112
      %v1658 = vpop.permute.xlu0 %1657
      %1660 = vrot.lane.b32.xlu0 %v641, 48
      %v1661 = vpop.permute.xlu0 %1660
      %v1663 = vsel %vm417, %v1658, %v1661
      %v1664 = vld [vmem:[%s8 + $0x16] sm:$0x1]
      %v1665 = vlaneseq
      %v1666 = vshrl.u32 %v1665, 7
      %v1667 = vsub.s32 0, %v1666
      %v1668 = vrot.slane %v1664, %v1667
      %v1669 = vmul.f32 %v1663, %v1668
      %v1670 = vpack.c.bf16 %v1669, %v1669
      %1671 = vst.msk [vmem:[#allocation2 + $0x120] sm:$0xf] %vm353, %v1670
      %1672 = vrot.lane.b32.xlu0 %v649, 112
      %v1673 = vpop.permute.xlu0 %1672
      %1675 = vrot.lane.b32.xlu0 %v649, 48
      %v1676 = vpop.permute.xlu0 %1675
      %v1678 = vsel %vm417, %v1673, %v1676
      %v1679 = vld [vmem:[%s8 + $0x16] sm:$0x1]
      %v1680 = vlaneseq
      %v1681 = vshrl.u32 %v1680, 7
      %v1682 = vsub.s32 0, %v1681
      %v1683 = vrot.slane %v1679, %v1682
      %v1684 = vmul.f32 %v1678, %v1683
      %v1685 = vpack.c.bf16 %v1684, %v1684
      %v1687 = vrot.slane %v1685, 4
      %1689 = vst.msk [vmem:[#allocation2 + $0x120] sm:$0xf0] %vm374, %v1687
      %1690 = vrot.lane.b32.xlu0 %v642, 112
      %v1691 = vpop.permute.xlu0 %1690
      %1693 = vrot.lane.b32.xlu0 %v642, 48
      %v1694 = vpop.permute.xlu0 %1693
      %v1696 = vsel %vm417, %v1691, %v1694
      %v1697 = vld [vmem:[%s8 + $0x16] sm:$0x1]
      %v1698 = vlaneseq
      %v1699 = vshrl.u32 %v1698, 7
      %v1700 = vsub.s32 0, %v1699
      %v1701 = vrot.slane %v1697, %v1700
      %v1702 = vmul.f32 %v1696, %v1701
      %v1703 = vpack.c.bf16 %v1702, %v1702
      %1704 = vst.msk [vmem:[#allocation2 + $0x128] sm:$0xf] %vm353, %v1703
      %1705 = vrot.lane.b32.xlu0 %v650, 112
      %v1706 = vpop.permute.xlu0 %1705
      %1708 = vrot.lane.b32.xlu0 %v650, 48
      %v1709 = vpop.permute.xlu0 %1708
      %v1711 = vsel %vm417, %v1706, %v1709
      %v1712 = vld [vmem:[%s8 + $0x16] sm:$0x1]
      %v1713 = vlaneseq
      %v1714 = vshrl.u32 %v1713, 7
      %v1715 = vsub.s32 0, %v1714
      %v1716 = vrot.slane %v1712, %v1715
      %v1717 = vmul.f32 %v1711, %v1716
      %v1718 = vpack.c.bf16 %v1717, %v1717
      %v1720 = vrot.slane %v1718, 4
      %1722 = vst.msk [vmem:[#allocation2 + $0x128] sm:$0xf0] %vm374, %v1720
      %1723 = vrot.lane.b32.xlu0 %v641, 111
      %v1724 = vpop.permute.xlu0 %1723
      %1726 = vrot.lane.b32.xlu0 %v641, 47
      %v1727 = vpop.permute.xlu0 %1726
      %v1729 = vsel %vm433, %v1724, %v1727
      %v1730 = vld [vmem:[%s8 + $0x17] sm:$0x1]
      %v1731 = vlaneseq
      %v1732 = vshrl.u32 %v1731, 7
      %v1733 = vsub.s32 0, %v1732
      %v1734 = vrot.slane %v1730, %v1733
      %v1735 = vmul.f32 %v1729, %v1734
      %v1736 = vpack.c.bf16 %v1735, %v1735
      %1737 = vst.msk [vmem:[#allocation2 + $0x130] sm:$0xf] %vm353, %v1736
      %1738 = vrot.lane.b32.xlu0 %v649, 111
      %v1739 = vpop.permute.xlu0 %1738
      %1741 = vrot.lane.b32.xlu0 %v649, 47
      %v1742 = vpop.permute.xlu0 %1741
      %v1744 = vsel %vm433, %v1739, %v1742
      %v1745 = vld [vmem:[%s8 + $0x17] sm:$0x1]
      %v1746 = vlaneseq
      %v1747 = vshrl.u32 %v1746, 7
      %v1748 = vsub.s32 0, %v1747
      %v1749 = vrot.slane %v1745, %v1748
      %v1750 = vmul.f32 %v1744, %v1749
      %v1751 = vpack.c.bf16 %v1750, %v1750
      %v1753 = vrot.slane %v1751, 4
      %1755 = vst.msk [vmem:[#allocation2 + $0x130] sm:$0xf0] %vm374, %v1753
      %1756 = vrot.lane.b32.xlu0 %v642, 113
      %v1757 = vpop.permute.xlu0 %1756
      %1759 = vrot.lane.b32.xlu0 %v642, 49
      %v1760 = vpop.permute.xlu0 %1759
      %v1762 = vsel %vm1629, %v1757, %v1760
      %v1763 = vld [vmem:[%s8 + $0x15] sm:$0x1]
      %v1764 = vlaneseq
      %v1765 = vshrl.u32 %v1764, 7
      %v1766 = vsub.s32 0, %v1765
      %v1767 = vrot.slane %v1763, %v1766
      %v1768 = vmul.f32 %v1762, %v1767
      %v1769 = vpack.c.bf16 %v1768, %v1768
      %1770 = vst.msk [vmem:[#allocation2 + $0x138] sm:$0xf] %vm353, %v1769
      %1771 = vrot.lane.b32.xlu0 %v650, 113
      %v1772 = vpop.permute.xlu0 %1771
      %1774 = vrot.lane.b32.xlu0 %v650, 49
      %v1775 = vpop.permute.xlu0 %1774
      %v1777 = vsel %vm1629, %v1772, %v1775
      %v1778 = vld [vmem:[%s8 + $0x15] sm:$0x1]
      %v1779 = vlaneseq
      %v1780 = vshrl.u32 %v1779, 7
      %v1781 = vsub.s32 0, %v1780
      %v1782 = vrot.slane %v1778, %v1781
      %v1783 = vmul.f32 %v1777, %v1782
      %v1784 = vpack.c.bf16 %v1783, %v1783
      %v1786 = vrot.slane %v1784, 4
      %1788 = vst.msk [vmem:[#allocation2 + $0x138] sm:$0xf0] %vm374, %v1786
      %1789 = vrot.lane.b32.xlu0 %v639, 108
      %v1790 = vpop.permute.xlu0 %1789
      %1792 = vrot.lane.b32.xlu0 %v639, 44
      %v1793 = vpop.permute.xlu0 %1792
      %v1795 = vsel %vm452, %v1790, %v1793
      %v1796 = vld [vmem:[%s8 + $0x19] sm:$0x1]
      %v1797 = vlaneseq
      %v1798 = vshrl.u32 %v1797, 7
      %v1799 = vsub.s32 0, %v1798
      %v1800 = vrot.slane %v1796, %v1799
      %v1801 = vmul.f32 %v1795, %v1800
      %v1802 = vpack.c.bf16 %v1801, %v1801
      %1803 = vst.msk [vmem:[#allocation2 + $0x140] sm:$0xf] %vm353, %v1802
      %1804 = vrot.lane.b32.xlu0 %v647, 108
      %v1805 = vpop.permute.xlu0 %1804
      %1807 = vrot.lane.b32.xlu0 %v647, 44
      %v1808 = vpop.permute.xlu0 %1807
      %v1810 = vsel %vm452, %v1805, %v1808
      %v1811 = vld [vmem:[%s8 + $0x19] sm:$0x1]
      %v1812 = vlaneseq
      %v1813 = vshrl.u32 %v1812, 7
      %v1814 = vsub.s32 0, %v1813
      %v1815 = vrot.slane %v1811, %v1814
      %v1816 = vmul.f32 %v1810, %v1815
      %v1817 = vpack.c.bf16 %v1816, %v1816
      %v1819 = vrot.slane %v1817, 4
      %1821 = vst.msk [vmem:[#allocation2 + $0x140] sm:$0xf0] %vm374, %v1819
      %1822 = vrot.lane.b32.xlu0 %v640, 108
      %v1823 = vpop.permute.xlu0 %1822
      %1825 = vrot.lane.b32.xlu0 %v640, 44
      %v1826 = vpop.permute.xlu0 %1825
      %v1828 = vsel %vm452, %v1823, %v1826
      %v1829 = vld [vmem:[%s8 + $0x19] sm:$0x1]
      %v1830 = vlaneseq
      %v1831 = vshrl.u32 %v1830, 7
      %v1832 = vsub.s32 0, %v1831
      %v1833 = vrot.slane %v1829, %v1832
      %v1834 = vmul.f32 %v1828, %v1833
      %v1835 = vpack.c.bf16 %v1834, %v1834
      %1836 = vst.msk [vmem:[#allocation2 + $0x148] sm:$0xf] %vm353, %v1835
      %1837 = vrot.lane.b32.xlu0 %v648, 108
      %v1838 = vpop.permute.xlu0 %1837
      %1840 = vrot.lane.b32.xlu0 %v648, 44
      %v1841 = vpop.permute.xlu0 %1840
      %v1843 = vsel %vm452, %v1838, %v1841
      %v1844 = vld [vmem:[%s8 + $0x19] sm:$0x1]
      %v1845 = vlaneseq
      %v1846 = vshrl.u32 %v1845, 7
      %v1847 = vsub.s32 0, %v1846
      %v1848 = vrot.slane %v1844, %v1847
      %v1849 = vmul.f32 %v1843, %v1848
      %v1850 = vpack.c.bf16 %v1849, %v1849
      %v1852 = vrot.slane %v1850, 4
      %1854 = vst.msk [vmem:[#allocation2 + $0x148] sm:$0xf0] %vm374, %v1852
      %1855 = vrot.lane.b32.xlu0 %v639, 107
      %v1856 = vpop.permute.xlu0 %1855
      %1858 = vrot.lane.b32.xlu0 %v639, 43
      %v1859 = vpop.permute.xlu0 %1858
      %v1861 = vsel %vm468, %v1856, %v1859
      %v1862 = vld [vmem:[%s8 + $0x1a] sm:$0x1]
      %v1863 = vlaneseq
      %v1864 = vshrl.u32 %v1863, 7
      %v1865 = vsub.s32 0, %v1864
      %v1866 = vrot.slane %v1862, %v1865
      %v1867 = vmul.f32 %v1861, %v1866
      %v1868 = vpack.c.bf16 %v1867, %v1867
      %1869 = vst.msk [vmem:[#allocation2 + $0x150] sm:$0xf] %vm353, %v1868
      %1870 = vrot.lane.b32.xlu0 %v647, 107
      %v1871 = vpop.permute.xlu0 %1870
      %1873 = vrot.lane.b32.xlu0 %v647, 43
      %v1874 = vpop.permute.xlu0 %1873
      %v1876 = vsel %vm468, %v1871, %v1874
      %v1877 = vld [vmem:[%s8 + $0x1a] sm:$0x1]
      %v1878 = vlaneseq
      %v1879 = vshrl.u32 %v1878, 7
      %v1880 = vsub.s32 0, %v1879
      %v1881 = vrot.slane %v1877, %v1880
      %v1882 = vmul.f32 %v1876, %v1881
      %v1883 = vpack.c.bf16 %v1882, %v1882
      %v1885 = vrot.slane %v1883, 4
      %1887 = vst.msk [vmem:[#allocation2 + $0x150] sm:$0xf0] %vm374, %v1885
      %1888 = vrot.lane.b32.xlu0 %v640, 109
      %v1889 = vpop.permute.xlu0 %1888
      %1891 = vrot.lane.b32.xlu0 %v640, 45
      %v1892 = vpop.permute.xlu0 %1891
      %vm1894 = vcmask 367616
      %v1895 = vsel %vm1894, %v1889, %v1892
      %v1896 = vld [vmem:[%s8 + $0x18] sm:$0x1]
      %v1897 = vlaneseq
      %v1898 = vshrl.u32 %v1897, 7
      %v1899 = vsub.s32 0, %v1898
      %v1900 = vrot.slane %v1896, %v1899
      %v1901 = vmul.f32 %v1895, %v1900
      %v1902 = vpack.c.bf16 %v1901, %v1901
      %1903 = vst.msk [vmem:[#allocation2 + $0x158] sm:$0xf] %vm353, %v1902
      %1904 = vrot.lane.b32.xlu0 %v648, 109
      %v1905 = vpop.permute.xlu0 %1904
      %1907 = vrot.lane.b32.xlu0 %v648, 45
      %v1908 = vpop.permute.xlu0 %1907
      %v1910 = vsel %vm1894, %v1905, %v1908
      %v1911 = vld [vmem:[%s8 + $0x18] sm:$0x1]
      %v1912 = vlaneseq
      %v1913 = vshrl.u32 %v1912, 7
      %v1914 = vsub.s32 0, %v1913
      %v1915 = vrot.slane %v1911, %v1914
      %v1916 = vmul.f32 %v1910, %v1915
      %v1917 = vpack.c.bf16 %v1916, %v1916
      %v1919 = vrot.slane %v1917, 4
      %1921 = vst.msk [vmem:[#allocation2 + $0x158] sm:$0xf0] %vm374, %v1919
      %1922 = vrot.lane.b32.xlu0 %v641, 116
      %v1923 = vpop.permute.xlu0 %1922
      %1925 = vrot.lane.b32.xlu0 %v641, 52
      %v1926 = vpop.permute.xlu0 %1925
      %vm1928 = vcmask 424960
      %v1929 = vsel %vm1928, %v1923, %v1926
      %v1930 = vld [vmem:[%s8 + $0x13] sm:$0x1]
      %v1931 = vlaneseq
      %v1932 = vshrl.u32 %v1931, 7
      %v1933 = vsub.s32 0, %v1932
      %v1934 = vrot.slane %v1930, %v1933
      %v1935 = vmul.f32 %v1929, %v1934
      %v1936 = vpack.c.bf16 %v1935, %v1935
      %1937 = vst.msk [vmem:[#allocation2 + $0x160] sm:$0xf] %vm353, %v1936
      %1938 = vrot.lane.b32.xlu0 %v649, 116
      %v1939 = vpop.permute.xlu0 %1938
      %1941 = vrot.lane.b32.xlu0 %v649, 52
      %v1942 = vpop.permute.xlu0 %1941
      %v1944 = vsel %vm1928, %v1939, %v1942
      %v1945 = vld [vmem:[%s8 + $0x13] sm:$0x1]
      %v1946 = vlaneseq
      %v1947 = vshrl.u32 %v1946, 7
      %v1948 = vsub.s32 0, %v1947
      %v1949 = vrot.slane %v1945, %v1948
      %v1950 = vmul.f32 %v1944, %v1949
      %v1951 = vpack.c.bf16 %v1950, %v1950
      %v1953 = vrot.slane %v1951, 4
      %1955 = vst.msk [vmem:[#allocation2 + $0x160] sm:$0xf0] %vm374, %v1953
      %1956 = vrot.lane.b32.xlu0 %v642, 116
      %v1957 = vpop.permute.xlu0 %1956
      %1959 = vrot.lane.b32.xlu0 %v642, 52
      %v1960 = vpop.permute.xlu0 %1959
      %v1962 = vsel %vm1928, %v1957, %v1960
      %v1963 = vld [vmem:[%s8 + $0x13] sm:$0x1]
      %v1964 = vlaneseq
      %v1965 = vshrl.u32 %v1964, 7
      %v1966 = vsub.s32 0, %v1965
      %v1967 = vrot.slane %v1963, %v1966
      %v1968 = vmul.f32 %v1962, %v1967
      %v1969 = vpack.c.bf16 %v1968, %v1968
      %1970 = vst.msk [vmem:[#allocation2 + $0x168] sm:$0xf] %vm353, %v1969
      %1971 = vrot.lane.b32.xlu0 %v650, 116
      %v1972 = vpop.permute.xlu0 %1971
      %1974 = vrot.lane.b32.xlu0 %v650, 52
      %v1975 = vpop.permute.xlu0 %1974
      %v1977 = vsel %vm1928, %v1972, %v1975
      %v1978 = vld [vmem:[%s8 + $0x13] sm:$0x1]
      %v1979 = vlaneseq
      %v1980 = vshrl.u32 %v1979, 7
      %v1981 = vsub.s32 0, %v1980
      %v1982 = vrot.slane %v1978, %v1981
      %v1983 = vmul.f32 %v1977, %v1982
      %v1984 = vpack.c.bf16 %v1983, %v1983
      %v1986 = vrot.slane %v1984, 4
      %1988 = vst.msk [vmem:[#allocation2 + $0x168] sm:$0xf0] %vm374, %v1986
      %1989 = vrot.lane.b32.xlu0 %v641, 115
      %v1990 = vpop.permute.xlu0 %1989
      %1992 = vrot.lane.b32.xlu0 %v641, 51
      %v1993 = vpop.permute.xlu0 %1992
      %vm1995 = vcmask 416768
      %v1996 = vsel %vm1995, %v1990, %v1993
      %v1997 = vld [vmem:[%s8 + $0x14] sm:$0x1]
      %v1998 = vlaneseq
      %v1999 = vshrl.u32 %v1998, 7
      %v2000 = vsub.s32 0, %v1999
      %v2001 = vrot.slane %v1997, %v2000
      %v2002 = vmul.f32 %v1996, %v2001
      %v2003 = vpack.c.bf16 %v2002, %v2002
      %2004 = vst.msk [vmem:[#allocation2 + $0x170] sm:$0xf] %vm353, %v2003
      %2005 = vrot.lane.b32.xlu0 %v649, 115
      %v2006 = vpop.permute.xlu0 %2005
      %2008 = vrot.lane.b32.xlu0 %v649, 51
      %v2009 = vpop.permute.xlu0 %2008
      %v2011 = vsel %vm1995, %v2006, %v2009
      %v2012 = vld [vmem:[%s8 + $0x14] sm:$0x1]
      %v2013 = vlaneseq
      %v2014 = vshrl.u32 %v2013, 7
      %v2015 = vsub.s32 0, %v2014
      %v2016 = vrot.slane %v2012, %v2015
      %v2017 = vmul.f32 %v2011, %v2016
      %v2018 = vpack.c.bf16 %v2017, %v2017
      %v2020 = vrot.slane %v2018, 4
      %2022 = vst.msk [vmem:[#allocation2 + $0x170] sm:$0xf0] %vm374, %v2020
      %2023 = vrot.lane.b32.xlu0 %v642, 117
      %v2024 = vpop.permute.xlu0 %2023
      %2026 = vrot.lane.b32.xlu0 %v642, 53
      %v2027 = vpop.permute.xlu0 %2026
      %vm2029 = vcmask 433152
      %v2030 = vsel %vm2029, %v2024, %v2027
      %v2031 = vld [vmem:[%s8 + $0x12] sm:$0x1]
      %v2032 = vlaneseq
      %v2033 = vshrl.u32 %v2032, 7
      %v2034 = vsub.s32 0, %v2033
      %v2035 = vrot.slane %v2031, %v2034
      %v2036 = vmul.f32 %v2030, %v2035
      %v2037 = vpack.c.bf16 %v2036, %v2036
      %2038 = vst.msk [vmem:[#allocation2 + $0x178] sm:$0xf] %vm353, %v2037
      %2039 = vrot.lane.b32.xlu0 %v650, 117
      %v2040 = vpop.permute.xlu0 %2039
      %2042 = vrot.lane.b32.xlu0 %v650, 53
      %v2043 = vpop.permute.xlu0 %2042
      %v2045 = vsel %vm2029, %v2040, %v2043
      %v2046 = vld [vmem:[%s8 + $0x12] sm:$0x1]
      %v2047 = vlaneseq
      %v2048 = vshrl.u32 %v2047, 7
      %v2049 = vsub.s32 0, %v2048
      %v2050 = vrot.slane %v2046, %v2049
      %v2051 = vmul.f32 %v2045, %v2050
      %v2052 = vpack.c.bf16 %v2051, %v2051
      %v2054 = vrot.slane %v2052, 4
      %2056 = vst.msk [vmem:[#allocation2 + $0x178] sm:$0xf0] %vm374, %v2054
      %2057 = vrot.lane.b32.xlu0 %v643, 80
      %v2058 = vpop.permute.xlu0 %2057
      %2060 = vrot.lane.b32.xlu0 %v643, 16
      %v2061 = vpop.permute.xlu0 %2060
      %vm2063 = vcmask 130048
      %v2064 = vsel %vm2063, %v2058, %v2061
      %v2065 = vld [vmem:[%s8 + $0x4] sm:$0x1]
      %v2066 = vlaneseq
      %v2067 = vshrl.u32 %v2066, 7
      %v2068 = vsub.s32 0, %v2067
      %v2069 = vrot.slane %v2065, %v2068
      %v2070 = vmul.f32 %v2064, %v2069
      %v2071 = vpack.c.bf16 %v2070, %v2070
      %2072 = vst.msk [vmem:[#allocation2 + $0x180] sm:$0xf] %vm353, %v2071
      %2073 = vrot.lane.b32.xlu0 %v651, 80
      %v2074 = vpop.permute.xlu0 %2073
      %2076 = vrot.lane.b32.xlu0 %v651, 16
      %v2077 = vpop.permute.xlu0 %2076
      %v2079 = vsel %vm2063, %v2074, %v2077
      %v2080 = vld [vmem:[%s8 + $0x4] sm:$0x1]
      %v2081 = vlaneseq
      %v2082 = vshrl.u32 %v2081, 7
      %v2083 = vsub.s32 0, %v2082
      %v2084 = vrot.slane %v2080, %v2083
      %v2085 = vmul.f32 %v2079, %v2084
      %v2086 = vpack.c.bf16 %v2085, %v2085
      %v2088 = vrot.slane %v2086, 4
      %2090 = vst.msk [vmem:[#allocation2 + $0x180] sm:$0xf0] %vm374, %v2088
      %2091 = vrot.lane.b32.xlu0 %v644, 80
      %v2092 = vpop.permute.xlu0 %2091
      %2094 = vrot.lane.b32.xlu0 %v644, 16
      %v2095 = vpop.permute.xlu0 %2094
      %v2097 = vsel %vm2063, %v2092, %v2095
      %v2098 = vld [vmem:[%s8 + $0x4] sm:$0x1]
      %v2099 = vlaneseq
      %v2100 = vshrl.u32 %v2099, 7
      %v2101 = vsub.s32 0, %v2100
      %v2102 = vrot.slane %v2098, %v2101
      %v2103 = vmul.f32 %v2097, %v2102
      %v2104 = vpack.c.bf16 %v2103, %v2103
      %2105 = vst.msk [vmem:[#allocation2 + $0x188] sm:$0xf] %vm353, %v2104
      %2106 = vrot.lane.b32.xlu0 %v652, 80
      %v2107 = vpop.permute.xlu0 %2106
      %2109 = vrot.lane.b32.xlu0 %v652, 16
      %v2110 = vpop.permute.xlu0 %2109
      %v2112 = vsel %vm2063, %v2107, %v2110
      %v2113 = vld [vmem:[%s8 + $0x4] sm:$0x1]
      %v2114 = vlaneseq
      %v2115 = vshrl.u32 %v2114, 7
      %v2116 = vsub.s32 0, %v2115
      %v2117 = vrot.slane %v2113, %v2116
      %v2118 = vmul.f32 %v2112, %v2117
      %v2119 = vpack.c.bf16 %v2118, %v2118
      %v2121 = vrot.slane %v2119, 4
      %2123 = vst.msk [vmem:[#allocation2 + $0x188] sm:$0xf0] %vm374, %v2121
      %2124 = vrot.lane.b32.xlu0 %v643, 79
      %v2125 = vpop.permute.xlu0 %2124
      %2127 = vrot.lane.b32.xlu0 %v643, 15
      %v2128 = vpop.permute.xlu0 %2127
      %vm2130 = vcmask 121856
      %v2131 = vsel %vm2130, %v2125, %v2128
      %v2132 = vld [vmem:[%s8 + $0x5] sm:$0x1]
      %v2133 = vlaneseq
      %v2134 = vshrl.u32 %v2133, 7
      %v2135 = vsub.s32 0, %v2134
      %v2136 = vrot.slane %v2132, %v2135
      %v2137 = vmul.f32 %v2131, %v2136
      %v2138 = vpack.c.bf16 %v2137, %v2137
      %2139 = vst.msk [vmem:[#allocation2 + $0x190] sm:$0xf] %vm353, %v2138
      %2140 = vrot.lane.b32.xlu0 %v651, 79
      %v2141 = vpop.permute.xlu0 %2140
      %2143 = vrot.lane.b32.xlu0 %v651, 15
      %v2144 = vpop.permute.xlu0 %2143
      %v2146 = vsel %vm2130, %v2141, %v2144
      %v2147 = vld [vmem:[%s8 + $0x5] sm:$0x1]
      %v2148 = vlaneseq
      %v2149 = vshrl.u32 %v2148, 7
      %v2150 = vsub.s32 0, %v2149
      %v2151 = vrot.slane %v2147, %v2150
      %v2152 = vmul.f32 %v2146, %v2151
      %v2153 = vpack.c.bf16 %v2152, %v2152
      %v2155 = vrot.slane %v2153, 4
      %2157 = vst.msk [vmem:[#allocation2 + $0x190] sm:$0xf0] %vm374, %v2155
      %2158 = vrot.lane.b32.xlu0 %v644, 81
      %v2159 = vpop.permute.xlu0 %2158
      %2161 = vrot.lane.b32.xlu0 %v644, 17
      %v2162 = vpop.permute.xlu0 %2161
      %vm2164 = vcmask 138240
      %v2165 = vsel %vm2164, %v2159, %v2162
      %v2166 = vld [vmem:[%s8 + $0x3] sm:$0x1]
      %v2167 = vlaneseq
      %v2168 = vshrl.u32 %v2167, 7
      %v2169 = vsub.s32 0, %v2168
      %v2170 = vrot.slane %v2166, %v2169
      %v2171 = vmul.f32 %v2165, %v2170
      %v2172 = vpack.c.bf16 %v2171, %v2171
      %2173 = vst.msk [vmem:[#allocation2 + $0x198] sm:$0xf] %vm353, %v2172
      %2174 = vrot.lane.b32.xlu0 %v652, 81
      %v2175 = vpop.permute.xlu0 %2174
      %2177 = vrot.lane.b32.xlu0 %v652, 17
      %v2178 = vpop.permute.xlu0 %2177
      %v2180 = vsel %vm2164, %v2175, %v2178
      %v2181 = vld [vmem:[%s8 + $0x3] sm:$0x1]
      %v2182 = vlaneseq
      %v2183 = vshrl.u32 %v2182, 7
      %v2184 = vsub.s32 0, %v2183
      %v2185 = vrot.slane %v2181, %v2184
      %v2186 = vmul.f32 %v2180, %v2185
      %v2187 = vpack.c.bf16 %v2186, %v2186
      %v2189 = vrot.slane %v2187, 4
      %2191 = vst.msk [vmem:[#allocation2 + $0x198] sm:$0xf0] %vm374, %v2189
      %2192 = vrot.lane.b32.xlu0 %v645, 80
      %v2193 = vpop.permute.xlu0 %2192
      %2195 = vrot.lane.b32.xlu0 %v645, 16
      %v2196 = vpop.permute.xlu0 %2195
      %v2198 = vsel %vm2063, %v2193, %v2196
      %v2199 = vld [vmem:[%s8 + $0x4] sm:$0x1]
      %v2200 = vlaneseq
      %v2201 = vshrl.u32 %v2200, 7
      %v2202 = vsub.s32 0, %v2201
      %v2203 = vrot.slane %v2199, %v2202
      %v2204 = vmul.f32 %v2198, %v2203
      %v2205 = vpack.c.bf16 %v2204, %v2204
      %2206 = vst.msk [vmem:[#allocation2 + $0x1a0] sm:$0xf] %vm353, %v2205
      %2207 = vrot.lane.b32.xlu0 %v653, 80
      %v2208 = vpop.permute.xlu0 %2207
      %2210 = vrot.lane.b32.xlu0 %v653, 16
      %v2211 = vpop.permute.xlu0 %2210
      %v2213 = vsel %vm2063, %v2208, %v2211
      %v2214 = vld [vmem:[%s8 + $0x4] sm:$0x1]
      %v2215 = vlaneseq
      %v2216 = vshrl.u32 %v2215, 7
      %v2217 = vsub.s32 0, %v2216
      %v2218 = vrot.slane %v2214, %v2217
      %v2219 = vmul.f32 %v2213, %v2218
      %v2220 = vpack.c.bf16 %v2219, %v2219
      %v2222 = vrot.slane %v2220, 4
      %2224 = vst.msk [vmem:[#allocation2 + $0x1a0] sm:$0xf0] %vm374, %v2222
      %2225 = vrot.lane.b32.xlu0 %v646, 80
      %v2226 = vpop.permute.xlu0 %2225
      %2228 = vrot.lane.b32.xlu0 %v646, 16
      %v2229 = vpop.permute.xlu0 %2228
      %v2231 = vsel %vm2063, %v2226, %v2229
      %v2232 = vld [vmem:[%s8 + $0x4] sm:$0x1]
      %v2233 = vlaneseq
      %v2234 = vshrl.u32 %v2233, 7
      %v2235 = vsub.s32 0, %v2234
      %v2236 = vrot.slane %v2232, %v2235
      %v2237 = vmul.f32 %v2231, %v2236
      %v2238 = vpack.c.bf16 %v2237, %v2237
      %2239 = vst.msk [vmem:[#allocation2 + $0x1a8] sm:$0xf] %vm353, %v2238
      %2240 = vrot.lane.b32.xlu0 %v654, 80
      %v2241 = vpop.permute.xlu0 %2240
      %2243 = vrot.lane.b32.xlu0 %v654, 16
      %v2244 = vpop.permute.xlu0 %2243
      %v2246 = vsel %vm2063, %v2241, %v2244
      %v2247 = vld [vmem:[%s8 + $0x4] sm:$0x1]
      %v2248 = vlaneseq
      %v2249 = vshrl.u32 %v2248, 7
      %v2250 = vsub.s32 0, %v2249
      %v2251 = vrot.slane %v2247, %v2250
      %v2252 = vmul.f32 %v2246, %v2251
      %v2253 = vpack.c.bf16 %v2252, %v2252
      %v2255 = vrot.slane %v2253, 4
      %2257 = vst.msk [vmem:[#allocation2 + $0x1a8] sm:$0xf0] %vm374, %v2255
      %2258 = vrot.lane.b32.xlu0 %v645, 79
      %v2259 = vpop.permute.xlu0 %2258
      %2261 = vrot.lane.b32.xlu0 %v645, 15
      %v2262 = vpop.permute.xlu0 %2261
      %v2264 = vsel %vm2130, %v2259, %v2262
      %v2265 = vld [vmem:[%s8 + $0x5] sm:$0x1]
      %v2266 = vlaneseq
      %v2267 = vshrl.u32 %v2266, 7
      %v2268 = vsub.s32 0, %v2267
      %v2269 = vrot.slane %v2265, %v2268
      %v2270 = vmul.f32 %v2264, %v2269
      %v2271 = vpack.c.bf16 %v2270, %v2270
      %2272 = vst.msk [vmem:[#allocation2 + $0x1b0] sm:$0xf] %vm353, %v2271
      %2273 = vrot.lane.b32.xlu0 %v653, 79
      %v2274 = vpop.permute.xlu0 %2273
      %2276 = vrot.lane.b32.xlu0 %v653, 15
      %v2277 = vpop.permute.xlu0 %2276
      %v2279 = vsel %vm2130, %v2274, %v2277
      %v2280 = vld [vmem:[%s8 + $0x5] sm:$0x1]
      %v2281 = vlaneseq
      %v2282 = vshrl.u32 %v2281, 7
      %v2283 = vsub.s32 0, %v2282
      %v2284 = vrot.slane %v2280, %v2283
      %v2285 = vmul.f32 %v2279, %v2284
      %v2286 = vpack.c.bf16 %v2285, %v2285
      %v2288 = vrot.slane %v2286, 4
      %2290 = vst.msk [vmem:[#allocation2 + $0x1b0] sm:$0xf0] %vm374, %v2288
      %2291 = vrot.lane.b32.xlu0 %v646, 81
      %v2292 = vpop.permute.xlu0 %2291
      %2294 = vrot.lane.b32.xlu0 %v646, 17
      %v2295 = vpop.permute.xlu0 %2294
      %v2297 = vsel %vm2164, %v2292, %v2295
      %v2298 = vld [vmem:[%s8 + $0x3] sm:$0x1]
      %v2299 = vlaneseq
      %v2300 = vshrl.u32 %v2299, 7
      %v2301 = vsub.s32 0, %v2300
      %v2302 = vrot.slane %v2298, %v2301
      %v2303 = vmul.f32 %v2297, %v2302
      %v2304 = vpack.c.bf16 %v2303, %v2303
      %2305 = vst.msk [vmem:[#allocation2 + $0x1b8] sm:$0xf] %vm353, %v2304
      %2306 = vrot.lane.b32.xlu0 %v654, 81
      %v2307 = vpop.permute.xlu0 %2306
      %2309 = vrot.lane.b32.xlu0 %v654, 17
      %v2310 = vpop.permute.xlu0 %2309
      %v2312 = vsel %vm2164, %v2307, %v2310
      %v2313 = vld [vmem:[%s8 + $0x3] sm:$0x1]
      %v2314 = vlaneseq
      %v2315 = vshrl.u32 %v2314, 7
      %v2316 = vsub.s32 0, %v2315
      %v2317 = vrot.slane %v2313, %v2316
      %v2318 = vmul.f32 %v2312, %v2317
      %v2319 = vpack.c.bf16 %v2318, %v2318
      %v2321 = vrot.slane %v2319, 4
      %2323 = vst.msk [vmem:[#allocation2 + $0x1b8] sm:$0xf0] %vm374, %v2321
      %2324 = vrot.lane.b32.xlu0 %v643, 76
      %v2325 = vpop.permute.xlu0 %2324
      %2327 = vrot.lane.b32.xlu0 %v643, 12
      %v2328 = vpop.permute.xlu0 %2327
      %vm2330 = vcmask 97280
      %v2331 = vsel %vm2330, %v2325, %v2328
      %v2332 = vld [vmem:[%s8 + $0x7] sm:$0x1]
      %v2333 = vlaneseq
      %v2334 = vshrl.u32 %v2333, 7
      %v2335 = vsub.s32 0, %v2334
      %v2336 = vrot.slane %v2332, %v2335
      %v2337 = vmul.f32 %v2331, %v2336
      %v2338 = vpack.c.bf16 %v2337, %v2337
      %2339 = vst.msk [vmem:[#allocation2 + $0x1c0] sm:$0xf] %vm353, %v2338
      %2340 = vrot.lane.b32.xlu0 %v651, 76
      %v2341 = vpop.permute.xlu0 %2340
      %2343 = vrot.lane.b32.xlu0 %v651, 12
      %v2344 = vpop.permute.xlu0 %2343
      %v2346 = vsel %vm2330, %v2341, %v2344
      %v2347 = vld [vmem:[%s8 + $0x7] sm:$0x1]
      %v2348 = vlaneseq
      %v2349 = vshrl.u32 %v2348, 7
      %v2350 = vsub.s32 0, %v2349
      %v2351 = vrot.slane %v2347, %v2350
      %v2352 = vmul.f32 %v2346, %v2351
      %v2353 = vpack.c.bf16 %v2352, %v2352
      %v2355 = vrot.slane %v2353, 4
      %2357 = vst.msk [vmem:[#allocation2 + $0x1c0] sm:$0xf0] %vm374, %v2355
      %2358 = vrot.lane.b32.xlu0 %v644, 76
      %v2359 = vpop.permute.xlu0 %2358
      %2361 = vrot.lane.b32.xlu0 %v644, 12
      %v2362 = vpop.permute.xlu0 %2361
      %v2364 = vsel %vm2330, %v2359, %v2362
      %v2365 = vld [vmem:[%s8 + $0x7] sm:$0x1]
      %v2366 = vlaneseq
      %v2367 = vshrl.u32 %v2366, 7
      %v2368 = vsub.s32 0, %v2367
      %v2369 = vrot.slane %v2365, %v2368
      %v2370 = vmul.f32 %v2364, %v2369
      %v2371 = vpack.c.bf16 %v2370, %v2370
      %2372 = vst.msk [vmem:[#allocation2 + $0x1c8] sm:$0xf] %vm353, %v2371
      %2373 = vrot.lane.b32.xlu0 %v652, 76
      %v2374 = vpop.permute.xlu0 %2373
      %2376 = vrot.lane.b32.xlu0 %v652, 12
      %v2377 = vpop.permute.xlu0 %2376
      %v2379 = vsel %vm2330, %v2374, %v2377
      %v2380 = vld [vmem:[%s8 + $0x7] sm:$0x1]
      %v2381 = vlaneseq
      %v2382 = vshrl.u32 %v2381, 7
      %v2383 = vsub.s32 0, %v2382
      %v2384 = vrot.slane %v2380, %v2383
      %v2385 = vmul.f32 %v2379, %v2384
      %v2386 = vpack.c.bf16 %v2385, %v2385
      %v2388 = vrot.slane %v2386, 4
      %2390 = vst.msk [vmem:[#allocation2 + $0x1c8] sm:$0xf0] %vm374, %v2388
      %2391 = vrot.lane.b32.xlu0 %v643, 75
      %v2392 = vpop.permute.xlu0 %2391
      %2394 = vrot.lane.b32.xlu0 %v643, 11
      %v2395 = vpop.permute.xlu0 %2394
      %vm2397 = vcmask 89088
      %v2398 = vsel %vm2397, %v2392, %v2395
      %v2399 = vld [vmem:[%s8 + $0x8] sm:$0x1]
      %v2400 = vlaneseq
      %v2401 = vshrl.u32 %v2400, 7
      %v2402 = vsub.s32 0, %v2401
      %v2403 = vrot.slane %v2399, %v2402
      %v2404 = vmul.f32 %v2398, %v2403
      %v2405 = vpack.c.bf16 %v2404, %v2404
      %2406 = vst.msk [vmem:[#allocation2 + $0x1d0] sm:$0xf] %vm353, %v2405
      %2407 = vrot.lane.b32.xlu0 %v651, 75
      %v2408 = vpop.permute.xlu0 %2407
      %2410 = vrot.lane.b32.xlu0 %v651, 11
      %v2411 = vpop.permute.xlu0 %2410
      %v2413 = vsel %vm2397, %v2408, %v2411
      %v2414 = vld [vmem:[%s8 + $0x8] sm:$0x1]
      %v2415 = vlaneseq
      %v2416 = vshrl.u32 %v2415, 7
      %v2417 = vsub.s32 0, %v2416
      %v2418 = vrot.slane %v2414, %v2417
      %v2419 = vmul.f32 %v2413, %v2418
      %v2420 = vpack.c.bf16 %v2419, %v2419
      %v2422 = vrot.slane %v2420, 4
      %2424 = vst.msk [vmem:[#allocation2 + $0x1d0] sm:$0xf0] %vm374, %v2422
      %2425 = vrot.lane.b32.xlu0 %v644, 77
      %v2426 = vpop.permute.xlu0 %2425
      %2428 = vrot.lane.b32.xlu0 %v644, 13
      %v2429 = vpop.permute.xlu0 %2428
      %vm2431 = vcmask 105472
      %v2432 = vsel %vm2431, %v2426, %v2429
      %v2433 = vld [vmem:[%s8 + $0x6] sm:$0x1]
      %v2434 = vlaneseq
      %v2435 = vshrl.u32 %v2434, 7
      %v2436 = vsub.s32 0, %v2435
      %v2437 = vrot.slane %v2433, %v2436
      %v2438 = vmul.f32 %v2432, %v2437
      %v2439 = vpack.c.bf16 %v2438, %v2438
      %2440 = vst.msk [vmem:[#allocation2 + $0x1d8] sm:$0xf] %vm353, %v2439
      %2441 = vrot.lane.b32.xlu0 %v652, 77
      %v2442 = vpop.permute.xlu0 %2441
      %2444 = vrot.lane.b32.xlu0 %v652, 13
      %v2445 = vpop.permute.xlu0 %2444
      %v2447 = vsel %vm2431, %v2442, %v2445
      %v2448 = vld [vmem:[%s8 + $0x6] sm:$0x1]
      %v2449 = vlaneseq
      %v2450 = vshrl.u32 %v2449, 7
      %v2451 = vsub.s32 0, %v2450
      %v2452 = vrot.slane %v2448, %v2451
      %v2453 = vmul.f32 %v2447, %v2452
      %v2454 = vpack.c.bf16 %v2453, %v2453
      %v2456 = vrot.slane %v2454, 4
      %2458 = vst.msk [vmem:[#allocation2 + $0x1d8] sm:$0xf0] %vm374, %v2456
      %2459 = vrot.lane.b32.xlu0 %v645, 84
      %v2460 = vpop.permute.xlu0 %2459
      %2462 = vrot.lane.b32.xlu0 %v645, 20
      %v2463 = vpop.permute.xlu0 %2462
      %vm2465 = vcmask 162816
      %v2466 = vsel %vm2465, %v2460, %v2463
      %v2467 = vld [vmem:[%s8 + $0x1] sm:$0x1]
      %v2468 = vlaneseq
      %v2469 = vshrl.u32 %v2468, 7
      %v2470 = vsub.s32 0, %v2469
      %v2471 = vrot.slane %v2467, %v2470
      %v2472 = vmul.f32 %v2466, %v2471
      %v2473 = vpack.c.bf16 %v2472, %v2472
      %2474 = vst.msk [vmem:[#allocation2 + $0x1e0] sm:$0xf] %vm353, %v2473
      %2475 = vrot.lane.b32.xlu0 %v653, 84
      %v2476 = vpop.permute.xlu0 %2475
      %2478 = vrot.lane.b32.xlu0 %v653, 20
      %v2479 = vpop.permute.xlu0 %2478
      %v2481 = vsel %vm2465, %v2476, %v2479
      %v2482 = vld [vmem:[%s8 + $0x1] sm:$0x1]
      %v2483 = vlaneseq
      %v2484 = vshrl.u32 %v2483, 7
      %v2485 = vsub.s32 0, %v2484
      %v2486 = vrot.slane %v2482, %v2485
      %v2487 = vmul.f32 %v2481, %v2486
      %v2488 = vpack.c.bf16 %v2487, %v2487
      %v2490 = vrot.slane %v2488, 4
      %2492 = vst.msk [vmem:[#allocation2 + $0x1e0] sm:$0xf0] %vm374, %v2490
      %2493 = vrot.lane.b32.xlu0 %v646, 84
      %v2494 = vpop.permute.xlu0 %2493
      %2496 = vrot.lane.b32.xlu0 %v646, 20
      %v2497 = vpop.permute.xlu0 %2496
      %v2499 = vsel %vm2465, %v2494, %v2497
      %v2500 = vld [vmem:[%s8 + $0x1] sm:$0x1]
      %v2501 = vlaneseq
      %v2502 = vshrl.u32 %v2501, 7
      %v2503 = vsub.s32 0, %v2502
      %v2504 = vrot.slane %v2500, %v2503
      %v2505 = vmul.f32 %v2499, %v2504
      %v2506 = vpack.c.bf16 %v2505, %v2505
      %2507 = vst.msk [vmem:[#allocation2 + $0x1e8] sm:$0xf] %vm353, %v2506
      %2508 = vrot.lane.b32.xlu0 %v654, 84
      %v2509 = vpop.permute.xlu0 %2508
      %2511 = vrot.lane.b32.xlu0 %v654, 20
      %v2512 = vpop.permute.xlu0 %2511
      %v2514 = vsel %vm2465, %v2509, %v2512
      %v2515 = vld [vmem:[%s8 + $0x1] sm:$0x1]
      %v2516 = vlaneseq
      %v2517 = vshrl.u32 %v2516, 7
      %v2518 = vsub.s32 0, %v2517
      %v2519 = vrot.slane %v2515, %v2518
      %v2520 = vmul.f32 %v2514, %v2519
      %v2521 = vpack.c.bf16 %v2520, %v2520
      %v2523 = vrot.slane %v2521, 4
      %2525 = vst.msk [vmem:[#allocation2 + $0x1e8] sm:$0xf0] %vm374, %v2523
      %2526 = vrot.lane.b32.xlu0 %v645, 83
      %v2527 = vpop.permute.xlu0 %2526
      %2529 = vrot.lane.b32.xlu0 %v645, 19
      %v2530 = vpop.permute.xlu0 %2529
      %vm2532 = vcmask 154624
      %v2533 = vsel %vm2532, %v2527, %v2530
      %v2534 = vld [vmem:[%s8 + $0x2] sm:$0x1]
      %v2535 = vlaneseq
      %v2536 = vshrl.u32 %v2535, 7
      %v2537 = vsub.s32 0, %v2536
      %v2538 = vrot.slane %v2534, %v2537
      %v2539 = vmul.f32 %v2533, %v2538
      %v2540 = vpack.c.bf16 %v2539, %v2539
      %2541 = vst.msk [vmem:[#allocation2 + $0x1f0] sm:$0xf] %vm353, %v2540
      %2542 = vrot.lane.b32.xlu0 %v653, 83
      %v2543 = vpop.permute.xlu0 %2542
      %2545 = vrot.lane.b32.xlu0 %v653, 19
      %v2546 = vpop.permute.xlu0 %2545
      %v2548 = vsel %vm2532, %v2543, %v2546
      %v2549 = vld [vmem:[%s8 + $0x2] sm:$0x1]
      %v2550 = vlaneseq
      %v2551 = vshrl.u32 %v2550, 7
      %v2552 = vsub.s32 0, %v2551
      %v2553 = vrot.slane %v2549, %v2552
      %v2554 = vmul.f32 %v2548, %v2553
      %v2555 = vpack.c.bf16 %v2554, %v2554
      %v2557 = vrot.slane %v2555, 4
      %2559 = vst.msk [vmem:[#allocation2 + $0x1f0] sm:$0xf0] %vm374, %v2557
      %2560 = vrot.lane.b32.xlu0 %v646, 85
      %v2561 = vpop.permute.xlu0 %2560
      %2563 = vrot.lane.b32.xlu0 %v646, 21
      %v2564 = vpop.permute.xlu0 %2563
      %vm2566 = vcmask 171008
      %v2567 = vsel %vm2566, %v2561, %v2564
      %v2568 = vld [vmem:[%s8] sm:$0x1]
      %v2569 = vlaneseq
      %v2570 = vshrl.u32 %v2569, 7
      %v2571 = vsub.s32 0, %v2570
      %v2572 = vrot.slane %v2568, %v2571
      %v2573 = vmul.f32 %v2567, %v2572
      %v2574 = vpack.c.bf16 %v2573, %v2573
      %2575 = vst.msk [vmem:[#allocation2 + $0x1f8] sm:$0xf] %vm353, %v2574
      %2576 = vrot.lane.b32.xlu0 %v654, 85
      %v2577 = vpop.permute.xlu0 %2576
      %2579 = vrot.lane.b32.xlu0 %v654, 21
      %v2580 = vpop.permute.xlu0 %2579
      %v2582 = vsel %vm2566, %v2577, %v2580
      %v2583 = vld [vmem:[%s8] sm:$0x1]
      %v2584 = vlaneseq
      %v2585 = vshrl.u32 %v2584, 7
      %v2586 = vsub.s32 0, %v2585
      %v2587 = vrot.slane %v2583, %v2586
      %v2588 = vmul.f32 %v2582, %v2587
      %v2589 = vpack.c.bf16 %v2588, %v2588
      %v2591 = vrot.slane %v2589, 4
      %2593 = vst.msk [vmem:[#allocation2 + $0x1f8] sm:$0xf0] %vm374, %v2591
      %v2594 = vld [vmem:[%s3] sm:$0xff]
      %v2595 = vld [vmem:[%s3 + $0x8] sm:$0xff]
      %v2596 = vld [vmem:[%s3 + $0x10] sm:$0xff]
      %v2597 = vld [vmem:[%s3 + $0x18] sm:$0xff]
      %v2598 = vld [vmem:[%s3 + $0x20] sm:$0xff]
      %v2599 = vld [vmem:[%s3 + $0x28] sm:$0xff]
      %v2600 = vld [vmem:[%s3 + $0x30] sm:$0xff]
      %v2601 = vld [vmem:[%s3 + $0x38] sm:$0xff]
      %v2602 = vld [vmem:[%s3 + $0x40] sm:$0xff]
      %v2603 = vld [vmem:[%s3 + $0x48] sm:$0xff]
      %v2604 = vld [vmem:[%s3 + $0x50] sm:$0xff]
      %v2605 = vld [vmem:[%s3 + $0x58] sm:$0xff]
      %v2606 = vld [vmem:[%s3 + $0x60] sm:$0xff]
      %v2607 = vld [vmem:[%s3 + $0x68] sm:$0xff]
      %v2608 = vld [vmem:[%s3 + $0x70] sm:$0xff]
      %v2609 = vld [vmem:[%s3 + $0x78] sm:$0xff]
      %v2610 = vld [vmem:[%s3 + $0x80] sm:$0xff]
      %v2611 = vld [vmem:[%s3 + $0x88] sm:$0xff]
      %v2612 = vld [vmem:[%s3 + $0x90] sm:$0xff]
      %v2613 = vld [vmem:[%s3 + $0x98] sm:$0xff]
      %v2614 = vld [vmem:[%s3 + $0xa0] sm:$0xff]
      %v2615 = vld [vmem:[%s3 + $0xa8] sm:$0xff]
      %v2616 = vld [vmem:[%s3 + $0xb0] sm:$0xff]
      %v2617 = vld [vmem:[%s3 + $0xb8] sm:$0xff]
      %v2618 = vld [vmem:[%s3 + $0xc0] sm:$0xff]
      %v2619 = vld [vmem:[%s3 + $0xc8] sm:$0xff]
      %v2620 = vld [vmem:[%s3 + $0xd0] sm:$0xff]
      %v2621 = vld [vmem:[%s3 + $0xd8] sm:$0xff]
      %v2622 = vld [vmem:[%s3 + $0xe0] sm:$0xff]
      %v2623 = vld [vmem:[%s3 + $0xe8] sm:$0xff]
      %v2624 = vld [vmem:[%s3 + $0xf0] sm:$0xff]
      %v2625 = vld [vmem:[%s3 + $0xf8] sm:$0xff]
      %v2626 = vld [vmem:[#allocation2] sm:$0xff]
      %v2627 = vld [vmem:[#allocation2 + $0x8] sm:$0xff]
      %v2628 = vld [vmem:[#allocation2 + $0x10] sm:$0xff]
      %v2629 = vld [vmem:[#allocation2 + $0x18] sm:$0xff]
      %v2630 = vld [vmem:[#allocation2 + $0x20] sm:$0xff]
      %v2631 = vld [vmem:[#allocation2 + $0x28] sm:$0xff]
      %v2632 = vld [vmem:[#allocation2 + $0x30] sm:$0xff]
      %v2633 = vld [vmem:[#allocation2 + $0x38] sm:$0xff]
      %v2634 = vld [vmem:[#allocation2 + $0x40] sm:$0xff]
      %v2635 = vld [vmem:[#allocation2 + $0x48] sm:$0xff]
      %v2636 = vld [vmem:[#allocation2 + $0x50] sm:$0xff]
      %v2637 = vld [vmem:[#allocation2 + $0x58] sm:$0xff]
      %v2638 = vld [vmem:[#allocation2 + $0x60] sm:$0xff]
      %v2639 = vld [vmem:[#allocation2 + $0x68] sm:$0xff]
      %v2640 = vld [vmem:[#allocation2 + $0x70] sm:$0xff]
      %v2641 = vld [vmem:[#allocation2 + $0x78] sm:$0xff]
      %v2642 = vld [vmem:[#allocation2 + $0x80] sm:$0xff]
      %v2643 = vld [vmem:[#allocation2 + $0x88] sm:$0xff]
      %v2644 = vld [vmem:[#allocation2 + $0x90] sm:$0xff]
      %v2645 = vld [vmem:[#allocation2 + $0x98] sm:$0xff]
      %v2646 = vld [vmem:[#allocation2 + $0xa0] sm:$0xff]
      %v2647 = vld [vmem:[#allocation2 + $0xa8] sm:$0xff]
      %v2648 = vld [vmem:[#allocation2 + $0xb0] sm:$0xff]
      %v2649 = vld [vmem:[#allocation2 + $0xb8] sm:$0xff]
      %v2650 = vld [vmem:[#allocation2 + $0xc0] sm:$0xff]
      %v2651 = vld [vmem:[#allocation2 + $0xc8] sm:$0xff]
      %v2652 = vld [vmem:[#allocation2 + $0xd0] sm:$0xff]
      %v2653 = vld [vmem:[#allocation2 + $0xd8] sm:$0xff]
      %v2654 = vld [vmem:[#allocation2 + $0xe0] sm:$0xff]
      %v2655 = vld [vmem:[#allocation2 + $0xe8] sm:$0xff]
      %v2656 = vld [vmem:[#allocation2 + $0xf0] sm:$0xff]
      %v2657 = vld [vmem:[#allocation2 + $0xf8] sm:$0xff]
      %v2658 = vld [vmem:[#allocation2 + $0x100] sm:$0xff]
      %v2659 = vld [vmem:[#allocation2 + $0x108] sm:$0xff]
      %v2660 = vld [vmem:[#allocation2 + $0x110] sm:$0xff]
      %v2661 = vld [vmem:[#allocation2 + $0x118] sm:$0xff]
      %v2662 = vld [vmem:[#allocation2 + $0x120] sm:$0xff]
      %v2663 = vld [vmem:[#allocation2 + $0x128] sm:$0xff]
      %v2664 = vld [vmem:[#allocation2 + $0x130] sm:$0xff]
      %v2665 = vld [vmem:[#allocation2 + $0x138] sm:$0xff]
      %v2666 = vld [vmem:[#allocation2 + $0x140] sm:$0xff]
      %v2667 = vld [vmem:[#allocation2 + $0x148] sm:$0xff]
      %v2668 = vld [vmem:[#allocation2 + $0x150] sm:$0xff]
      %v2669 = vld [vmem:[#allocation2 + $0x158] sm:$0xff]
      %v2670 = vld [vmem:[#allocation2 + $0x160] sm:$0xff]
      %v2671 = vld [vmem:[#allocation2 + $0x168] sm:$0xff]
      %v2672 = vld [vmem:[#allocation2 + $0x170] sm:$0xff]
      %v2673 = vld [vmem:[#allocation2 + $0x178] sm:$0xff]
      %v2674 = vld [vmem:[#allocation2 + $0x180] sm:$0xff]
      %v2675 = vld [vmem:[#allocation2 + $0x188] sm:$0xff]
      %v2676 = vld [vmem:[#allocation2 + $0x190] sm:$0xff]
      %v2677 = vld [vmem:[#allocation2 + $0x198] sm:$0xff]
      %v2678 = vld [vmem:[#allocation2 + $0x1a0] sm:$0xff]
      %v2679 = vld [vmem:[#allocation2 + $0x1a8] sm:$0xff]
      %v2680 = vld [vmem:[#allocation2 + $0x1b0] sm:$0xff]
      %v2681 = vld [vmem:[#allocation2 + $0x1b8] sm:$0xff]
      %v2682 = vld [vmem:[#allocation2 + $0x1c0] sm:$0xff]
      %v2683 = vld [vmem:[#allocation2 + $0x1c8] sm:$0xff]
      %v2684 = vld [vmem:[#allocation2 + $0x1d0] sm:$0xff]
      %v2685 = vld [vmem:[#allocation2 + $0x1d8] sm:$0xff]
      %v2686 = vld [vmem:[#allocation2 + $0x1e0] sm:$0xff]
      %v2687 = vld [vmem:[#allocation2 + $0x1e8] sm:$0xff]
      %v2688 = vld [vmem:[#allocation2 + $0x1f0] sm:$0xff]
      %v2689 = vld [vmem:[#allocation2 + $0x1f8] sm:$0xff]
      %v2690 = vld [vmem:[%s6] sm:$0xff]
      %v2691 = vld [vmem:[%s6 + $0x8] sm:$0xff]
      %v2692 = vld [vmem:[%s6 + $0x10] sm:$0xff]
      %v2693 = vld [vmem:[%s6 + $0x18] sm:$0xff]
      %v2694 = vld [vmem:[%s6 + $0x20] sm:$0xff]
      %v2695 = vld [vmem:[%s6 + $0x28] sm:$0xff]
      %v2696 = vld [vmem:[%s6 + $0x30] sm:$0xff]
      %v2697 = vld [vmem:[%s6 + $0x38] sm:$0xff]
      %2699 = vset.pattern.permute.xlu0 0
      %2700 = vperm.xlu0 %2699, %v2690
      %v2701 = vpop.permute.xlu0 %2700
      %2704 = vset.pattern.permute.xlu0 0
      %2705 = vperm.xlu0 %2704, %v2691
      %v2706 = vpop.permute.xlu0 %2705
      %2709 = vset.pattern.permute.xlu0 0
      %2710 = vperm.xlu0 %2709, %v2692
      %v2711 = vpop.permute.xlu0 %2710
      %2714 = vset.pattern.permute.xlu0 0
      %2715 = vperm.xlu0 %2714, %v2693
      %v2716 = vpop.permute.xlu0 %2715
      %2719 = vset.pattern.permute.xlu0 0
      %2720 = vperm.xlu0 %2719, %v2694
      %v2721 = vpop.permute.xlu0 %2720
      %2724 = vset.pattern.permute.xlu0 0
      %2725 = vperm.xlu0 %2724, %v2695
      %v2726 = vpop.permute.xlu0 %2725
      %2729 = vset.pattern.permute.xlu0 0
      %2730 = vperm.xlu0 %2729, %v2696
      %v2731 = vpop.permute.xlu0 %2730
      %2734 = vset.pattern.permute.xlu0 0
      %2735 = vperm.xlu0 %2734, %v2697
      %v2736 = vpop.permute.xlu0 %2735
      %v2770 = vunpack.c.l.b16 %v2594
      %v2771 = vunpack.c.h.b16 %v2594
      %v2772 = vunpack.c.l.b16 %v2595
      %v2773 = vunpack.c.h.b16 %v2595
      %v2774 = vunpack.c.l.b16 %v2596
      %v2775 = vunpack.c.h.b16 %v2596
      %v2776 = vunpack.c.l.b16 %v2597
      %v2777 = vunpack.c.h.b16 %v2597
      %v2778 = vunpack.c.l.b16 %v2598
      %v2779 = vunpack.c.h.b16 %v2598
      %v2780 = vunpack.c.l.b16 %v2599
      %v2781 = vunpack.c.h.b16 %v2599
      %v2782 = vunpack.c.l.b16 %v2600
      %v2783 = vunpack.c.h.b16 %v2600
      %v2784 = vunpack.c.l.b16 %v2601
      %v2785 = vunpack.c.h.b16 %v2601
      %v2786 = vunpack.c.l.b16 %v2602
      %v2787 = vunpack.c.h.b16 %v2602
      %v2788 = vunpack.c.l.b16 %v2603
      %v2789 = vunpack.c.h.b16 %v2603
      %v2790 = vunpack.c.l.b16 %v2604
      %v2791 = vunpack.c.h.b16 %v2604
      %v2792 = vunpack.c.l.b16 %v2605
      %v2793 = vunpack.c.h.b16 %v2605
      %v2794 = vunpack.c.l.b16 %v2606
      %v2795 = vunpack.c.h.b16 %v2606
      %v2796 = vunpack.c.l.b16 %v2607
      %v2797 = vunpack.c.h.b16 %v2607
      %v2798 = vunpack.c.l.b16 %v2608
      %v2799 = vunpack.c.h.b16 %v2608
      %v2800 = vunpack.c.l.b16 %v2609
      %v2801 = vunpack.c.h.b16 %v2609
      %v2802 = vunpack.c.l.b16 %v2610
      %v2803 = vunpack.c.h.b16 %v2610
      %v2804 = vunpack.c.l.b16 %v2611
      %v2805 = vunpack.c.h.b16 %v2611
      %v2806 = vunpack.c.l.b16 %v2612
      %v2807 = vunpack.c.h.b16 %v2612
      %v2808 = vunpack.c.l.b16 %v2613
      %v2809 = vunpack.c.h.b16 %v2613
      %v2810 = vunpack.c.l.b16 %v2614
      %v2811 = vunpack.c.h.b16 %v2614
      %v2812 = vunpack.c.l.b16 %v2615
      %v2813 = vunpack.c.h.b16 %v2615
      %v2814 = vunpack.c.l.b16 %v2616
      %v2815 = vunpack.c.h.b16 %v2616
      %v2816 = vunpack.c.l.b16 %v2617
      %v2817 = vunpack.c.h.b16 %v2617
      %v2818 = vunpack.c.l.b16 %v2618
      %v2819 = vunpack.c.h.b16 %v2618
      %v2820 = vunpack.c.l.b16 %v2619
      %v2821 = vunpack.c.h.b16 %v2619
      %v2822 = vunpack.c.l.b16 %v2620
      %v2823 = vunpack.c.h.b16 %v2620
      %v2824 = vunpack.c.l.b16 %v2621
      %v2825 = vunpack.c.h.b16 %v2621
      %v2826 = vunpack.c.l.b16 %v2622
      %v2827 = vunpack.c.h.b16 %v2622
      %v2828 = vunpack.c.l.b16 %v2623
      %v2829 = vunpack.c.h.b16 %v2623
      %v2830 = vunpack.c.l.b16 %v2624
      %v2831 = vunpack.c.h.b16 %v2624
      %v2832 = vunpack.c.l.b16 %v2625
      %v2833 = vunpack.c.h.b16 %v2625
      %v2834 = vpack.c.b16 %v2778, %v2770
      %v2835 = vpack.c.b16 %v2779, %v2771
      %v2836 = vpack.c.b16 %v2780, %v2772
      %v2837 = vpack.c.b16 %v2781, %v2773
      %v2838 = vpack.c.b16 %v2782, %v2774
      %v2839 = vpack.c.b16 %v2783, %v2775
      %v2840 = vpack.c.b16 %v2784, %v2776
      %v2841 = vpack.c.b16 %v2785, %v2777
      %v2842 = vpack.c.b16 %v2794, %v2786
      %v2843 = vpack.c.b16 %v2795, %v2787
      %v2844 = vpack.c.b16 %v2796, %v2788
      %v2845 = vpack.c.b16 %v2797, %v2789
      %v2846 = vpack.c.b16 %v2798, %v2790
      %v2847 = vpack.c.b16 %v2799, %v2791
      %v2848 = vpack.c.b16 %v2800, %v2792
      %v2849 = vpack.c.b16 %v2801, %v2793
      %v2850 = vpack.c.b16 %v2810, %v2802
      %v2851 = vpack.c.b16 %v2811, %v2803
      %v2852 = vpack.c.b16 %v2812, %v2804
      %v2853 = vpack.c.b16 %v2813, %v2805
      %v2854 = vpack.c.b16 %v2814, %v2806
      %v2855 = vpack.c.b16 %v2815, %v2807
      %v2856 = vpack.c.b16 %v2816, %v2808
      %v2857 = vpack.c.b16 %v2817, %v2809
      %v2858 = vpack.c.b16 %v2826, %v2818
      %v2859 = vpack.c.b16 %v2827, %v2819
      %v2860 = vpack.c.b16 %v2828, %v2820
      %v2861 = vpack.c.b16 %v2829, %v2821
      %v2862 = vpack.c.b16 %v2830, %v2822
      %v2863 = vpack.c.b16 %v2831, %v2823
      %v2864 = vpack.c.b16 %v2832, %v2824
      %v2865 = vpack.c.b16 %v2833, %v2825
      %2898 = vmatprep.subr.bf16.mxu0 0
      %2899 = vmatpush1.bf16.msra.mxu0 %v2626
      %2900 = vmatprep.subr.bf16.mxu0 0
      %2901 = vmatpush1.bf16.msra.mxu0 %v2627
      %2902 = vmatprep.subr.bf16.mxu0 0
      %2903 = vmatpush1.bf16.msra.mxu0 %v2628
      %2904 = vmatprep.subr.bf16.mxu0 0
      %2905 = vmatpush1.bf16.msra.mxu0 %v2629
      %2906 = vmatprep.subr.bf16.mxu0 0
      %2907 = vmatpush1.bf16.msra.mxu0 %v2630
      %2908 = vmatprep.subr.bf16.mxu0 0
      %2909 = vmatpush1.bf16.msra.mxu0 %v2631
      %2910 = vmatprep.subr.bf16.mxu0 0
      %2911 = vmatpush1.bf16.msra.mxu0 %v2632
      %2912 = vmatprep.subr.bf16.mxu0 0
      %2913 = vmatpush1.bf16.msra.mxu0 %v2633
      %2914 = vmatprep.subr.bf16.mxu0 0
      %2915 = vmatpush1.bf16.msra.mxu0 %v2634
      %2916 = vmatprep.subr.bf16.mxu0 0
      %2917 = vmatpush1.bf16.msra.mxu0 %v2635
      %2918 = vmatprep.subr.bf16.mxu0 0
      %2919 = vmatpush1.bf16.msra.mxu0 %v2636
      %2920 = vmatprep.subr.bf16.mxu0 0
      %2921 = vmatpush1.bf16.msra.mxu0 %v2637
      %2922 = vmatprep.subr.bf16.mxu0 0
      %2923 = vmatpush1.bf16.msra.mxu0 %v2638
      %2924 = vmatprep.subr.bf16.mxu0 0
      %2925 = vmatpush1.bf16.msra.mxu0 %v2639
      %2926 = vmatprep.subr.bf16.mxu0 0
      %2927 = vmatpush1.bf16.msra.mxu0 %v2640
      %2928 = vmatprep.subr.bf16.mxu0 0
      %2929 = vmatpush1.bf16.msra.mxu0 %v2641
      %2930 = vmatprep.mubr.bf16.mxu0 %v2835
      %2931 = vmatmul.mubr.bf16.gmra.mrb[0].mxu0 %v2834
      %v2932 = vpop.f32.mrb[0].mxu0
      %v2933 = vadd.f32 %v2701, %v2932
      %v2934 = vpop.f32.mrb[0].mxu0
      %v2935 = vpop.f32.mrb[0].mxu0
      %v2936 = vadd.f32 %v2706, %v2935
      %v2937 = vpop.f32.mrb[0].mxu0
      %2938 = vmatprep.mubr.bf16.mxu0 %v2843
      %2939 = vmatmul.mubr.bf16.gmra.mrb[0].mxu0 %v2842
      %v2940 = vpop.f32.mrb[0].mxu0
      %v2941 = vadd.f32 %v2711, %v2940
      %v2942 = vpop.f32.mrb[0].mxu0
      %v2943 = vpop.f32.mrb[0].mxu0
      %v2944 = vadd.f32 %v2716, %v2943
      %v2945 = vpop.f32.mrb[0].mxu0
      %2946 = vmatprep.mubr.bf16.mxu0 %v2851
      %2947 = vmatmul.mubr.bf16.gmra.mrb[0].mxu0 %v2850
      %v2948 = vpop.f32.mrb[0].mxu0
      %v2949 = vadd.f32 %v2721, %v2948
      %v2950 = vpop.f32.mrb[0].mxu0
      %v2951 = vpop.f32.mrb[0].mxu0
      %v2952 = vadd.f32 %v2726, %v2951
      %v2953 = vpop.f32.mrb[0].mxu0
      %2954 = vmatprep.mubr.bf16.mxu0 %v2859
      %2955 = vmatmul.mubr.bf16.gmra.mrb[0].mxu0 %v2858
      %v2956 = vpop.f32.mrb[0].mxu0
      %v2957 = vadd.f32 %v2731, %v2956
      %v2958 = vpop.f32.mrb[0].mxu0
      %v2959 = vpop.f32.mrb[0].mxu0
      %v2960 = vadd.f32 %v2736, %v2959
      %v2961 = vpop.f32.mrb[0].mxu0
      %2962 = vdwg.mxu0
      %2963 = vmatprep.subr.bf16.mxu0 0
      %2964 = vmatpush1.bf16.msra.mxu0 %v2642
      %2965 = vmatprep.subr.bf16.mxu0 0
      %2966 = vmatpush1.bf16.msra.mxu0 %v2643
      %2967 = vmatprep.subr.bf16.mxu0 0
      %2968 = vmatpush1.bf16.msra.mxu0 %v2644
      %2969 = vmatprep.subr.bf16.mxu0 0
      %2970 = vmatpush1.bf16.msra.mxu0 %v2645
      %2971 = vmatprep.subr.bf16.mxu0 0
      %2972 = vmatpush1.bf16.msra.mxu0 %v2646
      %2973 = vmatprep.subr.bf16.mxu0 0
      %2974 = vmatpush1.bf16.msra.mxu0 %v2647
      %2975 = vmatprep.subr.bf16.mxu0 0
      %2976 = vmatpush1.bf16.msra.mxu0 %v2648
      %2977 = vmatprep.subr.bf16.mxu0 0
      %2978 = vmatpush1.bf16.msra.mxu0 %v2649
      %2979 = vmatprep.subr.bf16.mxu0 0
      %2980 = vmatpush1.bf16.msra.mxu0 %v2650
      %2981 = vmatprep.subr.bf16.mxu0 0
      %2982 = vmatpush1.bf16.msra.mxu0 %v2651
      %2983 = vmatprep.subr.bf16.mxu0 0
      %2984 = vmatpush1.bf16.msra.mxu0 %v2652
      %2985 = vmatprep.subr.bf16.mxu0 0
      %2986 = vmatpush1.bf16.msra.mxu0 %v2653
      %2987 = vmatprep.subr.bf16.mxu0 0
      %2988 = vmatpush1.bf16.msra.mxu0 %v2654
      %2989 = vmatprep.subr.bf16.mxu0 0
      %2990 = vmatpush1.bf16.msra.mxu0 %v2655
      %2991 = vmatprep.subr.bf16.mxu0 0
      %2992 = vmatpush1.bf16.msra.mxu0 %v2656
      %2993 = vmatprep.subr.bf16.mxu0 0
      %2994 = vmatpush1.bf16.msra.mxu0 %v2657
      %2995 = vmatprep.mubr.bf16.mxu0 %v2837
      %2996 = vmatmul.mubr.bf16.gmra.mrb[0].mxu0 %v2836
      %v2997 = vpop.f32.mrb[0].mxu0
      %v2998 = vadd.f32 %v2933, %v2997
      %v2999 = vpop.f32.mrb[0].mxu0
      %v3000 = vpop.f32.mrb[0].mxu0
      %v3001 = vadd.f32 %v2936, %v3000
      %v3002 = vpop.f32.mrb[0].mxu0
      %3003 = vmatprep.mubr.bf16.mxu0 %v2845
      %3004 = vmatmul.mubr.bf16.gmra.mrb[0].mxu0 %v2844
      %v3005 = vpop.f32.mrb[0].mxu0
      %v3006 = vadd.f32 %v2941, %v3005
      %v3007 = vpop.f32.mrb[0].mxu0
      %v3008 = vpop.f32.mrb[0].mxu0
      %v3009 = vadd.f32 %v2944, %v3008
      %v3010 = vpop.f32.mrb[0].mxu0
      %3011 = vmatprep.mubr.bf16.mxu0 %v2853
      %3012 = vmatmul.mubr.bf16.gmra.mrb[0].mxu0 %v2852
      %v3013 = vpop.f32.mrb[0].mxu0
      %v3014 = vadd.f32 %v2949, %v3013
      %v3015 = vpop.f32.mrb[0].mxu0
      %v3016 = vpop.f32.mrb[0].mxu0
      %v3017 = vadd.f32 %v2952, %v3016
      %v3018 = vpop.f32.mrb[0].mxu0
      %3019 = vmatprep.mubr.bf16.mxu0 %v2861
      %3020 = vmatmul.mubr.bf16.gmra.mrb[0].mxu0 %v2860
      %v3021 = vpop.f32.mrb[0].mxu0
      %v3022 = vadd.f32 %v2957, %v3021
      %v3023 = vpop.f32.mrb[0].mxu0
      %v3024 = vpop.f32.mrb[0].mxu0
      %v3025 = vadd.f32 %v2960, %v3024
      %v3026 = vpop.f32.mrb[0].mxu0
      %3027 = vdwg.mxu0
      %3028 = vmatprep.subr.bf16.mxu0 0
      %3029 = vmatpush1.bf16.msra.mxu0 %v2658
      %3030 = vmatprep.subr.bf16.mxu0 0
      %3031 = vmatpush1.bf16.msra.mxu0 %v2659
      %3032 = vmatprep.subr.bf16.mxu0 0
      %3033 = vmatpush1.bf16.msra.mxu0 %v2660
      %3034 = vmatprep.subr.bf16.mxu0 0
      %3035 = vmatpush1.bf16.msra.mxu0 %v2661
      %3036 = vmatprep.subr.bf16.mxu0 0
      %3037 = vmatpush1.bf16.msra.mxu0 %v2662
      %3038 = vmatprep.subr.bf16.mxu0 0
      %3039 = vmatpush1.bf16.msra.mxu0 %v2663
      %3040 = vmatprep.subr.bf16.mxu0 0
      %3041 = vmatpush1.bf16.msra.mxu0 %v2664
      %3042 = vmatprep.subr.bf16.mxu0 0
      %3043 = vmatpush1.bf16.msra.mxu0 %v2665
      %3044 = vmatprep.subr.bf16.mxu0 0
      %3045 = vmatpush1.bf16.msra.mxu0 %v2666
      %3046 = vmatprep.subr.bf16.mxu0 0
      %3047 = vmatpush1.bf16.msra.mxu0 %v2667
      %3048 = vmatprep.subr.bf16.mxu0 0
      %3049 = vmatpush1.bf16.msra.mxu0 %v2668
      %3050 = vmatprep.subr.bf16.mxu0 0
      %3051 = vmatpush1.bf16.msra.mxu0 %v2669
      %3052 = vmatprep.subr.bf16.mxu0 0
      %3053 = vmatpush1.bf16.msra.mxu0 %v2670
      %3054 = vmatprep.subr.bf16.mxu0 0
      %3055 = vmatpush1.bf16.msra.mxu0 %v2671
      %3056 = vmatprep.subr.bf16.mxu0 0
      %3057 = vmatpush1.bf16.msra.mxu0 %v2672
      %3058 = vmatprep.subr.bf16.mxu0 0
      %3059 = vmatpush1.bf16.msra.mxu0 %v2673
      %3060 = vmatprep.mubr.bf16.mxu0 %v2839
      %3061 = vmatmul.mubr.bf16.gmra.mrb[0].mxu0 %v2838
      %v3062 = vpop.f32.mrb[0].mxu0
      %v3063 = vadd.f32 %v2998, %v3062
      %v3064 = vpop.f32.mrb[0].mxu0
      %v3065 = vpop.f32.mrb[0].mxu0
      %v3066 = vadd.f32 %v3001, %v3065
      %v3067 = vpop.f32.mrb[0].mxu0
      %3068 = vmatprep.mubr.bf16.mxu0 %v2847
      %3069 = vmatmul.mubr.bf16.gmra.mrb[0].mxu0 %v2846
      %v3070 = vpop.f32.mrb[0].mxu0
      %v3071 = vadd.f32 %v3006, %v3070
      %v3072 = vpop.f32.mrb[0].mxu0
      %v3073 = vpop.f32.mrb[0].mxu0
      %v3074 = vadd.f32 %v3009, %v3073
      %v3075 = vpop.f32.mrb[0].mxu0
      %3076 = vmatprep.mubr.bf16.mxu0 %v2855
      %3077 = vmatmul.mubr.bf16.gmra.mrb[0].mxu0 %v2854
      %v3078 = vpop.f32.mrb[0].mxu0
      %v3079 = vadd.f32 %v3014, %v3078
      %v3080 = vpop.f32.mrb[0].mxu0
      %v3081 = vpop.f32.mrb[0].mxu0
      %v3082 = vadd.f32 %v3017, %v3081
      %v3083 = vpop.f32.mrb[0].mxu0
      %3084 = vmatprep.mubr.bf16.mxu0 %v2863
      %3085 = vmatmul.mubr.bf16.gmra.mrb[0].mxu0 %v2862
      %v3086 = vpop.f32.mrb[0].mxu0
      %v3087 = vadd.f32 %v3022, %v3086
      %v3088 = vpop.f32.mrb[0].mxu0
      %v3089 = vpop.f32.mrb[0].mxu0
      %v3090 = vadd.f32 %v3025, %v3089
      %v3091 = vpop.f32.mrb[0].mxu0
      %3092 = vdwg.mxu0
      %3093 = vmatprep.subr.bf16.mxu0 0
      %3094 = vmatpush1.bf16.msra.mxu0 %v2674
      %3095 = vmatprep.subr.bf16.mxu0 0
      %3096 = vmatpush1.bf16.msra.mxu0 %v2675
      %3097 = vmatprep.subr.bf16.mxu0 0
      %3098 = vmatpush1.bf16.msra.mxu0 %v2676
      %3099 = vmatprep.subr.bf16.mxu0 0
      %3100 = vmatpush1.bf16.msra.mxu0 %v2677
      %3101 = vmatprep.subr.bf16.mxu0 0
      %3102 = vmatpush1.bf16.msra.mxu0 %v2678
      %3103 = vmatprep.subr.bf16.mxu0 0
      %3104 = vmatpush1.bf16.msra.mxu0 %v2679
      %3105 = vmatprep.subr.bf16.mxu0 0
      %3106 = vmatpush1.bf16.msra.mxu0 %v2680
      %3107 = vmatprep.subr.bf16.mxu0 0
      %3108 = vmatpush1.bf16.msra.mxu0 %v2681
      %3109 = vmatprep.subr.bf16.mxu0 0
      %3110 = vmatpush1.bf16.msra.mxu0 %v2682
      %3111 = vmatprep.subr.bf16.mxu0 0
      %3112 = vmatpush1.bf16.msra.mxu0 %v2683
      %3113 = vmatprep.subr.bf16.mxu0 0
      %3114 = vmatpush1.bf16.msra.mxu0 %v2684
      %3115 = vmatprep.subr.bf16.mxu0 0
      %3116 = vmatpush1.bf16.msra.mxu0 %v2685
      %3117 = vmatprep.subr.bf16.mxu0 0
      %3118 = vmatpush1.bf16.msra.mxu0 %v2686
      %3119 = vmatprep.subr.bf16.mxu0 0
      %3120 = vmatpush1.bf16.msra.mxu0 %v2687
      %3121 = vmatprep.subr.bf16.mxu0 0
      %3122 = vmatpush1.bf16.msra.mxu0 %v2688
      %3123 = vmatprep.subr.bf16.mxu0 0
      %3124 = vmatpush1.bf16.msra.mxu0 %v2689
      %3125 = vmatprep.mubr.bf16.mxu0 %v2841
      %3126 = vmatmul.mubr.bf16.gmra.mrb[0].mxu0 %v2840
      %v3127 = vpop.f32.mrb[0].mxu0
      %v3128 = vadd.f32 %v3063, %v3127
      %v3129 = vpop.f32.mrb[0].mxu0
      %v3130 = vpop.f32.mrb[0].mxu0
      %v3131 = vadd.f32 %v3066, %v3130
      %v3132 = vpop.f32.mrb[0].mxu0
      %3133 = vmatprep.mubr.bf16.mxu0 %v2849
      %3134 = vmatmul.mubr.bf16.gmra.mrb[0].mxu0 %v2848
      %v3135 = vpop.f32.mrb[0].mxu0
      %v3136 = vadd.f32 %v3071, %v3135
      %v3137 = vpop.f32.mrb[0].mxu0
      %v3138 = vpop.f32.mrb[0].mxu0
      %v3139 = vadd.f32 %v3074, %v3138
      %v3140 = vpop.f32.mrb[0].mxu0
      %3141 = vmatprep.mubr.bf16.mxu0 %v2857
      %3142 = vmatmul.mubr.bf16.gmra.mrb[0].mxu0 %v2856
      %v3143 = vpop.f32.mrb[0].mxu0
      %v3144 = vadd.f32 %v3079, %v3143
      %v3145 = vpop.f32.mrb[0].mxu0
      %v3146 = vpop.f32.mrb[0].mxu0
      %v3147 = vadd.f32 %v3082, %v3146
      %v3148 = vpop.f32.mrb[0].mxu0
      %3149 = vmatprep.mubr.bf16.mxu0 %v2865
      %3150 = vmatmul.mubr.bf16.gmra.mrb[0].mxu0 %v2864
      %v3151 = vpop.f32.mrb[0].mxu0
      %v3152 = vadd.f32 %v3087, %v3151
      %v3153 = vpop.f32.mrb[0].mxu0
      %v3154 = vpop.f32.mrb[0].mxu0
      %v3155 = vadd.f32 %v3090, %v3154
      %v3156 = vpop.f32.mrb[0].mxu0
      %3157 = vdwg.mxu0
      %v3158 = vmax.f32 %v3128, 0.0
      %v3159 = vmax.f32 %v3131, 0.0
      %v3160 = vmax.f32 %v3136, 0.0
      %v3161 = vmax.f32 %v3139, 0.0
      %v3162 = vmax.f32 %v3144, 0.0
      %v3163 = vmax.f32 %v3147, 0.0
      %v3164 = vmax.f32 %v3152, 0.0
      %v3165 = vmax.f32 %v3155, 0.0
      %v3166 = vpack.c.bf16 %v3158, %v3158
      %3167 = vst.msk [vmem:[#allocation2] sm:$0xf] %vm353, %v3166
      %v3168 = vpack.c.bf16 %v3159, %v3159
      %v3170 = vrot.slane %v3168, 4
      %3172 = vst.msk [vmem:[#allocation2] sm:$0xf0] %vm374, %v3170
      %3174 = vrot.lane.b32.xlu0 %v3158, 127
      %v3175 = vpop.permute.xlu0 %3174
      %3177 = vrot.lane.b32.xlu0 %v3158, 63
      %v3178 = vpop.permute.xlu0 %3177
      %v3180 = vsel %vm362, %v3175, %v3178
      %v3181 = vld [vmem:[%s8 + $0xe] sm:$0x1]
      %v3182 = vlaneseq
      %v3183 = vshrl.u32 %v3182, 7
      %v3184 = vsub.s32 0, %v3183
      %v3185 = vrot.slane %v3181, %v3184
      %v3186 = vmul.f32 %v3180, %v3185
      %v3187 = vpack.c.bf16 %v3186, %v3186
      %3188 = vst.msk [vmem:[#allocation2 + $0x8] sm:$0xf] %vm353, %v3187
      %3190 = vrot.lane.b32.xlu0 %v3159, 65
      %v3191 = vpop.permute.xlu0 %3190
      %3193 = vrot.lane.b32.xlu0 %v3159, 1
      %v3194 = vpop.permute.xlu0 %3193
      %v3196 = vsel %vm711, %v3191, %v3194
      %v3197 = vld [vmem:[%s8 + $0xc] sm:$0x1]
      %v3198 = vlaneseq
      %v3199 = vshrl.u32 %v3198, 7
      %v3200 = vsub.s32 0, %v3199
      %v3201 = vrot.slane %v3197, %v3200
      %v3202 = vmul.f32 %v3196, %v3201
      %v3203 = vpack.c.bf16 %v3202, %v3202
      %v3205 = vrot.slane %v3203, 4
      %3207 = vst.msk [vmem:[#allocation2 + $0x8] sm:$0xf0] %vm374, %v3205
      %v3208 = vpack.c.bf16 %v3160, %v3160
      %3209 = vst.msk [vmem:[#allocation2 + $0x10] sm:$0xf] %vm353, %v3208
      %v3210 = vpack.c.bf16 %v3161, %v3161
      %v3212 = vrot.slane %v3210, 4
      %3214 = vst.msk [vmem:[#allocation2 + $0x10] sm:$0xf0] %vm374, %v3212
      %3216 = vrot.lane.b32.xlu0 %v3160, 127
      %v3217 = vpop.permute.xlu0 %3216
      %3219 = vrot.lane.b32.xlu0 %v3160, 63
      %v3220 = vpop.permute.xlu0 %3219
      %v3222 = vsel %vm362, %v3217, %v3220
      %v3223 = vld [vmem:[%s8 + $0xe] sm:$0x1]
      %v3224 = vlaneseq
      %v3225 = vshrl.u32 %v3224, 7
      %v3226 = vsub.s32 0, %v3225
      %v3227 = vrot.slane %v3223, %v3226
      %v3228 = vmul.f32 %v3222, %v3227
      %v3229 = vpack.c.bf16 %v3228, %v3228
      %3230 = vst.msk [vmem:[#allocation2 + $0x18] sm:$0xf] %vm353, %v3229
      %3232 = vrot.lane.b32.xlu0 %v3161, 65
      %v3233 = vpop.permute.xlu0 %3232
      %3235 = vrot.lane.b32.xlu0 %v3161, 1
      %v3236 = vpop.permute.xlu0 %3235
      %v3238 = vsel %vm711, %v3233, %v3236
      %v3239 = vld [vmem:[%s8 + $0xc] sm:$0x1]
      %v3240 = vlaneseq
      %v3241 = vshrl.u32 %v3240, 7
      %v3242 = vsub.s32 0, %v3241
      %v3243 = vrot.slane %v3239, %v3242
      %v3244 = vmul.f32 %v3238, %v3243
      %v3245 = vpack.c.bf16 %v3244, %v3244
      %v3247 = vrot.slane %v3245, 4
      %3249 = vst.msk [vmem:[#allocation2 + $0x18] sm:$0xf0] %vm374, %v3247
      %3250 = vrot.lane.b32.xlu0 %v3158, 124
      %v3251 = vpop.permute.xlu0 %3250
      %3253 = vrot.lane.b32.xlu0 %v3158, 60
      %v3254 = vpop.permute.xlu0 %3253
      %v3256 = vsel %vm382, %v3251, %v3254
      %v3257 = vld [vmem:[%s8 + $0x10] sm:$0x1]
      %v3258 = vlaneseq
      %v3259 = vshrl.u32 %v3258, 7
      %v3260 = vsub.s32 0, %v3259
      %v3261 = vrot.slane %v3257, %v3260
      %v3262 = vmul.f32 %v3256, %v3261
      %v3263 = vpack.c.bf16 %v3262, %v3262
      %3264 = vst.msk [vmem:[#allocation2 + $0x20] sm:$0xf] %vm353, %v3263
      %3265 = vrot.lane.b32.xlu0 %v3159, 124
      %v3266 = vpop.permute.xlu0 %3265
      %3268 = vrot.lane.b32.xlu0 %v3159, 60
      %v3269 = vpop.permute.xlu0 %3268
      %v3271 = vsel %vm382, %v3266, %v3269
      %v3272 = vld [vmem:[%s8 + $0x10] sm:$0x1]
      %v3273 = vlaneseq
      %v3274 = vshrl.u32 %v3273, 7
      %v3275 = vsub.s32 0, %v3274
      %v3276 = vrot.slane %v3272, %v3275
      %v3277 = vmul.f32 %v3271, %v3276
      %v3278 = vpack.c.bf16 %v3277, %v3277
      %v3280 = vrot.slane %v3278, 4
      %3282 = vst.msk [vmem:[#allocation2 + $0x20] sm:$0xf0] %vm374, %v3280
      %3283 = vrot.lane.b32.xlu0 %v3158, 123
      %v3284 = vpop.permute.xlu0 %3283
      %3286 = vrot.lane.b32.xlu0 %v3158, 59
      %v3287 = vpop.permute.xlu0 %3286
      %v3289 = vsel %vm398, %v3284, %v3287
      %v3290 = vld [vmem:[%s8 + $0x11] sm:$0x1]
      %v3291 = vlaneseq
      %v3292 = vshrl.u32 %v3291, 7
      %v3293 = vsub.s32 0, %v3292
      %v3294 = vrot.slane %v3290, %v3293
      %v3295 = vmul.f32 %v3289, %v3294
      %v3296 = vpack.c.bf16 %v3295, %v3295
      %3297 = vst.msk [vmem:[#allocation2 + $0x28] sm:$0xf] %vm353, %v3296
      %3298 = vrot.lane.b32.xlu0 %v3159, 125
      %v3299 = vpop.permute.xlu0 %3298
      %3301 = vrot.lane.b32.xlu0 %v3159, 61
      %v3302 = vpop.permute.xlu0 %3301
      %v3304 = vsel %vm929, %v3299, %v3302
      %v3305 = vld [vmem:[%s8 + $0xf] sm:$0x1]
      %v3306 = vlaneseq
      %v3307 = vshrl.u32 %v3306, 7
      %v3308 = vsub.s32 0, %v3307
      %v3309 = vrot.slane %v3305, %v3308
      %v3310 = vmul.f32 %v3304, %v3309
      %v3311 = vpack.c.bf16 %v3310, %v3310
      %v3313 = vrot.slane %v3311, 4
      %3315 = vst.msk [vmem:[#allocation2 + $0x28] sm:$0xf0] %vm374, %v3313
      %3316 = vrot.lane.b32.xlu0 %v3160, 68
      %v3317 = vpop.permute.xlu0 %3316
      %3319 = vrot.lane.b32.xlu0 %v3160, 4
      %v3320 = vpop.permute.xlu0 %3319
      %v3322 = vsel %vm963, %v3317, %v3320
      %v3323 = vld [vmem:[%s8 + $0xa] sm:$0x1]
      %v3324 = vlaneseq
      %v3325 = vshrl.u32 %v3324, 7
      %v3326 = vsub.s32 0, %v3325
      %v3327 = vrot.slane %v3323, %v3326
      %v3328 = vmul.f32 %v3322, %v3327
      %v3329 = vpack.c.bf16 %v3328, %v3328
      %3330 = vst.msk [vmem:[#allocation2 + $0x30] sm:$0xf] %vm353, %v3329
      %3331 = vrot.lane.b32.xlu0 %v3161, 68
      %v3332 = vpop.permute.xlu0 %3331
      %3334 = vrot.lane.b32.xlu0 %v3161, 4
      %v3335 = vpop.permute.xlu0 %3334
      %v3337 = vsel %vm963, %v3332, %v3335
      %v3338 = vld [vmem:[%s8 + $0xa] sm:$0x1]
      %v3339 = vlaneseq
      %v3340 = vshrl.u32 %v3339, 7
      %v3341 = vsub.s32 0, %v3340
      %v3342 = vrot.slane %v3338, %v3341
      %v3343 = vmul.f32 %v3337, %v3342
      %v3344 = vpack.c.bf16 %v3343, %v3343
      %v3346 = vrot.slane %v3344, 4
      %3348 = vst.msk [vmem:[#allocation2 + $0x30] sm:$0xf0] %vm374, %v3346
      %3349 = vrot.lane.b32.xlu0 %v3160, 67
      %v3350 = vpop.permute.xlu0 %3349
      %3352 = vrot.lane.b32.xlu0 %v3160, 3
      %v3353 = vpop.permute.xlu0 %3352
      %v3355 = vsel %vm1030, %v3350, %v3353
      %v3356 = vld [vmem:[%s8 + $0xb] sm:$0x1]
      %v3357 = vlaneseq
      %v3358 = vshrl.u32 %v3357, 7
      %v3359 = vsub.s32 0, %v3358
      %v3360 = vrot.slane %v3356, %v3359
      %v3361 = vmul.f32 %v3355, %v3360
      %v3362 = vpack.c.bf16 %v3361, %v3361
      %3363 = vst.msk [vmem:[#allocation2 + $0x38] sm:$0xf] %vm353, %v3362
      %3364 = vrot.lane.b32.xlu0 %v3161, 69
      %v3365 = vpop.permute.xlu0 %3364
      %3367 = vrot.lane.b32.xlu0 %v3161, 5
      %v3368 = vpop.permute.xlu0 %3367
      %v3370 = vsel %vm1064, %v3365, %v3368
      %v3371 = vld [vmem:[%s8 + $0x9] sm:$0x1]
      %v3372 = vlaneseq
      %v3373 = vshrl.u32 %v3372, 7
      %v3374 = vsub.s32 0, %v3373
      %v3375 = vrot.slane %v3371, %v3374
      %v3376 = vmul.f32 %v3370, %v3375
      %v3377 = vpack.c.bf16 %v3376, %v3376
      %v3379 = vrot.slane %v3377, 4
      %3381 = vst.msk [vmem:[#allocation2 + $0x38] sm:$0xf0] %vm374, %v3379
      %v3382 = vpack.c.bf16 %v3162, %v3162
      %3383 = vst.msk [vmem:[#allocation2 + $0x40] sm:$0xf] %vm353, %v3382
      %v3384 = vpack.c.bf16 %v3163, %v3163
      %v3386 = vrot.slane %v3384, 4
      %3388 = vst.msk [vmem:[#allocation2 + $0x40] sm:$0xf0] %vm374, %v3386
      %3390 = vrot.lane.b32.xlu0 %v3162, 127
      %v3391 = vpop.permute.xlu0 %3390
      %3393 = vrot.lane.b32.xlu0 %v3162, 63
      %v3394 = vpop.permute.xlu0 %3393
      %v3396 = vsel %vm362, %v3391, %v3394
      %v3397 = vld [vmem:[%s8 + $0xe] sm:$0x1]
      %v3398 = vlaneseq
      %v3399 = vshrl.u32 %v3398, 7
      %v3400 = vsub.s32 0, %v3399
      %v3401 = vrot.slane %v3397, %v3400
      %v3402 = vmul.f32 %v3396, %v3401
      %v3403 = vpack.c.bf16 %v3402, %v3402
      %3404 = vst.msk [vmem:[#allocation2 + $0x48] sm:$0xf] %vm353, %v3403
      %3406 = vrot.lane.b32.xlu0 %v3163, 65
      %v3407 = vpop.permute.xlu0 %3406
      %3409 = vrot.lane.b32.xlu0 %v3163, 1
      %v3410 = vpop.permute.xlu0 %3409
      %v3412 = vsel %vm711, %v3407, %v3410
      %v3413 = vld [vmem:[%s8 + $0xc] sm:$0x1]
      %v3414 = vlaneseq
      %v3415 = vshrl.u32 %v3414, 7
      %v3416 = vsub.s32 0, %v3415
      %v3417 = vrot.slane %v3413, %v3416
      %v3418 = vmul.f32 %v3412, %v3417
      %v3419 = vpack.c.bf16 %v3418, %v3418
      %v3421 = vrot.slane %v3419, 4
      %3423 = vst.msk [vmem:[#allocation2 + $0x48] sm:$0xf0] %vm374, %v3421
      %v3424 = vpack.c.bf16 %v3164, %v3164
      %3425 = vst.msk [vmem:[#allocation2 + $0x50] sm:$0xf] %vm353, %v3424
      %v3426 = vpack.c.bf16 %v3165, %v3165
      %v3428 = vrot.slane %v3426, 4
      %3430 = vst.msk [vmem:[#allocation2 + $0x50] sm:$0xf0] %vm374, %v3428
      %3432 = vrot.lane.b32.xlu0 %v3164, 127
      %v3433 = vpop.permute.xlu0 %3432
      %3435 = vrot.lane.b32.xlu0 %v3164, 63
      %v3436 = vpop.permute.xlu0 %3435
      %v3438 = vsel %vm362, %v3433, %v3436
      %v3439 = vld [vmem:[%s8 + $0xe] sm:$0x1]
      %v3440 = vlaneseq
      %v3441 = vshrl.u32 %v3440, 7
      %v3442 = vsub.s32 0, %v3441
      %v3443 = vrot.slane %v3439, %v3442
      %v3444 = vmul.f32 %v3438, %v3443
      %v3445 = vpack.c.bf16 %v3444, %v3444
      %3446 = vst.msk [vmem:[#allocation2 + $0x58] sm:$0xf] %vm353, %v3445
      %3448 = vrot.lane.b32.xlu0 %v3165, 65
      %v3449 = vpop.permute.xlu0 %3448
      %3451 = vrot.lane.b32.xlu0 %v3165, 1
      %v3452 = vpop.permute.xlu0 %3451
      %v3454 = vsel %vm711, %v3449, %v3452
      %v3455 = vld [vmem:[%s8 + $0xc] sm:$0x1]
      %v3456 = vlaneseq
      %v3457 = vshrl.u32 %v3456, 7
      %v3458 = vsub.s32 0, %v3457
      %v3459 = vrot.slane %v3455, %v3458
      %v3460 = vmul.f32 %v3454, %v3459
      %v3461 = vpack.c.bf16 %v3460, %v3460
      %v3463 = vrot.slane %v3461, 4
      %3465 = vst.msk [vmem:[#allocation2 + $0x58] sm:$0xf0] %vm374, %v3463
      %3466 = vrot.lane.b32.xlu0 %v3162, 124
      %v3467 = vpop.permute.xlu0 %3466
      %3469 = vrot.lane.b32.xlu0 %v3162, 60
      %v3470 = vpop.permute.xlu0 %3469
      %v3472 = vsel %vm382, %v3467, %v3470
      %v3473 = vld [vmem:[%s8 + $0x10] sm:$0x1]
      %v3474 = vlaneseq
      %v3475 = vshrl.u32 %v3474, 7
      %v3476 = vsub.s32 0, %v3475
      %v3477 = vrot.slane %v3473, %v3476
      %v3478 = vmul.f32 %v3472, %v3477
      %v3479 = vpack.c.bf16 %v3478, %v3478
      %3480 = vst.msk [vmem:[#allocation2 + $0x60] sm:$0xf] %vm353, %v3479
      %3481 = vrot.lane.b32.xlu0 %v3163, 124
      %v3482 = vpop.permute.xlu0 %3481
      %3484 = vrot.lane.b32.xlu0 %v3163, 60
      %v3485 = vpop.permute.xlu0 %3484
      %v3487 = vsel %vm382, %v3482, %v3485
      %v3488 = vld [vmem:[%s8 + $0x10] sm:$0x1]
      %v3489 = vlaneseq
      %v3490 = vshrl.u32 %v3489, 7
      %v3491 = vsub.s32 0, %v3490
      %v3492 = vrot.slane %v3488, %v3491
      %v3493 = vmul.f32 %v3487, %v3492
      %v3494 = vpack.c.bf16 %v3493, %v3493
      %v3496 = vrot.slane %v3494, 4
      %3498 = vst.msk [vmem:[#allocation2 + $0x60] sm:$0xf0] %vm374, %v3496
      %3499 = vrot.lane.b32.xlu0 %v3162, 123
      %v3500 = vpop.permute.xlu0 %3499
      %3502 = vrot.lane.b32.xlu0 %v3162, 59
      %v3503 = vpop.permute.xlu0 %3502
      %v3505 = vsel %vm398, %v3500, %v3503
      %v3506 = vld [vmem:[%s8 + $0x11] sm:$0x1]
      %v3507 = vlaneseq
      %v3508 = vshrl.u32 %v3507, 7
      %v3509 = vsub.s32 0, %v3508
      %v3510 = vrot.slane %v3506, %v3509
      %v3511 = vmul.f32 %v3505, %v3510
      %v3512 = vpack.c.bf16 %v3511, %v3511
      %3513 = vst.msk [vmem:[#allocation2 + $0x68] sm:$0xf] %vm353, %v3512
      %3514 = vrot.lane.b32.xlu0 %v3163, 125
      %v3515 = vpop.permute.xlu0 %3514
      %3517 = vrot.lane.b32.xlu0 %v3163, 61
      %v3518 = vpop.permute.xlu0 %3517
      %v3520 = vsel %vm929, %v3515, %v3518
      %v3521 = vld [vmem:[%s8 + $0xf] sm:$0x1]
      %v3522 = vlaneseq
      %v3523 = vshrl.u32 %v3522, 7
      %v3524 = vsub.s32 0, %v3523
      %v3525 = vrot.slane %v3521, %v3524
      %v3526 = vmul.f32 %v3520, %v3525
      %v3527 = vpack.c.bf16 %v3526, %v3526
      %v3529 = vrot.slane %v3527, 4
      %3531 = vst.msk [vmem:[#allocation2 + $0x68] sm:$0xf0] %vm374, %v3529
      %3532 = vrot.lane.b32.xlu0 %v3164, 68
      %v3533 = vpop.permute.xlu0 %3532
      %3535 = vrot.lane.b32.xlu0 %v3164, 4
      %v3536 = vpop.permute.xlu0 %3535
      %v3538 = vsel %vm963, %v3533, %v3536
      %v3539 = vld [vmem:[%s8 + $0xa] sm:$0x1]
      %v3540 = vlaneseq
      %v3541 = vshrl.u32 %v3540, 7
      %v3542 = vsub.s32 0, %v3541
      %v3543 = vrot.slane %v3539, %v3542
      %v3544 = vmul.f32 %v3538, %v3543
      %v3545 = vpack.c.bf16 %v3544, %v3544
      %3546 = vst.msk [vmem:[#allocation2 + $0x70] sm:$0xf] %vm353, %v3545
      %3547 = vrot.lane.b32.xlu0 %v3165, 68
      %v3548 = vpop.permute.xlu0 %3547
      %3550 = vrot.lane.b32.xlu0 %v3165, 4
      %v3551 = vpop.permute.xlu0 %3550
      %v3553 = vsel %vm963, %v3548, %v3551
      %v3554 = vld [vmem:[%s8 + $0xa] sm:$0x1]
      %v3555 = vlaneseq
      %v3556 = vshrl.u32 %v3555, 7
      %v3557 = vsub.s32 0, %v3556
      %v3558 = vrot.slane %v3554, %v3557
      %v3559 = vmul.f32 %v3553, %v3558
      %v3560 = vpack.c.bf16 %v3559, %v3559
      %v3562 = vrot.slane %v3560, 4
      %3564 = vst.msk [vmem:[#allocation2 + $0x70] sm:$0xf0] %vm374, %v3562
      %3565 = vrot.lane.b32.xlu0 %v3164, 67
      %v3566 = vpop.permute.xlu0 %3565
      %3568 = vrot.lane.b32.xlu0 %v3164, 3
      %v3569 = vpop.permute.xlu0 %3568
      %v3571 = vsel %vm1030, %v3566, %v3569
      %v3572 = vld [vmem:[%s8 + $0xb] sm:$0x1]
      %v3573 = vlaneseq
      %v3574 = vshrl.u32 %v3573, 7
      %v3575 = vsub.s32 0, %v3574
      %v3576 = vrot.slane %v3572, %v3575
      %v3577 = vmul.f32 %v3571, %v3576
      %v3578 = vpack.c.bf16 %v3577, %v3577
      %3579 = vst.msk [vmem:[#allocation2 + $0x78] sm:$0xf] %vm353, %v3578
      %3580 = vrot.lane.b32.xlu0 %v3165, 69
      %v3581 = vpop.permute.xlu0 %3580
      %3583 = vrot.lane.b32.xlu0 %v3165, 5
      %v3584 = vpop.permute.xlu0 %3583
      %v3586 = vsel %vm1064, %v3581, %v3584
      %v3587 = vld [vmem:[%s8 + $0x9] sm:$0x1]
      %v3588 = vlaneseq
      %v3589 = vshrl.u32 %v3588, 7
      %v3590 = vsub.s32 0, %v3589
      %v3591 = vrot.slane %v3587, %v3590
      %v3592 = vmul.f32 %v3586, %v3591
      %v3593 = vpack.c.bf16 %v3592, %v3592
      %v3595 = vrot.slane %v3593, 4
      %3597 = vst.msk [vmem:[#allocation2 + $0x78] sm:$0xf0] %vm374, %v3595
      %3598 = vrot.lane.b32.xlu0 %v3158, 112
      %v3599 = vpop.permute.xlu0 %3598
      %3601 = vrot.lane.b32.xlu0 %v3158, 48
      %v3602 = vpop.permute.xlu0 %3601
      %v3604 = vsel %vm417, %v3599, %v3602
      %v3605 = vld [vmem:[%s8 + $0x16] sm:$0x1]
      %v3606 = vlaneseq
      %v3607 = vshrl.u32 %v3606, 7
      %v3608 = vsub.s32 0, %v3607
      %v3609 = vrot.slane %v3605, %v3608
      %v3610 = vmul.f32 %v3604, %v3609
      %v3611 = vpack.c.bf16 %v3610, %v3610
      %3612 = vst.msk [vmem:[#allocation2 + $0x80] sm:$0xf] %vm353, %v3611
      %3613 = vrot.lane.b32.xlu0 %v3159, 112
      %v3614 = vpop.permute.xlu0 %3613
      %3616 = vrot.lane.b32.xlu0 %v3159, 48
      %v3617 = vpop.permute.xlu0 %3616
      %v3619 = vsel %vm417, %v3614, %v3617
      %v3620 = vld [vmem:[%s8 + $0x16] sm:$0x1]
      %v3621 = vlaneseq
      %v3622 = vshrl.u32 %v3621, 7
      %v3623 = vsub.s32 0, %v3622
      %v3624 = vrot.slane %v3620, %v3623
      %v3625 = vmul.f32 %v3619, %v3624
      %v3626 = vpack.c.bf16 %v3625, %v3625
      %v3628 = vrot.slane %v3626, 4
      %3630 = vst.msk [vmem:[#allocation2 + $0x80] sm:$0xf0] %vm374, %v3628
      %3631 = vrot.lane.b32.xlu0 %v3158, 111
      %v3632 = vpop.permute.xlu0 %3631
      %3634 = vrot.lane.b32.xlu0 %v3158, 47
      %v3635 = vpop.permute.xlu0 %3634
      %v3637 = vsel %vm433, %v3632, %v3635
      %v3638 = vld [vmem:[%s8 + $0x17] sm:$0x1]
      %v3639 = vlaneseq
      %v3640 = vshrl.u32 %v3639, 7
      %v3641 = vsub.s32 0, %v3640
      %v3642 = vrot.slane %v3638, %v3641
      %v3643 = vmul.f32 %v3637, %v3642
      %v3644 = vpack.c.bf16 %v3643, %v3643
      %3645 = vst.msk [vmem:[#allocation2 + $0x88] sm:$0xf] %vm353, %v3644
      %3646 = vrot.lane.b32.xlu0 %v3159, 113
      %v3647 = vpop.permute.xlu0 %3646
      %3649 = vrot.lane.b32.xlu0 %v3159, 49
      %v3650 = vpop.permute.xlu0 %3649
      %v3652 = vsel %vm1629, %v3647, %v3650
      %v3653 = vld [vmem:[%s8 + $0x15] sm:$0x1]
      %v3654 = vlaneseq
      %v3655 = vshrl.u32 %v3654, 7
      %v3656 = vsub.s32 0, %v3655
      %v3657 = vrot.slane %v3653, %v3656
      %v3658 = vmul.f32 %v3652, %v3657
      %v3659 = vpack.c.bf16 %v3658, %v3658
      %v3661 = vrot.slane %v3659, 4
      %3663 = vst.msk [vmem:[#allocation2 + $0x88] sm:$0xf0] %vm374, %v3661
      %3664 = vrot.lane.b32.xlu0 %v3160, 112
      %v3665 = vpop.permute.xlu0 %3664
      %3667 = vrot.lane.b32.xlu0 %v3160, 48
      %v3668 = vpop.permute.xlu0 %3667
      %v3670 = vsel %vm417, %v3665, %v3668
      %v3671 = vld [vmem:[%s8 + $0x16] sm:$0x1]
      %v3672 = vlaneseq
      %v3673 = vshrl.u32 %v3672, 7
      %v3674 = vsub.s32 0, %v3673
      %v3675 = vrot.slane %v3671, %v3674
      %v3676 = vmul.f32 %v3670, %v3675
      %v3677 = vpack.c.bf16 %v3676, %v3676
      %3678 = vst.msk [vmem:[#allocation2 + $0x90] sm:$0xf] %vm353, %v3677
      %3679 = vrot.lane.b32.xlu0 %v3161, 112
      %v3680 = vpop.permute.xlu0 %3679
      %3682 = vrot.lane.b32.xlu0 %v3161, 48
      %v3683 = vpop.permute.xlu0 %3682
      %v3685 = vsel %vm417, %v3680, %v3683
      %v3686 = vld [vmem:[%s8 + $0x16] sm:$0x1]
      %v3687 = vlaneseq
      %v3688 = vshrl.u32 %v3687, 7
      %v3689 = vsub.s32 0, %v3688
      %v3690 = vrot.slane %v3686, %v3689
      %v3691 = vmul.f32 %v3685, %v3690
      %v3692 = vpack.c.bf16 %v3691, %v3691
      %v3694 = vrot.slane %v3692, 4
      %3696 = vst.msk [vmem:[#allocation2 + $0x90] sm:$0xf0] %vm374, %v3694
      %3697 = vrot.lane.b32.xlu0 %v3160, 111
      %v3698 = vpop.permute.xlu0 %3697
      %3700 = vrot.lane.b32.xlu0 %v3160, 47
      %v3701 = vpop.permute.xlu0 %3700
      %v3703 = vsel %vm433, %v3698, %v3701
      %v3704 = vld [vmem:[%s8 + $0x17] sm:$0x1]
      %v3705 = vlaneseq
      %v3706 = vshrl.u32 %v3705, 7
      %v3707 = vsub.s32 0, %v3706
      %v3708 = vrot.slane %v3704, %v3707
      %v3709 = vmul.f32 %v3703, %v3708
      %v3710 = vpack.c.bf16 %v3709, %v3709
      %3711 = vst.msk [vmem:[#allocation2 + $0x98] sm:$0xf] %vm353, %v3710
      %3712 = vrot.lane.b32.xlu0 %v3161, 113
      %v3713 = vpop.permute.xlu0 %3712
      %3715 = vrot.lane.b32.xlu0 %v3161, 49
      %v3716 = vpop.permute.xlu0 %3715
      %v3718 = vsel %vm1629, %v3713, %v3716
      %v3719 = vld [vmem:[%s8 + $0x15] sm:$0x1]
      %v3720 = vlaneseq
      %v3721 = vshrl.u32 %v3720, 7
      %v3722 = vsub.s32 0, %v3721
      %v3723 = vrot.slane %v3719, %v3722
      %v3724 = vmul.f32 %v3718, %v3723
      %v3725 = vpack.c.bf16 %v3724, %v3724
      %v3727 = vrot.slane %v3725, 4
      %3729 = vst.msk [vmem:[#allocation2 + $0x98] sm:$0xf0] %vm374, %v3727
      %3730 = vrot.lane.b32.xlu0 %v3158, 108
      %v3731 = vpop.permute.xlu0 %3730
      %3733 = vrot.lane.b32.xlu0 %v3158, 44
      %v3734 = vpop.permute.xlu0 %3733
      %v3736 = vsel %vm452, %v3731, %v3734
      %v3737 = vld [vmem:[%s8 + $0x19] sm:$0x1]
      %v3738 = vlaneseq
      %v3739 = vshrl.u32 %v3738, 7
      %v3740 = vsub.s32 0, %v3739
      %v3741 = vrot.slane %v3737, %v3740
      %v3742 = vmul.f32 %v3736, %v3741
      %v3743 = vpack.c.bf16 %v3742, %v3742
      %3744 = vst.msk [vmem:[#allocation2 + $0xa0] sm:$0xf] %vm353, %v3743
      %3745 = vrot.lane.b32.xlu0 %v3159, 108
      %v3746 = vpop.permute.xlu0 %3745
      %3748 = vrot.lane.b32.xlu0 %v3159, 44
      %v3749 = vpop.permute.xlu0 %3748
      %v3751 = vsel %vm452, %v3746, %v3749
      %v3752 = vld [vmem:[%s8 + $0x19] sm:$0x1]
      %v3753 = vlaneseq
      %v3754 = vshrl.u32 %v3753, 7
      %v3755 = vsub.s32 0, %v3754
      %v3756 = vrot.slane %v3752, %v3755
      %v3757 = vmul.f32 %v3751, %v3756
      %v3758 = vpack.c.bf16 %v3757, %v3757
      %v3760 = vrot.slane %v3758, 4
      %3762 = vst.msk [vmem:[#allocation2 + $0xa0] sm:$0xf0] %vm374, %v3760
      %3763 = vrot.lane.b32.xlu0 %v3158, 107
      %v3764 = vpop.permute.xlu0 %3763
      %3766 = vrot.lane.b32.xlu0 %v3158, 43
      %v3767 = vpop.permute.xlu0 %3766
      %v3769 = vsel %vm468, %v3764, %v3767
      %v3770 = vld [vmem:[%s8 + $0x1a] sm:$0x1]
      %v3771 = vlaneseq
      %v3772 = vshrl.u32 %v3771, 7
      %v3773 = vsub.s32 0, %v3772
      %v3774 = vrot.slane %v3770, %v3773
      %v3775 = vmul.f32 %v3769, %v3774
      %v3776 = vpack.c.bf16 %v3775, %v3775
      %3777 = vst.msk [vmem:[#allocation2 + $0xa8] sm:$0xf] %vm353, %v3776
      %3778 = vrot.lane.b32.xlu0 %v3159, 109
      %v3779 = vpop.permute.xlu0 %3778
      %3781 = vrot.lane.b32.xlu0 %v3159, 45
      %v3782 = vpop.permute.xlu0 %3781
      %v3784 = vsel %vm1894, %v3779, %v3782
      %v3785 = vld [vmem:[%s8 + $0x18] sm:$0x1]
      %v3786 = vlaneseq
      %v3787 = vshrl.u32 %v3786, 7
      %v3788 = vsub.s32 0, %v3787
      %v3789 = vrot.slane %v3785, %v3788
      %v3790 = vmul.f32 %v3784, %v3789
      %v3791 = vpack.c.bf16 %v3790, %v3790
      %v3793 = vrot.slane %v3791, 4
      %3795 = vst.msk [vmem:[#allocation2 + $0xa8] sm:$0xf0] %vm374, %v3793
      %3796 = vrot.lane.b32.xlu0 %v3160, 116
      %v3797 = vpop.permute.xlu0 %3796
      %3799 = vrot.lane.b32.xlu0 %v3160, 52
      %v3800 = vpop.permute.xlu0 %3799
      %v3802 = vsel %vm1928, %v3797, %v3800
      %v3803 = vld [vmem:[%s8 + $0x13] sm:$0x1]
      %v3804 = vlaneseq
      %v3805 = vshrl.u32 %v3804, 7
      %v3806 = vsub.s32 0, %v3805
      %v3807 = vrot.slane %v3803, %v3806
      %v3808 = vmul.f32 %v3802, %v3807
      %v3809 = vpack.c.bf16 %v3808, %v3808
      %3810 = vst.msk [vmem:[#allocation2 + $0xb0] sm:$0xf] %vm353, %v3809
      %3811 = vrot.lane.b32.xlu0 %v3161, 116
      %v3812 = vpop.permute.xlu0 %3811
      %3814 = vrot.lane.b32.xlu0 %v3161, 52
      %v3815 = vpop.permute.xlu0 %3814
      %v3817 = vsel %vm1928, %v3812, %v3815
      %v3818 = vld [vmem:[%s8 + $0x13] sm:$0x1]
      %v3819 = vlaneseq
      %v3820 = vshrl.u32 %v3819, 7
      %v3821 = vsub.s32 0, %v3820
      %v3822 = vrot.slane %v3818, %v3821
      %v3823 = vmul.f32 %v3817, %v3822
      %v3824 = vpack.c.bf16 %v3823, %v3823
      %v3826 = vrot.slane %v3824, 4
      %3828 = vst.msk [vmem:[#allocation2 + $0xb0] sm:$0xf0] %vm374, %v3826
      %3829 = vrot.lane.b32.xlu0 %v3160, 115
      %v3830 = vpop.permute.xlu0 %3829
      %3832 = vrot.lane.b32.xlu0 %v3160, 51
      %v3833 = vpop.permute.xlu0 %3832
      %v3835 = vsel %vm1995, %v3830, %v3833
      %v3836 = vld [vmem:[%s8 + $0x14] sm:$0x1]
      %v3837 = vlaneseq
      %v3838 = vshrl.u32 %v3837, 7
      %v3839 = vsub.s32 0, %v3838
      %v3840 = vrot.slane %v3836, %v3839
      %v3841 = vmul.f32 %v3835, %v3840
      %v3842 = vpack.c.bf16 %v3841, %v3841
      %3843 = vst.msk [vmem:[#allocation2 + $0xb8] sm:$0xf] %vm353, %v3842
      %3844 = vrot.lane.b32.xlu0 %v3161, 117
      %v3845 = vpop.permute.xlu0 %3844
      %3847 = vrot.lane.b32.xlu0 %v3161, 53
      %v3848 = vpop.permute.xlu0 %3847
      %v3850 = vsel %vm2029, %v3845, %v3848
      %v3851 = vld [vmem:[%s8 + $0x12] sm:$0x1]
      %v3852 = vlaneseq
      %v3853 = vshrl.u32 %v3852, 7
      %v3854 = vsub.s32 0, %v3853
      %v3855 = vrot.slane %v3851, %v3854
      %v3856 = vmul.f32 %v3850, %v3855
      %v3857 = vpack.c.bf16 %v3856, %v3856
      %v3859 = vrot.slane %v3857, 4
      %3861 = vst.msk [vmem:[#allocation2 + $0xb8] sm:$0xf0] %vm374, %v3859
      %3862 = vrot.lane.b32.xlu0 %v3162, 80
      %v3863 = vpop.permute.xlu0 %3862
      %3865 = vrot.lane.b32.xlu0 %v3162, 16
      %v3866 = vpop.permute.xlu0 %3865
      %v3868 = vsel %vm2063, %v3863, %v3866
      %v3869 = vld [vmem:[%s8 + $0x4] sm:$0x1]
      %v3870 = vlaneseq
      %v3871 = vshrl.u32 %v3870, 7
      %v3872 = vsub.s32 0, %v3871
      %v3873 = vrot.slane %v3869, %v3872
      %v3874 = vmul.f32 %v3868, %v3873
      %v3875 = vpack.c.bf16 %v3874, %v3874
      %3876 = vst.msk [vmem:[#allocation2 + $0xc0] sm:$0xf] %vm353, %v3875
      %3877 = vrot.lane.b32.xlu0 %v3163, 80
      %v3878 = vpop.permute.xlu0 %3877
      %3880 = vrot.lane.b32.xlu0 %v3163, 16
      %v3881 = vpop.permute.xlu0 %3880
      %v3883 = vsel %vm2063, %v3878, %v3881
      %v3884 = vld [vmem:[%s8 + $0x4] sm:$0x1]
      %v3885 = vlaneseq
      %v3886 = vshrl.u32 %v3885, 7
      %v3887 = vsub.s32 0, %v3886
      %v3888 = vrot.slane %v3884, %v3887
      %v3889 = vmul.f32 %v3883, %v3888
      %v3890 = vpack.c.bf16 %v3889, %v3889
      %v3892 = vrot.slane %v3890, 4
      %3894 = vst.msk [vmem:[#allocation2 + $0xc0] sm:$0xf0] %vm374, %v3892
      %3895 = vrot.lane.b32.xlu0 %v3162, 79
      %v3896 = vpop.permute.xlu0 %3895
      %3898 = vrot.lane.b32.xlu0 %v3162, 15
      %v3899 = vpop.permute.xlu0 %3898
      %v3901 = vsel %vm2130, %v3896, %v3899
      %v3902 = vld [vmem:[%s8 + $0x5] sm:$0x1]
      %v3903 = vlaneseq
      %v3904 = vshrl.u32 %v3903, 7
      %v3905 = vsub.s32 0, %v3904
      %v3906 = vrot.slane %v3902, %v3905
      %v3907 = vmul.f32 %v3901, %v3906
      %v3908 = vpack.c.bf16 %v3907, %v3907
      %3909 = vst.msk [vmem:[#allocation2 + $0xc8] sm:$0xf] %vm353, %v3908
      %3910 = vrot.lane.b32.xlu0 %v3163, 81
      %v3911 = vpop.permute.xlu0 %3910
      %3913 = vrot.lane.b32.xlu0 %v3163, 17
      %v3914 = vpop.permute.xlu0 %3913
      %v3916 = vsel %vm2164, %v3911, %v3914
      %v3917 = vld [vmem:[%s8 + $0x3] sm:$0x1]
      %v3918 = vlaneseq
      %v3919 = vshrl.u32 %v3918, 7
      %v3920 = vsub.s32 0, %v3919
      %v3921 = vrot.slane %v3917, %v3920
      %v3922 = vmul.f32 %v3916, %v3921
      %v3923 = vpack.c.bf16 %v3922, %v3922
      %v3925 = vrot.slane %v3923, 4
      %3927 = vst.msk [vmem:[#allocation2 + $0xc8] sm:$0xf0] %vm374, %v3925
      %3928 = vrot.lane.b32.xlu0 %v3164, 80
      %v3929 = vpop.permute.xlu0 %3928
      %3931 = vrot.lane.b32.xlu0 %v3164, 16
      %v3932 = vpop.permute.xlu0 %3931
      %v3934 = vsel %vm2063, %v3929, %v3932
      %v3935 = vld [vmem:[%s8 + $0x4] sm:$0x1]
      %v3936 = vlaneseq
      %v3937 = vshrl.u32 %v3936, 7
      %v3938 = vsub.s32 0, %v3937
      %v3939 = vrot.slane %v3935, %v3938
      %v3940 = vmul.f32 %v3934, %v3939
      %v3941 = vpack.c.bf16 %v3940, %v3940
      %3942 = vst.msk [vmem:[#allocation2 + $0xd0] sm:$0xf] %vm353, %v3941
      %3943 = vrot.lane.b32.xlu0 %v3165, 80
      %v3944 = vpop.permute.xlu0 %3943
      %3946 = vrot.lane.b32.xlu0 %v3165, 16
      %v3947 = vpop.permute.xlu0 %3946
      %v3949 = vsel %vm2063, %v3944, %v3947
      %v3950 = vld [vmem:[%s8 + $0x4] sm:$0x1]
      %v3951 = vlaneseq
      %v3952 = vshrl.u32 %v3951, 7
      %v3953 = vsub.s32 0, %v3952
      %v3954 = vrot.slane %v3950, %v3953
      %v3955 = vmul.f32 %v3949, %v3954
      %v3956 = vpack.c.bf16 %v3955, %v3955
      %v3958 = vrot.slane %v3956, 4
      %3960 = vst.msk [vmem:[#allocation2 + $0xd0] sm:$0xf0] %vm374, %v3958
      %3961 = vrot.lane.b32.xlu0 %v3164, 79
      %v3962 = vpop.permute.xlu0 %3961
      %3964 = vrot.lane.b32.xlu0 %v3164, 15
      %v3965 = vpop.permute.xlu0 %3964
      %v3967 = vsel %vm2130, %v3962, %v3965
      %v3968 = vld [vmem:[%s8 + $0x5] sm:$0x1]
      %v3969 = vlaneseq
      %v3970 = vshrl.u32 %v3969, 7
      %v3971 = vsub.s32 0, %v3970
      %v3972 = vrot.slane %v3968, %v3971
      %v3973 = vmul.f32 %v3967, %v3972
      %v3974 = vpack.c.bf16 %v3973, %v3973
      %3975 = vst.msk [vmem:[#allocation2 + $0xd8] sm:$0xf] %vm353, %v3974
      %3976 = vrot.lane.b32.xlu0 %v3165, 81
      %v3977 = vpop.permute.xlu0 %3976
      %3979 = vrot.lane.b32.xlu0 %v3165, 17
      %v3980 = vpop.permute.xlu0 %3979
      %v3982 = vsel %vm2164, %v3977, %v3980
      %v3983 = vld [vmem:[%s8 + $0x3] sm:$0x1]
      %v3984 = vlaneseq
      %v3985 = vshrl.u32 %v3984, 7
      %v3986 = vsub.s32 0, %v3985
      %v3987 = vrot.slane %v3983, %v3986
      %v3988 = vmul.f32 %v3982, %v3987
      %v3989 = vpack.c.bf16 %v3988, %v3988
      %v3991 = vrot.slane %v3989, 4
      %3993 = vst.msk [vmem:[#allocation2 + $0xd8] sm:$0xf0] %vm374, %v3991
      %3994 = vrot.lane.b32.xlu0 %v3162, 76
      %v3995 = vpop.permute.xlu0 %3994
      %3997 = vrot.lane.b32.xlu0 %v3162, 12
      %v3998 = vpop.permute.xlu0 %3997
      %v4000 = vsel %vm2330, %v3995, %v3998
      %v4001 = vld [vmem:[%s8 + $0x7] sm:$0x1]
      %v4002 = vlaneseq
      %v4003 = vshrl.u32 %v4002, 7
      %v4004 = vsub.s32 0, %v4003
      %v4005 = vrot.slane %v4001, %v4004
      %v4006 = vmul.f32 %v4000, %v4005
      %v4007 = vpack.c.bf16 %v4006, %v4006
      %4008 = vst.msk [vmem:[#allocation2 + $0xe0] sm:$0xf] %vm353, %v4007
      %4009 = vrot.lane.b32.xlu0 %v3163, 76
      %v4010 = vpop.permute.xlu0 %4009
      %4012 = vrot.lane.b32.xlu0 %v3163, 12
      %v4013 = vpop.permute.xlu0 %4012
      %v4015 = vsel %vm2330, %v4010, %v4013
      %v4016 = vld [vmem:[%s8 + $0x7] sm:$0x1]
      %v4017 = vlaneseq
      %v4018 = vshrl.u32 %v4017, 7
      %v4019 = vsub.s32 0, %v4018
      %v4020 = vrot.slane %v4016, %v4019
      %v4021 = vmul.f32 %v4015, %v4020
      %v4022 = vpack.c.bf16 %v4021, %v4021
      %v4024 = vrot.slane %v4022, 4
      %4026 = vst.msk [vmem:[#allocation2 + $0xe0] sm:$0xf0] %vm374, %v4024
      %4027 = vrot.lane.b32.xlu0 %v3162, 75
      %v4028 = vpop.permute.xlu0 %4027
      %4030 = vrot.lane.b32.xlu0 %v3162, 11
      %v4031 = vpop.permute.xlu0 %4030
      %v4033 = vsel %vm2397, %v4028, %v4031
      %v4034 = vld [vmem:[%s8 + $0x8] sm:$0x1]
      %v4035 = vlaneseq
      %v4036 = vshrl.u32 %v4035, 7
      %v4037 = vsub.s32 0, %v4036
      %v4038 = vrot.slane %v4034, %v4037
      %v4039 = vmul.f32 %v4033, %v4038
      %v4040 = vpack.c.bf16 %v4039, %v4039
      %4041 = vst.msk [vmem:[#allocation2 + $0xe8] sm:$0xf] %vm353, %v4040
      %4042 = vrot.lane.b32.xlu0 %v3163, 77
      %v4043 = vpop.permute.xlu0 %4042
      %4045 = vrot.lane.b32.xlu0 %v3163, 13
      %v4046 = vpop.permute.xlu0 %4045
      %v4048 = vsel %vm2431, %v4043, %v4046
      %v4049 = vld [vmem:[%s8 + $0x6] sm:$0x1]
      %v4050 = vlaneseq
      %v4051 = vshrl.u32 %v4050, 7
      %v4052 = vsub.s32 0, %v4051
      %v4053 = vrot.slane %v4049, %v4052
      %v4054 = vmul.f32 %v4048, %v4053
      %v4055 = vpack.c.bf16 %v4054, %v4054
      %v4057 = vrot.slane %v4055, 4
      %4059 = vst.msk [vmem:[#allocation2 + $0xe8] sm:$0xf0] %vm374, %v4057
      %4060 = vrot.lane.b32.xlu0 %v3164, 84
      %v4061 = vpop.permute.xlu0 %4060
      %4063 = vrot.lane.b32.xlu0 %v3164, 20
      %v4064 = vpop.permute.xlu0 %4063
      %v4066 = vsel %vm2465, %v4061, %v4064
      %v4067 = vld [vmem:[%s8 + $0x1] sm:$0x1]
      %v4068 = vlaneseq
      %v4069 = vshrl.u32 %v4068, 7
      %v4070 = vsub.s32 0, %v4069
      %v4071 = vrot.slane %v4067, %v4070
      %v4072 = vmul.f32 %v4066, %v4071
      %v4073 = vpack.c.bf16 %v4072, %v4072
      %4074 = vst.msk [vmem:[#allocation2 + $0xf0] sm:$0xf] %vm353, %v4073
      %4075 = vrot.lane.b32.xlu0 %v3165, 84
      %v4076 = vpop.permute.xlu0 %4075
      %4078 = vrot.lane.b32.xlu0 %v3165, 20
      %v4079 = vpop.permute.xlu0 %4078
      %v4081 = vsel %vm2465, %v4076, %v4079
      %v4082 = vld [vmem:[%s8 + $0x1] sm:$0x1]
      %v4083 = vlaneseq
      %v4084 = vshrl.u32 %v4083, 7
      %v4085 = vsub.s32 0, %v4084
      %v4086 = vrot.slane %v4082, %v4085
      %v4087 = vmul.f32 %v4081, %v4086
      %v4088 = vpack.c.bf16 %v4087, %v4087
      %v4090 = vrot.slane %v4088, 4
      %4092 = vst.msk [vmem:[#allocation2 + $0xf0] sm:$0xf0] %vm374, %v4090
      %4093 = vrot.lane.b32.xlu0 %v3164, 83
      %v4094 = vpop.permute.xlu0 %4093
      %4096 = vrot.lane.b32.xlu0 %v3164, 19
      %v4097 = vpop.permute.xlu0 %4096
      %v4099 = vsel %vm2532, %v4094, %v4097
      %v4100 = vld [vmem:[%s8 + $0x2] sm:$0x1]
      %v4101 = vlaneseq
      %v4102 = vshrl.u32 %v4101, 7
      %v4103 = vsub.s32 0, %v4102
      %v4104 = vrot.slane %v4100, %v4103
      %v4105 = vmul.f32 %v4099, %v4104
      %v4106 = vpack.c.bf16 %v4105, %v4105
      %4107 = vst.msk [vmem:[#allocation2 + $0xf8] sm:$0xf] %vm353, %v4106
      %4108 = vrot.lane.b32.xlu0 %v3165, 85
      %v4109 = vpop.permute.xlu0 %4108
      %4111 = vrot.lane.b32.xlu0 %v3165, 21
      %v4112 = vpop.permute.xlu0 %4111
      %v4114 = vsel %vm2566, %v4109, %v4112
      %v4115 = vld [vmem:[%s8] sm:$0x1]
      %v4116 = vlaneseq
      %v4117 = vshrl.u32 %v4116, 7
      %v4118 = vsub.s32 0, %v4117
      %v4119 = vrot.slane %v4115, %v4118
      %v4120 = vmul.f32 %v4114, %v4119
      %v4121 = vpack.c.bf16 %v4120, %v4120
      %v4123 = vrot.slane %v4121, 4
      %4125 = vst.msk [vmem:[#allocation2 + $0xf8] sm:$0xf0] %vm374, %v4123
      %v4126 = vld [vmem:[%s4] sm:$0xff]
      %v4127 = vld [vmem:[%s4 + $0x8] sm:$0xff]
      %v4128 = vld [vmem:[%s4 + $0x10] sm:$0xff]
      %v4129 = vld [vmem:[%s4 + $0x18] sm:$0xff]
      %v4130 = vld [vmem:[%s4 + $0x20] sm:$0xff]
      %v4131 = vld [vmem:[%s4 + $0x28] sm:$0xff]
      %v4132 = vld [vmem:[%s4 + $0x30] sm:$0xff]
      %v4133 = vld [vmem:[%s4 + $0x38] sm:$0xff]
      %v4134 = vld [vmem:[%s4 + $0x40] sm:$0xff]
      %v4135 = vld [vmem:[%s4 + $0x48] sm:$0xff]
      %v4136 = vld [vmem:[%s4 + $0x50] sm:$0xff]
      %v4137 = vld [vmem:[%s4 + $0x58] sm:$0xff]
      %v4138 = vld [vmem:[%s4 + $0x60] sm:$0xff]
      %v4139 = vld [vmem:[%s4 + $0x68] sm:$0xff]
      %v4140 = vld [vmem:[%s4 + $0x70] sm:$0xff]
      %v4141 = vld [vmem:[%s4 + $0x78] sm:$0xff]
      %v4142 = vld [vmem:[#allocation2] sm:$0xff]
      %v4143 = vld [vmem:[#allocation2 + $0x8] sm:$0xff]
      %v4144 = vld [vmem:[#allocation2 + $0x10] sm:$0xff]
      %v4145 = vld [vmem:[#allocation2 + $0x18] sm:$0xff]
      %v4146 = vld [vmem:[#allocation2 + $0x20] sm:$0xff]
      %v4147 = vld [vmem:[#allocation2 + $0x28] sm:$0xff]
      %v4148 = vld [vmem:[#allocation2 + $0x30] sm:$0xff]
      %v4149 = vld [vmem:[#allocation2 + $0x38] sm:$0xff]
      %v4150 = vld [vmem:[#allocation2 + $0x40] sm:$0xff]
      %v4151 = vld [vmem:[#allocation2 + $0x48] sm:$0xff]
      %v4152 = vld [vmem:[#allocation2 + $0x50] sm:$0xff]
      %v4153 = vld [vmem:[#allocation2 + $0x58] sm:$0xff]
      %v4154 = vld [vmem:[#allocation2 + $0x60] sm:$0xff]
      %v4155 = vld [vmem:[#allocation2 + $0x68] sm:$0xff]
      %v4156 = vld [vmem:[#allocation2 + $0x70] sm:$0xff]
      %v4157 = vld [vmem:[#allocation2 + $0x78] sm:$0xff]
      %v4158 = vld [vmem:[#allocation2 + $0x80] sm:$0xff]
      %v4159 = vld [vmem:[#allocation2 + $0x88] sm:$0xff]
      %v4160 = vld [vmem:[#allocation2 + $0x90] sm:$0xff]
      %v4161 = vld [vmem:[#allocation2 + $0x98] sm:$0xff]
      %v4162 = vld [vmem:[#allocation2 + $0xa0] sm:$0xff]
      %v4163 = vld [vmem:[#allocation2 + $0xa8] sm:$0xff]
      %v4164 = vld [vmem:[#allocation2 + $0xb0] sm:$0xff]
      %v4165 = vld [vmem:[#allocation2 + $0xb8] sm:$0xff]
      %v4166 = vld [vmem:[#allocation2 + $0xc0] sm:$0xff]
      %v4167 = vld [vmem:[#allocation2 + $0xc8] sm:$0xff]
      %v4168 = vld [vmem:[#allocation2 + $0xd0] sm:$0xff]
      %v4169 = vld [vmem:[#allocation2 + $0xd8] sm:$0xff]
      %v4170 = vld [vmem:[#allocation2 + $0xe0] sm:$0xff]
      %v4171 = vld [vmem:[#allocation2 + $0xe8] sm:$0xff]
      %v4172 = vld [vmem:[#allocation2 + $0xf0] sm:$0xff]
      %v4173 = vld [vmem:[#allocation2 + $0xf8] sm:$0xff]
      %v4174 = vld [vmem:[%s7] sm:$0xff]
      %v4175 = vld [vmem:[%s7 + $0x8] sm:$0xff]
      %v4176 = vld [vmem:[%s7 + $0x10] sm:$0xff]
      %v4177 = vld [vmem:[%s7 + $0x18] sm:$0xff]
      %v4178 = vld [vmem:[%s7 + $0x20] sm:$0xff]
      %v4179 = vld [vmem:[%s7 + $0x28] sm:$0xff]
      %v4180 = vld [vmem:[%s7 + $0x30] sm:$0xff]
      %v4181 = vld [vmem:[%s7 + $0x38] sm:$0xff]
      %4183 = vset.pattern.permute.xlu0 0
      %4184 = vperm.xlu0 %4183, %v4174
      %v4185 = vpop.permute.xlu0 %4184
      %4188 = vset.pattern.permute.xlu0 0
      %4189 = vperm.xlu0 %4188, %v4175
      %v4190 = vpop.permute.xlu0 %4189
      %4193 = vset.pattern.permute.xlu0 0
      %4194 = vperm.xlu0 %4193, %v4176
      %v4195 = vpop.permute.xlu0 %4194
      %4198 = vset.pattern.permute.xlu0 0
      %4199 = vperm.xlu0 %4198, %v4177
      %v4200 = vpop.permute.xlu0 %4199
      %4203 = vset.pattern.permute.xlu0 0
      %4204 = vperm.xlu0 %4203, %v4178
      %v4205 = vpop.permute.xlu0 %4204
      %4208 = vset.pattern.permute.xlu0 0
      %4209 = vperm.xlu0 %4208, %v4179
      %v4210 = vpop.permute.xlu0 %4209
      %4213 = vset.pattern.permute.xlu0 0
      %4214 = vperm.xlu0 %4213, %v4180
      %v4215 = vpop.permute.xlu0 %4214
      %4218 = vset.pattern.permute.xlu0 0
      %4219 = vperm.xlu0 %4218, %v4181
      %v4220 = vpop.permute.xlu0 %4219
      %v4238 = vunpack.c.l.b16 %v4126
      %v4239 = vunpack.c.h.b16 %v4126
      %v4240 = vunpack.c.l.b16 %v4127
      %v4241 = vunpack.c.h.b16 %v4127
      %v4242 = vunpack.c.l.b16 %v4128
      %v4243 = vunpack.c.h.b16 %v4128
      %v4244 = vunpack.c.l.b16 %v4129
      %v4245 = vunpack.c.h.b16 %v4129
      %v4246 = vunpack.c.l.b16 %v4130
      %v4247 = vunpack.c.h.b16 %v4130
      %v4248 = vunpack.c.l.b16 %v4131
      %v4249 = vunpack.c.h.b16 %v4131
      %v4250 = vunpack.c.l.b16 %v4132
      %v4251 = vunpack.c.h.b16 %v4132
      %v4252 = vunpack.c.l.b16 %v4133
      %v4253 = vunpack.c.h.b16 %v4133
      %v4254 = vunpack.c.l.b16 %v4134
      %v4255 = vunpack.c.h.b16 %v4134
      %v4256 = vunpack.c.l.b16 %v4135
      %v4257 = vunpack.c.h.b16 %v4135
      %v4258 = vunpack.c.l.b16 %v4136
      %v4259 = vunpack.c.h.b16 %v4136
      %v4260 = vunpack.c.l.b16 %v4137
      %v4261 = vunpack.c.h.b16 %v4137
      %v4262 = vunpack.c.l.b16 %v4138
      %v4263 = vunpack.c.h.b16 %v4138
      %v4264 = vunpack.c.l.b16 %v4139
      %v4265 = vunpack.c.h.b16 %v4139
      %v4266 = vunpack.c.l.b16 %v4140
      %v4267 = vunpack.c.h.b16 %v4140
      %v4268 = vunpack.c.l.b16 %v4141
      %v4269 = vunpack.c.h.b16 %v4141
      %v4270 = vpack.c.b16 %v4242, %v4238
      %v4271 = vpack.c.b16 %v4243, %v4239
      %v4272 = vpack.c.b16 %v4244, %v4240
      %v4273 = vpack.c.b16 %v4245, %v4241
      %v4274 = vpack.c.b16 %v4250, %v4246
      %v4275 = vpack.c.b16 %v4251, %v4247
      %v4276 = vpack.c.b16 %v4252, %v4248
      %v4277 = vpack.c.b16 %v4253, %v4249
      %v4278 = vpack.c.b16 %v4258, %v4254
      %v4279 = vpack.c.b16 %v4259, %v4255
      %v4280 = vpack.c.b16 %v4260, %v4256
      %v4281 = vpack.c.b16 %v4261, %v4257
      %v4282 = vpack.c.b16 %v4266, %v4262
      %v4283 = vpack.c.b16 %v4267, %v4263
      %v4284 = vpack.c.b16 %v4268, %v4264
      %v4285 = vpack.c.b16 %v4269, %v4265
      %4302 = vmatprep.subr.bf16.mxu0 0
      %4303 = vmatpush1.bf16.msra.mxu0 %v4142
      %4304 = vmatprep.subr.bf16.mxu0 0
      %4305 = vmatpush1.bf16.msra.mxu0 %v4143
      %4306 = vmatprep.subr.bf16.mxu0 0
      %4307 = vmatpush1.bf16.msra.mxu0 %v4144
      %4308 = vmatprep.subr.bf16.mxu0 0
      %4309 = vmatpush1.bf16.msra.mxu0 %v4145
      %4310 = vmatprep.subr.bf16.mxu0 0
      %4311 = vmatpush1.bf16.msra.mxu0 %v4146
      %4312 = vmatprep.subr.bf16.mxu0 0
      %4313 = vmatpush1.bf16.msra.mxu0 %v4147
      %4314 = vmatprep.subr.bf16.mxu0 0
      %4315 = vmatpush1.bf16.msra.mxu0 %v4148
      %4316 = vmatprep.subr.bf16.mxu0 0
      %4317 = vmatpush1.bf16.msra.mxu0 %v4149
      %4318 = vmatprep.subr.bf16.mxu0 0
      %4319 = vmatpush1.bf16.msra.mxu0 %v4150
      %4320 = vmatprep.subr.bf16.mxu0 0
      %4321 = vmatpush1.bf16.msra.mxu0 %v4151
      %4322 = vmatprep.subr.bf16.mxu0 0
      %4323 = vmatpush1.bf16.msra.mxu0 %v4152
      %4324 = vmatprep.subr.bf16.mxu0 0
      %4325 = vmatpush1.bf16.msra.mxu0 %v4153
      %4326 = vmatprep.subr.bf16.mxu0 0
      %4327 = vmatpush1.bf16.msra.mxu0 %v4154
      %4328 = vmatprep.subr.bf16.mxu0 0
      %4329 = vmatpush1.bf16.msra.mxu0 %v4155
      %4330 = vmatprep.subr.bf16.mxu0 0
      %4331 = vmatpush1.bf16.msra.mxu0 %v4156
      %4332 = vmatprep.subr.bf16.mxu0 0
      %4333 = vmatpush1.bf16.msra.mxu0 %v4157
      %4334 = vmatprep.mubr.bf16.mxu0 %v4271
      %4335 = vmatmul.mubr.bf16.gmra.mrb[0].mxu0 %v4270
      %v4336 = vpop.f32.mrb[0].mxu0
      %v4337 = vadd.f32 %v4185, %v4336
      %v4338 = vpop.f32.mrb[0].mxu0
      %v4339 = vpop.f32.mrb[0].mxu0
      %v4340 = vadd.f32 %v4190, %v4339
      %v4341 = vpop.f32.mrb[0].mxu0
      %4342 = vmatprep.mubr.bf16.mxu0 %v4275
      %4343 = vmatmul.mubr.bf16.gmra.mrb[0].mxu0 %v4274
      %v4344 = vpop.f32.mrb[0].mxu0
      %v4345 = vadd.f32 %v4195, %v4344
      %v4346 = vpop.f32.mrb[0].mxu0
      %v4347 = vpop.f32.mrb[0].mxu0
      %v4348 = vadd.f32 %v4200, %v4347
      %v4349 = vpop.f32.mrb[0].mxu0
      %4350 = vmatprep.mubr.bf16.mxu0 %v4279
      %4351 = vmatmul.mubr.bf16.gmra.mrb[0].mxu0 %v4278
      %v4352 = vpop.f32.mrb[0].mxu0
      %v4353 = vadd.f32 %v4205, %v4352
      %v4354 = vpop.f32.mrb[0].mxu0
      %v4355 = vpop.f32.mrb[0].mxu0
      %v4356 = vadd.f32 %v4210, %v4355
      %v4357 = vpop.f32.mrb[0].mxu0
      %4358 = vmatprep.mubr.bf16.mxu0 %v4283
      %4359 = vmatmul.mubr.bf16.gmra.mrb[0].mxu0 %v4282
      %v4360 = vpop.f32.mrb[0].mxu0
      %v4361 = vadd.f32 %v4215, %v4360
      %v4362 = vpop.f32.mrb[0].mxu0
      %v4363 = vpop.f32.mrb[0].mxu0
      %v4364 = vadd.f32 %v4220, %v4363
      %v4365 = vpop.f32.mrb[0].mxu0
      %4366 = vdwg.mxu0
      %4367 = vmatprep.subr.bf16.mxu0 0
      %4368 = vmatpush1.bf16.msra.mxu0 %v4158
      %4369 = vmatprep.subr.bf16.mxu0 0
      %4370 = vmatpush1.bf16.msra.mxu0 %v4159
      %4371 = vmatprep.subr.bf16.mxu0 0
      %4372 = vmatpush1.bf16.msra.mxu0 %v4160
      %4373 = vmatprep.subr.bf16.mxu0 0
      %4374 = vmatpush1.bf16.msra.mxu0 %v4161
      %4375 = vmatprep.subr.bf16.mxu0 0
      %4376 = vmatpush1.bf16.msra.mxu0 %v4162
      %4377 = vmatprep.subr.bf16.mxu0 0
      %4378 = vmatpush1.bf16.msra.mxu0 %v4163
      %4379 = vmatprep.subr.bf16.mxu0 0
      %4380 = vmatpush1.bf16.msra.mxu0 %v4164
      %4381 = vmatprep.subr.bf16.mxu0 0
      %4382 = vmatpush1.bf16.msra.mxu0 %v4165
      %4383 = vmatprep.subr.bf16.mxu0 0
      %4384 = vmatpush1.bf16.msra.mxu0 %v4166
      %4385 = vmatprep.subr.bf16.mxu0 0
      %4386 = vmatpush1.bf16.msra.mxu0 %v4167
      %4387 = vmatprep.subr.bf16.mxu0 0
      %4388 = vmatpush1.bf16.msra.mxu0 %v4168
      %4389 = vmatprep.subr.bf16.mxu0 0
      %4390 = vmatpush1.bf16.msra.mxu0 %v4169
      %4391 = vmatprep.subr.bf16.mxu0 0
      %4392 = vmatpush1.bf16.msra.mxu0 %v4170
      %4393 = vmatprep.subr.bf16.mxu0 0
      %4394 = vmatpush1.bf16.msra.mxu0 %v4171
      %4395 = vmatprep.subr.bf16.mxu0 0
      %4396 = vmatpush1.bf16.msra.mxu0 %v4172
      %4397 = vmatprep.subr.bf16.mxu0 0
      %4398 = vmatpush1.bf16.msra.mxu0 %v4173
      %4399 = vmatprep.mubr.bf16.mxu0 %v4273
      %4400 = vmatmul.mubr.bf16.gmra.mrb[0].mxu0 %v4272
      %v4401 = vpop.f32.mrb[0].mxu0
      %v4402 = vadd.f32 %v4337, %v4401
      %v4403 = vpop.f32.mrb[0].mxu0
      %v4404 = vpop.f32.mrb[0].mxu0
      %v4405 = vadd.f32 %v4340, %v4404
      %v4406 = vpop.f32.mrb[0].mxu0
      %4407 = vmatprep.mubr.bf16.mxu0 %v4277
      %4408 = vmatmul.mubr.bf16.gmra.mrb[0].mxu0 %v4276
      %v4409 = vpop.f32.mrb[0].mxu0
      %v4410 = vadd.f32 %v4345, %v4409
      %v4411 = vpop.f32.mrb[0].mxu0
      %v4412 = vpop.f32.mrb[0].mxu0
      %v4413 = vadd.f32 %v4348, %v4412
      %v4414 = vpop.f32.mrb[0].mxu0
      %4415 = vmatprep.mubr.bf16.mxu0 %v4281
      %4416 = vmatmul.mubr.bf16.gmra.mrb[0].mxu0 %v4280
      %v4417 = vpop.f32.mrb[0].mxu0
      %v4418 = vadd.f32 %v4353, %v4417
      %v4419 = vpop.f32.mrb[0].mxu0
      %v4420 = vpop.f32.mrb[0].mxu0
      %v4421 = vadd.f32 %v4356, %v4420
      %v4422 = vpop.f32.mrb[0].mxu0
      %4423 = vmatprep.mubr.bf16.mxu0 %v4285
      %4424 = vmatmul.mubr.bf16.gmra.mrb[0].mxu0 %v4284
      %v4425 = vpop.f32.mrb[0].mxu0
      %v4426 = vadd.f32 %v4361, %v4425
      %v4427 = vpop.f32.mrb[0].mxu0
      %v4428 = vpop.f32.mrb[0].mxu0
      %v4429 = vadd.f32 %v4364, %v4428
      %v4430 = vpop.f32.mrb[0].mxu0
      %4431 = vdwg.mxu0
      %v4432 = vmax.f32 %v4402, 0.0
      %v4433 = vmax.f32 %v4405, 0.0
      %v4434 = vmax.f32 %v4410, 0.0
      %v4435 = vmax.f32 %v4413, 0.0
      %v4436 = vmax.f32 %v4418, 0.0
      %v4437 = vmax.f32 %v4421, 0.0
      %v4438 = vmax.f32 %v4426, 0.0
      %v4439 = vmax.f32 %v4429, 0.0
      %4440 = vst.msk [vmem:[%s349] sm:$0xff] %vm561, %v4432
      %4441 = vst.msk [vmem:[%s349 + $0x8] sm:$0xff] %vm561, %v4433
      %4442 = vst.msk [vmem:[%s349 + $0x10] sm:$0xff] %vm561, %v4434
      %4443 = vst.msk [vmem:[%s349 + $0x18] sm:$0xff] %vm561, %v4435
      %4444 = vst.msk [vmem:[%s349 + $0x20] sm:$0xff] %vm561, %v4436
      %4445 = vst.msk [vmem:[%s349 + $0x28] sm:$0xff] %vm561, %v4437
      %4446 = vst.msk [vmem:[%s349 + $0x30] sm:$0xff] %vm561, %v4438
      %4447 = vst.msk [vmem:[%s349 + $0x38] sm:$0xff] %vm561, %v4439
      %p4448 = scmp.lt.s32.totalorder %s20, 1
      %s4449 = scalar_select %p4448, %s20, 1
      %s4450 = smul.addr %s4449, 8
      %s4451 = smul.addr %s4450, 8
      %s4452 = scalar_lea.vmem %s9, %s4451
      // Predicated region
      $region57: #{upblock_forward.1} parent=55 // pred_check
        %p4453 = pneg %p237
      $region58: #{upblock_forward.1} parent=55 // pred_check_branch
        %4455 = sbr.rel (%p4453) target = $region60
      $region59: #{upblock_forward.1} parent=55 // pred_region
        _
      $region60: #{upblock_forward.1} parent=55 // pred_fallthru
        _
    $region56: #{upblock_forward.1} parent=5 // pred_fallthru
      _
    %p4456 = scmp.le.s32.totalorder 2, %s15
    // Predicated region
    $region61: #{upblock_forward.1} parent=5 // pred_check
      %p4457 = pneg %p4456
    $region62: #{upblock_forward.1} parent=5 // pred_check_branch
      %4459 = sbr.rel (%p4457) target = $region64
    $region63: #{upblock_forward.1} parent=5 // pred_region
      %s4460 = ssub.s32 %s15, 2
      // Predicated region
      $region65: #{upblock_forward.1} parent=63 // pred_check
        %p4461 = pneg %p243
      $region66: #{upblock_forward.1} parent=63 // pred_check_branch
        %4463 = sbr.rel (%p4461) target = $region68
      $region67: #{upblock_forward.1} parent=63 // pred_region
        %p4464 = scmp.lt.s32.totalorder %s21, 1
        %s4465 = scalar_select %p4464, %s21, 1
        %s4466 = smul.addr %s4465, 8
        %s4467 = smul.addr %s4466, 8
        %s4468 = scalar_lea.vmem %s9, %s4467
      $region68: #{upblock_forward.1} parent=63 // pred_fallthru
        _
    $region64: #{upblock_forward.1} parent=5 // pred_fallthru
      _
  $region6: #{upblock_forward.1} parent=0 // loop_footer
    %s19 = sadd.s32 1, %s15
  $region7: #{upblock_forward.1} parent=0 // loop_footer_branch
    %14 = sbr.rel target = $region3
  $region8: #{upblock_forward.1} parent=0 // loop_exit
    _

</llo_original>
